<compile_context>
chip_gen: v5e
topology: v5e:2x2
jax: 0.10.0
libtpu: 0.0.40
codegen_flags: <defaults>
</compile_context>

<pallas_src>
import functools

import jax
import jax.numpy as jnp
from jax.experimental import pallas as pl
from jax.experimental.pallas import tpu as pltpu

# ---- hyper-parameters from the PyTorch module ----
INPUT_SIZE = 19      # Conv2d in-channels
HIDDEN_SIZE = 64     # Conv2d out-channels == LSTM input feature size
LSTM_HIDDEN = 10
NUM_LAYERS = 2
NUM_CLASSES = 2
CONV_K = 64
CONV_PAD = 32
POOL = 4
BN_EPS = 1e-5

_HI = jax.lax.Precision.HIGHEST


# ----------------------------------------------------------------------------
# Fused kernel: conv(one bf16 matmul over all pool shifts) + BN + ELU + AvgPool
#               -> 2-layer LSTM (packed gates, hoisted input projection) -> FC
# ----------------------------------------------------------------------------
def _fused_kernel(xcol_ref, wconv_ref, scale_ref, shift_ref,
                  wih1_ref, whh1_ref, b1_ref,
                  wih2_ref, whh2_ref, b2_ref,
                  wfc_ref, bfc_ref, o_ref, *, T, B, Cout, LH):
    # ---- conv: all POOL shifts in ONE bf16 MXU matmul, f32 accumulation ----
    y = jnp.dot(xcol_ref[...], wconv_ref[...],
                preferred_element_type=jnp.float32)            # (T*B, POOL*Cout)
    y = y * scale_ref[...] + shift_ref[...]                    # BatchNorm (eval)
    y = jnp.where(y > 0, y, jnp.exp(jnp.minimum(y, 0.0)) - 1.0)  # ELU, safe exp
    seq = (y[:, 0 * Cout:1 * Cout] + y[:, 1 * Cout:2 * Cout]
           + y[:, 2 * Cout:3 * Cout] + y[:, 3 * Cout:4 * Cout]) * (1.0 / POOL)

    # ---- LSTM: layer-1 input projection hoisted out of the recurrence ----
    xproj1 = jnp.dot(seq, wih1_ref[...], precision=_HI,
                     preferred_element_type=jnp.float32) + b1_ref[...]  # (T*B, 4*LH)

    def gates(z):                                              # packed i|f|g|o
        return (jax.nn.sigmoid(z[:, 0 * LH:1 * LH]),
                jax.nn.sigmoid(z[:, 1 * LH:2 * LH]),
                jnp.tanh(z[:, 2 * LH:3 * LH]),
                jax.nn.sigmoid(z[:, 3 * LH:4 * LH]))

    zeros = jnp.zeros((B, LH), jnp.float32)
    h1, c1, h2, c2 = zeros, zeros, zeros, zeros
    for t in range(T):   # static unroll; T is small.  TODO(synk): fori_loop for long T.
        z1 = xproj1[t * B:(t + 1) * B, :] + jnp.dot(
            h1, whh1_ref[...], precision=_HI, preferred_element_type=jnp.float32)
        i1, f1, g1, o1 = gates(z1)
        c1 = f1 * c1 + i1 * g1
        h1 = o1 * jnp.tanh(c1)

        z2 = (jnp.dot(h1, wih2_ref[...], precision=_HI,
                      preferred_element_type=jnp.float32)
              + jnp.dot(h2, whh2_ref[...], precision=_HI,
                        preferred_element_type=jnp.float32)
              + b2_ref[...])
        i2, f2, g2, o2 = gates(z2)
        c2 = f2 * c2 + i2 * g2
        h2 = o2 * jnp.tanh(c2)

    # fc(out[:, -1, :])
    o_ref[...] = (jnp.dot(h2, wfc_ref[...], precision=_HI,
                          preferred_element_type=jnp.float32) + bfc_ref[...])


def _full_idx(ndim, i):
    return (0,) * ndim


def _pack_gate_w(w):   # (4, in, H) -> (in, 4H), gate blocks i|f|g|o
    return jnp.transpose(w, (1, 0, 2)).reshape(w.shape[1], 4 * w.shape[2])


def _pack_gate_b(b):   # (4, 1, H) -> (1, 4H)   (b_ih + b_hh already folded)
    return b.reshape(1, 4 * b.shape[2])


# ----------------------------------------------------------------------------
# Wrapper: layout plumbing (padding, block conv weight, gate packing) in JAX
# ----------------------------------------------------------------------------
def conv_lstm_forward(x, params):
    (conv_w, bn_gamma, bn_beta, bn_mean, bn_var,
     wih1, whh1, b1, wih2, whh2, b2, fc_w, fc_b) = params

    B, C, Hd, W = x.shape
    Cout = conv_w.shape[0]
    Wpad = W + 2 * CONV_PAD
    Wc = Wpad - CONV_K + 1
    Wp = Wc // POOL
    assert Wp == 1 and Wc == POOL, "LSTM input_size=64 requires pooled width == 1"

    T = Hd
    BP = ((B + 7) // 8) * 8                  # pad batch -> full (8, lanes) tiles
    M = T * BP

    # conv as one matmul: one row per (t, b) of the flattened padded input;
    # contraction dim C*Wpad zero-padded to a multiple of 128.
    CK = C * Wpad
    CKP = ((CK + 127) // 128) * 128
    xb = jnp.pad(x, ((0, BP - B), (0, 0), (0, 0), (CONV_PAD, CONV_PAD)))
    xcol = jnp.transpose(xb, (2, 0, 1, 3)).reshape(M, CK)        # rows = (t, b)
    xcol = jnp.pad(xcol, ((0, 0), (0, CKP - CK))).astype(jnp.bfloat16)

    # block conv weight: column block p holds the (C, K, Cout) kernel shifted by p
    wt = jnp.transpose(conv_w.reshape(Cout, C, CONV_K), (1, 2, 0))  # (C, K, Cout)
    wbig = jnp.zeros((C, Wpad, POOL, Cout), jnp.float32)
    for p in range(POOL):
        wbig = wbig.at[:, p:p + CONV_K, p, :].set(wt)
    wbig = wbig.reshape(CK, POOL * Cout)
    wbig = jnp.pad(wbig, ((0, CKP - CK), (0, 0))).astype(jnp.bfloat16)

    # eval-mode BatchNorm folded into scale/shift, tiled over the POOL blocks
    scale = bn_gamma / jnp.sqrt(bn_var + BN_EPS)
    shift = bn_beta - bn_mean * scale
    scale4 = jnp.tile(scale, POOL).reshape(1, POOL * Cout)
    shift4 = jnp.tile(shift, POOL).reshape(1, POOL * Cout)

    args = (xcol, wbig, scale4, shift4,
            _pack_gate_w(wih1), _pack_gate_w(whh1), _pack_gate_b(b1),
            _pack_gate_w(wih2), _pack_gate_w(whh2), _pack_gate_b(b2),
            fc_w.T, fc_b.reshape(1, -1))

    kernel = functools.partial(_fused_kernel, T=T, B=BP, Cout=Cout, LH=LSTM_HIDDEN)
    in_specs = [pl.BlockSpec(a.shape, functools.partial(_full_idx, a.ndim))
                for a in args]
    out = pl.pallas_call(
        kernel,
        out_shape=jax.ShapeDtypeStruct((BP, NUM_CLASSES), jnp.float32),
        grid=(1,),
        in_specs=in_specs,
        out_specs=pl.BlockSpec((BP, NUM_CLASSES), functools.partial(_full_idx, 2)),
        compiler_params=pltpu.CompilerParams(dimension_semantics=("arbitrary",)),
    )(*args)
    return out[:B]


# ----------------------------------------------------------------------------
# Pure-JAX reference (same math, no Pallas) for sanity checks
# ----------------------------------------------------------------------------
def reference(x, params, conv_dtype=jnp.float32):
    (conv_w, g, b, m, v, wih1, whh1, b1, wih2, whh2, b2, fcw, fcb) = params
    y = jax.lax.conv_general_dilated(
        x.astype(conv_dtype), conv_w.astype(conv_dtype),
        window_strides=(1, 1), padding=((0, 0), (CONV_PAD, CONV_PAD)),
        dimension_numbers=("NCHW", "OIHW", "NCHW"),
        preferred_element_type=jnp.float32, precision=_HI)
    y = ((y - m[None, :, None, None]) / jnp.sqrt(v[None, :, None, None] + BN_EPS)
         * g[None, :, None, None] + b[None, :, None, None])
    y = jnp.where(y > 0, y, jnp.exp(jnp.minimum(y, 0.0)) - 1.0)
    B, Cout, Hd, Wc = y.shape
    Wp = Wc // POOL
    y = y[:, :, :, :Wp * POOL].reshape(B, Cout, Hd, Wp, POOL).mean(-1)
    seq = jnp.transpose(y, (0, 2, 1, 3)).reshape(B, Hd, Cout * Wp)

    def cell(xt, h, c, wih, whh, bb):
        z = [jnp.dot(xt, wih[k], precision=_HI)
             + jnp.dot(h, whh[k], precision=_HI) + bb[k] for k in range(4)]
        c = jax.nn.sigmoid(z[1]) * c + jax.nn.sigmoid(z[0]) * jnp.tanh(z[2])
        h = jax.nn.sigmoid(z[3]) * jnp.tanh(c)
        return h, c

    zeros = jnp.zeros((B, LSTM_HIDDEN), jnp.float32)
    h1, c1, h2, c2 = zeros, zeros, zeros, zeros
    for t in range(seq.shape[1]):
        h1, c1 = cell(seq[:, t], h1, c1, wih1, whh1, b1)
        h2, c2 = cell(h1, h2, c2, wih2, whh2, b2)
    return jnp.dot(h2, fcw.T, precision=_HI) + fcb


# ----------------------------------------------------------------------------
if __name__ == "__main__":
    key = jax.random.PRNGKey(0)
    keys = jax.random.split(key, 16)

    # input: NCHW; W=3 -> conv width 4 -> pooled width 1 (matches LSTM input 64)
    B, C, Hd, W = 2, INPUT_SIZE, 8, 3
    x = jax.random.normal(keys[0], (B, C, Hd, W), jnp.float32)

    # deterministic synthetic parameters (shapes per the module's __init__)
    conv_w = 0.05 * jax.random.normal(keys[1], (HIDDEN_SIZE, C, 1, CONV_K), jnp.float32)
    bn_gamma = 1.0 + 0.1 * jax.random.normal(keys[2], (HIDDEN_SIZE,), jnp.float32)
    bn_beta = 0.1 * jax.random.normal(keys[3], (HIDDEN_SIZE,), jnp.float32)
    bn_mean = 0.1 * jax.random.normal(keys[4], (HIDDEN_SIZE,), jnp.float32)
    bn_var = jax.random.uniform(keys[5], (HIDDEN_SIZE,), jnp.float32, 0.5, 1.5)

    s = LSTM_HIDDEN ** -0.5

    def u(k, shape):
        return jax.random.uniform(k, shape, jnp.float32, -s, s)

    wih1 = u(keys[6], (4, HIDDEN_SIZE, LSTM_HIDDEN))
    whh1 = u(keys[7], (4, LSTM_HIDDEN, LSTM_HIDDEN))
    b1 = u(keys[8], (4, 1, LSTM_HIDDEN))                 # b_ih + b_hh folded
    wih2 = u(keys[9], (4, LSTM_HIDDEN, LSTM_HIDDEN))
    whh2 = u(keys[10], (4, LSTM_HIDDEN, LSTM_HIDDEN))
    b2 = u(keys[11], (4, 1, LSTM_HIDDEN))
    fc_w = u(keys[12], (NUM_CLASSES, LSTM_HIDDEN))
    fc_b = u(keys[13], (NUM_CLASSES,))

    params = (conv_w, bn_gamma, bn_beta, bn_mean, bn_var,
              wih1, whh1, b1, wih2, whh2, b2, fc_w, fc_b)

    fwd = jax.jit(conv_lstm_forward)
    out = jax.block_until_ready(fwd(x, params))
    assert out.shape == (B, NUM_CLASSES)

    # tight check against a reference with the same bf16 conv-matmul numerics,
    # loose check against the true f32 reference (kernel conv operands are bf16).
    ref_bf16 = reference(x, params, conv_dtype=jnp.bfloat16)
    ref_f32 = reference(x, params, conv_dtype=jnp.float32)
    assert jnp.allclose(out, ref_bf16, atol=2e-3, rtol=2e-3), (out, ref_bf16)
    assert jnp.allclose(out, ref_f32, atol=2e-2, rtol=2e-2), (out, ref_f32)

    print("KERNEL_OK")
</pallas_src>

<mosaic_0001>
module attributes {stable_mosaic.version = 11 : i64} {
  func.func @_fused_kernel(%arg0: i32, %arg1: memref<64x1280xbf16, #tpu.memory_space<vmem>>, %arg2: memref<1280x256xbf16, #tpu.memory_space<vmem>>, %arg3: memref<1x256xf32, #tpu.memory_space<vmem>>, %arg4: memref<1x256xf32, #tpu.memory_space<vmem>>, %arg5: memref<64x40xf32, #tpu.memory_space<vmem>>, %arg6: memref<10x40xf32, #tpu.memory_space<vmem>>, %arg7: memref<1x40xf32, #tpu.memory_space<vmem>>, %arg8: memref<10x40xf32, #tpu.memory_space<vmem>>, %arg9: memref<10x40xf32, #tpu.memory_space<vmem>>, %arg10: memref<1x40xf32, #tpu.memory_space<vmem>>, %arg11: memref<10x2xf32, #tpu.memory_space<vmem>>, %arg12: memref<1x2xf32, #tpu.memory_space<vmem>>, %arg13: memref<8x2xf32, #tpu.memory_space<vmem>>) attributes {dimension_semantics = [#tpu.dimension_semantics<arbitrary>], iteration_bounds = array<i64: 1>, scalar_prefetch = 0 : i64, scratch_operands = 0 : i64, tpu.core_type = #tpu.core_type<tc>, window_params = [{pipeline_mode = #tpu.pipeline_mode<synchronous>, transform_indices = @transform_0, window_bounds = array<i64: 64, 1280>}, {pipeline_mode = #tpu.pipeline_mode<synchronous>, transform_indices = @transform_1, window_bounds = array<i64: 1280, 256>}, {pipeline_mode = #tpu.pipeline_mode<synchronous>, transform_indices = @transform_2, window_bounds = array<i64: 1, 256>}, {pipeline_mode = #tpu.pipeline_mode<synchronous>, transform_indices = @transform_3, window_bounds = array<i64: 1, 256>}, {pipeline_mode = #tpu.pipeline_mode<synchronous>, transform_indices = @transform_4, window_bounds = array<i64: 64, 40>}, {pipeline_mode = #tpu.pipeline_mode<synchronous>, transform_indices = @transform_5, window_bounds = array<i64: 10, 40>}, {pipeline_mode = #tpu.pipeline_mode<synchronous>, transform_indices = @transform_6, window_bounds = array<i64: 1, 40>}, {pipeline_mode = #tpu.pipeline_mode<synchronous>, transform_indices = @transform_7, window_bounds = array<i64: 10, 40>}, {pipeline_mode = #tpu.pipeline_mode<synchronous>, transform_indices = @transform_8, window_bounds = array<i64: 10, 40>}, {pipeline_mode = #tpu.pipeline_mode<synchronous>, transform_indices = @transform_9, window_bounds = array<i64: 1, 40>}, {pipeline_mode = #tpu.pipeline_mode<synchronous>, transform_indices = @transform_10, window_bounds = array<i64: 10, 2>}, {pipeline_mode = #tpu.pipeline_mode<synchronous>, transform_indices = @transform_11, window_bounds = array<i64: 1, 2>}, {pipeline_mode = #tpu.pipeline_mode<synchronous>, transform_indices = @transform_12, window_bounds = array<i64: 8, 2>}]} {
    %c0 = arith.constant 0 : index
    %c0_0 = arith.constant 0 : index
    %0 = vector.load %arg1[%c0, %c0_0] : memref<64x1280xbf16, #tpu.memory_space<vmem>>, vector<64x1280xbf16>
    %c0_1 = arith.constant 0 : index
    %c0_2 = arith.constant 0 : index
    %1 = vector.load %arg2[%c0_1, %c0_2] : memref<1280x256xbf16, #tpu.memory_space<vmem>>, vector<1280x256xbf16>
    %cst = arith.constant dense<0.000000e+00> : vector<64x256xf32>
    %2 = tpu.matmul %0, %1, %cst {dimension_numbers = #tpu.dot_dimension_numbers<[1], [0], [0], [1], [0, 0, 1, 1], [], []>} : vector<64x1280xbf16>, vector<1280x256xbf16>, vector<64x256xf32> -> vector<64x256xf32>
    %c0_3 = arith.constant 0 : index
    %c0_4 = arith.constant 0 : index
    %3 = vector.load %arg3[%c0_3, %c0_4] : memref<1x256xf32, #tpu.memory_space<vmem>>, vector<1x256xf32>
    %4 = vector.broadcast %3 : vector<1x256xf32> to vector<64x256xf32>
    %5 = arith.mulf %2, %4 : vector<64x256xf32>
    %c0_5 = arith.constant 0 : index
    %c0_6 = arith.constant 0 : index
    %6 = vector.load %arg4[%c0_5, %c0_6] : memref<1x256xf32, #tpu.memory_space<vmem>>, vector<1x256xf32>
    %7 = vector.broadcast %6 : vector<1x256xf32> to vector<64x256xf32>
    %8 = arith.addf %5, %7 : vector<64x256xf32>
    %cst_7 = arith.constant 0.000000e+00 : f32
    %9 = vector.broadcast %cst_7 : f32 to vector<64x256xf32>
    %10 = arith.cmpf ogt, %8, %9 : vector<64x256xf32>
    %cst_8 = arith.constant 0.000000e+00 : f32
    %11 = vector.broadcast %cst_8 : f32 to vector<64x256xf32>
    %12 = arith.minimumf %8, %11 : vector<64x256xf32>
    %13 = math.exp %12 : vector<64x256xf32>
    %cst_9 = arith.constant 1.000000e+00 : f32
    %14 = vector.broadcast %cst_9 : f32 to vector<64x256xf32>
    %15 = arith.subf %13, %14 : vector<64x256xf32>
    %16 = arith.select %10, %8, %15 : vector<64x256xi1>, vector<64x256xf32>
    %17 = vector.extract_strided_slice %16 {offsets = [0, 0], sizes = [64, 64], strides = [1, 1]} : vector<64x256xf32> to vector<64x64xf32>
    %18 = vector.extract_strided_slice %16 {offsets = [0, 64], sizes = [64, 64], strides = [1, 1]} : vector<64x256xf32> to vector<64x64xf32>
    %19 = arith.addf %17, %18 : vector<64x64xf32>
    %20 = vector.extract_strided_slice %16 {offsets = [0, 128], sizes = [64, 64], strides = [1, 1]} : vector<64x256xf32> to vector<64x64xf32>
    %21 = arith.addf %19, %20 : vector<64x64xf32>
    %22 = vector.extract_strided_slice %16 {offsets = [0, 192], sizes = [64, 64], strides = [1, 1]} : vector<64x256xf32> to vector<64x64xf32>
    %23 = arith.addf %21, %22 : vector<64x64xf32>
    %cst_10 = arith.constant 2.500000e-01 : f32
    %24 = vector.broadcast %cst_10 : f32 to vector<64x64xf32>
    %25 = arith.mulf %23, %24 : vector<64x64xf32>
    %c0_11 = arith.constant 0 : index
    %c0_12 = arith.constant 0 : index
    %26 = vector.load %arg5[%c0_11, %c0_12] : memref<64x40xf32, #tpu.memory_space<vmem>>, vector<64x40xf32>
    %cst_13 = arith.constant dense<0.000000e+00> : vector<64x40xf32>
    %27 = tpu.matmul %25, %26, %cst_13 {dimension_numbers = #tpu.dot_dimension_numbers<[1], [0], [0], [1], [0, 0, 1, 1], [], []>, precision = #tpu.contract_precision<fp32>} : vector<64x64xf32>, vector<64x40xf32>, vector<64x40xf32> -> vector<64x40xf32>
    %c0_14 = arith.constant 0 : index
    %c0_15 = arith.constant 0 : index
    %28 = vector.load %arg7[%c0_14, %c0_15] : memref<1x40xf32, #tpu.memory_space<vmem>>, vector<1x40xf32>
    %29 = vector.broadcast %28 : vector<1x40xf32> to vector<64x40xf32>
    %30 = arith.addf %27, %29 : vector<64x40xf32>
    %cst_16 = arith.constant 0.000000e+00 : f32
    %31 = vector.broadcast %cst_16 : f32 to vector<8x10xf32>
    %32 = vector.extract_strided_slice %30 {offsets = [0, 0], sizes = [8, 40], strides = [1, 1]} : vector<64x40xf32> to vector<8x40xf32>
    %c0_17 = arith.constant 0 : index
    %c0_18 = arith.constant 0 : index
    %33 = vector.load %arg6[%c0_17, %c0_18] : memref<10x40xf32, #tpu.memory_space<vmem>>, vector<10x40xf32>
    %cst_19 = arith.constant dense<0.000000e+00> : vector<8x40xf32>
    %34 = tpu.matmul %31, %33, %cst_19 {dimension_numbers = #tpu.dot_dimension_numbers<[1], [0], [0], [1], [0, 0, 1, 1], [], []>, precision = #tpu.contract_precision<fp32>} : vector<8x10xf32>, vector<10x40xf32>, vector<8x40xf32> -> vector<8x40xf32>
    %35 = arith.addf %32, %34 : vector<8x40xf32>
    %36 = vector.extract_strided_slice %35 {offsets = [0, 0], sizes = [8, 10], strides = [1, 1]} : vector<8x40xf32> to vector<8x10xf32>
    %37 = arith.negf %36 : vector<8x10xf32>
    %38 = math.exp %37 : vector<8x10xf32>
    %cst_20 = arith.constant 1.000000e+00 : f32
    %39 = vector.broadcast %cst_20 : f32 to vector<8x10xf32>
    %40 = arith.addf %39, %38 : vector<8x10xf32>
    %41 = arith.divf %39, %40 : vector<8x10xf32>
    %42 = vector.extract_strided_slice %35 {offsets = [0, 10], sizes = [8, 10], strides = [1, 1]} : vector<8x40xf32> to vector<8x10xf32>
    %43 = arith.negf %42 : vector<8x10xf32>
    %44 = math.exp %43 : vector<8x10xf32>
    %cst_21 = arith.constant 1.000000e+00 : f32
    %45 = vector.broadcast %cst_21 : f32 to vector<8x10xf32>
    %46 = arith.addf %45, %44 : vector<8x10xf32>
    %47 = arith.divf %45, %46 : vector<8x10xf32>
    %48 = vector.extract_strided_slice %35 {offsets = [0, 20], sizes = [8, 10], strides = [1, 1]} : vector<8x40xf32> to vector<8x10xf32>
    %49 = math.tanh %48 : vector<8x10xf32>
    %50 = vector.extract_strided_slice %35 {offsets = [0, 30], sizes = [8, 10], strides = [1, 1]} : vector<8x40xf32> to vector<8x10xf32>
    %51 = arith.negf %50 : vector<8x10xf32>
    %52 = math.exp %51 : vector<8x10xf32>
    %cst_22 = arith.constant 1.000000e+00 : f32
    %53 = vector.broadcast %cst_22 : f32 to vector<8x10xf32>
    %54 = arith.addf %53, %52 : vector<8x10xf32>
    %55 = arith.divf %53, %54 : vector<8x10xf32>
    %56 = arith.mulf %47, %31 : vector<8x10xf32>
    %57 = arith.mulf %41, %49 : vector<8x10xf32>
    %58 = arith.addf %56, %57 : vector<8x10xf32>
    %59 = math.tanh %58 : vector<8x10xf32>
    %60 = arith.mulf %55, %59 : vector<8x10xf32>
    %c0_23 = arith.constant 0 : index
    %c0_24 = arith.constant 0 : index
    %61 = vector.load %arg8[%c0_23, %c0_24] : memref<10x40xf32, #tpu.memory_space<vmem>>, vector<10x40xf32>
    %cst_25 = arith.constant dense<0.000000e+00> : vector<8x40xf32>
    %62 = tpu.matmul %60, %61, %cst_25 {dimension_numbers = #tpu.dot_dimension_numbers<[1], [0], [0], [1], [0, 0, 1, 1], [], []>, precision = #tpu.contract_precision<fp32>} : vector<8x10xf32>, vector<10x40xf32>, vector<8x40xf32> -> vector<8x40xf32>
    %c0_26 = arith.constant 0 : index
    %c0_27 = arith.constant 0 : index
    %63 = vector.load %arg9[%c0_26, %c0_27] : memref<10x40xf32, #tpu.memory_space<vmem>>, vector<10x40xf32>
    %cst_28 = arith.constant dense<0.000000e+00> : vector<8x40xf32>
    %64 = tpu.matmul %31, %63, %cst_28 {dimension_numbers = #tpu.dot_dimension_numbers<[1], [0], [0], [1], [0, 0, 1, 1], [], []>, precision = #tpu.contract_precision<fp32>} : vector<8x10xf32>, vector<10x40xf32>, vector<8x40xf32> -> vector<8x40xf32>
    %65 = arith.addf %62, %64 : vector<8x40xf32>
    %c0_29 = arith.constant 0 : index
    %c0_30 = arith.constant 0 : index
    %66 = vector.load %arg10[%c0_29, %c0_30] : memref<1x40xf32, #tpu.memory_space<vmem>>, vector<1x40xf32>
    %67 = vector.broadcast %66 : vector<1x40xf32> to vector<8x40xf32>
    %68 = arith.addf %65, %67 : vector<8x40xf32>
    %69 = vector.extract_strided_slice %68 {offsets = [0, 0], sizes = [8, 10], strides = [1, 1]} : vector<8x40xf32> to vector<8x10xf32>
    %70 = arith.negf %69 : vector<8x10xf32>
    %71 = math.exp %70 : vector<8x10xf32>
    %cst_31 = arith.constant 1.000000e+00 : f32
    %72 = vector.broadcast %cst_31 : f32 to vector<8x10xf32>
    %73 = arith.addf %72, %71 : vector<8x10xf32>
    %74 = arith.divf %72, %73 : vector<8x10xf32>
    %75 = vector.extract_strided_slice %68 {offsets = [0, 10], sizes = [8, 10], strides = [1, 1]} : vector<8x40xf32> to vector<8x10xf32>
    %76 = arith.negf %75 : vector<8x10xf32>
    %77 = math.exp %76 : vector<8x10xf32>
    %cst_32 = arith.constant 1.000000e+00 : f32
    %78 = vector.broadcast %cst_32 : f32 to vector<8x10xf32>
    %79 = arith.addf %78, %77 : vector<8x10xf32>
    %80 = arith.divf %78, %79 : vector<8x10xf32>
    %81 = vector.extract_strided_slice %68 {offsets = [0, 20], sizes = [8, 10], strides = [1, 1]} : vector<8x40xf32> to vector<8x10xf32>
    %82 = math.tanh %81 : vector<8x10xf32>
    %83 = vector.extract_strided_slice %68 {offsets = [0, 30], sizes = [8, 10], strides = [1, 1]} : vector<8x40xf32> to vector<8x10xf32>
    %84 = arith.negf %83 : vector<8x10xf32>
    %85 = math.exp %84 : vector<8x10xf32>
    %cst_33 = arith.constant 1.000000e+00 : f32
    %86 = vector.broadcast %cst_33 : f32 to vector<8x10xf32>
    %87 = arith.addf %86, %85 : vector<8x10xf32>
    %88 = arith.divf %86, %87 : vector<8x10xf32>
    %89 = arith.mulf %80, %31 : vector<8x10xf32>
    %90 = arith.mulf %74, %82 : vector<8x10xf32>
    %91 = arith.addf %89, %90 : vector<8x10xf32>
    %92 = math.tanh %91 : vector<8x10xf32>
    %93 = arith.mulf %88, %92 : vector<8x10xf32>
    %94 = vector.extract_strided_slice %30 {offsets = [8, 0], sizes = [8, 40], strides = [1, 1]} : vector<64x40xf32> to vector<8x40xf32>
    %c0_34 = arith.constant 0 : index
    %c0_35 = arith.constant 0 : index
    %95 = vector.load %arg6[%c0_34, %c0_35] : memref<10x40xf32, #tpu.memory_space<vmem>>, vector<10x40xf32>
    %cst_36 = arith.constant dense<0.000000e+00> : vector<8x40xf32>
    %96 = tpu.matmul %60, %95, %cst_36 {dimension_numbers = #tpu.dot_dimension_numbers<[1], [0], [0], [1], [0, 0, 1, 1], [], []>, precision = #tpu.contract_precision<fp32>} : vector<8x10xf32>, vector<10x40xf32>, vector<8x40xf32> -> vector<8x40xf32>
    %97 = arith.addf %94, %96 : vector<8x40xf32>
    %98 = vector.extract_strided_slice %97 {offsets = [0, 0], sizes = [8, 10], strides = [1, 1]} : vector<8x40xf32> to vector<8x10xf32>
    %99 = arith.negf %98 : vector<8x10xf32>
    %100 = math.exp %99 : vector<8x10xf32>
    %cst_37 = arith.constant 1.000000e+00 : f32
    %101 = vector.broadcast %cst_37 : f32 to vector<8x10xf32>
    %102 = arith.addf %101, %100 : vector<8x10xf32>
    %103 = arith.divf %101, %102 : vector<8x10xf32>
    %104 = vector.extract_strided_slice %97 {offsets = [0, 10], sizes = [8, 10], strides = [1, 1]} : vector<8x40xf32> to vector<8x10xf32>
    %105 = arith.negf %104 : vector<8x10xf32>
    %106 = math.exp %105 : vector<8x10xf32>
    %cst_38 = arith.constant 1.000000e+00 : f32
    %107 = vector.broadcast %cst_38 : f32 to vector<8x10xf32>
    %108 = arith.addf %107, %106 : vector<8x10xf32>
    %109 = arith.divf %107, %108 : vector<8x10xf32>
    %110 = vector.extract_strided_slice %97 {offsets = [0, 20], sizes = [8, 10], strides = [1, 1]} : vector<8x40xf32> to vector<8x10xf32>
    %111 = math.tanh %110 : vector<8x10xf32>
    %112 = vector.extract_strided_slice %97 {offsets = [0, 30], sizes = [8, 10], strides = [1, 1]} : vector<8x40xf32> to vector<8x10xf32>
    %113 = arith.negf %112 : vector<8x10xf32>
    %114 = math.exp %113 : vector<8x10xf32>
    %cst_39 = arith.constant 1.000000e+00 : f32
    %115 = vector.broadcast %cst_39 : f32 to vector<8x10xf32>
    %116 = arith.addf %115, %114 : vector<8x10xf32>
    %117 = arith.divf %115, %116 : vector<8x10xf32>
    %118 = arith.mulf %109, %58 : vector<8x10xf32>
    %119 = arith.mulf %103, %111 : vector<8x10xf32>
    %120 = arith.addf %118, %119 : vector<8x10xf32>
    %121 = math.tanh %120 : vector<8x10xf32>
    %122 = arith.mulf %117, %121 : vector<8x10xf32>
    %c0_40 = arith.constant 0 : index
    %c0_41 = arith.constant 0 : index
    %123 = vector.load %arg8[%c0_40, %c0_41] : memref<10x40xf32, #tpu.memory_space<vmem>>, vector<10x40xf32>
    %cst_42 = arith.constant dense<0.000000e+00> : vector<8x40xf32>
    %124 = tpu.matmul %122, %123, %cst_42 {dimension_numbers = #tpu.dot_dimension_numbers<[1], [0], [0], [1], [0, 0, 1, 1], [], []>, precision = #tpu.contract_precision<fp32>} : vector<8x10xf32>, vector<10x40xf32>, vector<8x40xf32> -> vector<8x40xf32>
    %c0_43 = arith.constant 0 : index
    %c0_44 = arith.constant 0 : index
    %125 = vector.load %arg9[%c0_43, %c0_44] : memref<10x40xf32, #tpu.memory_space<vmem>>, vector<10x40xf32>
    %cst_45 = arith.constant dense<0.000000e+00> : vector<8x40xf32>
    %126 = tpu.matmul %93, %125, %cst_45 {dimension_numbers = #tpu.dot_dimension_numbers<[1], [0], [0], [1], [0, 0, 1, 1], [], []>, precision = #tpu.contract_precision<fp32>} : vector<8x10xf32>, vector<10x40xf32>, vector<8x40xf32> -> vector<8x40xf32>
    %127 = arith.addf %124, %126 : vector<8x40xf32>
    %c0_46 = arith.constant 0 : index
    %c0_47 = arith.constant 0 : index
    %128 = vector.load %arg10[%c0_46, %c0_47] : memref<1x40xf32, #tpu.memory_space<vmem>>, vector<1x40xf32>
    %129 = vector.broadcast %128 : vector<1x40xf32> to vector<8x40xf32>
    %130 = arith.addf %127, %129 : vector<8x40xf32>
    %131 = vector.extract_strided_slice %130 {offsets = [0, 0], sizes = [8, 10], strides = [1, 1]} : vector<8x40xf32> to vector<8x10xf32>
    %132 = arith.negf %131 : vector<8x10xf32>
    %133 = math.exp %132 : vector<8x10xf32>
    %cst_48 = arith.constant 1.000000e+00 : f32
    %134 = vector.broadcast %cst_48 : f32 to vector<8x10xf32>
    %135 = arith.addf %134, %133 : vector<8x10xf32>
    %136 = arith.divf %134, %135 : vector<8x10xf32>
    %137 = vector.extract_strided_slice %130 {offsets = [0, 10], sizes = [8, 10], strides = [1, 1]} : vector<8x40xf32> to vector<8x10xf32>
    %138 = arith.negf %137 : vector<8x10xf32>
    %139 = math.exp %138 : vector<8x10xf32>
    %cst_49 = arith.constant 1.000000e+00 : f32
    %140 = vector.broadcast %cst_49 : f32 to vector<8x10xf32>
    %141 = arith.addf %140, %139 : vector<8x10xf32>
    %142 = arith.divf %140, %141 : vector<8x10xf32>
    %143 = vector.extract_strided_slice %130 {offsets = [0, 20], sizes = [8, 10], strides = [1, 1]} : vector<8x40xf32> to vector<8x10xf32>
    %144 = math.tanh %143 : vector<8x10xf32>
    %145 = vector.extract_strided_slice %130 {offsets = [0, 30], sizes = [8, 10], strides = [1, 1]} : vector<8x40xf32> to vector<8x10xf32>
    %146 = arith.negf %145 : vector<8x10xf32>
    %147 = math.exp %146 : vector<8x10xf32>
    %cst_50 = arith.constant 1.000000e+00 : f32
    %148 = vector.broadcast %cst_50 : f32 to vector<8x10xf32>
    %149 = arith.addf %148, %147 : vector<8x10xf32>
    %150 = arith.divf %148, %149 : vector<8x10xf32>
    %151 = arith.mulf %142, %91 : vector<8x10xf32>
    %152 = arith.mulf %136, %144 : vector<8x10xf32>
    %153 = arith.addf %151, %152 : vector<8x10xf32>
    %154 = math.tanh %153 : vector<8x10xf32>
    %155 = arith.mulf %150, %154 : vector<8x10xf32>
    %156 = vector.extract_strided_slice %30 {offsets = [16, 0], sizes = [8, 40], strides = [1, 1]} : vector<64x40xf32> to vector<8x40xf32>
    %c0_51 = arith.constant 0 : index
    %c0_52 = arith.constant 0 : index
    %157 = vector.load %arg6[%c0_51, %c0_52] : memref<10x40xf32, #tpu.memory_space<vmem>>, vector<10x40xf32>
    %cst_53 = arith.constant dense<0.000000e+00> : vector<8x40xf32>
    %158 = tpu.matmul %122, %157, %cst_53 {dimension_numbers = #tpu.dot_dimension_numbers<[1], [0], [0], [1], [0, 0, 1, 1], [], []>, precision = #tpu.contract_precision<fp32>} : vector<8x10xf32>, vector<10x40xf32>, vector<8x40xf32> -> vector<8x40xf32>
    %159 = arith.addf %156, %158 : vector<8x40xf32>
    %160 = vector.extract_strided_slice %159 {offsets = [0, 0], sizes = [8, 10], strides = [1, 1]} : vector<8x40xf32> to vector<8x10xf32>
    %161 = arith.negf %160 : vector<8x10xf32>
    %162 = math.exp %161 : vector<8x10xf32>
    %cst_54 = arith.constant 1.000000e+00 : f32
    %163 = vector.broadcast %cst_54 : f32 to vector<8x10xf32>
    %164 = arith.addf %163, %162 : vector<8x10xf32>
    %165 = arith.divf %163, %164 : vector<8x10xf32>
    %166 = vector.extract_strided_slice %159 {offsets = [0, 10], sizes = [8, 10], strides = [1, 1]} : vector<8x40xf32> to vector<8x10xf32>
    %167 = arith.negf %166 : vector<8x10xf32>
    %168 = math.exp %167 : vector<8x10xf32>
    %cst_55 = arith.constant 1.000000e+00 : f32
    %169 = vector.broadcast %cst_55 : f32 to vector<8x10xf32>
    %170 = arith.addf %169, %168 : vector<8x10xf32>
    %171 = arith.divf %169, %170 : vector<8x10xf32>
    %172 = vector.extract_strided_slice %159 {offsets = [0, 20], sizes = [8, 10], strides = [1, 1]} : vector<8x40xf32> to vector<8x10xf32>
    %173 = math.tanh %172 : vector<8x10xf32>
    %174 = vector.extract_strided_slice %159 {offsets = [0, 30], sizes = [8, 10], strides = [1, 1]} : vector<8x40xf32> to vector<8x10xf32>
    %175 = arith.negf %174 : vector<8x10xf32>
    %176 = math.exp %175 : vector<8x10xf32>
    %cst_56 = arith.constant 1.000000e+00 : f32
    %177 = vector.broadcast %cst_56 : f32 to vector<8x10xf32>
    %178 = arith.addf %177, %176 : vector<8x10xf32>
    %179 = arith.divf %177, %178 : vector<8x10xf32>
    %180 = arith.mulf %171, %120 : vector<8x10xf32>
    %181 = arith.mulf %165, %173 : vector<8x10xf32>
    %182 = arith.addf %180, %181 : vector<8x10xf32>
    %183 = math.tanh %182 : vector<8x10xf32>
    %184 = arith.mulf %179, %183 : vector<8x10xf32>
    %c0_57 = arith.constant 0 : index
    %c0_58 = arith.constant 0 : index
    %185 = vector.load %arg8[%c0_57, %c0_58] : memref<10x40xf32, #tpu.memory_space<vmem>>, vector<10x40xf32>
    %cst_59 = arith.constant dense<0.000000e+00> : vector<8x40xf32>
    %186 = tpu.matmul %184, %185, %cst_59 {dimension_numbers = #tpu.dot_dimension_numbers<[1], [0], [0], [1], [0, 0, 1, 1], [], []>, precision = #tpu.contract_precision<fp32>} : vector<8x10xf32>, vector<10x40xf32>, vector<8x40xf32> -> vector<8x40xf32>
    %c0_60 = arith.constant 0 : index
    %c0_61 = arith.constant 0 : index
    %187 = vector.load %arg9[%c0_60, %c0_61] : memref<10x40xf32, #tpu.memory_space<vmem>>, vector<10x40xf32>
    %cst_62 = arith.constant dense<0.000000e+00> : vector<8x40xf32>
    %188 = tpu.matmul %155, %187, %cst_62 {dimension_numbers = #tpu.dot_dimension_numbers<[1], [0], [0], [1], [0, 0, 1, 1], [], []>, precision = #tpu.contract_precision<fp32>} : vector<8x10xf32>, vector<10x40xf32>, vector<8x40xf32> -> vector<8x40xf32>
    %189 = arith.addf %186, %188 : vector<8x40xf32>
    %c0_63 = arith.constant 0 : index
    %c0_64 = arith.constant 0 : index
    %190 = vector.load %arg10[%c0_63, %c0_64] : memref<1x40xf32, #tpu.memory_space<vmem>>, vector<1x40xf32>
    %191 = vector.broadcast %190 : vector<1x40xf32> to vector<8x40xf32>
    %192 = arith.addf %189, %191 : vector<8x40xf32>
    %193 = vector.extract_strided_slice %192 {offsets = [0, 0], sizes = [8, 10], strides = [1, 1]} : vector<8x40xf32> to vector<8x10xf32>
    %194 = arith.negf %193 : vector<8x10xf32>
    %195 = math.exp %194 : vector<8x10xf32>
    %cst_65 = arith.constant 1.000000e+00 : f32
    %196 = vector.broadcast %cst_65 : f32 to vector<8x10xf32>
    %197 = arith.addf %196, %195 : vector<8x10xf32>
    %198 = arith.divf %196, %197 : vector<8x10xf32>
    %199 = vector.extract_strided_slice %192 {offsets = [0, 10], sizes = [8, 10], strides = [1, 1]} : vector<8x40xf32> to vector<8x10xf32>
    %200 = arith.negf %199 : vector<8x10xf32>
    %201 = math.exp %200 : vector<8x10xf32>
    %cst_66 = arith.constant 1.000000e+00 : f32
    %202 = vector.broadcast %cst_66 : f32 to vector<8x10xf32>
    %203 = arith.addf %202, %201 : vector<8x10xf32>
    %204 = arith.divf %202, %203 : vector<8x10xf32>
    %205 = vector.extract_strided_slice %192 {offsets = [0, 20], sizes = [8, 10], strides = [1, 1]} : vector<8x40xf32> to vector<8x10xf32>
    %206 = math.tanh %205 : vector<8x10xf32>
    %207 = vector.extract_strided_slice %192 {offsets = [0, 30], sizes = [8, 10], strides = [1, 1]} : vector<8x40xf32> to vector<8x10xf32>
    %208 = arith.negf %207 : vector<8x10xf32>
    %209 = math.exp %208 : vector<8x10xf32>
    %cst_67 = arith.constant 1.000000e+00 : f32
    %210 = vector.broadcast %cst_67 : f32 to vector<8x10xf32>
    %211 = arith.addf %210, %209 : vector<8x10xf32>
    %212 = arith.divf %210, %211 : vector<8x10xf32>
    %213 = arith.mulf %204, %153 : vector<8x10xf32>
    %214 = arith.mulf %198, %206 : vector<8x10xf32>
    %215 = arith.addf %213, %214 : vector<8x10xf32>
    %216 = math.tanh %215 : vector<8x10xf32>
    %217 = arith.mulf %212, %216 : vector<8x10xf32>
    %218 = vector.extract_strided_slice %30 {offsets = [24, 0], sizes = [8, 40], strides = [1, 1]} : vector<64x40xf32> to vector<8x40xf32>
    %c0_68 = arith.constant 0 : index
    %c0_69 = arith.constant 0 : index
    %219 = vector.load %arg6[%c0_68, %c0_69] : memref<10x40xf32, #tpu.memory_space<vmem>>, vector<10x40xf32>
    %cst_70 = arith.constant dense<0.000000e+00> : vector<8x40xf32>
    %220 = tpu.matmul %184, %219, %cst_70 {dimension_numbers = #tpu.dot_dimension_numbers<[1], [0], [0], [1], [0, 0, 1, 1], [], []>, precision = #tpu.contract_precision<fp32>} : vector<8x10xf32>, vector<10x40xf32>, vector<8x40xf32> -> vector<8x40xf32>
    %221 = arith.addf %218, %220 : vector<8x40xf32>
    %222 = vector.extract_strided_slice %221 {offsets = [0, 0], sizes = [8, 10], strides = [1, 1]} : vector<8x40xf32> to vector<8x10xf32>
    %223 = arith.negf %222 : vector<8x10xf32>
    %224 = math.exp %223 : vector<8x10xf32>
    %cst_71 = arith.constant 1.000000e+00 : f32
    %225 = vector.broadcast %cst_71 : f32 to vector<8x10xf32>
    %226 = arith.addf %225, %224 : vector<8x10xf32>
    %227 = arith.divf %225, %226 : vector<8x10xf32>
    %228 = vector.extract_strided_slice %221 {offsets = [0, 10], sizes = [8, 10], strides = [1, 1]} : vector<8x40xf32> to vector<8x10xf32>
    %229 = arith.negf %228 : vector<8x10xf32>
    %230 = math.exp %229 : vector<8x10xf32>
    %cst_72 = arith.constant 1.000000e+00 : f32
    %231 = vector.broadcast %cst_72 : f32 to vector<8x10xf32>
    %232 = arith.addf %231, %230 : vector<8x10xf32>
    %233 = arith.divf %231, %232 : vector<8x10xf32>
    %234 = vector.extract_strided_slice %221 {offsets = [0, 20], sizes = [8, 10], strides = [1, 1]} : vector<8x40xf32> to vector<8x10xf32>
    %235 = math.tanh %234 : vector<8x10xf32>
    %236 = vector.extract_strided_slice %221 {offsets = [0, 30], sizes = [8, 10], strides = [1, 1]} : vector<8x40xf32> to vector<8x10xf32>
    %237 = arith.negf %236 : vector<8x10xf32>
    %238 = math.exp %237 : vector<8x10xf32>
    %cst_73 = arith.constant 1.000000e+00 : f32
    %239 = vector.broadcast %cst_73 : f32 to vector<8x10xf32>
    %240 = arith.addf %239, %238 : vector<8x10xf32>
    %241 = arith.divf %239, %240 : vector<8x10xf32>
    %242 = arith.mulf %233, %182 : vector<8x10xf32>
    %243 = arith.mulf %227, %235 : vector<8x10xf32>
    %244 = arith.addf %242, %243 : vector<8x10xf32>
    %245 = math.tanh %244 : vector<8x10xf32>
    %246 = arith.mulf %241, %245 : vector<8x10xf32>
    %c0_74 = arith.constant 0 : index
    %c0_75 = arith.constant 0 : index
    %247 = vector.load %arg8[%c0_74, %c0_75] : memref<10x40xf32, #tpu.memory_space<vmem>>, vector<10x40xf32>
    %cst_76 = arith.constant dense<0.000000e+00> : vector<8x40xf32>
    %248 = tpu.matmul %246, %247, %cst_76 {dimension_numbers = #tpu.dot_dimension_numbers<[1], [0], [0], [1], [0, 0, 1, 1], [], []>, precision = #tpu.contract_precision<fp32>} : vector<8x10xf32>, vector<10x40xf32>, vector<8x40xf32> -> vector<8x40xf32>
    %c0_77 = arith.constant 0 : index
    %c0_78 = arith.constant 0 : index
    %249 = vector.load %arg9[%c0_77, %c0_78] : memref<10x40xf32, #tpu.memory_space<vmem>>, vector<10x40xf32>
    %cst_79 = arith.constant dense<0.000000e+00> : vector<8x40xf32>
    %250 = tpu.matmul %217, %249, %cst_79 {dimension_numbers = #tpu.dot_dimension_numbers<[1], [0], [0], [1], [0, 0, 1, 1], [], []>, precision = #tpu.contract_precision<fp32>} : vector<8x10xf32>, vector<10x40xf32>, vector<8x40xf32> -> vector<8x40xf32>
    %251 = arith.addf %248, %250 : vector<8x40xf32>
    %c0_80 = arith.constant 0 : index
    %c0_81 = arith.constant 0 : index
    %252 = vector.load %arg10[%c0_80, %c0_81] : memref<1x40xf32, #tpu.memory_space<vmem>>, vector<1x40xf32>
    %253 = vector.broadcast %252 : vector<1x40xf32> to vector<8x40xf32>
    %254 = arith.addf %251, %253 : vector<8x40xf32>
    %255 = vector.extract_strided_slice %254 {offsets = [0, 0], sizes = [8, 10], strides = [1, 1]} : vector<8x40xf32> to vector<8x10xf32>
    %256 = arith.negf %255 : vector<8x10xf32>
    %257 = math.exp %256 : vector<8x10xf32>
    %cst_82 = arith.constant 1.000000e+00 : f32
    %258 = vector.broadcast %cst_82 : f32 to vector<8x10xf32>
    %259 = arith.addf %258, %257 : vector<8x10xf32>
    %260 = arith.divf %258, %259 : vector<8x10xf32>
    %261 = vector.extract_strided_slice %254 {offsets = [0, 10], sizes = [8, 10], strides = [1, 1]} : vector<8x40xf32> to vector<8x10xf32>
    %262 = arith.negf %261 : vector<8x10xf32>
    %263 = math.exp %262 : vector<8x10xf32>
    %cst_83 = arith.constant 1.000000e+00 : f32
    %264 = vector.broadcast %cst_83 : f32 to vector<8x10xf32>
    %265 = arith.addf %264, %263 : vector<8x10xf32>
    %266 = arith.divf %264, %265 : vector<8x10xf32>
    %267 = vector.extract_strided_slice %254 {offsets = [0, 20], sizes = [8, 10], strides = [1, 1]} : vector<8x40xf32> to vector<8x10xf32>
    %268 = math.tanh %267 : vector<8x10xf32>
    %269 = vector.extract_strided_slice %254 {offsets = [0, 30], sizes = [8, 10], strides = [1, 1]} : vector<8x40xf32> to vector<8x10xf32>
    %270 = arith.negf %269 : vector<8x10xf32>
    %271 = math.exp %270 : vector<8x10xf32>
    %cst_84 = arith.constant 1.000000e+00 : f32
    %272 = vector.broadcast %cst_84 : f32 to vector<8x10xf32>
    %273 = arith.addf %272, %271 : vector<8x10xf32>
    %274 = arith.divf %272, %273 : vector<8x10xf32>
    %275 = arith.mulf %266, %215 : vector<8x10xf32>
    %276 = arith.mulf %260, %268 : vector<8x10xf32>
    %277 = arith.addf %275, %276 : vector<8x10xf32>
    %278 = math.tanh %277 : vector<8x10xf32>
    %279 = arith.mulf %274, %278 : vector<8x10xf32>
    %280 = vector.extract_strided_slice %30 {offsets = [32, 0], sizes = [8, 40], strides = [1, 1]} : vector<64x40xf32> to vector<8x40xf32>
    %c0_85 = arith.constant 0 : index
    %c0_86 = arith.constant 0 : index
    %281 = vector.load %arg6[%c0_85, %c0_86] : memref<10x40xf32, #tpu.memory_space<vmem>>, vector<10x40xf32>
    %cst_87 = arith.constant dense<0.000000e+00> : vector<8x40xf32>
    %282 = tpu.matmul %246, %281, %cst_87 {dimension_numbers = #tpu.dot_dimension_numbers<[1], [0], [0], [1], [0, 0, 1, 1], [], []>, precision = #tpu.contract_precision<fp32>} : vector<8x10xf32>, vector<10x40xf32>, vector<8x40xf32> -> vector<8x40xf32>
    %283 = arith.addf %280, %282 : vector<8x40xf32>
    %284 = vector.extract_strided_slice %283 {offsets = [0, 0], sizes = [8, 10], strides = [1, 1]} : vector<8x40xf32> to vector<8x10xf32>
    %285 = arith.negf %284 : vector<8x10xf32>
    %286 = math.exp %285 : vector<8x10xf32>
    %cst_88 = arith.constant 1.000000e+00 : f32
    %287 = vector.broadcast %cst_88 : f32 to vector<8x10xf32>
    %288 = arith.addf %287, %286 : vector<8x10xf32>
    %289 = arith.divf %287, %288 : vector<8x10xf32>
    %290 = vector.extract_strided_slice %283 {offsets = [0, 10], sizes = [8, 10], strides = [1, 1]} : vector<8x40xf32> to vector<8x10xf32>
    %291 = arith.negf %290 : vector<8x10xf32>
    %292 = math.exp %291 : vector<8x10xf32>
    %cst_89 = arith.constant 1.000000e+00 : f32
    %293 = vector.broadcast %cst_89 : f32 to vector<8x10xf32>
    %294 = arith.addf %293, %292 : vector<8x10xf32>
    %295 = arith.divf %293, %294 : vector<8x10xf32>
    %296 = vector.extract_strided_slice %283 {offsets = [0, 20], sizes = [8, 10], strides = [1, 1]} : vector<8x40xf32> to vector<8x10xf32>
    %297 = math.tanh %296 : vector<8x10xf32>
    %298 = vector.extract_strided_slice %283 {offsets = [0, 30], sizes = [8, 10], strides = [1, 1]} : vector<8x40xf32> to vector<8x10xf32>
    %299 = arith.negf %298 : vector<8x10xf32>
    %300 = math.exp %299 : vector<8x10xf32>
    %cst_90 = arith.constant 1.000000e+00 : f32
    %301 = vector.broadcast %cst_90 : f32 to vector<8x10xf32>
    %302 = arith.addf %301, %300 : vector<8x10xf32>
    %303 = arith.divf %301, %302 : vector<8x10xf32>
    %304 = arith.mulf %295, %244 : vector<8x10xf32>
    %305 = arith.mulf %289, %297 : vector<8x10xf32>
    %306 = arith.addf %304, %305 : vector<8x10xf32>
    %307 = math.tanh %306 : vector<8x10xf32>
    %308 = arith.mulf %303, %307 : vector<8x10xf32>
    %c0_91 = arith.constant 0 : index
    %c0_92 = arith.constant 0 : index
    %309 = vector.load %arg8[%c0_91, %c0_92] : memref<10x40xf32, #tpu.memory_space<vmem>>, vector<10x40xf32>
    %cst_93 = arith.constant dense<0.000000e+00> : vector<8x40xf32>
    %310 = tpu.matmul %308, %309, %cst_93 {dimension_numbers = #tpu.dot_dimension_numbers<[1], [0], [0], [1], [0, 0, 1, 1], [], []>, precision = #tpu.contract_precision<fp32>} : vector<8x10xf32>, vector<10x40xf32>, vector<8x40xf32> -> vector<8x40xf32>
    %c0_94 = arith.constant 0 : index
    %c0_95 = arith.constant 0 : index
    %311 = vector.load %arg9[%c0_94, %c0_95] : memref<10x40xf32, #tpu.memory_space<vmem>>, vector<10x40xf32>
    %cst_96 = arith.constant dense<0.000000e+00> : vector<8x40xf32>
    %312 = tpu.matmul %279, %311, %cst_96 {dimension_numbers = #tpu.dot_dimension_numbers<[1], [0], [0], [1], [0, 0, 1, 1], [], []>, precision = #tpu.contract_precision<fp32>} : vector<8x10xf32>, vector<10x40xf32>, vector<8x40xf32> -> vector<8x40xf32>
    %313 = arith.addf %310, %312 : vector<8x40xf32>
    %c0_97 = arith.constant 0 : index
    %c0_98 = arith.constant 0 : index
    %314 = vector.load %arg10[%c0_97, %c0_98] : memref<1x40xf32, #tpu.memory_space<vmem>>, vector<1x40xf32>
    %315 = vector.broadcast %314 : vector<1x40xf32> to vector<8x40xf32>
    %316 = arith.addf %313, %315 : vector<8x40xf32>
    %317 = vector.extract_strided_slice %316 {offsets = [0, 0], sizes = [8, 10], strides = [1, 1]} : vector<8x40xf32> to vector<8x10xf32>
    %318 = arith.negf %317 : vector<8x10xf32>
    %319 = math.exp %318 : vector<8x10xf32>
    %cst_99 = arith.constant 1.000000e+00 : f32
    %320 = vector.broadcast %cst_99 : f32 to vector<8x10xf32>
    %321 = arith.addf %320, %319 : vector<8x10xf32>
    %322 = arith.divf %320, %321 : vector<8x10xf32>
    %323 = vector.extract_strided_slice %316 {offsets = [0, 10], sizes = [8, 10], strides = [1, 1]} : vector<8x40xf32> to vector<8x10xf32>
    %324 = arith.negf %323 : vector<8x10xf32>
    %325 = math.exp %324 : vector<8x10xf32>
    %cst_100 = arith.constant 1.000000e+00 : f32
    %326 = vector.broadcast %cst_100 : f32 to vector<8x10xf32>
    %327 = arith.addf %326, %325 : vector<8x10xf32>
    %328 = arith.divf %326, %327 : vector<8x10xf32>
    %329 = vector.extract_strided_slice %316 {offsets = [0, 20], sizes = [8, 10], strides = [1, 1]} : vector<8x40xf32> to vector<8x10xf32>
    %330 = math.tanh %329 : vector<8x10xf32>
    %331 = vector.extract_strided_slice %316 {offsets = [0, 30], sizes = [8, 10], strides = [1, 1]} : vector<8x40xf32> to vector<8x10xf32>
    %332 = arith.negf %331 : vector<8x10xf32>
    %333 = math.exp %332 : vector<8x10xf32>
    %cst_101 = arith.constant 1.000000e+00 : f32
    %334 = vector.broadcast %cst_101 : f32 to vector<8x10xf32>
    %335 = arith.addf %334, %333 : vector<8x10xf32>
    %336 = arith.divf %334, %335 : vector<8x10xf32>
    %337 = arith.mulf %328, %277 : vector<8x10xf32>
    %338 = arith.mulf %322, %330 : vector<8x10xf32>
    %339 = arith.addf %337, %338 : vector<8x10xf32>
    %340 = math.tanh %339 : vector<8x10xf32>
    %341 = arith.mulf %336, %340 : vector<8x10xf32>
    %342 = vector.extract_strided_slice %30 {offsets = [40, 0], sizes = [8, 40], strides = [1, 1]} : vector<64x40xf32> to vector<8x40xf32>
    %c0_102 = arith.constant 0 : index
    %c0_103 = arith.constant 0 : index
    %343 = vector.load %arg6[%c0_102, %c0_103] : memref<10x40xf32, #tpu.memory_space<vmem>>, vector<10x40xf32>
    %cst_104 = arith.constant dense<0.000000e+00> : vector<8x40xf32>
    %344 = tpu.matmul %308, %343, %cst_104 {dimension_numbers = #tpu.dot_dimension_numbers<[1], [0], [0], [1], [0, 0, 1, 1], [], []>, precision = #tpu.contract_precision<fp32>} : vector<8x10xf32>, vector<10x40xf32>, vector<8x40xf32> -> vector<8x40xf32>
    %345 = arith.addf %342, %344 : vector<8x40xf32>
    %346 = vector.extract_strided_slice %345 {offsets = [0, 0], sizes = [8, 10], strides = [1, 1]} : vector<8x40xf32> to vector<8x10xf32>
    %347 = arith.negf %346 : vector<8x10xf32>
    %348 = math.exp %347 : vector<8x10xf32>
    %cst_105 = arith.constant 1.000000e+00 : f32
    %349 = vector.broadcast %cst_105 : f32 to vector<8x10xf32>
    %350 = arith.addf %349, %348 : vector<8x10xf32>
    %351 = arith.divf %349, %350 : vector<8x10xf32>
    %352 = vector.extract_strided_slice %345 {offsets = [0, 10], sizes = [8, 10], strides = [1, 1]} : vector<8x40xf32> to vector<8x10xf32>
    %353 = arith.negf %352 : vector<8x10xf32>
    %354 = math.exp %353 : vector<8x10xf32>
    %cst_106 = arith.constant 1.000000e+00 : f32
    %355 = vector.broadcast %cst_106 : f32 to vector<8x10xf32>
    %356 = arith.addf %355, %354 : vector<8x10xf32>
    %357 = arith.divf %355, %356 : vector<8x10xf32>
    %358 = vector.extract_strided_slice %345 {offsets = [0, 20], sizes = [8, 10], strides = [1, 1]} : vector<8x40xf32> to vector<8x10xf32>
    %359 = math.tanh %358 : vector<8x10xf32>
    %360 = vector.extract_strided_slice %345 {offsets = [0, 30], sizes = [8, 10], strides = [1, 1]} : vector<8x40xf32> to vector<8x10xf32>
    %361 = arith.negf %360 : vector<8x10xf32>
    %362 = math.exp %361 : vector<8x10xf32>
    %cst_107 = arith.constant 1.000000e+00 : f32
    %363 = vector.broadcast %cst_107 : f32 to vector<8x10xf32>
    %364 = arith.addf %363, %362 : vector<8x10xf32>
    %365 = arith.divf %363, %364 : vector<8x10xf32>
    %366 = arith.mulf %357, %306 : vector<8x10xf32>
    %367 = arith.mulf %351, %359 : vector<8x10xf32>
    %368 = arith.addf %366, %367 : vector<8x10xf32>
    %369 = math.tanh %368 : vector<8x10xf32>
    %370 = arith.mulf %365, %369 : vector<8x10xf32>
    %c0_108 = arith.constant 0 : index
    %c0_109 = arith.constant 0 : index
    %371 = vector.load %arg8[%c0_108, %c0_109] : memref<10x40xf32, #tpu.memory_space<vmem>>, vector<10x40xf32>
    %cst_110 = arith.constant dense<0.000000e+00> : vector<8x40xf32>
    %372 = tpu.matmul %370, %371, %cst_110 {dimension_numbers = #tpu.dot_dimension_numbers<[1], [0], [0], [1], [0, 0, 1, 1], [], []>, precision = #tpu.contract_precision<fp32>} : vector<8x10xf32>, vector<10x40xf32>, vector<8x40xf32> -> vector<8x40xf32>
    %c0_111 = arith.constant 0 : index
    %c0_112 = arith.constant 0 : index
    %373 = vector.load %arg9[%c0_111, %c0_112] : memref<10x40xf32, #tpu.memory_space<vmem>>, vector<10x40xf32>
    %cst_113 = arith.constant dense<0.000000e+00> : vector<8x40xf32>
    %374 = tpu.matmul %341, %373, %cst_113 {dimension_numbers = #tpu.dot_dimension_numbers<[1], [0], [0], [1], [0, 0, 1, 1], [], []>, precision = #tpu.contract_precision<fp32>} : vector<8x10xf32>, vector<10x40xf32>, vector<8x40xf32> -> vector<8x40xf32>
    %375 = arith.addf %372, %374 : vector<8x40xf32>
    %c0_114 = arith.constant 0 : index
    %c0_115 = arith.constant 0 : index
    %376 = vector.load %arg10[%c0_114, %c0_115] : memref<1x40xf32, #tpu.memory_space<vmem>>, vector<1x40xf32>
    %377 = vector.broadcast %376 : vector<1x40xf32> to vector<8x40xf32>
    %378 = arith.addf %375, %377 : vector<8x40xf32>
    %379 = vector.extract_strided_slice %378 {offsets = [0, 0], sizes = [8, 10], strides = [1, 1]} : vector<8x40xf32> to vector<8x10xf32>
    %380 = arith.negf %379 : vector<8x10xf32>
    %381 = math.exp %380 : vector<8x10xf32>
    %cst_116 = arith.constant 1.000000e+00 : f32
    %382 = vector.broadcast %cst_116 : f32 to vector<8x10xf32>
    %383 = arith.addf %382, %381 : vector<8x10xf32>
    %384 = arith.divf %382, %383 : vector<8x10xf32>
    %385 = vector.extract_strided_slice %378 {offsets = [0, 10], sizes = [8, 10], strides = [1, 1]} : vector<8x40xf32> to vector<8x10xf32>
    %386 = arith.negf %385 : vector<8x10xf32>
    %387 = math.exp %386 : vector<8x10xf32>
    %cst_117 = arith.constant 1.000000e+00 : f32
    %388 = vector.broadcast %cst_117 : f32 to vector<8x10xf32>
    %389 = arith.addf %388, %387 : vector<8x10xf32>
    %390 = arith.divf %388, %389 : vector<8x10xf32>
    %391 = vector.extract_strided_slice %378 {offsets = [0, 20], sizes = [8, 10], strides = [1, 1]} : vector<8x40xf32> to vector<8x10xf32>
    %392 = math.tanh %391 : vector<8x10xf32>
    %393 = vector.extract_strided_slice %378 {offsets = [0, 30], sizes = [8, 10], strides = [1, 1]} : vector<8x40xf32> to vector<8x10xf32>
    %394 = arith.negf %393 : vector<8x10xf32>
    %395 = math.exp %394 : vector<8x10xf32>
    %cst_118 = arith.constant 1.000000e+00 : f32
    %396 = vector.broadcast %cst_118 : f32 to vector<8x10xf32>
    %397 = arith.addf %396, %395 : vector<8x10xf32>
    %398 = arith.divf %396, %397 : vector<8x10xf32>
    %399 = arith.mulf %390, %339 : vector<8x10xf32>
    %400 = arith.mulf %384, %392 : vector<8x10xf32>
    %401 = arith.addf %399, %400 : vector<8x10xf32>
    %402 = math.tanh %401 : vector<8x10xf32>
    %403 = arith.mulf %398, %402 : vector<8x10xf32>
    %404 = vector.extract_strided_slice %30 {offsets = [48, 0], sizes = [8, 40], strides = [1, 1]} : vector<64x40xf32> to vector<8x40xf32>
    %c0_119 = arith.constant 0 : index
    %c0_120 = arith.constant 0 : index
    %405 = vector.load %arg6[%c0_119, %c0_120] : memref<10x40xf32, #tpu.memory_space<vmem>>, vector<10x40xf32>
    %cst_121 = arith.constant dense<0.000000e+00> : vector<8x40xf32>
    %406 = tpu.matmul %370, %405, %cst_121 {dimension_numbers = #tpu.dot_dimension_numbers<[1], [0], [0], [1], [0, 0, 1, 1], [], []>, precision = #tpu.contract_precision<fp32>} : vector<8x10xf32>, vector<10x40xf32>, vector<8x40xf32> -> vector<8x40xf32>
    %407 = arith.addf %404, %406 : vector<8x40xf32>
    %408 = vector.extract_strided_slice %407 {offsets = [0, 0], sizes = [8, 10], strides = [1, 1]} : vector<8x40xf32> to vector<8x10xf32>
    %409 = arith.negf %408 : vector<8x10xf32>
    %410 = math.exp %409 : vector<8x10xf32>
    %cst_122 = arith.constant 1.000000e+00 : f32
    %411 = vector.broadcast %cst_122 : f32 to vector<8x10xf32>
    %412 = arith.addf %411, %410 : vector<8x10xf32>
    %413 = arith.divf %411, %412 : vector<8x10xf32>
    %414 = vector.extract_strided_slice %407 {offsets = [0, 10], sizes = [8, 10], strides = [1, 1]} : vector<8x40xf32> to vector<8x10xf32>
    %415 = arith.negf %414 : vector<8x10xf32>
    %416 = math.exp %415 : vector<8x10xf32>
    %cst_123 = arith.constant 1.000000e+00 : f32
    %417 = vector.broadcast %cst_123 : f32 to vector<8x10xf32>
    %418 = arith.addf %417, %416 : vector<8x10xf32>
    %419 = arith.divf %417, %418 : vector<8x10xf32>
    %420 = vector.extract_strided_slice %407 {offsets = [0, 20], sizes = [8, 10], strides = [1, 1]} : vector<8x40xf32> to vector<8x10xf32>
    %421 = math.tanh %420 : vector<8x10xf32>
    %422 = vector.extract_strided_slice %407 {offsets = [0, 30], sizes = [8, 10], strides = [1, 1]} : vector<8x40xf32> to vector<8x10xf32>
    %423 = arith.negf %422 : vector<8x10xf32>
    %424 = math.exp %423 : vector<8x10xf32>
    %cst_124 = arith.constant 1.000000e+00 : f32
    %425 = vector.broadcast %cst_124 : f32 to vector<8x10xf32>
    %426 = arith.addf %425, %424 : vector<8x10xf32>
    %427 = arith.divf %425, %426 : vector<8x10xf32>
    %428 = arith.mulf %419, %368 : vector<8x10xf32>
    %429 = arith.mulf %413, %421 : vector<8x10xf32>
    %430 = arith.addf %428, %429 : vector<8x10xf32>
    %431 = math.tanh %430 : vector<8x10xf32>
    %432 = arith.mulf %427, %431 : vector<8x10xf32>
    %c0_125 = arith.constant 0 : index
    %c0_126 = arith.constant 0 : index
    %433 = vector.load %arg8[%c0_125, %c0_126] : memref<10x40xf32, #tpu.memory_space<vmem>>, vector<10x40xf32>
    %cst_127 = arith.constant dense<0.000000e+00> : vector<8x40xf32>
    %434 = tpu.matmul %432, %433, %cst_127 {dimension_numbers = #tpu.dot_dimension_numbers<[1], [0], [0], [1], [0, 0, 1, 1], [], []>, precision = #tpu.contract_precision<fp32>} : vector<8x10xf32>, vector<10x40xf32>, vector<8x40xf32> -> vector<8x40xf32>
    %c0_128 = arith.constant 0 : index
    %c0_129 = arith.constant 0 : index
    %435 = vector.load %arg9[%c0_128, %c0_129] : memref<10x40xf32, #tpu.memory_space<vmem>>, vector<10x40xf32>
    %cst_130 = arith.constant dense<0.000000e+00> : vector<8x40xf32>
    %436 = tpu.matmul %403, %435, %cst_130 {dimension_numbers = #tpu.dot_dimension_numbers<[1], [0], [0], [1], [0, 0, 1, 1], [], []>, precision = #tpu.contract_precision<fp32>} : vector<8x10xf32>, vector<10x40xf32>, vector<8x40xf32> -> vector<8x40xf32>
    %437 = arith.addf %434, %436 : vector<8x40xf32>
    %c0_131 = arith.constant 0 : index
    %c0_132 = arith.constant 0 : index
    %438 = vector.load %arg10[%c0_131, %c0_132] : memref<1x40xf32, #tpu.memory_space<vmem>>, vector<1x40xf32>
    %439 = vector.broadcast %438 : vector<1x40xf32> to vector<8x40xf32>
    %440 = arith.addf %437, %439 : vector<8x40xf32>
    %441 = vector.extract_strided_slice %440 {offsets = [0, 0], sizes = [8, 10], strides = [1, 1]} : vector<8x40xf32> to vector<8x10xf32>
    %442 = arith.negf %441 : vector<8x10xf32>
    %443 = math.exp %442 : vector<8x10xf32>
    %cst_133 = arith.constant 1.000000e+00 : f32
    %444 = vector.broadcast %cst_133 : f32 to vector<8x10xf32>
    %445 = arith.addf %444, %443 : vector<8x10xf32>
    %446 = arith.divf %444, %445 : vector<8x10xf32>
    %447 = vector.extract_strided_slice %440 {offsets = [0, 10], sizes = [8, 10], strides = [1, 1]} : vector<8x40xf32> to vector<8x10xf32>
    %448 = arith.negf %447 : vector<8x10xf32>
    %449 = math.exp %448 : vector<8x10xf32>
    %cst_134 = arith.constant 1.000000e+00 : f32
    %450 = vector.broadcast %cst_134 : f32 to vector<8x10xf32>
    %451 = arith.addf %450, %449 : vector<8x10xf32>
    %452 = arith.divf %450, %451 : vector<8x10xf32>
    %453 = vector.extract_strided_slice %440 {offsets = [0, 20], sizes = [8, 10], strides = [1, 1]} : vector<8x40xf32> to vector<8x10xf32>
    %454 = math.tanh %453 : vector<8x10xf32>
    %455 = vector.extract_strided_slice %440 {offsets = [0, 30], sizes = [8, 10], strides = [1, 1]} : vector<8x40xf32> to vector<8x10xf32>
    %456 = arith.negf %455 : vector<8x10xf32>
    %457 = math.exp %456 : vector<8x10xf32>
    %cst_135 = arith.constant 1.000000e+00 : f32
    %458 = vector.broadcast %cst_135 : f32 to vector<8x10xf32>
    %459 = arith.addf %458, %457 : vector<8x10xf32>
    %460 = arith.divf %458, %459 : vector<8x10xf32>
    %461 = arith.mulf %452, %401 : vector<8x10xf32>
    %462 = arith.mulf %446, %454 : vector<8x10xf32>
    %463 = arith.addf %461, %462 : vector<8x10xf32>
    %464 = math.tanh %463 : vector<8x10xf32>
    %465 = arith.mulf %460, %464 : vector<8x10xf32>
    %466 = vector.extract_strided_slice %30 {offsets = [56, 0], sizes = [8, 40], strides = [1, 1]} : vector<64x40xf32> to vector<8x40xf32>
    %c0_136 = arith.constant 0 : index
    %c0_137 = arith.constant 0 : index
    %467 = vector.load %arg6[%c0_136, %c0_137] : memref<10x40xf32, #tpu.memory_space<vmem>>, vector<10x40xf32>
    %cst_138 = arith.constant dense<0.000000e+00> : vector<8x40xf32>
    %468 = tpu.matmul %432, %467, %cst_138 {dimension_numbers = #tpu.dot_dimension_numbers<[1], [0], [0], [1], [0, 0, 1, 1], [], []>, precision = #tpu.contract_precision<fp32>} : vector<8x10xf32>, vector<10x40xf32>, vector<8x40xf32> -> vector<8x40xf32>
    %469 = arith.addf %466, %468 : vector<8x40xf32>
    %470 = vector.extract_strided_slice %469 {offsets = [0, 0], sizes = [8, 10], strides = [1, 1]} : vector<8x40xf32> to vector<8x10xf32>
    %471 = arith.negf %470 : vector<8x10xf32>
    %472 = math.exp %471 : vector<8x10xf32>
    %cst_139 = arith.constant 1.000000e+00 : f32
    %473 = vector.broadcast %cst_139 : f32 to vector<8x10xf32>
    %474 = arith.addf %473, %472 : vector<8x10xf32>
    %475 = arith.divf %473, %474 : vector<8x10xf32>
    %476 = vector.extract_strided_slice %469 {offsets = [0, 10], sizes = [8, 10], strides = [1, 1]} : vector<8x40xf32> to vector<8x10xf32>
    %477 = arith.negf %476 : vector<8x10xf32>
    %478 = math.exp %477 : vector<8x10xf32>
    %cst_140 = arith.constant 1.000000e+00 : f32
    %479 = vector.broadcast %cst_140 : f32 to vector<8x10xf32>
    %480 = arith.addf %479, %478 : vector<8x10xf32>
    %481 = arith.divf %479, %480 : vector<8x10xf32>
    %482 = vector.extract_strided_slice %469 {offsets = [0, 20], sizes = [8, 10], strides = [1, 1]} : vector<8x40xf32> to vector<8x10xf32>
    %483 = math.tanh %482 : vector<8x10xf32>
    %484 = vector.extract_strided_slice %469 {offsets = [0, 30], sizes = [8, 10], strides = [1, 1]} : vector<8x40xf32> to vector<8x10xf32>
    %485 = arith.negf %484 : vector<8x10xf32>
    %486 = math.exp %485 : vector<8x10xf32>
    %cst_141 = arith.constant 1.000000e+00 : f32
    %487 = vector.broadcast %cst_141 : f32 to vector<8x10xf32>
    %488 = arith.addf %487, %486 : vector<8x10xf32>
    %489 = arith.divf %487, %488 : vector<8x10xf32>
    %490 = arith.mulf %481, %430 : vector<8x10xf32>
    %491 = arith.mulf %475, %483 : vector<8x10xf32>
    %492 = arith.addf %490, %491 : vector<8x10xf32>
    %493 = math.tanh %492 : vector<8x10xf32>
    %494 = arith.mulf %489, %493 : vector<8x10xf32>
    %c0_142 = arith.constant 0 : index
    %c0_143 = arith.constant 0 : index
    %495 = vector.load %arg8[%c0_142, %c0_143] : memref<10x40xf32, #tpu.memory_space<vmem>>, vector<10x40xf32>
    %cst_144 = arith.constant dense<0.000000e+00> : vector<8x40xf32>
    %496 = tpu.matmul %494, %495, %cst_144 {dimension_numbers = #tpu.dot_dimension_numbers<[1], [0], [0], [1], [0, 0, 1, 1], [], []>, precision = #tpu.contract_precision<fp32>} : vector<8x10xf32>, vector<10x40xf32>, vector<8x40xf32> -> vector<8x40xf32>
    %c0_145 = arith.constant 0 : index
    %c0_146 = arith.constant 0 : index
    %497 = vector.load %arg9[%c0_145, %c0_146] : memref<10x40xf32, #tpu.memory_space<vmem>>, vector<10x40xf32>
    %cst_147 = arith.constant dense<0.000000e+00> : vector<8x40xf32>
    %498 = tpu.matmul %465, %497, %cst_147 {dimension_numbers = #tpu.dot_dimension_numbers<[1], [0], [0], [1], [0, 0, 1, 1], [], []>, precision = #tpu.contract_precision<fp32>} : vector<8x10xf32>, vector<10x40xf32>, vector<8x40xf32> -> vector<8x40xf32>
    %499 = arith.addf %496, %498 : vector<8x40xf32>
    %c0_148 = arith.constant 0 : index
    %c0_149 = arith.constant 0 : index
    %500 = vector.load %arg10[%c0_148, %c0_149] : memref<1x40xf32, #tpu.memory_space<vmem>>, vector<1x40xf32>
    %501 = vector.broadcast %500 : vector<1x40xf32> to vector<8x40xf32>
    %502 = arith.addf %499, %501 : vector<8x40xf32>
    %503 = vector.extract_strided_slice %502 {offsets = [0, 0], sizes = [8, 10], strides = [1, 1]} : vector<8x40xf32> to vector<8x10xf32>
    %504 = arith.negf %503 : vector<8x10xf32>
    %505 = math.exp %504 : vector<8x10xf32>
    %cst_150 = arith.constant 1.000000e+00 : f32
    %506 = vector.broadcast %cst_150 : f32 to vector<8x10xf32>
    %507 = arith.addf %506, %505 : vector<8x10xf32>
    %508 = arith.divf %506, %507 : vector<8x10xf32>
    %509 = vector.extract_strided_slice %502 {offsets = [0, 10], sizes = [8, 10], strides = [1, 1]} : vector<8x40xf32> to vector<8x10xf32>
    %510 = arith.negf %509 : vector<8x10xf32>
    %511 = math.exp %510 : vector<8x10xf32>
    %cst_151 = arith.constant 1.000000e+00 : f32
    %512 = vector.broadcast %cst_151 : f32 to vector<8x10xf32>
    %513 = arith.addf %512, %511 : vector<8x10xf32>
    %514 = arith.divf %512, %513 : vector<8x10xf32>
    %515 = vector.extract_strided_slice %502 {offsets = [0, 20], sizes = [8, 10], strides = [1, 1]} : vector<8x40xf32> to vector<8x10xf32>
    %516 = math.tanh %515 : vector<8x10xf32>
    %517 = vector.extract_strided_slice %502 {offsets = [0, 30], sizes = [8, 10], strides = [1, 1]} : vector<8x40xf32> to vector<8x10xf32>
    %518 = arith.negf %517 : vector<8x10xf32>
    %519 = math.exp %518 : vector<8x10xf32>
    %cst_152 = arith.constant 1.000000e+00 : f32
    %520 = vector.broadcast %cst_152 : f32 to vector<8x10xf32>
    %521 = arith.addf %520, %519 : vector<8x10xf32>
    %522 = arith.divf %520, %521 : vector<8x10xf32>
    %523 = arith.mulf %514, %463 : vector<8x10xf32>
    %524 = arith.mulf %508, %516 : vector<8x10xf32>
    %525 = arith.addf %523, %524 : vector<8x10xf32>
    %526 = math.tanh %525 : vector<8x10xf32>
    %527 = arith.mulf %522, %526 : vector<8x10xf32>
    %c0_153 = arith.constant 0 : index
    %c0_154 = arith.constant 0 : index
    %528 = vector.load %arg11[%c0_153, %c0_154] : memref<10x2xf32, #tpu.memory_space<vmem>>, vector<10x2xf32>
    %cst_155 = arith.constant dense<0.000000e+00> : vector<8x2xf32>
    %529 = tpu.matmul %527, %528, %cst_155 {dimension_numbers = #tpu.dot_dimension_numbers<[1], [0], [0], [1], [0, 0, 1, 1], [], []>, precision = #tpu.contract_precision<fp32>} : vector<8x10xf32>, vector<10x2xf32>, vector<8x2xf32> -> vector<8x2xf32>
    %c0_156 = arith.constant 0 : index
    %c0_157 = arith.constant 0 : index
    %530 = vector.load %arg12[%c0_156, %c0_157] : memref<1x2xf32, #tpu.memory_space<vmem>>, vector<1x2xf32>
    %531 = vector.broadcast %530 : vector<1x2xf32> to vector<8x2xf32>
    %532 = arith.addf %529, %531 : vector<8x2xf32>
    %c0_158 = arith.constant 0 : index
    %c0_159 = arith.constant 0 : index
    %533 = vector.load %arg13[%c0_158, %c0_159] : memref<8x2xf32, #tpu.memory_space<vmem>>, vector<8x2xf32>
    tpu.vector_store %arg13[%c0_158, %c0_159], %532 {strides = array<i32>} : memref<8x2xf32, #tpu.memory_space<vmem>>, vector<8x2xf32>,
    return
  }
  func.func @transform_0(%arg0: i32) -> (i32, i32) {
    %c0_i32 = arith.constant 0 : i32
    %c0_i32_0 = arith.constant 0 : i32
    %c0_i32_1 = arith.constant 0 : i32
    return %c0_i32, %c0_i32_0 : i32, i32
  }
  func.func @transform_1(%arg0: i32) -> (i32, i32) {
    %c0_i32 = arith.constant 0 : i32
    %c0_i32_0 = arith.constant 0 : i32
    %c0_i32_1 = arith.constant 0 : i32
    return %c0_i32, %c0_i32_0 : i32, i32
  }
  func.func @transform_2(%arg0: i32) -> (i32, i32) {
    %c0_i32 = arith.constant 0 : i32
    %c0_i32_0 = arith.constant 0 : i32
    %c0_i32_1 = arith.constant 0 : i32
    return %c0_i32, %c0_i32_0 : i32, i32
  }
  func.func @transform_3(%arg0: i32) -> (i32, i32) {
    %c0_i32 = arith.constant 0 : i32
    %c0_i32_0 = arith.constant 0 : i32
    %c0_i32_1 = arith.constant 0 : i32
    return %c0_i32, %c0_i32_0 : i32, i32
  }
  func.func @transform_4(%arg0: i32) -> (i32, i32) {
    %c0_i32 = arith.constant 0 : i32
    %c0_i32_0 = arith.constant 0 : i32
    %c0_i32_1 = arith.constant 0 : i32
    return %c0_i32, %c0_i32_0 : i32, i32
  }
  func.func @transform_5(%arg0: i32) -> (i32, i32) {
    %c0_i32 = arith.constant 0 : i32
    %c0_i32_0 = arith.constant 0 : i32
    %c0_i32_1 = arith.constant 0 : i32
    return %c0_i32, %c0_i32_0 : i32, i32
  }
  func.func @transform_6(%arg0: i32) -> (i32, i32) {
    %c0_i32 = arith.constant 0 : i32
    %c0_i32_0 = arith.constant 0 : i32
    %c0_i32_1 = arith.constant 0 : i32
    return %c0_i32, %c0_i32_0 : i32, i32
  }
  func.func @transform_7(%arg0: i32) -> (i32, i32) {
    %c0_i32 = arith.constant 0 : i32
    %c0_i32_0 = arith.constant 0 : i32
    %c0_i32_1 = arith.constant 0 : i32
    return %c0_i32, %c0_i32_0 : i32, i32
  }
  func.func @transform_8(%arg0: i32) -> (i32, i32) {
    %c0_i32 = arith.constant 0 : i32
    %c0_i32_0 = arith.constant 0 : i32
    %c0_i32_1 = arith.constant 0 : i32
    return %c0_i32, %c0_i32_0 : i32, i32
  }
  func.func @transform_9(%arg0: i32) -> (i32, i32) {
    %c0_i32 = arith.constant 0 : i32
    %c0_i32_0 = arith.constant 0 : i32
    %c0_i32_1 = arith.constant 0 : i32
    return %c0_i32, %c0_i32_0 : i32, i32
  }
  func.func @transform_10(%arg0: i32) -> (i32, i32) {
    %c0_i32 = arith.constant 0 : i32
    %c0_i32_0 = arith.constant 0 : i32
    %c0_i32_1 = arith.constant 0 : i32
    return %c0_i32, %c0_i32_0 : i32, i32
  }
  func.func @transform_11(%arg0: i32) -> (i32, i32) {
    %c0_i32 = arith.constant 0 : i32
    %c0_i32_0 = arith.constant 0 : i32
    %c0_i32_1 = arith.constant 0 : i32
    return %c0_i32, %c0_i32_0 : i32, i32
  }
  func.func @transform_12(%arg0: i32) -> (i32, i32) {
    %c0_i32 = arith.constant 0 : i32
    %c0_i32_0 = arith.constant 0 : i32
    %c0_i32_1 = arith.constant 0 : i32
    return %c0_i32, %c0_i32_0 : i32, i32
  }
}

</mosaic_0001>

<llo_original>
// kernel: tile.13
$region0: #{tile.13}
  #allocation0 [shape = 's32[1]{0}', space=sflag, size = 0x4, scoped, tag = 'scoped memory for tile.13']
  %s0 = inlined_call_operand.vmem [shape: f32[64], index: 0, kind: input, shape index: {}]
  %s1 = inlined_call_operand.vmem [shape: f32[4,64], index: 1, kind: output, shape index: {}]
  // Predicated region
  $region2: #{tile.13} parent=0 // pred_check
    _
  $region3: #{tile.13} parent=0 // pred_check_branch
    %3 = sbr.rel (0) target = $region5
  $region4: #{tile.13} parent=0 // pred_region
    _
  $region5: #{tile.13} parent=0 // pred_fallthru
    _
  %v4 = vld [vmem:[%s0] ss:$0 sm:$0xff]
  %5 = vst [vmem:[%s1] sm:$0xf] %v4

// kernel: tile.14
$region0: #{tile.14}
  %s0 = inlined_call_operand.vmem [shape: f32[4,64], index: 0, kind: input, shape index: {}]
  %s1 = inlined_call_operand.vmem [shape: f32[1,256], index: 1, kind: output, shape index: {}]
  $region1: #{tile.14} parent=0
    #allocation0 [shape = 'u8[8192]{0}', space=vmem, size = 0x2000, scoped, tag = 'scoped mem for output reshape']
    #allocation1 [shape = 'u8[4096]{0}', space=vmem, size = 0x1000, scoped, tag = 'scoped mem for input reshape']
    %s3 = ssub.s32 16, 1
    %v4 = vld [vmem:[%s0] sm:%s3]
    %5 = vst [vmem:[#allocation1] sm:%s3] %v4
    %s6 = smov 3
    %v7 = vld [vmem:[#allocation1] ss:$2 sm:%s6]
    %vm8 = vcmask 523264
    %9 = vst.msk [vmem:[#allocation0] ss:$8 sm:$0x3] %vm8, %v7
    %s10 = scalar_lea.vmem [#allocation1], 1
    %s11 = smov 3
    %v12 = vld [vmem:[%s10] ss:$2 sm:%s11]
    %13 = vrot.lane.b32.xlu0 %v12, 64
    %v14 = vpop.permute.xlu0 %13
    %vm15 = vcmask 1048064
    %16 = vst.msk [vmem:[#allocation0] ss:$8 sm:$0x3] %vm15, %v14
    %s18 = ssub.s32 2, 1
    %v19 = vld [vmem:[#allocation0] sm:%s18]
    %s21 = ssub.s32 2, 1
    %22 = vst [vmem:[%s1] sm:%s21] %v19
    %s23 = scalar_lea.vmem [#allocation0], 8
    %v24 = vld [vmem:[%s23] sm:%s18]
    %s26 = ssub.s32 2, 1
    %s27 = scalar_lea.vmem %s1, 1
    %28 = vst [vmem:[%s27] sm:%s26] %v24

// kernel: conv_lstm_forward.1
$region0: #{conv_lstm_forward.1}
  #allocation0 [shape = 'u32[]', space=smem, size = 0x4, offset = 0x4, fixed_abs, tag = 'smem constant byte address 0x4 - core index']
  #allocation1 [shape = 'u32[72,128]{1,0:T(1,128)}', space=vmem, size = 0x9000, scoped, tag = 'internal scratch']
  %s0 = inlined_call_operand.vmem [shape: bf16[64,1280], index: 0, kind: input, shape index: {}]
  %s1 = inlined_call_operand.vmem [shape: bf16[1280,256], index: 1, kind: input, shape index: {}]
  %s2 = inlined_call_operand.vmem [shape: f32[1,256], index: 2, kind: input, shape index: {}]
  %s3 = inlined_call_operand.vmem [shape: f32[1,256], index: 3, kind: input, shape index: {}]
  %s4 = inlined_call_operand.vmem [shape: f32[64,40], index: 4, kind: input, shape index: {}]
  %s5 = inlined_call_operand.vmem [shape: f32[10,40], index: 5, kind: input, shape index: {}]
  %s6 = inlined_call_operand.vmem [shape: f32[1,40], index: 6, kind: input, shape index: {}]
  %s7 = inlined_call_operand.vmem [shape: f32[10,40], index: 7, kind: input, shape index: {}]
  %s8 = inlined_call_operand.vmem [shape: f32[10,40], index: 8, kind: input, shape index: {}]
  %s9 = inlined_call_operand.vmem [shape: f32[1,40], index: 9, kind: input, shape index: {}]
  %s10 = inlined_call_operand.vmem [shape: f32[10,2], index: 10, kind: input, shape index: {}]
  %s11 = inlined_call_operand.vmem [shape: f32[1,2], index: 11, kind: input, shape index: {}]
  %s12 = inlined_call_operand.vmem [shape: f32[8,2], index: 12, kind: output, shape index: {}]
  %s13 = sld [smem:[#allocation0]]
  $region58: #{conv_lstm_forward.1} parent=0
    _
  %s15 = ssub.s32 1, %s13
  %s16 = scalar_select 0, %s15, %s13
  // Predicated region
  $region2: #{conv_lstm_forward.1} parent=0 // pred_check
    _
  $region3: #{conv_lstm_forward.1} parent=0 // pred_check_branch
    %18 = sbr.rel (0) target = $region5
  $region4: #{conv_lstm_forward.1} parent=0 // pred_region
    _
  $region5: #{conv_lstm_forward.1} parent=0 // pred_fallthru
    _
  // Predicated region
  $region6: #{conv_lstm_forward.1} parent=0 // pred_check
    _
  $region7: #{conv_lstm_forward.1} parent=0 // pred_check_branch
    %20 = sbr.rel (0) target = $region9
  $region8: #{conv_lstm_forward.1} parent=0 // pred_region
    _
  $region9: #{conv_lstm_forward.1} parent=0 // pred_fallthru
    _
  // Predicated region
  $region10: #{conv_lstm_forward.1} parent=0 // pred_check
    _
  $region11: #{conv_lstm_forward.1} parent=0 // pred_check_branch
    %22 = sbr.rel (0) target = $region13
  $region12: #{conv_lstm_forward.1} parent=0 // pred_region
    _
  $region13: #{conv_lstm_forward.1} parent=0 // pred_fallthru
    _
  // Predicated region
  $region14: #{conv_lstm_forward.1} parent=0 // pred_check
    _
  $region15: #{conv_lstm_forward.1} parent=0 // pred_check_branch
    %24 = sbr.rel (0) target = $region17
  $region16: #{conv_lstm_forward.1} parent=0 // pred_region
    _
  $region17: #{conv_lstm_forward.1} parent=0 // pred_fallthru
    _
  // Predicated region
  $region18: #{conv_lstm_forward.1} parent=0 // pred_check
    _
  $region19: #{conv_lstm_forward.1} parent=0 // pred_check_branch
    %26 = sbr.rel (0) target = $region21
  $region20: #{conv_lstm_forward.1} parent=0 // pred_region
    _
  $region21: #{conv_lstm_forward.1} parent=0 // pred_fallthru
    _
  // Predicated region
  $region22: #{conv_lstm_forward.1} parent=0 // pred_check
    _
  $region23: #{conv_lstm_forward.1} parent=0 // pred_check_branch
    %28 = sbr.rel (0) target = $region25
  $region24: #{conv_lstm_forward.1} parent=0 // pred_region
    _
  $region25: #{conv_lstm_forward.1} parent=0 // pred_fallthru
    _
  // Predicated region
  $region26: #{conv_lstm_forward.1} parent=0 // pred_check
    _
  $region27: #{conv_lstm_forward.1} parent=0 // pred_check_branch
    %30 = sbr.rel (0) target = $region29
  $region28: #{conv_lstm_forward.1} parent=0 // pred_region
    _
  $region29: #{conv_lstm_forward.1} parent=0 // pred_fallthru
    _
  // Predicated region
  $region30: #{conv_lstm_forward.1} parent=0 // pred_check
    _
  $region31: #{conv_lstm_forward.1} parent=0 // pred_check_branch
    %32 = sbr.rel (0) target = $region33
  $region32: #{conv_lstm_forward.1} parent=0 // pred_region
    _
  $region33: #{conv_lstm_forward.1} parent=0 // pred_fallthru
    _
  // Predicated region
  $region34: #{conv_lstm_forward.1} parent=0 // pred_check
    _
  $region35: #{conv_lstm_forward.1} parent=0 // pred_check_branch
    %34 = sbr.rel (0) target = $region37
  $region36: #{conv_lstm_forward.1} parent=0 // pred_region
    _
  $region37: #{conv_lstm_forward.1} parent=0 // pred_fallthru
    _
  // Predicated region
  $region38: #{conv_lstm_forward.1} parent=0 // pred_check
    _
  $region39: #{conv_lstm_forward.1} parent=0 // pred_check_branch
    %36 = sbr.rel (0) target = $region41
  $region40: #{conv_lstm_forward.1} parent=0 // pred_region
    _
  $region41: #{conv_lstm_forward.1} parent=0 // pred_fallthru
    _
  // Predicated region
  $region42: #{conv_lstm_forward.1} parent=0 // pred_check
    _
  $region43: #{conv_lstm_forward.1} parent=0 // pred_check_branch
    %38 = sbr.rel (0) target = $region45
  $region44: #{conv_lstm_forward.1} parent=0 // pred_region
    _
  $region45: #{conv_lstm_forward.1} parent=0 // pred_fallthru
    _
  // Predicated region
  $region46: #{conv_lstm_forward.1} parent=0 // pred_check
    _
  $region47: #{conv_lstm_forward.1} parent=0 // pred_check_branch
    %40 = sbr.rel (0) target = $region49
  $region48: #{conv_lstm_forward.1} parent=0 // pred_region
    _
  $region49: #{conv_lstm_forward.1} parent=0 // pred_fallthru
    _
  %v41 = vld [vmem:[%s0] sm:$0xff]
  %v42 = vld [vmem:[%s0 + $0x8] sm:$0xff]
  %v43 = vld [vmem:[%s0 + $0x10] sm:$0xff]
  %v44 = vld [vmem:[%s0 + $0x18] sm:$0xff]
  %v45 = vld [vmem:[%s0 + $0x20] sm:$0xff]
  %v46 = vld [vmem:[%s0 + $0x28] sm:$0xff]
  %v47 = vld [vmem:[%s0 + $0x30] sm:$0xff]
  %v48 = vld [vmem:[%s0 + $0x38] sm:$0xff]
  %v49 = vld [vmem:[%s0 + $0x40] sm:$0xff]
  %v50 = vld [vmem:[%s0 + $0x48] sm:$0xff]
  %v51 = vld [vmem:[%s0 + $0x50] sm:$0xff]
  %v52 = vld [vmem:[%s0 + $0x58] sm:$0xff]
  %v53 = vld [vmem:[%s0 + $0x60] sm:$0xff]
  %v54 = vld [vmem:[%s0 + $0x68] sm:$0xff]
  %v55 = vld [vmem:[%s0 + $0x70] sm:$0xff]
  %v56 = vld [vmem:[%s0 + $0x78] sm:$0xff]
  %v57 = vld [vmem:[%s0 + $0x80] sm:$0xff]
  %v58 = vld [vmem:[%s0 + $0x88] sm:$0xff]
  %v59 = vld [vmem:[%s0 + $0x90] sm:$0xff]
  %v60 = vld [vmem:[%s0 + $0x98] sm:$0xff]
  %v61 = vld [vmem:[%s0 + $0xa0] sm:$0xff]
  %v62 = vld [vmem:[%s0 + $0xa8] sm:$0xff]
  %v63 = vld [vmem:[%s0 + $0xb0] sm:$0xff]
  %v64 = vld [vmem:[%s0 + $0xb8] sm:$0xff]
  %v65 = vld [vmem:[%s0 + $0xc0] sm:$0xff]
  %v66 = vld [vmem:[%s0 + $0xc8] sm:$0xff]
  %v67 = vld [vmem:[%s0 + $0xd0] sm:$0xff]
  %v68 = vld [vmem:[%s0 + $0xd8] sm:$0xff]
  %v69 = vld [vmem:[%s0 + $0xe0] sm:$0xff]
  %v70 = vld [vmem:[%s0 + $0xe8] sm:$0xff]
  %v71 = vld [vmem:[%s0 + $0xf0] sm:$0xff]
  %v72 = vld [vmem:[%s0 + $0xf8] sm:$0xff]
  %v73 = vld [vmem:[%s0 + $0x100] sm:$0xff]
  %v74 = vld [vmem:[%s0 + $0x108] sm:$0xff]
  %v75 = vld [vmem:[%s0 + $0x110] sm:$0xff]
  %v76 = vld [vmem:[%s0 + $0x118] sm:$0xff]
  %v77 = vld [vmem:[%s0 + $0x120] sm:$0xff]
  %v78 = vld [vmem:[%s0 + $0x128] sm:$0xff]
  %v79 = vld [vmem:[%s0 + $0x130] sm:$0xff]
  %v80 = vld [vmem:[%s0 + $0x138] sm:$0xff]
  %v81 = vld [vmem:[%s1] sm:$0xff]
  %v82 = vld [vmem:[%s1 + $0x8] sm:$0xff]
  %v83 = vld [vmem:[%s1 + $0x10] sm:$0xff]
  %v84 = vld [vmem:[%s1 + $0x18] sm:$0xff]
  %v85 = vld [vmem:[%s1 + $0x20] sm:$0xff]
  %v86 = vld [vmem:[%s1 + $0x28] sm:$0xff]
  %v87 = vld [vmem:[%s1 + $0x30] sm:$0xff]
  %v88 = vld [vmem:[%s1 + $0x38] sm:$0xff]
  %v89 = vld [vmem:[%s1 + $0x40] sm:$0xff]
  %v90 = vld [vmem:[%s1 + $0x48] sm:$0xff]
  %v91 = vld [vmem:[%s1 + $0x50] sm:$0xff]
  %v92 = vld [vmem:[%s1 + $0x58] sm:$0xff]
  %v93 = vld [vmem:[%s1 + $0x60] sm:$0xff]
  %v94 = vld [vmem:[%s1 + $0x68] sm:$0xff]
  %v95 = vld [vmem:[%s1 + $0x70] sm:$0xff]
  %v96 = vld [vmem:[%s1 + $0x78] sm:$0xff]
  %v97 = vld [vmem:[%s1 + $0x80] sm:$0xff]
  %v98 = vld [vmem:[%s1 + $0x88] sm:$0xff]
  %v99 = vld [vmem:[%s1 + $0x90] sm:$0xff]
  %v100 = vld [vmem:[%s1 + $0x98] sm:$0xff]
  %v101 = vld [vmem:[%s1 + $0xa0] sm:$0xff]
  %v102 = vld [vmem:[%s1 + $0xa8] sm:$0xff]
  %v103 = vld [vmem:[%s1 + $0xb0] sm:$0xff]
  %v104 = vld [vmem:[%s1 + $0xb8] sm:$0xff]
  %v105 = vld [vmem:[%s1 + $0xc0] sm:$0xff]
  %v106 = vld [vmem:[%s1 + $0xc8] sm:$0xff]
  %v107 = vld [vmem:[%s1 + $0xd0] sm:$0xff]
  %v108 = vld [vmem:[%s1 + $0xd8] sm:$0xff]
  %v109 = vld [vmem:[%s1 + $0xe0] sm:$0xff]
  %v110 = vld [vmem:[%s1 + $0xe8] sm:$0xff]
  %v111 = vld [vmem:[%s1 + $0xf0] sm:$0xff]
  %v112 = vld [vmem:[%s1 + $0xf8] sm:$0xff]
  %v113 = vld [vmem:[%s1 + $0x100] sm:$0xff]
  %v114 = vld [vmem:[%s1 + $0x108] sm:$0xff]
  %v115 = vld [vmem:[%s1 + $0x110] sm:$0xff]
  %v116 = vld [vmem:[%s1 + $0x118] sm:$0xff]
  %v117 = vld [vmem:[%s1 + $0x120] sm:$0xff]
  %v118 = vld [vmem:[%s1 + $0x128] sm:$0xff]
  %v119 = vld [vmem:[%s1 + $0x130] sm:$0xff]
  %v120 = vld [vmem:[%s1 + $0x138] sm:$0xff]
  %v121 = vld [vmem:[%s1 + $0x140] sm:$0xff]
  %v122 = vld [vmem:[%s1 + $0x148] sm:$0xff]
  %v123 = vld [vmem:[%s1 + $0x150] sm:$0xff]
  %v124 = vld [vmem:[%s1 + $0x158] sm:$0xff]
  %v125 = vld [vmem:[%s1 + $0x160] sm:$0xff]
  %v126 = vld [vmem:[%s1 + $0x168] sm:$0xff]
  %v127 = vld [vmem:[%s1 + $0x170] sm:$0xff]
  %v128 = vld [vmem:[%s1 + $0x178] sm:$0xff]
  %v129 = vld [vmem:[%s1 + $0x180] sm:$0xff]
  %v130 = vld [vmem:[%s1 + $0x188] sm:$0xff]
  %v131 = vld [vmem:[%s1 + $0x190] sm:$0xff]
  %v132 = vld [vmem:[%s1 + $0x198] sm:$0xff]
  %v133 = vld [vmem:[%s1 + $0x1a0] sm:$0xff]
  %v134 = vld [vmem:[%s1 + $0x1a8] sm:$0xff]
  %v135 = vld [vmem:[%s1 + $0x1b0] sm:$0xff]
  %v136 = vld [vmem:[%s1 + $0x1b8] sm:$0xff]
  %v137 = vld [vmem:[%s1 + $0x1c0] sm:$0xff]
  %v138 = vld [vmem:[%s1 + $0x1c8] sm:$0xff]
  %v139 = vld [vmem:[%s1 + $0x1d0] sm:$0xff]
  %v140 = vld [vmem:[%s1 + $0x1d8] sm:$0xff]
  %v141 = vld [vmem:[%s1 + $0x1e0] sm:$0xff]
  %v142 = vld [vmem:[%s1 + $0x1e8] sm:$0xff]
  %v143 = vld [vmem:[%s1 + $0x1f0] sm:$0xff]
  %v144 = vld [vmem:[%s1 + $0x1f8] sm:$0xff]
  %v145 = vld [vmem:[%s1 + $0x200] sm:$0xff]
  %v146 = vld [vmem:[%s1 + $0x208] sm:$0xff]
  %v147 = vld [vmem:[%s1 + $0x210] sm:$0xff]
  %v148 = vld [vmem:[%s1 + $0x218] sm:$0xff]
  %v149 = vld [vmem:[%s1 + $0x220] sm:$0xff]
  %v150 = vld [vmem:[%s1 + $0x228] sm:$0xff]
  %v151 = vld [vmem:[%s1 + $0x230] sm:$0xff]
  %v152 = vld [vmem:[%s1 + $0x238] sm:$0xff]
  %v153 = vld [vmem:[%s1 + $0x240] sm:$0xff]
  %v154 = vld [vmem:[%s1 + $0x248] sm:$0xff]
  %v155 = vld [vmem:[%s1 + $0x250] sm:$0xff]
  %v156 = vld [vmem:[%s1 + $0x258] sm:$0xff]
  %v157 = vld [vmem:[%s1 + $0x260] sm:$0xff]
  %v158 = vld [vmem:[%s1 + $0x268] sm:$0xff]
  %v159 = vld [vmem:[%s1 + $0x270] sm:$0xff]
  %v160 = vld [vmem:[%s1 + $0x278] sm:$0xff]
  %v161 = vld [vmem:[%s1 + $0x280] sm:$0xff]
  %v162 = vld [vmem:[%s1 + $0x288] sm:$0xff]
  %v163 = vld [vmem:[%s1 + $0x290] sm:$0xff]
  %v164 = vld [vmem:[%s1 + $0x298] sm:$0xff]
  %v165 = vld [vmem:[%s1 + $0x2a0] sm:$0xff]
  %v166 = vld [vmem:[%s1 + $0x2a8] sm:$0xff]
  %v167 = vld [vmem:[%s1 + $0x2b0] sm:$0xff]
  %v168 = vld [vmem:[%s1 + $0x2b8] sm:$0xff]
  %v169 = vld [vmem:[%s1 + $0x2c0] sm:$0xff]
  %v170 = vld [vmem:[%s1 + $0x2c8] sm:$0xff]
  %v171 = vld [vmem:[%s1 + $0x2d0] sm:$0xff]
  %v172 = vld [vmem:[%s1 + $0x2d8] sm:$0xff]
  %v173 = vld [vmem:[%s1 + $0x2e0] sm:$0xff]
  %v174 = vld [vmem:[%s1 + $0x2e8] sm:$0xff]
  %v175 = vld [vmem:[%s1 + $0x2f0] sm:$0xff]
  %v176 = vld [vmem:[%s1 + $0x2f8] sm:$0xff]
  %v177 = vld [vmem:[%s1 + $0x300] sm:$0xff]
  %v178 = vld [vmem:[%s1 + $0x308] sm:$0xff]
  %v179 = vld [vmem:[%s1 + $0x310] sm:$0xff]
  %v180 = vld [vmem:[%s1 + $0x318] sm:$0xff]
  %v181 = vld [vmem:[%s1 + $0x320] sm:$0xff]
  %v182 = vld [vmem:[%s1 + $0x328] sm:$0xff]
  %v183 = vld [vmem:[%s1 + $0x330] sm:$0xff]
  %v184 = vld [vmem:[%s1 + $0x338] sm:$0xff]
  %v185 = vld [vmem:[%s1 + $0x340] sm:$0xff]
  %v186 = vld [vmem:[%s1 + $0x348] sm:$0xff]
  %v187 = vld [vmem:[%s1 + $0x350] sm:$0xff]
  %v188 = vld [vmem:[%s1 + $0x358] sm:$0xff]
  %v189 = vld [vmem:[%s1 + $0x360] sm:$0xff]
  %v190 = vld [vmem:[%s1 + $0x368] sm:$0xff]
  %v191 = vld [vmem:[%s1 + $0x370] sm:$0xff]
  %v192 = vld [vmem:[%s1 + $0x378] sm:$0xff]
  %v193 = vld [vmem:[%s1 + $0x380] sm:$0xff]
  %v194 = vld [vmem:[%s1 + $0x388] sm:$0xff]
  %v195 = vld [vmem:[%s1 + $0x390] sm:$0xff]
  %v196 = vld [vmem:[%s1 + $0x398] sm:$0xff]
  %v197 = vld [vmem:[%s1 + $0x3a0] sm:$0xff]
  %v198 = vld [vmem:[%s1 + $0x3a8] sm:$0xff]
  %v199 = vld [vmem:[%s1 + $0x3b0] sm:$0xff]
  %v200 = vld [vmem:[%s1 + $0x3b8] sm:$0xff]
  %v201 = vld [vmem:[%s1 + $0x3c0] sm:$0xff]
  %v202 = vld [vmem:[%s1 + $0x3c8] sm:$0xff]
  %v203 = vld [vmem:[%s1 + $0x3d0] sm:$0xff]
  %v204 = vld [vmem:[%s1 + $0x3d8] sm:$0xff]
  %v205 = vld [vmem:[%s1 + $0x3e0] sm:$0xff]
  %v206 = vld [vmem:[%s1 + $0x3e8] sm:$0xff]
  %v207 = vld [vmem:[%s1 + $0x3f0] sm:$0xff]
  %v208 = vld [vmem:[%s1 + $0x3f8] sm:$0xff]
  %v209 = vld [vmem:[%s1 + $0x400] sm:$0xff]
  %v210 = vld [vmem:[%s1 + $0x408] sm:$0xff]
  %v211 = vld [vmem:[%s1 + $0x410] sm:$0xff]
  %v212 = vld [vmem:[%s1 + $0x418] sm:$0xff]
  %v213 = vld [vmem:[%s1 + $0x420] sm:$0xff]
  %v214 = vld [vmem:[%s1 + $0x428] sm:$0xff]
  %v215 = vld [vmem:[%s1 + $0x430] sm:$0xff]
  %v216 = vld [vmem:[%s1 + $0x438] sm:$0xff]
  %v217 = vld [vmem:[%s1 + $0x440] sm:$0xff]
  %v218 = vld [vmem:[%s1 + $0x448] sm:$0xff]
  %v219 = vld [vmem:[%s1 + $0x450] sm:$0xff]
  %v220 = vld [vmem:[%s1 + $0x458] sm:$0xff]
  %v221 = vld [vmem:[%s1 + $0x460] sm:$0xff]
  %v222 = vld [vmem:[%s1 + $0x468] sm:$0xff]
  %v223 = vld [vmem:[%s1 + $0x470] sm:$0xff]
  %v224 = vld [vmem:[%s1 + $0x478] sm:$0xff]
  %v225 = vld [vmem:[%s1 + $0x480] sm:$0xff]
  %v226 = vld [vmem:[%s1 + $0x488] sm:$0xff]
  %v227 = vld [vmem:[%s1 + $0x490] sm:$0xff]
  %v228 = vld [vmem:[%s1 + $0x498] sm:$0xff]
  %v229 = vld [vmem:[%s1 + $0x4a0] sm:$0xff]
  %v230 = vld [vmem:[%s1 + $0x4a8] sm:$0xff]
  %v231 = vld [vmem:[%s1 + $0x4b0] sm:$0xff]
  %v232 = vld [vmem:[%s1 + $0x4b8] sm:$0xff]
  %v233 = vld [vmem:[%s1 + $0x4c0] sm:$0xff]
  %v234 = vld [vmem:[%s1 + $0x4c8] sm:$0xff]
  %v235 = vld [vmem:[%s1 + $0x4d0] sm:$0xff]
  %v236 = vld [vmem:[%s1 + $0x4d8] sm:$0xff]
  %v237 = vld [vmem:[%s1 + $0x4e0] sm:$0xff]
  %v238 = vld [vmem:[%s1 + $0x4e8] sm:$0xff]
  %v239 = vld [vmem:[%s1 + $0x4f0] sm:$0xff]
  %v240 = vld [vmem:[%s1 + $0x4f8] sm:$0xff]
  %v281 = vunpack.c.l.b16 %v41
  %v282 = vunpack.c.h.b16 %v41
  %v283 = vunpack.c.l.b16 %v42
  %v284 = vunpack.c.h.b16 %v42
  %v285 = vunpack.c.l.b16 %v43
  %v286 = vunpack.c.h.b16 %v43
  %v287 = vunpack.c.l.b16 %v44
  %v288 = vunpack.c.h.b16 %v44
  %v289 = vunpack.c.l.b16 %v45
  %v290 = vunpack.c.h.b16 %v45
  %v291 = vunpack.c.l.b16 %v46
  %v292 = vunpack.c.h.b16 %v46
  %v293 = vunpack.c.l.b16 %v47
  %v294 = vunpack.c.h.b16 %v47
  %v295 = vunpack.c.l.b16 %v48
  %v296 = vunpack.c.h.b16 %v48
  %v297 = vunpack.c.l.b16 %v49
  %v298 = vunpack.c.h.b16 %v49
  %v299 = vunpack.c.l.b16 %v50
  %v300 = vunpack.c.h.b16 %v50
  %v301 = vunpack.c.l.b16 %v51
  %v302 = vunpack.c.h.b16 %v51
  %v303 = vunpack.c.l.b16 %v52
  %v304 = vunpack.c.h.b16 %v52
  %v305 = vunpack.c.l.b16 %v53
  %v306 = vunpack.c.h.b16 %v53
  %v307 = vunpack.c.l.b16 %v54
  %v308 = vunpack.c.h.b16 %v54
  %v309 = vunpack.c.l.b16 %v55
  %v310 = vunpack.c.h.b16 %v55
  %v311 = vunpack.c.l.b16 %v56
  %v312 = vunpack.c.h.b16 %v56
  %v313 = vunpack.c.l.b16 %v57
  %v314 = vunpack.c.h.b16 %v57
  %v315 = vunpack.c.l.b16 %v58
  %v316 = vunpack.c.h.b16 %v58
  %v317 = vunpack.c.l.b16 %v59
  %v318 = vunpack.c.h.b16 %v59
  %v319 = vunpack.c.l.b16 %v60
  %v320 = vunpack.c.h.b16 %v60
  %v321 = vunpack.c.l.b16 %v61
  %v322 = vunpack.c.h.b16 %v61
  %v323 = vunpack.c.l.b16 %v62
  %v324 = vunpack.c.h.b16 %v62
  %v325 = vunpack.c.l.b16 %v63
  %v326 = vunpack.c.h.b16 %v63
  %v327 = vunpack.c.l.b16 %v64
  %v328 = vunpack.c.h.b16 %v64
  %v329 = vunpack.c.l.b16 %v65
  %v330 = vunpack.c.h.b16 %v65
  %v331 = vunpack.c.l.b16 %v66
  %v332 = vunpack.c.h.b16 %v66
  %v333 = vunpack.c.l.b16 %v67
  %v334 = vunpack.c.h.b16 %v67
  %v335 = vunpack.c.l.b16 %v68
  %v336 = vunpack.c.h.b16 %v68
  %v337 = vunpack.c.l.b16 %v69
  %v338 = vunpack.c.h.b16 %v69
  %v339 = vunpack.c.l.b16 %v70
  %v340 = vunpack.c.h.b16 %v70
  %v341 = vunpack.c.l.b16 %v71
  %v342 = vunpack.c.h.b16 %v71
  %v343 = vunpack.c.l.b16 %v72
  %v344 = vunpack.c.h.b16 %v72
  %v345 = vunpack.c.l.b16 %v73
  %v346 = vunpack.c.h.b16 %v73
  %v347 = vunpack.c.l.b16 %v74
  %v348 = vunpack.c.h.b16 %v74
  %v349 = vunpack.c.l.b16 %v75
  %v350 = vunpack.c.h.b16 %v75
  %v351 = vunpack.c.l.b16 %v76
  %v352 = vunpack.c.h.b16 %v76
  %v353 = vunpack.c.l.b16 %v77
  %v354 = vunpack.c.h.b16 %v77
  %v355 = vunpack.c.l.b16 %v78
  %v356 = vunpack.c.h.b16 %v78
  %v357 = vunpack.c.l.b16 %v79
  %v358 = vunpack.c.h.b16 %v79
  %v359 = vunpack.c.l.b16 %v80
  %v360 = vunpack.c.h.b16 %v80
  %v361 = vpack.c.b16 %v291, %v281
  %v362 = vpack.c.b16 %v292, %v282
  %v363 = vpack.c.b16 %v293, %v283
  %v364 = vpack.c.b16 %v294, %v284
  %v365 = vpack.c.b16 %v295, %v285
  %v366 = vpack.c.b16 %v296, %v286
  %v367 = vpack.c.b16 %v297, %v287
  %v368 = vpack.c.b16 %v298, %v288
  %v369 = vpack.c.b16 %v299, %v289
  %v370 = vpack.c.b16 %v300, %v290
  %v371 = vpack.c.b16 %v311, %v301
  %v372 = vpack.c.b16 %v312, %v302
  %v373 = vpack.c.b16 %v313, %v303
  %v374 = vpack.c.b16 %v314, %v304
  %v375 = vpack.c.b16 %v315, %v305
  %v376 = vpack.c.b16 %v316, %v306
  %v377 = vpack.c.b16 %v317, %v307
  %v378 = vpack.c.b16 %v318, %v308
  %v379 = vpack.c.b16 %v319, %v309
  %v380 = vpack.c.b16 %v320, %v310
  %v381 = vpack.c.b16 %v331, %v321
  %v382 = vpack.c.b16 %v332, %v322
  %v383 = vpack.c.b16 %v333, %v323
  %v384 = vpack.c.b16 %v334, %v324
  %v385 = vpack.c.b16 %v335, %v325
  %v386 = vpack.c.b16 %v336, %v326
  %v387 = vpack.c.b16 %v337, %v327
  %v388 = vpack.c.b16 %v338, %v328
  %v389 = vpack.c.b16 %v339, %v329
  %v390 = vpack.c.b16 %v340, %v330
  %v391 = vpack.c.b16 %v351, %v341
  %v392 = vpack.c.b16 %v352, %v342
  %v393 = vpack.c.b16 %v353, %v343
  %v394 = vpack.c.b16 %v354, %v344
  %v395 = vpack.c.b16 %v355, %v345
  %v396 = vpack.c.b16 %v356, %v346
  %v397 = vpack.c.b16 %v357, %v347
  %v398 = vpack.c.b16 %v358, %v348
  %v399 = vpack.c.b16 %v359, %v349
  %v400 = vpack.c.b16 %v360, %v350
  %v601 = vunpack.c.l.b16 %v81
  %v602 = vunpack.c.h.b16 %v81
  %v603 = vunpack.c.l.b16 %v82
  %v604 = vunpack.c.h.b16 %v82
  %v605 = vunpack.c.l.b16 %v83
  %v606 = vunpack.c.h.b16 %v83
  %v607 = vunpack.c.l.b16 %v84
  %v608 = vunpack.c.h.b16 %v84
  %v609 = vunpack.c.l.b16 %v85
  %v610 = vunpack.c.h.b16 %v85
  %v611 = vunpack.c.l.b16 %v86
  %v612 = vunpack.c.h.b16 %v86
  %v613 = vunpack.c.l.b16 %v87
  %v614 = vunpack.c.h.b16 %v87
  %v615 = vunpack.c.l.b16 %v88
  %v616 = vunpack.c.h.b16 %v88
  %v617 = vunpack.c.l.b16 %v89
  %v618 = vunpack.c.h.b16 %v89
  %v619 = vunpack.c.l.b16 %v90
  %v620 = vunpack.c.h.b16 %v90
  %v621 = vunpack.c.l.b16 %v91
  %v622 = vunpack.c.h.b16 %v91
  %v623 = vunpack.c.l.b16 %v92
  %v624 = vunpack.c.h.b16 %v92
  %v625 = vunpack.c.l.b16 %v93
  %v626 = vunpack.c.h.b16 %v93
  %v627 = vunpack.c.l.b16 %v94
  %v628 = vunpack.c.h.b16 %v94
  %v629 = vunpack.c.l.b16 %v95
  %v630 = vunpack.c.h.b16 %v95
  %v631 = vunpack.c.l.b16 %v96
  %v632 = vunpack.c.h.b16 %v96
  %v633 = vunpack.c.l.b16 %v97
  %v634 = vunpack.c.h.b16 %v97
  %v635 = vunpack.c.l.b16 %v98
  %v636 = vunpack.c.h.b16 %v98
  %v637 = vunpack.c.l.b16 %v99
  %v638 = vunpack.c.h.b16 %v99
  %v639 = vunpack.c.l.b16 %v100
  %v640 = vunpack.c.h.b16 %v100
  %v641 = vunpack.c.l.b16 %v101
  %v642 = vunpack.c.h.b16 %v101
  %v643 = vunpack.c.l.b16 %v102
  %v644 = vunpack.c.h.b16 %v102
  %v645 = vunpack.c.l.b16 %v103
  %v646 = vunpack.c.h.b16 %v103
  %v647 = vunpack.c.l.b16 %v104
  %v648 = vunpack.c.h.b16 %v104
  %v649 = vunpack.c.l.b16 %v105
  %v650 = vunpack.c.h.b16 %v105
  %v651 = vunpack.c.l.b16 %v106
  %v652 = vunpack.c.h.b16 %v106
  %v653 = vunpack.c.l.b16 %v107
  %v654 = vunpack.c.h.b16 %v107
  %v655 = vunpack.c.l.b16 %v108
  %v656 = vunpack.c.h.b16 %v108
  %v657 = vunpack.c.l.b16 %v109
  %v658 = vunpack.c.h.b16 %v109
  %v659 = vunpack.c.l.b16 %v110
  %v660 = vunpack.c.h.b16 %v110
  %v661 = vunpack.c.l.b16 %v111
  %v662 = vunpack.c.h.b16 %v111
  %v663 = vunpack.c.l.b16 %v112
  %v664 = vunpack.c.h.b16 %v112
  %v665 = vunpack.c.l.b16 %v113
  %v666 = vunpack.c.h.b16 %v113
  %v667 = vunpack.c.l.b16 %v114
  %v668 = vunpack.c.h.b16 %v114
  %v669 = vunpack.c.l.b16 %v115
  %v670 = vunpack.c.h.b16 %v115
  %v671 = vunpack.c.l.b16 %v116
  %v672 = vunpack.c.h.b16 %v116
  %v673 = vunpack.c.l.b16 %v117
  %v674 = vunpack.c.h.b16 %v117
  %v675 = vunpack.c.l.b16 %v118
  %v676 = vunpack.c.h.b16 %v118
  %v677 = vunpack.c.l.b16 %v119
  %v678 = vunpack.c.h.b16 %v119
  %v679 = vunpack.c.l.b16 %v120
  %v680 = vunpack.c.h.b16 %v120
  %v681 = vunpack.c.l.b16 %v121
  %v682 = vunpack.c.h.b16 %v121
  %v683 = vunpack.c.l.b16 %v122
  %v684 = vunpack.c.h.b16 %v122
  %v685 = vunpack.c.l.b16 %v123
  %v686 = vunpack.c.h.b16 %v123
  %v687 = vunpack.c.l.b16 %v124
  %v688 = vunpack.c.h.b16 %v124
  %v689 = vunpack.c.l.b16 %v125
  %v690 = vunpack.c.h.b16 %v125
  %v691 = vunpack.c.l.b16 %v126
  %v692 = vunpack.c.h.b16 %v126
  %v693 = vunpack.c.l.b16 %v127
  %v694 = vunpack.c.h.b16 %v127
  %v695 = vunpack.c.l.b16 %v128
  %v696 = vunpack.c.h.b16 %v128
  %v697 = vunpack.c.l.b16 %v129
  %v698 = vunpack.c.h.b16 %v129
  %v699 = vunpack.c.l.b16 %v130
  %v700 = vunpack.c.h.b16 %v130
  %v701 = vunpack.c.l.b16 %v131
  %v702 = vunpack.c.h.b16 %v131
  %v703 = vunpack.c.l.b16 %v132
  %v704 = vunpack.c.h.b16 %v132
  %v705 = vunpack.c.l.b16 %v133
  %v706 = vunpack.c.h.b16 %v133
  %v707 = vunpack.c.l.b16 %v134
  %v708 = vunpack.c.h.b16 %v134
  %v709 = vunpack.c.l.b16 %v135
  %v710 = vunpack.c.h.b16 %v135
  %v711 = vunpack.c.l.b16 %v136
  %v712 = vunpack.c.h.b16 %v136
  %v713 = vunpack.c.l.b16 %v137
  %v714 = vunpack.c.h.b16 %v137
  %v715 = vunpack.c.l.b16 %v138
  %v716 = vunpack.c.h.b16 %v138
  %v717 = vunpack.c.l.b16 %v139
  %v718 = vunpack.c.h.b16 %v139
  %v719 = vunpack.c.l.b16 %v140
  %v720 = vunpack.c.h.b16 %v140
  %v721 = vunpack.c.l.b16 %v141
  %v722 = vunpack.c.h.b16 %v141
  %v723 = vunpack.c.l.b16 %v142
  %v724 = vunpack.c.h.b16 %v142
  %v725 = vunpack.c.l.b16 %v143
  %v726 = vunpack.c.h.b16 %v143
  %v727 = vunpack.c.l.b16 %v144
  %v728 = vunpack.c.h.b16 %v144
  %v729 = vunpack.c.l.b16 %v145
  %v730 = vunpack.c.h.b16 %v145
  %v731 = vunpack.c.l.b16 %v146
  %v732 = vunpack.c.h.b16 %v146
  %v733 = vunpack.c.l.b16 %v147
  %v734 = vunpack.c.h.b16 %v147
  %v735 = vunpack.c.l.b16 %v148
  %v736 = vunpack.c.h.b16 %v148
  %v737 = vunpack.c.l.b16 %v149
  %v738 = vunpack.c.h.b16 %v149
  %v739 = vunpack.c.l.b16 %v150
  %v740 = vunpack.c.h.b16 %v150
  %v741 = vunpack.c.l.b16 %v151
  %v742 = vunpack.c.h.b16 %v151
  %v743 = vunpack.c.l.b16 %v152
  %v744 = vunpack.c.h.b16 %v152
  %v745 = vunpack.c.l.b16 %v153
  %v746 = vunpack.c.h.b16 %v153
  %v747 = vunpack.c.l.b16 %v154
  %v748 = vunpack.c.h.b16 %v154
  %v749 = vunpack.c.l.b16 %v155
  %v750 = vunpack.c.h.b16 %v155
  %v751 = vunpack.c.l.b16 %v156
  %v752 = vunpack.c.h.b16 %v156
  %v753 = vunpack.c.l.b16 %v157
  %v754 = vunpack.c.h.b16 %v157
  %v755 = vunpack.c.l.b16 %v158
  %v756 = vunpack.c.h.b16 %v158
  %v757 = vunpack.c.l.b16 %v159
  %v758 = vunpack.c.h.b16 %v159
  %v759 = vunpack.c.l.b16 %v160
  %v760 = vunpack.c.h.b16 %v160
  %v761 = vunpack.c.l.b16 %v161
  %v762 = vunpack.c.h.b16 %v161
  %v763 = vunpack.c.l.b16 %v162
  %v764 = vunpack.c.h.b16 %v162
  %v765 = vunpack.c.l.b16 %v163
  %v766 = vunpack.c.h.b16 %v163
  %v767 = vunpack.c.l.b16 %v164
  %v768 = vunpack.c.h.b16 %v164
  %v769 = vunpack.c.l.b16 %v165
  %v770 = vunpack.c.h.b16 %v165
  %v771 = vunpack.c.l.b16 %v166
  %v772 = vunpack.c.h.b16 %v166
  %v773 = vunpack.c.l.b16 %v167
  %v774 = vunpack.c.h.b16 %v167
  %v775 = vunpack.c.l.b16 %v168
  %v776 = vunpack.c.h.b16 %v168
  %v777 = vunpack.c.l.b16 %v169
  %v778 = vunpack.c.h.b16 %v169
  %v779 = vunpack.c.l.b16 %v170
  %v780 = vunpack.c.h.b16 %v170
  %v781 = vunpack.c.l.b16 %v171
  %v782 = vunpack.c.h.b16 %v171
  %v783 = vunpack.c.l.b16 %v172
  %v784 = vunpack.c.h.b16 %v172
  %v785 = vunpack.c.l.b16 %v173
  %v786 = vunpack.c.h.b16 %v173
  %v787 = vunpack.c.l.b16 %v174
  %v788 = vunpack.c.h.b16 %v174
  %v789 = vunpack.c.l.b16 %v175
  %v790 = vunpack.c.h.b16 %v175
  %v791 = vunpack.c.l.b16 %v176
  %v792 = vunpack.c.h.b16 %v176
  %v793 = vunpack.c.l.b16 %v177
  %v794 = vunpack.c.h.b16 %v177
  %v795 = vunpack.c.l.b16 %v178
  %v796 = vunpack.c.h.b16 %v178
  %v797 = vunpack.c.l.b16 %v179
  %v798 = vunpack.c.h.b16 %v179
  %v799 = vunpack.c.l.b16 %v180
  %v800 = vunpack.c.h.b16 %v180
  %v801 = vunpack.c.l.b16 %v181
  %v802 = vunpack.c.h.b16 %v181
  %v803 = vunpack.c.l.b16 %v182
  %v804 = vunpack.c.h.b16 %v182
  %v805 = vunpack.c.l.b16 %v183
  %v806 = vunpack.c.h.b16 %v183
  %v807 = vunpack.c.l.b16 %v184
  %v808 = vunpack.c.h.b16 %v184
  %v809 = vunpack.c.l.b16 %v185
  %v810 = vunpack.c.h.b16 %v185
  %v811 = vunpack.c.l.b16 %v186
  %v812 = vunpack.c.h.b16 %v186
  %v813 = vunpack.c.l.b16 %v187
  %v814 = vunpack.c.h.b16 %v187
  %v815 = vunpack.c.l.b16 %v188
  %v816 = vunpack.c.h.b16 %v188
  %v817 = vunpack.c.l.b16 %v189
  %v818 = vunpack.c.h.b16 %v189
  %v819 = vunpack.c.l.b16 %v190
  %v820 = vunpack.c.h.b16 %v190
  %v821 = vunpack.c.l.b16 %v191
  %v822 = vunpack.c.h.b16 %v191
  %v823 = vunpack.c.l.b16 %v192
  %v824 = vunpack.c.h.b16 %v192
  %v825 = vunpack.c.l.b16 %v193
  %v826 = vunpack.c.h.b16 %v193
  %v827 = vunpack.c.l.b16 %v194
  %v828 = vunpack.c.h.b16 %v194
  %v829 = vunpack.c.l.b16 %v195
  %v830 = vunpack.c.h.b16 %v195
  %v831 = vunpack.c.l.b16 %v196
  %v832 = vunpack.c.h.b16 %v196
  %v833 = vunpack.c.l.b16 %v197
  %v834 = vunpack.c.h.b16 %v197
  %v835 = vunpack.c.l.b16 %v198
  %v836 = vunpack.c.h.b16 %v198
  %v837 = vunpack.c.l.b16 %v199
  %v838 = vunpack.c.h.b16 %v199
  %v839 = vunpack.c.l.b16 %v200
  %v840 = vunpack.c.h.b16 %v200
  %v841 = vunpack.c.l.b16 %v201
  %v842 = vunpack.c.h.b16 %v201
  %v843 = vunpack.c.l.b16 %v202
  %v844 = vunpack.c.h.b16 %v202
  %v845 = vunpack.c.l.b16 %v203
  %v846 = vunpack.c.h.b16 %v203
  %v847 = vunpack.c.l.b16 %v204
  %v848 = vunpack.c.h.b16 %v204
  %v849 = vunpack.c.l.b16 %v205
  %v850 = vunpack.c.h.b16 %v205
  %v851 = vunpack.c.l.b16 %v206
  %v852 = vunpack.c.h.b16 %v206
  %v853 = vunpack.c.l.b16 %v207
  %v854 = vunpack.c.h.b16 %v207
  %v855 = vunpack.c.l.b16 %v208
  %v856 = vunpack.c.h.b16 %v208
  %v857 = vunpack.c.l.b16 %v209
  %v858 = vunpack.c.h.b16 %v209
  %v859 = vunpack.c.l.b16 %v210
  %v860 = vunpack.c.h.b16 %v210
  %v861 = vunpack.c.l.b16 %v211
  %v862 = vunpack.c.h.b16 %v211
  %v863 = vunpack.c.l.b16 %v212
  %v864 = vunpack.c.h.b16 %v212
  %v865 = vunpack.c.l.b16 %v213
  %v866 = vunpack.c.h.b16 %v213
  %v867 = vunpack.c.l.b16 %v214
  %v868 = vunpack.c.h.b16 %v214
  %v869 = vunpack.c.l.b16 %v215
  %v870 = vunpack.c.h.b16 %v215
  %v871 = vunpack.c.l.b16 %v216
  %v872 = vunpack.c.h.b16 %v216
  %v873 = vunpack.c.l.b16 %v217
  %v874 = vunpack.c.h.b16 %v217
  %v875 = vunpack.c.l.b16 %v218
  %v876 = vunpack.c.h.b16 %v218
  %v877 = vunpack.c.l.b16 %v219
  %v878 = vunpack.c.h.b16 %v219
  %v879 = vunpack.c.l.b16 %v220
  %v880 = vunpack.c.h.b16 %v220
  %v881 = vunpack.c.l.b16 %v221
  %v882 = vunpack.c.h.b16 %v221
  %v883 = vunpack.c.l.b16 %v222
  %v884 = vunpack.c.h.b16 %v222
  %v885 = vunpack.c.l.b16 %v223
  %v886 = vunpack.c.h.b16 %v223
  %v887 = vunpack.c.l.b16 %v224
  %v888 = vunpack.c.h.b16 %v224
  %v889 = vunpack.c.l.b16 %v225
  %v890 = vunpack.c.h.b16 %v225
  %v891 = vunpack.c.l.b16 %v226
  %v892 = vunpack.c.h.b16 %v226
  %v893 = vunpack.c.l.b16 %v227
  %v894 = vunpack.c.h.b16 %v227
  %v895 = vunpack.c.l.b16 %v228
  %v896 = vunpack.c.h.b16 %v228
  %v897 = vunpack.c.l.b16 %v229
  %v898 = vunpack.c.h.b16 %v229
  %v899 = vunpack.c.l.b16 %v230
  %v900 = vunpack.c.h.b16 %v230
  %v901 = vunpack.c.l.b16 %v231
  %v902 = vunpack.c.h.b16 %v231
  %v903 = vunpack.c.l.b16 %v232
  %v904 = vunpack.c.h.b16 %v232
  %v905 = vunpack.c.l.b16 %v233
  %v906 = vunpack.c.h.b16 %v233
  %v907 = vunpack.c.l.b16 %v234
  %v908 = vunpack.c.h.b16 %v234
  %v909 = vunpack.c.l.b16 %v235
  %v910 = vunpack.c.h.b16 %v235
  %v911 = vunpack.c.l.b16 %v236
  %v912 = vunpack.c.h.b16 %v236
  %v913 = vunpack.c.l.b16 %v237
  %v914 = vunpack.c.h.b16 %v237
  %v915 = vunpack.c.l.b16 %v238
  %v916 = vunpack.c.h.b16 %v238
  %v917 = vunpack.c.l.b16 %v239
  %v918 = vunpack.c.h.b16 %v239
  %v919 = vunpack.c.l.b16 %v240
  %v920 = vunpack.c.h.b16 %v240
  %v921 = vpack.c.b16 %v603, %v601
  %v922 = vpack.c.b16 %v604, %v602
  %v923 = vpack.c.b16 %v607, %v605
  %v924 = vpack.c.b16 %v608, %v606
  %v925 = vpack.c.b16 %v611, %v609
  %v926 = vpack.c.b16 %v612, %v610
  %v927 = vpack.c.b16 %v615, %v613
  %v928 = vpack.c.b16 %v616, %v614
  %v929 = vpack.c.b16 %v619, %v617
  %v930 = vpack.c.b16 %v620, %v618
  %v931 = vpack.c.b16 %v623, %v621
  %v932 = vpack.c.b16 %v624, %v622
  %v933 = vpack.c.b16 %v627, %v625
  %v934 = vpack.c.b16 %v628, %v626
  %v935 = vpack.c.b16 %v631, %v629
  %v936 = vpack.c.b16 %v632, %v630
  %v937 = vpack.c.b16 %v635, %v633
  %v938 = vpack.c.b16 %v636, %v634
  %v939 = vpack.c.b16 %v639, %v637
  %v940 = vpack.c.b16 %v640, %v638
  %v941 = vpack.c.b16 %v643, %v641
  %v942 = vpack.c.b16 %v644, %v642
  %v943 = vpack.c.b16 %v647, %v645
  %v944 = vpack.c.b16 %v648, %v646
  %v945 = vpack.c.b16 %v651, %v649
  %v946 = vpack.c.b16 %v652, %v650
  %v947 = vpack.c.b16 %v655, %v653
  %v948 = vpack.c.b16 %v656, %v654
  %v949 = vpack.c.b16 %v659, %v657
  %v950 = vpack.c.b16 %v660, %v658
  %v951 = vpack.c.b16 %v663, %v661
  %v952 = vpack.c.b16 %v664, %v662
  %v953 = vpack.c.b16 %v667, %v665
  %v954 = vpack.c.b16 %v668, %v666
  %v955 = vpack.c.b16 %v671, %v669
  %v956 = vpack.c.b16 %v672, %v670
  %v957 = vpack.c.b16 %v675, %v673
  %v958 = vpack.c.b16 %v676, %v674
  %v959 = vpack.c.b16 %v679, %v677
  %v960 = vpack.c.b16 %v680, %v678
  %v961 = vpack.c.b16 %v683, %v681
  %v962 = vpack.c.b16 %v684, %v682
  %v963 = vpack.c.b16 %v687, %v685
  %v964 = vpack.c.b16 %v688, %v686
  %v965 = vpack.c.b16 %v691, %v689
  %v966 = vpack.c.b16 %v692, %v690
  %v967 = vpack.c.b16 %v695, %v693
  %v968 = vpack.c.b16 %v696, %v694
  %v969 = vpack.c.b16 %v699, %v697
  %v970 = vpack.c.b16 %v700, %v698
  %v971 = vpack.c.b16 %v703, %v701
  %v972 = vpack.c.b16 %v704, %v702
  %v973 = vpack.c.b16 %v707, %v705
  %v974 = vpack.c.b16 %v708, %v706
  %v975 = vpack.c.b16 %v711, %v709
  %v976 = vpack.c.b16 %v712, %v710
  %v977 = vpack.c.b16 %v715, %v713
  %v978 = vpack.c.b16 %v716, %v714
  %v979 = vpack.c.b16 %v719, %v717
  %v980 = vpack.c.b16 %v720, %v718
  %v981 = vpack.c.b16 %v723, %v721
  %v982 = vpack.c.b16 %v724, %v722
  %v983 = vpack.c.b16 %v727, %v725
  %v984 = vpack.c.b16 %v728, %v726
  %v985 = vpack.c.b16 %v731, %v729
  %v986 = vpack.c.b16 %v732, %v730
  %v987 = vpack.c.b16 %v735, %v733
  %v988 = vpack.c.b16 %v736, %v734
  %v989 = vpack.c.b16 %v739, %v737
  %v990 = vpack.c.b16 %v740, %v738
  %v991 = vpack.c.b16 %v743, %v741
  %v992 = vpack.c.b16 %v744, %v742
  %v993 = vpack.c.b16 %v747, %v745
  %v994 = vpack.c.b16 %v748, %v746
  %v995 = vpack.c.b16 %v751, %v749
  %v996 = vpack.c.b16 %v752, %v750
  %v997 = vpack.c.b16 %v755, %v753
  %v998 = vpack.c.b16 %v756, %v754
  %v999 = vpack.c.b16 %v759, %v757
  %v1000 = vpack.c.b16 %v760, %v758
  %v1001 = vpack.c.b16 %v763, %v761
  %v1002 = vpack.c.b16 %v764, %v762
  %v1003 = vpack.c.b16 %v767, %v765
  %v1004 = vpack.c.b16 %v768, %v766
  %v1005 = vpack.c.b16 %v771, %v769
  %v1006 = vpack.c.b16 %v772, %v770
  %v1007 = vpack.c.b16 %v775, %v773
  %v1008 = vpack.c.b16 %v776, %v774
  %v1009 = vpack.c.b16 %v779, %v777
  %v1010 = vpack.c.b16 %v780, %v778
  %v1011 = vpack.c.b16 %v783, %v781
  %v1012 = vpack.c.b16 %v784, %v782
  %v1013 = vpack.c.b16 %v787, %v785
  %v1014 = vpack.c.b16 %v788, %v786
  %v1015 = vpack.c.b16 %v791, %v789
  %v1016 = vpack.c.b16 %v792, %v790
  %v1017 = vpack.c.b16 %v795, %v793
  %v1018 = vpack.c.b16 %v796, %v794
  %v1019 = vpack.c.b16 %v799, %v797
  %v1020 = vpack.c.b16 %v800, %v798
  %v1021 = vpack.c.b16 %v803, %v801
  %v1022 = vpack.c.b16 %v804, %v802
  %v1023 = vpack.c.b16 %v807, %v805
  %v1024 = vpack.c.b16 %v808, %v806
  %v1025 = vpack.c.b16 %v811, %v809
  %v1026 = vpack.c.b16 %v812, %v810
  %v1027 = vpack.c.b16 %v815, %v813
  %v1028 = vpack.c.b16 %v816, %v814
  %v1029 = vpack.c.b16 %v819, %v817
  %v1030 = vpack.c.b16 %v820, %v818
  %v1031 = vpack.c.b16 %v823, %v821
  %v1032 = vpack.c.b16 %v824, %v822
  %v1033 = vpack.c.b16 %v827, %v825
  %v1034 = vpack.c.b16 %v828, %v826
  %v1035 = vpack.c.b16 %v831, %v829
  %v1036 = vpack.c.b16 %v832, %v830
  %v1037 = vpack.c.b16 %v835, %v833
  %v1038 = vpack.c.b16 %v836, %v834
  %v1039 = vpack.c.b16 %v839, %v837
  %v1040 = vpack.c.b16 %v840, %v838
  %v1041 = vpack.c.b16 %v843, %v841
  %v1042 = vpack.c.b16 %v844, %v842
  %v1043 = vpack.c.b16 %v847, %v845
  %v1044 = vpack.c.b16 %v848, %v846
  %v1045 = vpack.c.b16 %v851, %v849
  %v1046 = vpack.c.b16 %v852, %v850
  %v1047 = vpack.c.b16 %v855, %v853
  %v1048 = vpack.c.b16 %v856, %v854
  %v1049 = vpack.c.b16 %v859, %v857
  %v1050 = vpack.c.b16 %v860, %v858
  %v1051 = vpack.c.b16 %v863, %v861
  %v1052 = vpack.c.b16 %v864, %v862
  %v1053 = vpack.c.b16 %v867, %v865
  %v1054 = vpack.c.b16 %v868, %v866
  %v1055 = vpack.c.b16 %v871, %v869
  %v1056 = vpack.c.b16 %v872, %v870
  %v1057 = vpack.c.b16 %v875, %v873
  %v1058 = vpack.c.b16 %v876, %v874
  %v1059 = vpack.c.b16 %v879, %v877
  %v1060 = vpack.c.b16 %v880, %v878
  %v1061 = vpack.c.b16 %v883, %v881
  %v1062 = vpack.c.b16 %v884, %v882
  %v1063 = vpack.c.b16 %v887, %v885
  %v1064 = vpack.c.b16 %v888, %v886
  %v1065 = vpack.c.b16 %v891, %v889
  %v1066 = vpack.c.b16 %v892, %v890
  %v1067 = vpack.c.b16 %v895, %v893
  %v1068 = vpack.c.b16 %v896, %v894
  %v1069 = vpack.c.b16 %v899, %v897
  %v1070 = vpack.c.b16 %v900, %v898
  %v1071 = vpack.c.b16 %v903, %v901
  %v1072 = vpack.c.b16 %v904, %v902
  %v1073 = vpack.c.b16 %v907, %v905
  %v1074 = vpack.c.b16 %v908, %v906
  %v1075 = vpack.c.b16 %v911, %v909
  %v1076 = vpack.c.b16 %v912, %v910
  %v1077 = vpack.c.b16 %v915, %v913
  %v1078 = vpack.c.b16 %v916, %v914
  %v1079 = vpack.c.b16 %v919, %v917
  %v1080 = vpack.c.b16 %v920, %v918
  %1241 = vmatpush.bf16.msra.mxu0 %v935
  %1242 = vmatpush.bf16.msra.mxu0 %v933
  %1243 = vmatpush.bf16.msra.mxu0 %v931
  %1244 = vmatpush.bf16.msra.mxu0 %v929
  %1245 = vmatpush.bf16.msra.mxu0 %v927
  %1246 = vmatpush.bf16.msra.mxu0 %v925
  %1247 = vmatpush.bf16.msra.mxu0 %v923
  %1248 = vmatpush.bf16.msra.mxu0 %v921
  %1249 = vmatmul.bf16.gmra.mxu0 %v361
  %v1250 = vpop.f32.mrf.mxu0
  %v1251 = vadd.f32 0.0, %v1250
  %v1252 = vpop.f32.mrf.mxu0
  %v1253 = vadd.f32 0.0, %v1252
  %1254 = vmatmul.bf16.gmra.mxu0 %v371
  %v1255 = vpop.f32.mrf.mxu0
  %v1256 = vadd.f32 0.0, %v1255
  %v1257 = vpop.f32.mrf.mxu0
  %v1258 = vadd.f32 0.0, %v1257
  %1259 = vmatmul.bf16.gmra.mxu0 %v381
  %v1260 = vpop.f32.mrf.mxu0
  %v1261 = vadd.f32 0.0, %v1260
  %v1262 = vpop.f32.mrf.mxu0
  %v1263 = vadd.f32 0.0, %v1262
  %1264 = vmatmul.bf16.gmra.mxu0 %v391
  %v1265 = vpop.f32.mrf.mxu0
  %v1266 = vadd.f32 0.0, %v1265
  %v1267 = vpop.f32.mrf.mxu0
  %v1268 = vadd.f32 0.0, %v1267
  %1269 = vdwg.mxu0
  %1270 = vmatpush.bf16.msra.mxu0 %v951
  %1271 = vmatpush.bf16.msra.mxu0 %v949
  %1272 = vmatpush.bf16.msra.mxu0 %v947
  %1273 = vmatpush.bf16.msra.mxu0 %v945
  %1274 = vmatpush.bf16.msra.mxu0 %v943
  %1275 = vmatpush.bf16.msra.mxu0 %v941
  %1276 = vmatpush.bf16.msra.mxu0 %v939
  %1277 = vmatpush.bf16.msra.mxu0 %v937
  %1278 = vmatmul.bf16.gmra.mxu0 %v362
  %v1279 = vpop.f32.mrf.mxu0
  %v1280 = vadd.f32 %v1251, %v1279
  %v1281 = vpop.f32.mrf.mxu0
  %v1282 = vadd.f32 %v1253, %v1281
  %1283 = vmatmul.bf16.gmra.mxu0 %v372
  %v1284 = vpop.f32.mrf.mxu0
  %v1285 = vadd.f32 %v1256, %v1284
  %v1286 = vpop.f32.mrf.mxu0
  %v1287 = vadd.f32 %v1258, %v1286
  %1288 = vmatmul.bf16.gmra.mxu0 %v382
  %v1289 = vpop.f32.mrf.mxu0
  %v1290 = vadd.f32 %v1261, %v1289
  %v1291 = vpop.f32.mrf.mxu0
  %v1292 = vadd.f32 %v1263, %v1291
  %1293 = vmatmul.bf16.gmra.mxu0 %v392
  %v1294 = vpop.f32.mrf.mxu0
  %v1295 = vadd.f32 %v1266, %v1294
  %v1296 = vpop.f32.mrf.mxu0
  %v1297 = vadd.f32 %v1268, %v1296
  %1298 = vdwg.mxu0
  %1299 = vmatpush.bf16.msra.mxu0 %v967
  %1300 = vmatpush.bf16.msra.mxu0 %v965
  %1301 = vmatpush.bf16.msra.mxu0 %v963
  %1302 = vmatpush.bf16.msra.mxu0 %v961
  %1303 = vmatpush.bf16.msra.mxu0 %v959
  %1304 = vmatpush.bf16.msra.mxu0 %v957
  %1305 = vmatpush.bf16.msra.mxu0 %v955
  %1306 = vmatpush.bf16.msra.mxu0 %v953
  %1307 = vmatmul.bf16.gmra.mxu0 %v363
  %v1308 = vpop.f32.mrf.mxu0
  %v1309 = vadd.f32 %v1280, %v1308
  %v1310 = vpop.f32.mrf.mxu0
  %v1311 = vadd.f32 %v1282, %v1310
  %1312 = vmatmul.bf16.gmra.mxu0 %v373
  %v1313 = vpop.f32.mrf.mxu0
  %v1314 = vadd.f32 %v1285, %v1313
  %v1315 = vpop.f32.mrf.mxu0
  %v1316 = vadd.f32 %v1287, %v1315
  %1317 = vmatmul.bf16.gmra.mxu0 %v383
  %v1318 = vpop.f32.mrf.mxu0
  %v1319 = vadd.f32 %v1290, %v1318
  %v1320 = vpop.f32.mrf.mxu0
  %v1321 = vadd.f32 %v1292, %v1320
  %1322 = vmatmul.bf16.gmra.mxu0 %v393
  %v1323 = vpop.f32.mrf.mxu0
  %v1324 = vadd.f32 %v1295, %v1323
  %v1325 = vpop.f32.mrf.mxu0
  %v1326 = vadd.f32 %v1297, %v1325
  %1327 = vdwg.mxu0
  %1328 = vmatpush.bf16.msra.mxu0 %v983
  %1329 = vmatpush.bf16.msra.mxu0 %v981
  %1330 = vmatpush.bf16.msra.mxu0 %v979
  %1331 = vmatpush.bf16.msra.mxu0 %v977
  %1332 = vmatpush.bf16.msra.mxu0 %v975
  %1333 = vmatpush.bf16.msra.mxu0 %v973
  %1334 = vmatpush.bf16.msra.mxu0 %v971
  %1335 = vmatpush.bf16.msra.mxu0 %v969
  %1336 = vmatmul.bf16.gmra.mxu0 %v364
  %v1337 = vpop.f32.mrf.mxu0
  %v1338 = vadd.f32 %v1309, %v1337
  %v1339 = vpop.f32.mrf.mxu0
  %v1340 = vadd.f32 %v1311, %v1339
  %1341 = vmatmul.bf16.gmra.mxu0 %v374
  %v1342 = vpop.f32.mrf.mxu0
  %v1343 = vadd.f32 %v1314, %v1342
  %v1344 = vpop.f32.mrf.mxu0
  %v1345 = vadd.f32 %v1316, %v1344
  %1346 = vmatmul.bf16.gmra.mxu0 %v384
  %v1347 = vpop.f32.mrf.mxu0
  %v1348 = vadd.f32 %v1319, %v1347
  %v1349 = vpop.f32.mrf.mxu0
  %v1350 = vadd.f32 %v1321, %v1349
  %1351 = vmatmul.bf16.gmra.mxu0 %v394
  %v1352 = vpop.f32.mrf.mxu0
  %v1353 = vadd.f32 %v1324, %v1352
  %v1354 = vpop.f32.mrf.mxu0
  %v1355 = vadd.f32 %v1326, %v1354
  %1356 = vdwg.mxu0
  %1357 = vmatpush.bf16.msra.mxu0 %v999
  %1358 = vmatpush.bf16.msra.mxu0 %v997
  %1359 = vmatpush.bf16.msra.mxu0 %v995
  %1360 = vmatpush.bf16.msra.mxu0 %v993
  %1361 = vmatpush.bf16.msra.mxu0 %v991
  %1362 = vmatpush.bf16.msra.mxu0 %v989
  %1363 = vmatpush.bf16.msra.mxu0 %v987
  %1364 = vmatpush.bf16.msra.mxu0 %v985
  %1365 = vmatmul.bf16.gmra.mxu0 %v365
  %v1366 = vpop.f32.mrf.mxu0
  %v1367 = vadd.f32 %v1338, %v1366
  %v1368 = vpop.f32.mrf.mxu0
  %v1369 = vadd.f32 %v1340, %v1368
  %1370 = vmatmul.bf16.gmra.mxu0 %v375
  %v1371 = vpop.f32.mrf.mxu0
  %v1372 = vadd.f32 %v1343, %v1371
  %v1373 = vpop.f32.mrf.mxu0
  %v1374 = vadd.f32 %v1345, %v1373
  %1375 = vmatmul.bf16.gmra.mxu0 %v385
  %v1376 = vpop.f32.mrf.mxu0
  %v1377 = vadd.f32 %v1348, %v1376
  %v1378 = vpop.f32.mrf.mxu0
  %v1379 = vadd.f32 %v1350, %v1378
  %1380 = vmatmul.bf16.gmra.mxu0 %v395
  %v1381 = vpop.f32.mrf.mxu0
  %v1382 = vadd.f32 %v1353, %v1381
  %v1383 = vpop.f32.mrf.mxu0
  %v1384 = vadd.f32 %v1355, %v1383
  %1385 = vdwg.mxu0
  %1386 = vmatpush.bf16.msra.mxu0 %v1015
  %1387 = vmatpush.bf16.msra.mxu0 %v1013
  %1388 = vmatpush.bf16.msra.mxu0 %v1011
  %1389 = vmatpush.bf16.msra.mxu0 %v1009
  %1390 = vmatpush.bf16.msra.mxu0 %v1007
  %1391 = vmatpush.bf16.msra.mxu0 %v1005
  %1392 = vmatpush.bf16.msra.mxu0 %v1003
  %1393 = vmatpush.bf16.msra.mxu0 %v1001
  %1394 = vmatmul.bf16.gmra.mxu0 %v366
  %v1395 = vpop.f32.mrf.mxu0
  %v1396 = vadd.f32 %v1367, %v1395
  %v1397 = vpop.f32.mrf.mxu0
  %v1398 = vadd.f32 %v1369, %v1397
  %1399 = vmatmul.bf16.gmra.mxu0 %v376
  %v1400 = vpop.f32.mrf.mxu0
  %v1401 = vadd.f32 %v1372, %v1400
  %v1402 = vpop.f32.mrf.mxu0
  %v1403 = vadd.f32 %v1374, %v1402
  %1404 = vmatmul.bf16.gmra.mxu0 %v386
  %v1405 = vpop.f32.mrf.mxu0
  %v1406 = vadd.f32 %v1377, %v1405
  %v1407 = vpop.f32.mrf.mxu0
  %v1408 = vadd.f32 %v1379, %v1407
  %1409 = vmatmul.bf16.gmra.mxu0 %v396
  %v1410 = vpop.f32.mrf.mxu0
  %v1411 = vadd.f32 %v1382, %v1410
  %v1412 = vpop.f32.mrf.mxu0
  %v1413 = vadd.f32 %v1384, %v1412
  %1414 = vdwg.mxu0
  %1415 = vmatpush.bf16.msra.mxu0 %v1031
  %1416 = vmatpush.bf16.msra.mxu0 %v1029
  %1417 = vmatpush.bf16.msra.mxu0 %v1027
  %1418 = vmatpush.bf16.msra.mxu0 %v1025
  %1419 = vmatpush.bf16.msra.mxu0 %v1023
  %1420 = vmatpush.bf16.msra.mxu0 %v1021
  %1421 = vmatpush.bf16.msra.mxu0 %v1019
  %1422 = vmatpush.bf16.msra.mxu0 %v1017
  %1423 = vmatmul.bf16.gmra.mxu0 %v367
  %v1424 = vpop.f32.mrf.mxu0
  %v1425 = vadd.f32 %v1396, %v1424
  %v1426 = vpop.f32.mrf.mxu0
  %v1427 = vadd.f32 %v1398, %v1426
  %1428 = vmatmul.bf16.gmra.mxu0 %v377
  %v1429 = vpop.f32.mrf.mxu0
  %v1430 = vadd.f32 %v1401, %v1429
  %v1431 = vpop.f32.mrf.mxu0
  %v1432 = vadd.f32 %v1403, %v1431
  %1433 = vmatmul.bf16.gmra.mxu0 %v387
  %v1434 = vpop.f32.mrf.mxu0
  %v1435 = vadd.f32 %v1406, %v1434
  %v1436 = vpop.f32.mrf.mxu0
  %v1437 = vadd.f32 %v1408, %v1436
  %1438 = vmatmul.bf16.gmra.mxu0 %v397
  %v1439 = vpop.f32.mrf.mxu0
  %v1440 = vadd.f32 %v1411, %v1439
  %v1441 = vpop.f32.mrf.mxu0
  %v1442 = vadd.f32 %v1413, %v1441
  %1443 = vdwg.mxu0
  %1444 = vmatpush.bf16.msra.mxu0 %v1047
  %1445 = vmatpush.bf16.msra.mxu0 %v1045
  %1446 = vmatpush.bf16.msra.mxu0 %v1043
  %1447 = vmatpush.bf16.msra.mxu0 %v1041
  %1448 = vmatpush.bf16.msra.mxu0 %v1039
  %1449 = vmatpush.bf16.msra.mxu0 %v1037
  %1450 = vmatpush.bf16.msra.mxu0 %v1035
  %1451 = vmatpush.bf16.msra.mxu0 %v1033
  %1452 = vmatmul.bf16.gmra.mxu0 %v368
  %v1453 = vpop.f32.mrf.mxu0
  %v1454 = vadd.f32 %v1425, %v1453
  %v1455 = vpop.f32.mrf.mxu0
  %v1456 = vadd.f32 %v1427, %v1455
  %1457 = vmatmul.bf16.gmra.mxu0 %v378
  %v1458 = vpop.f32.mrf.mxu0
  %v1459 = vadd.f32 %v1430, %v1458
  %v1460 = vpop.f32.mrf.mxu0
  %v1461 = vadd.f32 %v1432, %v1460
  %1462 = vmatmul.bf16.gmra.mxu0 %v388
  %v1463 = vpop.f32.mrf.mxu0
  %v1464 = vadd.f32 %v1435, %v1463
  %v1465 = vpop.f32.mrf.mxu0
  %v1466 = vadd.f32 %v1437, %v1465
  %1467 = vmatmul.bf16.gmra.mxu0 %v398
  %v1468 = vpop.f32.mrf.mxu0
  %v1469 = vadd.f32 %v1440, %v1468
  %v1470 = vpop.f32.mrf.mxu0
  %v1471 = vadd.f32 %v1442, %v1470
  %1472 = vdwg.mxu0
  %1473 = vmatpush.bf16.msra.mxu0 %v1063
  %1474 = vmatpush.bf16.msra.mxu0 %v1061
  %1475 = vmatpush.bf16.msra.mxu0 %v1059
  %1476 = vmatpush.bf16.msra.mxu0 %v1057
  %1477 = vmatpush.bf16.msra.mxu0 %v1055
  %1478 = vmatpush.bf16.msra.mxu0 %v1053
  %1479 = vmatpush.bf16.msra.mxu0 %v1051
  %1480 = vmatpush.bf16.msra.mxu0 %v1049
  %1481 = vmatmul.bf16.gmra.mxu0 %v369
  %v1482 = vpop.f32.mrf.mxu0
  %v1483 = vadd.f32 %v1454, %v1482
  %v1484 = vpop.f32.mrf.mxu0
  %v1485 = vadd.f32 %v1456, %v1484
  %1486 = vmatmul.bf16.gmra.mxu0 %v379
  %v1487 = vpop.f32.mrf.mxu0
  %v1488 = vadd.f32 %v1459, %v1487
  %v1489 = vpop.f32.mrf.mxu0
  %v1490 = vadd.f32 %v1461, %v1489
  %1491 = vmatmul.bf16.gmra.mxu0 %v389
  %v1492 = vpop.f32.mrf.mxu0
  %v1493 = vadd.f32 %v1464, %v1492
  %v1494 = vpop.f32.mrf.mxu0
  %v1495 = vadd.f32 %v1466, %v1494
  %1496 = vmatmul.bf16.gmra.mxu0 %v399
  %v1497 = vpop.f32.mrf.mxu0
  %v1498 = vadd.f32 %v1469, %v1497
  %v1499 = vpop.f32.mrf.mxu0
  %v1500 = vadd.f32 %v1471, %v1499
  %1501 = vdwg.mxu0
  %1502 = vmatpush.bf16.msra.mxu0 %v1079
  %1503 = vmatpush.bf16.msra.mxu0 %v1077
  %1504 = vmatpush.bf16.msra.mxu0 %v1075
  %1505 = vmatpush.bf16.msra.mxu0 %v1073
  %1506 = vmatpush.bf16.msra.mxu0 %v1071
  %1507 = vmatpush.bf16.msra.mxu0 %v1069
  %1508 = vmatpush.bf16.msra.mxu0 %v1067
  %1509 = vmatpush.bf16.msra.mxu0 %v1065
  %1510 = vmatmul.bf16.gmra.mxu0 %v370
  %v1511 = vpop.f32.mrf.mxu0
  %v1512 = vadd.f32 %v1483, %v1511
  %v1513 = vpop.f32.mrf.mxu0
  %v1514 = vadd.f32 %v1485, %v1513
  %1515 = vmatmul.bf16.gmra.mxu0 %v380
  %v1516 = vpop.f32.mrf.mxu0
  %v1517 = vadd.f32 %v1488, %v1516
  %v1518 = vpop.f32.mrf.mxu0
  %v1519 = vadd.f32 %v1490, %v1518
  %1520 = vmatmul.bf16.gmra.mxu0 %v390
  %v1521 = vpop.f32.mrf.mxu0
  %v1522 = vadd.f32 %v1493, %v1521
  %v1523 = vpop.f32.mrf.mxu0
  %v1524 = vadd.f32 %v1495, %v1523
  %1525 = vmatmul.bf16.gmra.mxu0 %v400
  %v1526 = vpop.f32.mrf.mxu0
  %v1527 = vadd.f32 %v1498, %v1526
  %v1528 = vpop.f32.mrf.mxu0
  %v1529 = vadd.f32 %v1500, %v1528
  %1530 = vdwg.mxu0
  %1531 = vmatpush.bf16.msra.mxu0 %v936
  %1532 = vmatpush.bf16.msra.mxu0 %v934
  %1533 = vmatpush.bf16.msra.mxu0 %v932
  %1534 = vmatpush.bf16.msra.mxu0 %v930
  %1535 = vmatpush.bf16.msra.mxu0 %v928
  %1536 = vmatpush.bf16.msra.mxu0 %v926
  %1537 = vmatpush.bf16.msra.mxu0 %v924
  %1538 = vmatpush.bf16.msra.mxu0 %v922
  %1539 = vmatmul.bf16.gmra.mxu0 %v361
  %v1540 = vpop.f32.mrf.mxu0
  %v1541 = vadd.f32 0.0, %v1540
  %v1542 = vpop.f32.mrf.mxu0
  %v1543 = vadd.f32 0.0, %v1542
  %1544 = vmatmul.bf16.gmra.mxu0 %v371
  %v1545 = vpop.f32.mrf.mxu0
  %v1546 = vadd.f32 0.0, %v1545
  %v1547 = vpop.f32.mrf.mxu0
  %v1548 = vadd.f32 0.0, %v1547
  %1549 = vmatmul.bf16.gmra.mxu0 %v381
  %v1550 = vpop.f32.mrf.mxu0
  %v1551 = vadd.f32 0.0, %v1550
  %v1552 = vpop.f32.mrf.mxu0
  %v1553 = vadd.f32 0.0, %v1552
  %1554 = vmatmul.bf16.gmra.mxu0 %v391
  %v1555 = vpop.f32.mrf.mxu0
  %v1556 = vadd.f32 0.0, %v1555
  %v1557 = vpop.f32.mrf.mxu0
  %v1558 = vadd.f32 0.0, %v1557
  %1559 = vdwg.mxu0
  %1560 = vmatpush.bf16.msra.mxu0 %v952
  %1561 = vmatpush.bf16.msra.mxu0 %v950
  %1562 = vmatpush.bf16.msra.mxu0 %v948
  %1563 = vmatpush.bf16.msra.mxu0 %v946
  %1564 = vmatpush.bf16.msra.mxu0 %v944
  %1565 = vmatpush.bf16.msra.mxu0 %v942
  %1566 = vmatpush.bf16.msra.mxu0 %v940
  %1567 = vmatpush.bf16.msra.mxu0 %v938
  %1568 = vmatmul.bf16.gmra.mxu0 %v362
  %v1569 = vpop.f32.mrf.mxu0
  %v1570 = vadd.f32 %v1541, %v1569
  %v1571 = vpop.f32.mrf.mxu0
  %v1572 = vadd.f32 %v1543, %v1571
  %1573 = vmatmul.bf16.gmra.mxu0 %v372
  %v1574 = vpop.f32.mrf.mxu0
  %v1575 = vadd.f32 %v1546, %v1574
  %v1576 = vpop.f32.mrf.mxu0
  %v1577 = vadd.f32 %v1548, %v1576
  %1578 = vmatmul.bf16.gmra.mxu0 %v382
  %v1579 = vpop.f32.mrf.mxu0
  %v1580 = vadd.f32 %v1551, %v1579
  %v1581 = vpop.f32.mrf.mxu0
  %v1582 = vadd.f32 %v1553, %v1581
  %1583 = vmatmul.bf16.gmra.mxu0 %v392
  %v1584 = vpop.f32.mrf.mxu0
  %v1585 = vadd.f32 %v1556, %v1584
  %v1586 = vpop.f32.mrf.mxu0
  %v1587 = vadd.f32 %v1558, %v1586
  %1588 = vdwg.mxu0
  %1589 = vmatpush.bf16.msra.mxu0 %v968
  %1590 = vmatpush.bf16.msra.mxu0 %v966
  %1591 = vmatpush.bf16.msra.mxu0 %v964
  %1592 = vmatpush.bf16.msra.mxu0 %v962
  %1593 = vmatpush.bf16.msra.mxu0 %v960
  %1594 = vmatpush.bf16.msra.mxu0 %v958
  %1595 = vmatpush.bf16.msra.mxu0 %v956
  %1596 = vmatpush.bf16.msra.mxu0 %v954
  %1597 = vmatmul.bf16.gmra.mxu0 %v363
  %v1598 = vpop.f32.mrf.mxu0
  %v1599 = vadd.f32 %v1570, %v1598
  %v1600 = vpop.f32.mrf.mxu0
  %v1601 = vadd.f32 %v1572, %v1600
  %1602 = vmatmul.bf16.gmra.mxu0 %v373
  %v1603 = vpop.f32.mrf.mxu0
  %v1604 = vadd.f32 %v1575, %v1603
  %v1605 = vpop.f32.mrf.mxu0
  %v1606 = vadd.f32 %v1577, %v1605
  %1607 = vmatmul.bf16.gmra.mxu0 %v383
  %v1608 = vpop.f32.mrf.mxu0
  %v1609 = vadd.f32 %v1580, %v1608
  %v1610 = vpop.f32.mrf.mxu0
  %v1611 = vadd.f32 %v1582, %v1610
  %1612 = vmatmul.bf16.gmra.mxu0 %v393
  %v1613 = vpop.f32.mrf.mxu0
  %v1614 = vadd.f32 %v1585, %v1613
  %v1615 = vpop.f32.mrf.mxu0
  %v1616 = vadd.f32 %v1587, %v1615
  %1617 = vdwg.mxu0
  %1618 = vmatpush.bf16.msra.mxu0 %v984
  %1619 = vmatpush.bf16.msra.mxu0 %v982
  %1620 = vmatpush.bf16.msra.mxu0 %v980
  %1621 = vmatpush.bf16.msra.mxu0 %v978
  %1622 = vmatpush.bf16.msra.mxu0 %v976
  %1623 = vmatpush.bf16.msra.mxu0 %v974
  %1624 = vmatpush.bf16.msra.mxu0 %v972
  %1625 = vmatpush.bf16.msra.mxu0 %v970
  %1626 = vmatmul.bf16.gmra.mxu0 %v364
  %v1627 = vpop.f32.mrf.mxu0
  %v1628 = vadd.f32 %v1599, %v1627
  %v1629 = vpop.f32.mrf.mxu0
  %v1630 = vadd.f32 %v1601, %v1629
  %1631 = vmatmul.bf16.gmra.mxu0 %v374
  %v1632 = vpop.f32.mrf.mxu0
  %v1633 = vadd.f32 %v1604, %v1632
  %v1634 = vpop.f32.mrf.mxu0
  %v1635 = vadd.f32 %v1606, %v1634
  %1636 = vmatmul.bf16.gmra.mxu0 %v384
  %v1637 = vpop.f32.mrf.mxu0
  %v1638 = vadd.f32 %v1609, %v1637
  %v1639 = vpop.f32.mrf.mxu0
  %v1640 = vadd.f32 %v1611, %v1639
  %1641 = vmatmul.bf16.gmra.mxu0 %v394
  %v1642 = vpop.f32.mrf.mxu0
  %v1643 = vadd.f32 %v1614, %v1642
  %v1644 = vpop.f32.mrf.mxu0
  %v1645 = vadd.f32 %v1616, %v1644
  %1646 = vdwg.mxu0
  %1647 = vmatpush.bf16.msra.mxu0 %v1000
  %1648 = vmatpush.bf16.msra.mxu0 %v998
  %1649 = vmatpush.bf16.msra.mxu0 %v996
  %1650 = vmatpush.bf16.msra.mxu0 %v994
  %1651 = vmatpush.bf16.msra.mxu0 %v992
  %1652 = vmatpush.bf16.msra.mxu0 %v990
  %1653 = vmatpush.bf16.msra.mxu0 %v988
  %1654 = vmatpush.bf16.msra.mxu0 %v986
  %1655 = vmatmul.bf16.gmra.mxu0 %v365
  %v1656 = vpop.f32.mrf.mxu0
  %v1657 = vadd.f32 %v1628, %v1656
  %v1658 = vpop.f32.mrf.mxu0
  %v1659 = vadd.f32 %v1630, %v1658
  %1660 = vmatmul.bf16.gmra.mxu0 %v375
  %v1661 = vpop.f32.mrf.mxu0
  %v1662 = vadd.f32 %v1633, %v1661
  %v1663 = vpop.f32.mrf.mxu0
  %v1664 = vadd.f32 %v1635, %v1663
  %1665 = vmatmul.bf16.gmra.mxu0 %v385
  %v1666 = vpop.f32.mrf.mxu0
  %v1667 = vadd.f32 %v1638, %v1666
  %v1668 = vpop.f32.mrf.mxu0
  %v1669 = vadd.f32 %v1640, %v1668
  %1670 = vmatmul.bf16.gmra.mxu0 %v395
  %v1671 = vpop.f32.mrf.mxu0
  %v1672 = vadd.f32 %v1643, %v1671
  %v1673 = vpop.f32.mrf.mxu0
  %v1674 = vadd.f32 %v1645, %v1673
  %1675 = vdwg.mxu0
  %1676 = vmatpush.bf16.msra.mxu0 %v1016
  %1677 = vmatpush.bf16.msra.mxu0 %v1014
  %1678 = vmatpush.bf16.msra.mxu0 %v1012
  %1679 = vmatpush.bf16.msra.mxu0 %v1010
  %1680 = vmatpush.bf16.msra.mxu0 %v1008
  %1681 = vmatpush.bf16.msra.mxu0 %v1006
  %1682 = vmatpush.bf16.msra.mxu0 %v1004
  %1683 = vmatpush.bf16.msra.mxu0 %v1002
  %1684 = vmatmul.bf16.gmra.mxu0 %v366
  %v1685 = vpop.f32.mrf.mxu0
  %v1686 = vadd.f32 %v1657, %v1685
  %v1687 = vpop.f32.mrf.mxu0
  %v1688 = vadd.f32 %v1659, %v1687
  %1689 = vmatmul.bf16.gmra.mxu0 %v376
  %v1690 = vpop.f32.mrf.mxu0
  %v1691 = vadd.f32 %v1662, %v1690
  %v1692 = vpop.f32.mrf.mxu0
  %v1693 = vadd.f32 %v1664, %v1692
  %1694 = vmatmul.bf16.gmra.mxu0 %v386
  %v1695 = vpop.f32.mrf.mxu0
  %v1696 = vadd.f32 %v1667, %v1695
  %v1697 = vpop.f32.mrf.mxu0
  %v1698 = vadd.f32 %v1669, %v1697
  %1699 = vmatmul.bf16.gmra.mxu0 %v396
  %v1700 = vpop.f32.mrf.mxu0
  %v1701 = vadd.f32 %v1672, %v1700
  %v1702 = vpop.f32.mrf.mxu0
  %v1703 = vadd.f32 %v1674, %v1702
  %1704 = vdwg.mxu0
  %1705 = vmatpush.bf16.msra.mxu0 %v1032
  %1706 = vmatpush.bf16.msra.mxu0 %v1030
  %1707 = vmatpush.bf16.msra.mxu0 %v1028
  %1708 = vmatpush.bf16.msra.mxu0 %v1026
  %1709 = vmatpush.bf16.msra.mxu0 %v1024
  %1710 = vmatpush.bf16.msra.mxu0 %v1022
  %1711 = vmatpush.bf16.msra.mxu0 %v1020
  %1712 = vmatpush.bf16.msra.mxu0 %v1018
  %1713 = vmatmul.bf16.gmra.mxu0 %v367
  %v1714 = vpop.f32.mrf.mxu0
  %v1715 = vadd.f32 %v1686, %v1714
  %v1716 = vpop.f32.mrf.mxu0
  %v1717 = vadd.f32 %v1688, %v1716
  %1718 = vmatmul.bf16.gmra.mxu0 %v377
  %v1719 = vpop.f32.mrf.mxu0
  %v1720 = vadd.f32 %v1691, %v1719
  %v1721 = vpop.f32.mrf.mxu0
  %v1722 = vadd.f32 %v1693, %v1721
  %1723 = vmatmul.bf16.gmra.mxu0 %v387
  %v1724 = vpop.f32.mrf.mxu0
  %v1725 = vadd.f32 %v1696, %v1724
  %v1726 = vpop.f32.mrf.mxu0
  %v1727 = vadd.f32 %v1698, %v1726
  %1728 = vmatmul.bf16.gmra.mxu0 %v397
  %v1729 = vpop.f32.mrf.mxu0
  %v1730 = vadd.f32 %v1701, %v1729
  %v1731 = vpop.f32.mrf.mxu0
  %v1732 = vadd.f32 %v1703, %v1731
  %1733 = vdwg.mxu0
  %1734 = vmatpush.bf16.msra.mxu0 %v1048
  %1735 = vmatpush.bf16.msra.mxu0 %v1046
  %1736 = vmatpush.bf16.msra.mxu0 %v1044
  %1737 = vmatpush.bf16.msra.mxu0 %v1042
  %1738 = vmatpush.bf16.msra.mxu0 %v1040
  %1739 = vmatpush.bf16.msra.mxu0 %v1038
  %1740 = vmatpush.bf16.msra.mxu0 %v1036
  %1741 = vmatpush.bf16.msra.mxu0 %v1034
  %1742 = vmatmul.bf16.gmra.mxu0 %v368
  %v1743 = vpop.f32.mrf.mxu0
  %v1744 = vadd.f32 %v1715, %v1743
  %v1745 = vpop.f32.mrf.mxu0
  %v1746 = vadd.f32 %v1717, %v1745
  %1747 = vmatmul.bf16.gmra.mxu0 %v378
  %v1748 = vpop.f32.mrf.mxu0
  %v1749 = vadd.f32 %v1720, %v1748
  %v1750 = vpop.f32.mrf.mxu0
  %v1751 = vadd.f32 %v1722, %v1750
  %1752 = vmatmul.bf16.gmra.mxu0 %v388
  %v1753 = vpop.f32.mrf.mxu0
  %v1754 = vadd.f32 %v1725, %v1753
  %v1755 = vpop.f32.mrf.mxu0
  %v1756 = vadd.f32 %v1727, %v1755
  %1757 = vmatmul.bf16.gmra.mxu0 %v398
  %v1758 = vpop.f32.mrf.mxu0
  %v1759 = vadd.f32 %v1730, %v1758
  %v1760 = vpop.f32.mrf.mxu0
  %v1761 = vadd.f32 %v1732, %v1760
  %1762 = vdwg.mxu0
  %1763 = vmatpush.bf16.msra.mxu0 %v1064
  %1764 = vmatpush.bf16.msra.mxu0 %v1062
  %1765 = vmatpush.bf16.msra.mxu0 %v1060
  %1766 = vmatpush.bf16.msra.mxu0 %v1058
  %1767 = vmatpush.bf16.msra.mxu0 %v1056
  %1768 = vmatpush.bf16.msra.mxu0 %v1054
  %1769 = vmatpush.bf16.msra.mxu0 %v1052
  %1770 = vmatpush.bf16.msra.mxu0 %v1050
  %1771 = vmatmul.bf16.gmra.mxu0 %v369
  %v1772 = vpop.f32.mrf.mxu0
  %v1773 = vadd.f32 %v1744, %v1772
  %v1774 = vpop.f32.mrf.mxu0
  %v1775 = vadd.f32 %v1746, %v1774
  %1776 = vmatmul.bf16.gmra.mxu0 %v379
  %v1777 = vpop.f32.mrf.mxu0
  %v1778 = vadd.f32 %v1749, %v1777
  %v1779 = vpop.f32.mrf.mxu0
  %v1780 = vadd.f32 %v1751, %v1779
  %1781 = vmatmul.bf16.gmra.mxu0 %v389
  %v1782 = vpop.f32.mrf.mxu0
  %v1783 = vadd.f32 %v1754, %v1782
  %v1784 = vpop.f32.mrf.mxu0
  %v1785 = vadd.f32 %v1756, %v1784
  %1786 = vmatmul.bf16.gmra.mxu0 %v399
  %v1787 = vpop.f32.mrf.mxu0
  %v1788 = vadd.f32 %v1759, %v1787
  %v1789 = vpop.f32.mrf.mxu0
  %v1790 = vadd.f32 %v1761, %v1789
  %1791 = vdwg.mxu0
  %1792 = vmatpush.bf16.msra.mxu0 %v1080
  %1793 = vmatpush.bf16.msra.mxu0 %v1078
  %1794 = vmatpush.bf16.msra.mxu0 %v1076
  %1795 = vmatpush.bf16.msra.mxu0 %v1074
  %1796 = vmatpush.bf16.msra.mxu0 %v1072
  %1797 = vmatpush.bf16.msra.mxu0 %v1070
  %1798 = vmatpush.bf16.msra.mxu0 %v1068
  %1799 = vmatpush.bf16.msra.mxu0 %v1066
  %1800 = vmatmul.bf16.gmra.mxu0 %v370
  %v1801 = vpop.f32.mrf.mxu0
  %v1802 = vadd.f32 %v1773, %v1801
  %v1803 = vpop.f32.mrf.mxu0
  %v1804 = vadd.f32 %v1775, %v1803
  %1805 = vmatmul.bf16.gmra.mxu0 %v380
  %v1806 = vpop.f32.mrf.mxu0
  %v1807 = vadd.f32 %v1778, %v1806
  %v1808 = vpop.f32.mrf.mxu0
  %v1809 = vadd.f32 %v1780, %v1808
  %1810 = vmatmul.bf16.gmra.mxu0 %v390
  %v1811 = vpop.f32.mrf.mxu0
  %v1812 = vadd.f32 %v1783, %v1811
  %v1813 = vpop.f32.mrf.mxu0
  %v1814 = vadd.f32 %v1785, %v1813
  %1815 = vmatmul.bf16.gmra.mxu0 %v400
  %v1816 = vpop.f32.mrf.mxu0
  %v1817 = vadd.f32 %v1788, %v1816
  %v1818 = vpop.f32.mrf.mxu0
  %v1819 = vadd.f32 %v1790, %v1818
  %1820 = vdwg.mxu0
  %v1821 = vld [vmem:[%s2] sm:$0x3]
  %v1823 = vperm.slane %v1821, 0
  %v1824 = vperm.slane %v1821, 1
  %v1827 = vmul.f32 %v1512, %v1823
  %v1828 = vmul.f32 %v1802, %v1824
  %v1829 = vmul.f32 %v1514, %v1823
  %v1830 = vmul.f32 %v1804, %v1824
  %v1831 = vmul.f32 %v1517, %v1823
  %v1832 = vmul.f32 %v1807, %v1824
  %v1833 = vmul.f32 %v1519, %v1823
  %v1834 = vmul.f32 %v1809, %v1824
  %v1835 = vmul.f32 %v1522, %v1823
  %v1836 = vmul.f32 %v1812, %v1824
  %v1837 = vmul.f32 %v1524, %v1823
  %v1838 = vmul.f32 %v1814, %v1824
  %v1839 = vmul.f32 %v1527, %v1823
  %v1840 = vmul.f32 %v1817, %v1824
  %v1841 = vmul.f32 %v1529, %v1823
  %v1842 = vmul.f32 %v1819, %v1824
  %v1843 = vld [vmem:[%s3] sm:$0x3]
  %v1845 = vperm.slane %v1843, 0
  %v1846 = vperm.slane %v1843, 1
  %v1849 = vadd.f32 %v1827, %v1845
  %v1850 = vadd.f32 %v1828, %v1846
  %v1851 = vadd.f32 %v1829, %v1845
  %v1852 = vadd.f32 %v1830, %v1846
  %v1853 = vadd.f32 %v1831, %v1845
  %v1854 = vadd.f32 %v1832, %v1846
  %v1855 = vadd.f32 %v1833, %v1845
  %v1856 = vadd.f32 %v1834, %v1846
  %v1857 = vadd.f32 %v1835, %v1845
  %v1858 = vadd.f32 %v1836, %v1846
  %v1859 = vadd.f32 %v1837, %v1845
  %v1860 = vadd.f32 %v1838, %v1846
  %v1861 = vadd.f32 %v1839, %v1845
  %v1862 = vadd.f32 %v1840, %v1846
  %v1863 = vadd.f32 %v1841, %v1845
  %v1864 = vadd.f32 %v1842, %v1846
  %vm1865 = vcmp.gt.f32.partialorder %v1849, 0.0
  %vm1866 = vcmp.gt.f32.partialorder %v1850, 0.0
  %vm1867 = vcmp.gt.f32.partialorder %v1851, 0.0
  %vm1868 = vcmp.gt.f32.partialorder %v1852, 0.0
  %vm1869 = vcmp.gt.f32.partialorder %v1853, 0.0
  %vm1870 = vcmp.gt.f32.partialorder %v1854, 0.0
  %vm1871 = vcmp.gt.f32.partialorder %v1855, 0.0
  %vm1872 = vcmp.gt.f32.partialorder %v1856, 0.0
  %vm1873 = vcmp.gt.f32.partialorder %v1857, 0.0
  %vm1874 = vcmp.gt.f32.partialorder %v1858, 0.0
  %vm1875 = vcmp.gt.f32.partialorder %v1859, 0.0
  %vm1876 = vcmp.gt.f32.partialorder %v1860, 0.0
  %vm1877 = vcmp.gt.f32.partialorder %v1861, 0.0
  %vm1878 = vcmp.gt.f32.partialorder %v1862, 0.0
  %vm1879 = vcmp.gt.f32.partialorder %v1863, 0.0
  %vm1880 = vcmp.gt.f32.partialorder %v1864, 0.0
  %v1881 = vmin.f32 %v1849, 0.0
  %v1882 = vmin.f32 %v1850, 0.0
  %v1883 = vmin.f32 %v1851, 0.0
  %v1884 = vmin.f32 %v1852, 0.0
  %v1885 = vmin.f32 %v1853, 0.0
  %v1886 = vmin.f32 %v1854, 0.0
  %v1887 = vmin.f32 %v1855, 0.0
  %v1888 = vmin.f32 %v1856, 0.0
  %v1889 = vmin.f32 %v1857, 0.0
  %v1890 = vmin.f32 %v1858, 0.0
  %v1891 = vmin.f32 %v1859, 0.0
  %v1892 = vmin.f32 %v1860, 0.0
  %v1893 = vmin.f32 %v1861, 0.0
  %v1894 = vmin.f32 %v1862, 0.0
  %v1895 = vmin.f32 %v1863, 0.0
  %v1896 = vmin.f32 %v1864, 0.0
  %v1897 = vmul.f32 %v1881, 1.442695
  %v1898 = vpow.pop %v1897
  %v1899 = vmul.f32 %v1882, 1.442695
  %v1900 = vpow.pop %v1899
  %v1901 = vmul.f32 %v1883, 1.442695
  %v1902 = vpow.pop %v1901
  %v1903 = vmul.f32 %v1884, 1.442695
  %v1904 = vpow.pop %v1903
  %v1905 = vmul.f32 %v1885, 1.442695
  %v1906 = vpow.pop %v1905
  %v1907 = vmul.f32 %v1886, 1.442695
  %v1908 = vpow.pop %v1907
  %v1909 = vmul.f32 %v1887, 1.442695
  %v1910 = vpow.pop %v1909
  %v1911 = vmul.f32 %v1888, 1.442695
  %v1912 = vpow.pop %v1911
  %v1913 = vmul.f32 %v1889, 1.442695
  %v1914 = vpow.pop %v1913
  %v1915 = vmul.f32 %v1890, 1.442695
  %v1916 = vpow.pop %v1915
  %v1917 = vmul.f32 %v1891, 1.442695
  %v1918 = vpow.pop %v1917
  %v1919 = vmul.f32 %v1892, 1.442695
  %v1920 = vpow.pop %v1919
  %v1921 = vmul.f32 %v1893, 1.442695
  %v1922 = vpow.pop %v1921
  %v1923 = vmul.f32 %v1894, 1.442695
  %v1924 = vpow.pop %v1923
  %v1925 = vmul.f32 %v1895, 1.442695
  %v1926 = vpow.pop %v1925
  %v1927 = vmul.f32 %v1896, 1.442695
  %v1928 = vpow.pop %v1927
  %v1929 = vsub.f32 %v1898, 1.0
  %v1930 = vsub.f32 %v1900, 1.0
  %v1931 = vsub.f32 %v1902, 1.0
  %v1932 = vsub.f32 %v1904, 1.0
  %v1933 = vsub.f32 %v1906, 1.0
  %v1934 = vsub.f32 %v1908, 1.0
  %v1935 = vsub.f32 %v1910, 1.0
  %v1936 = vsub.f32 %v1912, 1.0
  %v1937 = vsub.f32 %v1914, 1.0
  %v1938 = vsub.f32 %v1916, 1.0
  %v1939 = vsub.f32 %v1918, 1.0
  %v1940 = vsub.f32 %v1920, 1.0
  %v1941 = vsub.f32 %v1922, 1.0
  %v1942 = vsub.f32 %v1924, 1.0
  %v1943 = vsub.f32 %v1926, 1.0
  %v1944 = vsub.f32 %v1928, 1.0
  %v1945 = vsel %vm1865, %v1849, %v1929
  %v1946 = vsel %vm1866, %v1850, %v1930
  %v1947 = vsel %vm1867, %v1851, %v1931
  %v1948 = vsel %vm1868, %v1852, %v1932
  %v1949 = vsel %vm1869, %v1853, %v1933
  %v1950 = vsel %vm1870, %v1854, %v1934
  %v1951 = vsel %vm1871, %v1855, %v1935
  %v1952 = vsel %vm1872, %v1856, %v1936
  %v1953 = vsel %vm1873, %v1857, %v1937
  %v1954 = vsel %vm1874, %v1858, %v1938
  %v1955 = vsel %vm1875, %v1859, %v1939
  %v1956 = vsel %vm1876, %v1860, %v1940
  %v1957 = vsel %vm1877, %v1861, %v1941
  %v1958 = vsel %vm1878, %v1862, %v1942
  %v1959 = vsel %vm1879, %v1863, %v1943
  %v1960 = vsel %vm1880, %v1864, %v1944
  %1969 = vrot.lane.b32.xlu0 %v1945, 64
  %v1970 = vpop.permute.xlu0 %1969
  %1971 = vrot.lane.b32.xlu0 %v1947, 64
  %v1972 = vpop.permute.xlu0 %1971
  %1973 = vrot.lane.b32.xlu0 %v1949, 64
  %v1974 = vpop.permute.xlu0 %1973
  %1975 = vrot.lane.b32.xlu0 %v1951, 64
  %v1976 = vpop.permute.xlu0 %1975
  %1977 = vrot.lane.b32.xlu0 %v1953, 64
  %v1978 = vpop.permute.xlu0 %1977
  %1979 = vrot.lane.b32.xlu0 %v1955, 64
  %v1980 = vpop.permute.xlu0 %1979
  %1981 = vrot.lane.b32.xlu0 %v1957, 64
  %v1982 = vpop.permute.xlu0 %1981
  %1983 = vrot.lane.b32.xlu0 %v1959, 64
  %v1984 = vpop.permute.xlu0 %1983
  %v1993 = vadd.f32 %v1945, %v1970
  %v1994 = vadd.f32 %v1947, %v1972
  %v1995 = vadd.f32 %v1949, %v1974
  %v1996 = vadd.f32 %v1951, %v1976
  %v1997 = vadd.f32 %v1953, %v1978
  %v1998 = vadd.f32 %v1955, %v1980
  %v1999 = vadd.f32 %v1957, %v1982
  %v2000 = vadd.f32 %v1959, %v1984
  %v2001 = vadd.f32 %v1993, %v1946
  %v2002 = vadd.f32 %v1994, %v1948
  %v2003 = vadd.f32 %v1995, %v1950
  %v2004 = vadd.f32 %v1996, %v1952
  %v2005 = vadd.f32 %v1997, %v1954
  %v2006 = vadd.f32 %v1998, %v1956
  %v2007 = vadd.f32 %v1999, %v1958
  %v2008 = vadd.f32 %v2000, %v1960
  %2017 = vrot.lane.b32.xlu0 %v1946, 64
  %v2018 = vpop.permute.xlu0 %2017
  %2019 = vrot.lane.b32.xlu0 %v1948, 64
  %v2020 = vpop.permute.xlu0 %2019
  %2021 = vrot.lane.b32.xlu0 %v1950, 64
  %v2022 = vpop.permute.xlu0 %2021
  %2023 = vrot.lane.b32.xlu0 %v1952, 64
  %v2024 = vpop.permute.xlu0 %2023
  %2025 = vrot.lane.b32.xlu0 %v1954, 64
  %v2026 = vpop.permute.xlu0 %2025
  %2027 = vrot.lane.b32.xlu0 %v1956, 64
  %v2028 = vpop.permute.xlu0 %2027
  %2029 = vrot.lane.b32.xlu0 %v1958, 64
  %v2030 = vpop.permute.xlu0 %2029
  %2031 = vrot.lane.b32.xlu0 %v1960, 64
  %v2032 = vpop.permute.xlu0 %2031
  %v2041 = vadd.f32 %v2001, %v2018
  %v2042 = vadd.f32 %v2002, %v2020
  %v2043 = vadd.f32 %v2003, %v2022
  %v2044 = vadd.f32 %v2004, %v2024
  %v2045 = vadd.f32 %v2005, %v2026
  %v2046 = vadd.f32 %v2006, %v2028
  %v2047 = vadd.f32 %v2007, %v2030
  %v2048 = vadd.f32 %v2008, %v2032
  %v2049 = vmul.f32 %v2041, 0.25
  %v2050 = vmul.f32 %v2042, 0.25
  %v2051 = vmul.f32 %v2043, 0.25
  %v2052 = vmul.f32 %v2044, 0.25
  %v2053 = vmul.f32 %v2045, 0.25
  %v2054 = vmul.f32 %v2046, 0.25
  %v2055 = vmul.f32 %v2047, 0.25
  %v2056 = vmul.f32 %v2048, 0.25
  %v2057 = vld [vmem:[%s4] sm:$0xff]
  %v2058 = vld [vmem:[%s4 + $0x8] sm:$0xff]
  %v2059 = vld [vmem:[%s4 + $0x10] sm:$0xff]
  %v2060 = vld [vmem:[%s4 + $0x18] sm:$0xff]
  %v2061 = vld [vmem:[%s4 + $0x20] sm:$0xff]
  %v2062 = vld [vmem:[%s4 + $0x28] sm:$0xff]
  %v2063 = vld [vmem:[%s4 + $0x30] sm:$0xff]
  %v2064 = vld [vmem:[%s4 + $0x38] sm:$0xff]
  %v2065 = vld [vmem:[%s6] sm:$0x1]
  %v2067 = vperm.slane %v2065, 0
  %vm2069 = vcmask 523264
  %v2071 = vsel %vm2069, %v2049, 0
  %v2074 = vsel %vm2069, %v2050, 0
  %v2077 = vsel %vm2069, %v2051, 0
  %v2080 = vsel %vm2069, %v2052, 0
  %v2083 = vsel %vm2069, %v2053, 0
  %v2086 = vsel %vm2069, %v2054, 0
  %v2089 = vsel %vm2069, %v2055, 0
  %v2092 = vsel %vm2069, %v2056, 0
  %2094 = vmatpush.msra.mxu0 0.0
  %2095 = vmatpush.msra.mxu0 0.0
  %2096 = vmatpush.msra.mxu0 0.0
  %2097 = vmatpush.msra.mxu0 0.0
  %2098 = vmatpush.msra.mxu0 0.0
  %2099 = vmatpush.msra.mxu0 0.0
  %2100 = vmatpush.msra.mxu0 0.0
  %2101 = vmatpush.msra.mxu0 0.0
  %v2102 = vand.u32 %v2064, 4294901760
  %2103 = vmatpush.msra.mxu0 %v2102
  %v2104 = vand.u32 %v2063, 4294901760
  %2105 = vmatpush.msra.mxu0 %v2104
  %v2106 = vand.u32 %v2062, 4294901760
  %2107 = vmatpush.msra.mxu0 %v2106
  %v2108 = vand.u32 %v2061, 4294901760
  %2109 = vmatpush.msra.mxu0 %v2108
  %v2110 = vand.u32 %v2060, 4294901760
  %2111 = vmatpush.msra.mxu0 %v2110
  %v2112 = vand.u32 %v2059, 4294901760
  %2113 = vmatpush.msra.mxu0 %v2112
  %v2114 = vand.u32 %v2058, 4294901760
  %2115 = vmatpush.msra.mxu0 %v2114
  %v2116 = vand.u32 %v2057, 4294901760
  %2117 = vmatpush.msra.mxu0 %v2116
  %v2118 = vand.u32 %v2071, 4294901760
  %v2119 = vsub.f32 %v2071, %v2118
  %v2120 = vand.u32 %v2119, 4294901760
  %v2121 = vsub.f32 %v2119, %v2120
  %v2122 = vand.u32 %v2121, 4294901760
  %2123 = vmatmul.f32.gmra.mxu0 %v2122
  %v2124 = vpop.f32.mrf.mxu0
  %v2125 = vadd.f32 %v2067, %v2124
  %v2126 = vand.u32 %v2074, 4294901760
  %v2127 = vsub.f32 %v2074, %v2126
  %v2128 = vand.u32 %v2127, 4294901760
  %v2129 = vsub.f32 %v2127, %v2128
  %v2130 = vand.u32 %v2129, 4294901760
  %2131 = vmatmul.f32.gmra.mxu0 %v2130
  %v2132 = vpop.f32.mrf.mxu0
  %v2133 = vadd.f32 %v2067, %v2132
  %v2134 = vand.u32 %v2077, 4294901760
  %v2135 = vsub.f32 %v2077, %v2134
  %v2136 = vand.u32 %v2135, 4294901760
  %v2137 = vsub.f32 %v2135, %v2136
  %v2138 = vand.u32 %v2137, 4294901760
  %2139 = vmatmul.f32.gmra.mxu0 %v2138
  %v2140 = vpop.f32.mrf.mxu0
  %v2141 = vadd.f32 %v2067, %v2140
  %v2142 = vand.u32 %v2080, 4294901760
  %v2143 = vsub.f32 %v2080, %v2142
  %v2144 = vand.u32 %v2143, 4294901760
  %v2145 = vsub.f32 %v2143, %v2144
  %v2146 = vand.u32 %v2145, 4294901760
  %2147 = vmatmul.f32.gmra.mxu0 %v2146
  %v2148 = vpop.f32.mrf.mxu0
  %v2149 = vadd.f32 %v2067, %v2148
  %v2150 = vand.u32 %v2083, 4294901760
  %v2151 = vsub.f32 %v2083, %v2150
  %v2152 = vand.u32 %v2151, 4294901760
  %v2153 = vsub.f32 %v2151, %v2152
  %v2154 = vand.u32 %v2153, 4294901760
  %2155 = vmatmul.f32.gmra.mxu0 %v2154
  %v2156 = vpop.f32.mrf.mxu0
  %v2157 = vadd.f32 %v2067, %v2156
  %v2158 = vand.u32 %v2086, 4294901760
  %v2159 = vsub.f32 %v2086, %v2158
  %v2160 = vand.u32 %v2159, 4294901760
  %v2161 = vsub.f32 %v2159, %v2160
  %v2162 = vand.u32 %v2161, 4294901760
  %2163 = vmatmul.f32.gmra.mxu0 %v2162
  %v2164 = vpop.f32.mrf.mxu0
  %v2165 = vadd.f32 %v2067, %v2164
  %v2166 = vand.u32 %v2089, 4294901760
  %v2167 = vsub.f32 %v2089, %v2166
  %v2168 = vand.u32 %v2167, 4294901760
  %v2169 = vsub.f32 %v2167, %v2168
  %v2170 = vand.u32 %v2169, 4294901760
  %2171 = vmatmul.f32.gmra.mxu0 %v2170
  %v2172 = vpop.f32.mrf.mxu0
  %v2173 = vadd.f32 %v2067, %v2172
  %v2174 = vand.u32 %v2092, 4294901760
  %v2175 = vsub.f32 %v2092, %v2174
  %v2176 = vand.u32 %v2175, 4294901760
  %v2177 = vsub.f32 %v2175, %v2176
  %v2178 = vand.u32 %v2177, 4294901760
  %2179 = vmatmul.f32.gmra.mxu0 %v2178
  %v2180 = vpop.f32.mrf.mxu0
  %v2181 = vadd.f32 %v2067, %v2180
  %2182 = vdwg.mxu0
  %2183 = vmatpush.msra.mxu0 0.0
  %2184 = vmatpush.msra.mxu0 0.0
  %2185 = vmatpush.msra.mxu0 0.0
  %2186 = vmatpush.msra.mxu0 0.0
  %2187 = vmatpush.msra.mxu0 0.0
  %2188 = vmatpush.msra.mxu0 0.0
  %2189 = vmatpush.msra.mxu0 0.0
  %2190 = vmatpush.msra.mxu0 0.0
  %v2191 = vand.u32 %v2064, 4294901760
  %v2192 = vsub.f32 %v2064, %v2191
  %v2193 = vand.u32 %v2192, 4294901760
  %v2194 = vsub.f32 %v2192, %v2193
  %v2195 = vand.u32 %v2194, 4294901760
  %2196 = vmatpush.msra.mxu0 %v2195
  %v2197 = vand.u32 %v2063, 4294901760
  %v2198 = vsub.f32 %v2063, %v2197
  %v2199 = vand.u32 %v2198, 4294901760
  %v2200 = vsub.f32 %v2198, %v2199
  %v2201 = vand.u32 %v2200, 4294901760
  %2202 = vmatpush.msra.mxu0 %v2201
  %v2203 = vand.u32 %v2062, 4294901760
  %v2204 = vsub.f32 %v2062, %v2203
  %v2205 = vand.u32 %v2204, 4294901760
  %v2206 = vsub.f32 %v2204, %v2205
  %v2207 = vand.u32 %v2206, 4294901760
  %2208 = vmatpush.msra.mxu0 %v2207
  %v2209 = vand.u32 %v2061, 4294901760
  %v2210 = vsub.f32 %v2061, %v2209
  %v2211 = vand.u32 %v2210, 4294901760
  %v2212 = vsub.f32 %v2210, %v2211
  %v2213 = vand.u32 %v2212, 4294901760
  %2214 = vmatpush.msra.mxu0 %v2213
  %v2215 = vand.u32 %v2060, 4294901760
  %v2216 = vsub.f32 %v2060, %v2215
  %v2217 = vand.u32 %v2216, 4294901760
  %v2218 = vsub.f32 %v2216, %v2217
  %v2219 = vand.u32 %v2218, 4294901760
  %2220 = vmatpush.msra.mxu0 %v2219
  %v2221 = vand.u32 %v2059, 4294901760
  %v2222 = vsub.f32 %v2059, %v2221
  %v2223 = vand.u32 %v2222, 4294901760
  %v2224 = vsub.f32 %v2222, %v2223
  %v2225 = vand.u32 %v2224, 4294901760
  %2226 = vmatpush.msra.mxu0 %v2225
  %v2227 = vand.u32 %v2058, 4294901760
  %v2228 = vsub.f32 %v2058, %v2227
  %v2229 = vand.u32 %v2228, 4294901760
  %v2230 = vsub.f32 %v2228, %v2229
  %v2231 = vand.u32 %v2230, 4294901760
  %2232 = vmatpush.msra.mxu0 %v2231
  %v2233 = vand.u32 %v2057, 4294901760
  %v2234 = vsub.f32 %v2057, %v2233
  %v2235 = vand.u32 %v2234, 4294901760
  %v2236 = vsub.f32 %v2234, %v2235
  %v2237 = vand.u32 %v2236, 4294901760
  %2238 = vmatpush.msra.mxu0 %v2237
  %v2239 = vand.u32 %v2071, 4294901760
  %2240 = vmatmul.f32.gmra.mxu0 %v2239
  %v2241 = vpop.f32.mrf.mxu0
  %v2242 = vadd.f32 %v2125, %v2241
  %v2243 = vand.u32 %v2074, 4294901760
  %2244 = vmatmul.f32.gmra.mxu0 %v2243
  %v2245 = vpop.f32.mrf.mxu0
  %v2246 = vadd.f32 %v2133, %v2245
  %v2247 = vand.u32 %v2077, 4294901760
  %2248 = vmatmul.f32.gmra.mxu0 %v2247
  %v2249 = vpop.f32.mrf.mxu0
  %v2250 = vadd.f32 %v2141, %v2249
  %v2251 = vand.u32 %v2080, 4294901760
  %2252 = vmatmul.f32.gmra.mxu0 %v2251
  %v2253 = vpop.f32.mrf.mxu0
  %v2254 = vadd.f32 %v2149, %v2253
  %v2255 = vand.u32 %v2083, 4294901760
  %2256 = vmatmul.f32.gmra.mxu0 %v2255
  %v2257 = vpop.f32.mrf.mxu0
  %v2258 = vadd.f32 %v2157, %v2257
  %v2259 = vand.u32 %v2086, 4294901760
  %2260 = vmatmul.f32.gmra.mxu0 %v2259
  %v2261 = vpop.f32.mrf.mxu0
  %v2262 = vadd.f32 %v2165, %v2261
  %v2263 = vand.u32 %v2089, 4294901760
  %2264 = vmatmul.f32.gmra.mxu0 %v2263
  %v2265 = vpop.f32.mrf.mxu0
  %v2266 = vadd.f32 %v2173, %v2265
  %v2267 = vand.u32 %v2092, 4294901760
  %2268 = vmatmul.f32.gmra.mxu0 %v2267
  %v2269 = vpop.f32.mrf.mxu0
  %v2270 = vadd.f32 %v2181, %v2269
  %2271 = vdwg.mxu0
  %2272 = vmatpush.msra.mxu0 0.0
  %2273 = vmatpush.msra.mxu0 0.0
  %2274 = vmatpush.msra.mxu0 0.0
  %2275 = vmatpush.msra.mxu0 0.0
  %2276 = vmatpush.msra.mxu0 0.0
  %2277 = vmatpush.msra.mxu0 0.0
  %2278 = vmatpush.msra.mxu0 0.0
  %2279 = vmatpush.msra.mxu0 0.0
  %v2280 = vand.u32 %v2064, 4294901760
  %v2281 = vsub.f32 %v2064, %v2280
  %2282 = vmatpush.msra.mxu0 %v2281
  %v2283 = vand.u32 %v2063, 4294901760
  %v2284 = vsub.f32 %v2063, %v2283
  %2285 = vmatpush.msra.mxu0 %v2284
  %v2286 = vand.u32 %v2062, 4294901760
  %v2287 = vsub.f32 %v2062, %v2286
  %2288 = vmatpush.msra.mxu0 %v2287
  %v2289 = vand.u32 %v2061, 4294901760
  %v2290 = vsub.f32 %v2061, %v2289
  %2291 = vmatpush.msra.mxu0 %v2290
  %v2292 = vand.u32 %v2060, 4294901760
  %v2293 = vsub.f32 %v2060, %v2292
  %2294 = vmatpush.msra.mxu0 %v2293
  %v2295 = vand.u32 %v2059, 4294901760
  %v2296 = vsub.f32 %v2059, %v2295
  %2297 = vmatpush.msra.mxu0 %v2296
  %v2298 = vand.u32 %v2058, 4294901760
  %v2299 = vsub.f32 %v2058, %v2298
  %2300 = vmatpush.msra.mxu0 %v2299
  %v2301 = vand.u32 %v2057, 4294901760
  %v2302 = vsub.f32 %v2057, %v2301
  %2303 = vmatpush.msra.mxu0 %v2302
  %v2304 = vand.u32 %v2071, 4294901760
  %v2305 = vsub.f32 %v2071, %v2304
  %2306 = vmatmul.f32.gmra.mxu0 %v2305
  %v2307 = vpop.f32.mrf.mxu0
  %v2308 = vadd.f32 %v2242, %v2307
  %v2309 = vand.u32 %v2074, 4294901760
  %v2310 = vsub.f32 %v2074, %v2309
  %2311 = vmatmul.f32.gmra.mxu0 %v2310
  %v2312 = vpop.f32.mrf.mxu0
  %v2313 = vadd.f32 %v2246, %v2312
  %v2314 = vand.u32 %v2077, 4294901760
  %v2315 = vsub.f32 %v2077, %v2314
  %2316 = vmatmul.f32.gmra.mxu0 %v2315
  %v2317 = vpop.f32.mrf.mxu0
  %v2318 = vadd.f32 %v2250, %v2317
  %v2319 = vand.u32 %v2080, 4294901760
  %v2320 = vsub.f32 %v2080, %v2319
  %2321 = vmatmul.f32.gmra.mxu0 %v2320
  %v2322 = vpop.f32.mrf.mxu0
  %v2323 = vadd.f32 %v2254, %v2322
  %v2324 = vand.u32 %v2083, 4294901760
  %v2325 = vsub.f32 %v2083, %v2324
  %2326 = vmatmul.f32.gmra.mxu0 %v2325
  %v2327 = vpop.f32.mrf.mxu0
  %v2328 = vadd.f32 %v2258, %v2327
  %v2329 = vand.u32 %v2086, 4294901760
  %v2330 = vsub.f32 %v2086, %v2329
  %2331 = vmatmul.f32.gmra.mxu0 %v2330
  %v2332 = vpop.f32.mrf.mxu0
  %v2333 = vadd.f32 %v2262, %v2332
  %v2334 = vand.u32 %v2089, 4294901760
  %v2335 = vsub.f32 %v2089, %v2334
  %2336 = vmatmul.f32.gmra.mxu0 %v2335
  %v2337 = vpop.f32.mrf.mxu0
  %v2338 = vadd.f32 %v2266, %v2337
  %v2339 = vand.u32 %v2092, 4294901760
  %v2340 = vsub.f32 %v2092, %v2339
  %2341 = vmatmul.f32.gmra.mxu0 %v2340
  %v2342 = vpop.f32.mrf.mxu0
  %v2343 = vadd.f32 %v2270, %v2342
  %2344 = vdwg.mxu0
  %2345 = vmatpush.msra.mxu0 0.0
  %2346 = vmatpush.msra.mxu0 0.0
  %2347 = vmatpush.msra.mxu0 0.0
  %2348 = vmatpush.msra.mxu0 0.0
  %2349 = vmatpush.msra.mxu0 0.0
  %2350 = vmatpush.msra.mxu0 0.0
  %2351 = vmatpush.msra.mxu0 0.0
  %2352 = vmatpush.msra.mxu0 0.0
  %v2353 = vand.u32 %v2064, 4294901760
  %2354 = vmatpush.msra.mxu0 %v2353
  %v2355 = vand.u32 %v2063, 4294901760
  %2356 = vmatpush.msra.mxu0 %v2355
  %v2357 = vand.u32 %v2062, 4294901760
  %2358 = vmatpush.msra.mxu0 %v2357
  %v2359 = vand.u32 %v2061, 4294901760
  %2360 = vmatpush.msra.mxu0 %v2359
  %v2361 = vand.u32 %v2060, 4294901760
  %2362 = vmatpush.msra.mxu0 %v2361
  %v2363 = vand.u32 %v2059, 4294901760
  %2364 = vmatpush.msra.mxu0 %v2363
  %v2365 = vand.u32 %v2058, 4294901760
  %2366 = vmatpush.msra.mxu0 %v2365
  %v2367 = vand.u32 %v2057, 4294901760
  %2368 = vmatpush.msra.mxu0 %v2367
  %v2369 = vand.u32 %v2071, 4294901760
  %v2370 = vsub.f32 %v2071, %v2369
  %v2371 = vand.u32 %v2370, 4294901760
  %2372 = vmatmul.f32.gmra.mxu0 %v2371
  %v2373 = vpop.f32.mrf.mxu0
  %v2374 = vadd.f32 %v2308, %v2373
  %v2375 = vand.u32 %v2074, 4294901760
  %v2376 = vsub.f32 %v2074, %v2375
  %v2377 = vand.u32 %v2376, 4294901760
  %2378 = vmatmul.f32.gmra.mxu0 %v2377
  %v2379 = vpop.f32.mrf.mxu0
  %v2380 = vadd.f32 %v2313, %v2379
  %v2381 = vand.u32 %v2077, 4294901760
  %v2382 = vsub.f32 %v2077, %v2381
  %v2383 = vand.u32 %v2382, 4294901760
  %2384 = vmatmul.f32.gmra.mxu0 %v2383
  %v2385 = vpop.f32.mrf.mxu0
  %v2386 = vadd.f32 %v2318, %v2385
  %v2387 = vand.u32 %v2080, 4294901760
  %v2388 = vsub.f32 %v2080, %v2387
  %v2389 = vand.u32 %v2388, 4294901760
  %2390 = vmatmul.f32.gmra.mxu0 %v2389
  %v2391 = vpop.f32.mrf.mxu0
  %v2392 = vadd.f32 %v2323, %v2391
  %v2393 = vand.u32 %v2083, 4294901760
  %v2394 = vsub.f32 %v2083, %v2393
  %v2395 = vand.u32 %v2394, 4294901760
  %2396 = vmatmul.f32.gmra.mxu0 %v2395
  %v2397 = vpop.f32.mrf.mxu0
  %v2398 = vadd.f32 %v2328, %v2397
  %v2399 = vand.u32 %v2086, 4294901760
  %v2400 = vsub.f32 %v2086, %v2399
  %v2401 = vand.u32 %v2400, 4294901760
  %2402 = vmatmul.f32.gmra.mxu0 %v2401
  %v2403 = vpop.f32.mrf.mxu0
  %v2404 = vadd.f32 %v2333, %v2403
  %v2405 = vand.u32 %v2089, 4294901760
  %v2406 = vsub.f32 %v2089, %v2405
  %v2407 = vand.u32 %v2406, 4294901760
  %2408 = vmatmul.f32.gmra.mxu0 %v2407
  %v2409 = vpop.f32.mrf.mxu0
  %v2410 = vadd.f32 %v2338, %v2409
  %v2411 = vand.u32 %v2092, 4294901760
  %v2412 = vsub.f32 %v2092, %v2411
  %v2413 = vand.u32 %v2412, 4294901760
  %2414 = vmatmul.f32.gmra.mxu0 %v2413
  %v2415 = vpop.f32.mrf.mxu0
  %v2416 = vadd.f32 %v2343, %v2415
  %2417 = vdwg.mxu0
  %2418 = vmatpush.msra.mxu0 0.0
  %2419 = vmatpush.msra.mxu0 0.0
  %2420 = vmatpush.msra.mxu0 0.0
  %2421 = vmatpush.msra.mxu0 0.0
  %2422 = vmatpush.msra.mxu0 0.0
  %2423 = vmatpush.msra.mxu0 0.0
  %2424 = vmatpush.msra.mxu0 0.0
  %2425 = vmatpush.msra.mxu0 0.0
  %v2426 = vand.u32 %v2064, 4294901760
  %v2427 = vsub.f32 %v2064, %v2426
  %v2428 = vand.u32 %v2427, 4294901760
  %2429 = vmatpush.msra.mxu0 %v2428
  %v2430 = vand.u32 %v2063, 4294901760
  %v2431 = vsub.f32 %v2063, %v2430
  %v2432 = vand.u32 %v2431, 4294901760
  %2433 = vmatpush.msra.mxu0 %v2432
  %v2434 = vand.u32 %v2062, 4294901760
  %v2435 = vsub.f32 %v2062, %v2434
  %v2436 = vand.u32 %v2435, 4294901760
  %2437 = vmatpush.msra.mxu0 %v2436
  %v2438 = vand.u32 %v2061, 4294901760
  %v2439 = vsub.f32 %v2061, %v2438
  %v2440 = vand.u32 %v2439, 4294901760
  %2441 = vmatpush.msra.mxu0 %v2440
  %v2442 = vand.u32 %v2060, 4294901760
  %v2443 = vsub.f32 %v2060, %v2442
  %v2444 = vand.u32 %v2443, 4294901760
  %2445 = vmatpush.msra.mxu0 %v2444
  %v2446 = vand.u32 %v2059, 4294901760
  %v2447 = vsub.f32 %v2059, %v2446
  %v2448 = vand.u32 %v2447, 4294901760
  %2449 = vmatpush.msra.mxu0 %v2448
  %v2450 = vand.u32 %v2058, 4294901760
  %v2451 = vsub.f32 %v2058, %v2450
  %v2452 = vand.u32 %v2451, 4294901760
  %2453 = vmatpush.msra.mxu0 %v2452
  %v2454 = vand.u32 %v2057, 4294901760
  %v2455 = vsub.f32 %v2057, %v2454
  %v2456 = vand.u32 %v2455, 4294901760
  %2457 = vmatpush.msra.mxu0 %v2456
  %v2458 = vand.u32 %v2071, 4294901760
  %2459 = vmatmul.f32.gmra.mxu0 %v2458
  %v2460 = vpop.f32.mrf.mxu0
  %v2461 = vadd.f32 %v2374, %v2460
  %v2462 = vand.u32 %v2074, 4294901760
  %2463 = vmatmul.f32.gmra.mxu0 %v2462
  %v2464 = vpop.f32.mrf.mxu0
  %v2465 = vadd.f32 %v2380, %v2464
  %v2466 = vand.u32 %v2077, 4294901760
  %2467 = vmatmul.f32.gmra.mxu0 %v2466
  %v2468 = vpop.f32.mrf.mxu0
  %v2469 = vadd.f32 %v2386, %v2468
  %v2470 = vand.u32 %v2080, 4294901760
  %2471 = vmatmul.f32.gmra.mxu0 %v2470
  %v2472 = vpop.f32.mrf.mxu0
  %v2473 = vadd.f32 %v2392, %v2472
  %v2474 = vand.u32 %v2083, 4294901760
  %2475 = vmatmul.f32.gmra.mxu0 %v2474
  %v2476 = vpop.f32.mrf.mxu0
  %v2477 = vadd.f32 %v2398, %v2476
  %v2478 = vand.u32 %v2086, 4294901760
  %2479 = vmatmul.f32.gmra.mxu0 %v2478
  %v2480 = vpop.f32.mrf.mxu0
  %v2481 = vadd.f32 %v2404, %v2480
  %v2482 = vand.u32 %v2089, 4294901760
  %2483 = vmatmul.f32.gmra.mxu0 %v2482
  %v2484 = vpop.f32.mrf.mxu0
  %v2485 = vadd.f32 %v2410, %v2484
  %v2486 = vand.u32 %v2092, 4294901760
  %2487 = vmatmul.f32.gmra.mxu0 %v2486
  %v2488 = vpop.f32.mrf.mxu0
  %v2489 = vadd.f32 %v2416, %v2488
  %2490 = vdwg.mxu0
  %2491 = vmatpush.msra.mxu0 0.0
  %2492 = vmatpush.msra.mxu0 0.0
  %2493 = vmatpush.msra.mxu0 0.0
  %2494 = vmatpush.msra.mxu0 0.0
  %2495 = vmatpush.msra.mxu0 0.0
  %2496 = vmatpush.msra.mxu0 0.0
  %2497 = vmatpush.msra.mxu0 0.0
  %2498 = vmatpush.msra.mxu0 0.0
  %v2499 = vand.u32 %v2064, 4294901760
  %2500 = vmatpush.msra.mxu0 %v2499
  %v2501 = vand.u32 %v2063, 4294901760
  %2502 = vmatpush.msra.mxu0 %v2501
  %v2503 = vand.u32 %v2062, 4294901760
  %2504 = vmatpush.msra.mxu0 %v2503
  %v2505 = vand.u32 %v2061, 4294901760
  %2506 = vmatpush.msra.mxu0 %v2505
  %v2507 = vand.u32 %v2060, 4294901760
  %2508 = vmatpush.msra.mxu0 %v2507
  %v2509 = vand.u32 %v2059, 4294901760
  %2510 = vmatpush.msra.mxu0 %v2509
  %v2511 = vand.u32 %v2058, 4294901760
  %2512 = vmatpush.msra.mxu0 %v2511
  %v2513 = vand.u32 %v2057, 4294901760
  %2514 = vmatpush.msra.mxu0 %v2513
  %v2515 = vand.u32 %v2071, 4294901760
  %2516 = vmatmul.f32.gmra.mxu0 %v2515
  %v2517 = vpop.f32.mrf.mxu0
  %v2518 = vadd.f32 %v2461, %v2517
  %v2519 = vand.u32 %v2074, 4294901760
  %2520 = vmatmul.f32.gmra.mxu0 %v2519
  %v2521 = vpop.f32.mrf.mxu0
  %v2522 = vadd.f32 %v2465, %v2521
  %v2523 = vand.u32 %v2077, 4294901760
  %2524 = vmatmul.f32.gmra.mxu0 %v2523
  %v2525 = vpop.f32.mrf.mxu0
  %v2526 = vadd.f32 %v2469, %v2525
  %v2527 = vand.u32 %v2080, 4294901760
  %2528 = vmatmul.f32.gmra.mxu0 %v2527
  %v2529 = vpop.f32.mrf.mxu0
  %v2530 = vadd.f32 %v2473, %v2529
  %v2531 = vand.u32 %v2083, 4294901760
  %2532 = vmatmul.f32.gmra.mxu0 %v2531
  %v2533 = vpop.f32.mrf.mxu0
  %v2534 = vadd.f32 %v2477, %v2533
  %v2535 = vand.u32 %v2086, 4294901760
  %2536 = vmatmul.f32.gmra.mxu0 %v2535
  %v2537 = vpop.f32.mrf.mxu0
  %v2538 = vadd.f32 %v2481, %v2537
  %v2539 = vand.u32 %v2089, 4294901760
  %2540 = vmatmul.f32.gmra.mxu0 %v2539
  %v2541 = vpop.f32.mrf.mxu0
  %v2542 = vadd.f32 %v2485, %v2541
  %v2543 = vand.u32 %v2092, 4294901760
  %2544 = vmatmul.f32.gmra.mxu0 %v2543
  %v2545 = vpop.f32.mrf.mxu0
  %v2546 = vadd.f32 %v2489, %v2545
  %2547 = vdwg.mxu0
  %v2548 = vld [vmem:[%s5] sm:$0xff]
  %v2549 = vld [vmem:[%s5 + $0x8] sm:$0x3]
  %vm2550 = vcmask 80896
  %v2552 = vsel %vm2550, 0.0, 0
  %vm2554 = vcmask 1041408
  %v2556 = vsel %vm2554, %v2549, 0
  %2558 = vmatpush.msra.mxu0 0.0
  %2559 = vmatpush.msra.mxu0 0.0
  %2560 = vmatpush.msra.mxu0 0.0
  %2561 = vmatpush.msra.mxu0 0.0
  %2562 = vmatpush.msra.mxu0 0.0
  %2563 = vmatpush.msra.mxu0 0.0
  %2564 = vmatpush.msra.mxu0 0.0
  %2565 = vmatpush.msra.mxu0 0.0
  %2566 = vmatpush.msra.mxu0 0.0
  %2567 = vmatpush.msra.mxu0 0.0
  %2568 = vmatpush.msra.mxu0 0.0
  %2569 = vmatpush.msra.mxu0 0.0
  %2570 = vmatpush.msra.mxu0 0.0
  %2571 = vmatpush.msra.mxu0 0.0
  %v2572 = vand.u32 %v2556, 4294901760
  %2573 = vmatpush.msra.mxu0 %v2572
  %v2574 = vand.u32 %v2548, 4294901760
  %2575 = vmatpush.msra.mxu0 %v2574
  %v2576 = vand.u32 %v2552, 4294901760
  %v2577 = vsub.f32 %v2552, %v2576
  %v2578 = vand.u32 %v2577, 4294901760
  %v2579 = vsub.f32 %v2577, %v2578
  %v2580 = vand.u32 %v2579, 4294901760
  %2581 = vmatmul.f32.gmra.mxu0 %v2580
  %v2582 = vpop.f32.mrf.mxu0
  %v2583 = vadd.f32 0.0, %v2582
  %2584 = vdwg.mxu0
  %2585 = vmatpush.msra.mxu0 0.0
  %2586 = vmatpush.msra.mxu0 0.0
  %2587 = vmatpush.msra.mxu0 0.0
  %2588 = vmatpush.msra.mxu0 0.0
  %2589 = vmatpush.msra.mxu0 0.0
  %2590 = vmatpush.msra.mxu0 0.0
  %2591 = vmatpush.msra.mxu0 0.0
  %2592 = vmatpush.msra.mxu0 0.0
  %2593 = vmatpush.msra.mxu0 0.0
  %2594 = vmatpush.msra.mxu0 0.0
  %2595 = vmatpush.msra.mxu0 0.0
  %2596 = vmatpush.msra.mxu0 0.0
  %2597 = vmatpush.msra.mxu0 0.0
  %2598 = vmatpush.msra.mxu0 0.0
  %v2599 = vand.u32 %v2556, 4294901760
  %v2600 = vsub.f32 %v2556, %v2599
  %v2601 = vand.u32 %v2600, 4294901760
  %v2602 = vsub.f32 %v2600, %v2601
  %v2603 = vand.u32 %v2602, 4294901760
  %2604 = vmatpush.msra.mxu0 %v2603
  %v2605 = vand.u32 %v2548, 4294901760
  %v2606 = vsub.f32 %v2548, %v2605
  %v2607 = vand.u32 %v2606, 4294901760
  %v2608 = vsub.f32 %v2606, %v2607
  %v2609 = vand.u32 %v2608, 4294901760
  %2610 = vmatpush.msra.mxu0 %v2609
  %v2611 = vand.u32 %v2552, 4294901760
  %2612 = vmatmul.f32.gmra.mxu0 %v2611
  %v2613 = vpop.f32.mrf.mxu0
  %v2614 = vadd.f32 %v2583, %v2613
  %2615 = vdwg.mxu0
  %2616 = vmatpush.msra.mxu0 0.0
  %2617 = vmatpush.msra.mxu0 0.0
  %2618 = vmatpush.msra.mxu0 0.0
  %2619 = vmatpush.msra.mxu0 0.0
  %2620 = vmatpush.msra.mxu0 0.0
  %2621 = vmatpush.msra.mxu0 0.0
  %2622 = vmatpush.msra.mxu0 0.0
  %2623 = vmatpush.msra.mxu0 0.0
  %2624 = vmatpush.msra.mxu0 0.0
  %2625 = vmatpush.msra.mxu0 0.0
  %2626 = vmatpush.msra.mxu0 0.0
  %2627 = vmatpush.msra.mxu0 0.0
  %2628 = vmatpush.msra.mxu0 0.0
  %2629 = vmatpush.msra.mxu0 0.0
  %v2630 = vand.u32 %v2556, 4294901760
  %v2631 = vsub.f32 %v2556, %v2630
  %2632 = vmatpush.msra.mxu0 %v2631
  %v2633 = vand.u32 %v2548, 4294901760
  %v2634 = vsub.f32 %v2548, %v2633
  %2635 = vmatpush.msra.mxu0 %v2634
  %v2636 = vand.u32 %v2552, 4294901760
  %v2637 = vsub.f32 %v2552, %v2636
  %2638 = vmatmul.f32.gmra.mxu0 %v2637
  %v2639 = vpop.f32.mrf.mxu0
  %v2640 = vadd.f32 %v2614, %v2639
  %2641 = vdwg.mxu0
  %2642 = vmatpush.msra.mxu0 0.0
  %2643 = vmatpush.msra.mxu0 0.0
  %2644 = vmatpush.msra.mxu0 0.0
  %2645 = vmatpush.msra.mxu0 0.0
  %2646 = vmatpush.msra.mxu0 0.0
  %2647 = vmatpush.msra.mxu0 0.0
  %2648 = vmatpush.msra.mxu0 0.0
  %2649 = vmatpush.msra.mxu0 0.0
  %2650 = vmatpush.msra.mxu0 0.0
  %2651 = vmatpush.msra.mxu0 0.0
  %2652 = vmatpush.msra.mxu0 0.0
  %2653 = vmatpush.msra.mxu0 0.0
  %2654 = vmatpush.msra.mxu0 0.0
  %2655 = vmatpush.msra.mxu0 0.0
  %v2656 = vand.u32 %v2556, 4294901760
  %2657 = vmatpush.msra.mxu0 %v2656
  %v2658 = vand.u32 %v2548, 4294901760
  %2659 = vmatpush.msra.mxu0 %v2658
  %v2660 = vand.u32 %v2552, 4294901760
  %v2661 = vsub.f32 %v2552, %v2660
  %v2662 = vand.u32 %v2661, 4294901760
  %2663 = vmatmul.f32.gmra.mxu0 %v2662
  %v2664 = vpop.f32.mrf.mxu0
  %v2665 = vadd.f32 %v2640, %v2664
  %2666 = vdwg.mxu0
  %2667 = vmatpush.msra.mxu0 0.0
  %2668 = vmatpush.msra.mxu0 0.0
  %2669 = vmatpush.msra.mxu0 0.0
  %2670 = vmatpush.msra.mxu0 0.0
  %2671 = vmatpush.msra.mxu0 0.0
  %2672 = vmatpush.msra.mxu0 0.0
  %2673 = vmatpush.msra.mxu0 0.0
  %2674 = vmatpush.msra.mxu0 0.0
  %2675 = vmatpush.msra.mxu0 0.0
  %2676 = vmatpush.msra.mxu0 0.0
  %2677 = vmatpush.msra.mxu0 0.0
  %2678 = vmatpush.msra.mxu0 0.0
  %2679 = vmatpush.msra.mxu0 0.0
  %2680 = vmatpush.msra.mxu0 0.0
  %v2681 = vand.u32 %v2556, 4294901760
  %v2682 = vsub.f32 %v2556, %v2681
  %v2683 = vand.u32 %v2682, 4294901760
  %2684 = vmatpush.msra.mxu0 %v2683
  %v2685 = vand.u32 %v2548, 4294901760
  %v2686 = vsub.f32 %v2548, %v2685
  %v2687 = vand.u32 %v2686, 4294901760
  %2688 = vmatpush.msra.mxu0 %v2687
  %v2689 = vand.u32 %v2552, 4294901760
  %2690 = vmatmul.f32.gmra.mxu0 %v2689
  %v2691 = vpop.f32.mrf.mxu0
  %v2692 = vadd.f32 %v2665, %v2691
  %2693 = vdwg.mxu0
  %2694 = vmatpush.msra.mxu0 0.0
  %2695 = vmatpush.msra.mxu0 0.0
  %2696 = vmatpush.msra.mxu0 0.0
  %2697 = vmatpush.msra.mxu0 0.0
  %2698 = vmatpush.msra.mxu0 0.0
  %2699 = vmatpush.msra.mxu0 0.0
  %2700 = vmatpush.msra.mxu0 0.0
  %2701 = vmatpush.msra.mxu0 0.0
  %2702 = vmatpush.msra.mxu0 0.0
  %2703 = vmatpush.msra.mxu0 0.0
  %2704 = vmatpush.msra.mxu0 0.0
  %2705 = vmatpush.msra.mxu0 0.0
  %2706 = vmatpush.msra.mxu0 0.0
  %2707 = vmatpush.msra.mxu0 0.0
  %v2708 = vand.u32 %v2556, 4294901760
  %2709 = vmatpush.msra.mxu0 %v2708
  %v2710 = vand.u32 %v2548, 4294901760
  %2711 = vmatpush.msra.mxu0 %v2710
  %v2712 = vand.u32 %v2552, 4294901760
  %2713 = vmatmul.f32.gmra.mxu0 %v2712
  %v2714 = vpop.f32.mrf.mxu0
  %v2715 = vadd.f32 %v2692, %v2714
  %2716 = vdwg.mxu0
  %v2717 = vadd.f32 %v2518, %v2715
  %v2718 = vxor.u32 %v2717, 2147483648
  %v2719 = vmul.f32 %v2718, 1.442695
  %v2720 = vpow.pop %v2719
  %v2721 = vadd.f32 %v2720, 1.0
  %v2722 = vrcp.pop %v2721
  %v2723 = vmul.f32 %v2721, %v2722
  %v2724 = vsub.f32 1.0, %v2723
  %v2725 = vmul.f32 %v2722, %v2724
  %v2726 = vadd.f32 %v2722, %v2725
  %vm2727 = vweird.f32 %v2721
  %vm2728 = vweird.f32 %v2722
  %vm2729 = vmor %vm2727, %vm2728
  %v2730 = vsel %vm2729, %v2722, %v2726
  %v2731 = vand.u32 2147483647, %v2721
  %vm2732 = vcmp.eq.f32.partialorder %v2731, 8.507059e+37
  %v2733 = vand.u32 %v2721, 2147483648
  %v2734 = vor.u32 1.1754944e-38, %v2733
  %v2735 = vsel %vm2732, %v2734, %v2730
  %v2736 = vmul.f32 1.0, %v2735
  %v2737 = vtanh.pop %v2717
  %v2738 = vmul.f32 %v2736, 0.0
  %2740 = vrot.lane.b32.xlu0 %v2737, 108
  %v2741 = vpop.permute.xlu0 %2740
  %v2743 = vmul.f32 %v2736, %v2741
  %2745 = vrot.lane.b32.xlu0 %v2743, 10
  %v2746 = vpop.permute.xlu0 %2745
  %v2748 = vadd.f32 %v2738, %v2746
  %v2749 = vtanh.pop %v2748
  %2751 = vrot.lane.b32.xlu0 %v2749, 20
  %v2752 = vpop.permute.xlu0 %2751
  %v2754 = vmul.f32 %v2736, %v2752
  %v2755 = vld [vmem:[%s7] sm:$0xff]
  %v2756 = vld [vmem:[%s7 + $0x8] sm:$0x3]
  %v2757 = vld [vmem:[%s8] sm:$0xff]
  %v2758 = vld [vmem:[%s8 + $0x8] sm:$0x3]
  %v2760 = vsel %vm2554, %v2758, 0
  %2762 = vmatpush.msra.mxu0 0.0
  %2763 = vmatpush.msra.mxu0 0.0
  %2764 = vmatpush.msra.mxu0 0.0
  %2765 = vmatpush.msra.mxu0 0.0
  %2766 = vmatpush.msra.mxu0 0.0
  %2767 = vmatpush.msra.mxu0 0.0
  %2768 = vmatpush.msra.mxu0 0.0
  %2769 = vmatpush.msra.mxu0 0.0
  %2770 = vmatpush.msra.mxu0 0.0
  %2771 = vmatpush.msra.mxu0 0.0
  %2772 = vmatpush.msra.mxu0 0.0
  %2773 = vmatpush.msra.mxu0 0.0
  %2774 = vmatpush.msra.mxu0 0.0
  %2775 = vmatpush.msra.mxu0 0.0
  %v2776 = vand.u32 %v2760, 4294901760
  %2777 = vmatpush.msra.mxu0 %v2776
  %v2778 = vand.u32 %v2757, 4294901760
  %2779 = vmatpush.msra.mxu0 %v2778
  %v2780 = vand.u32 %v2552, 4294901760
  %v2781 = vsub.f32 %v2552, %v2780
  %v2782 = vand.u32 %v2781, 4294901760
  %v2783 = vsub.f32 %v2781, %v2782
  %v2784 = vand.u32 %v2783, 4294901760
  %2785 = vmatmul.f32.gmra.mxu0 %v2784
  %v2786 = vpop.f32.mrf.mxu0
  %v2787 = vadd.f32 0.0, %v2786
  %2788 = vdwg.mxu0
  %2789 = vmatpush.msra.mxu0 0.0
  %2790 = vmatpush.msra.mxu0 0.0
  %2791 = vmatpush.msra.mxu0 0.0
  %2792 = vmatpush.msra.mxu0 0.0
  %2793 = vmatpush.msra.mxu0 0.0
  %2794 = vmatpush.msra.mxu0 0.0
  %2795 = vmatpush.msra.mxu0 0.0
  %2796 = vmatpush.msra.mxu0 0.0
  %2797 = vmatpush.msra.mxu0 0.0
  %2798 = vmatpush.msra.mxu0 0.0
  %2799 = vmatpush.msra.mxu0 0.0
  %2800 = vmatpush.msra.mxu0 0.0
  %2801 = vmatpush.msra.mxu0 0.0
  %2802 = vmatpush.msra.mxu0 0.0
  %v2803 = vand.u32 %v2760, 4294901760
  %v2804 = vsub.f32 %v2760, %v2803
  %v2805 = vand.u32 %v2804, 4294901760
  %v2806 = vsub.f32 %v2804, %v2805
  %v2807 = vand.u32 %v2806, 4294901760
  %2808 = vmatpush.msra.mxu0 %v2807
  %v2809 = vand.u32 %v2757, 4294901760
  %v2810 = vsub.f32 %v2757, %v2809
  %v2811 = vand.u32 %v2810, 4294901760
  %v2812 = vsub.f32 %v2810, %v2811
  %v2813 = vand.u32 %v2812, 4294901760
  %2814 = vmatpush.msra.mxu0 %v2813
  %v2815 = vand.u32 %v2552, 4294901760
  %2816 = vmatmul.f32.gmra.mxu0 %v2815
  %v2817 = vpop.f32.mrf.mxu0
  %v2818 = vadd.f32 %v2787, %v2817
  %2819 = vdwg.mxu0
  %2820 = vmatpush.msra.mxu0 0.0
  %2821 = vmatpush.msra.mxu0 0.0
  %2822 = vmatpush.msra.mxu0 0.0
  %2823 = vmatpush.msra.mxu0 0.0
  %2824 = vmatpush.msra.mxu0 0.0
  %2825 = vmatpush.msra.mxu0 0.0
  %2826 = vmatpush.msra.mxu0 0.0
  %2827 = vmatpush.msra.mxu0 0.0
  %2828 = vmatpush.msra.mxu0 0.0
  %2829 = vmatpush.msra.mxu0 0.0
  %2830 = vmatpush.msra.mxu0 0.0
  %2831 = vmatpush.msra.mxu0 0.0
  %2832 = vmatpush.msra.mxu0 0.0
  %2833 = vmatpush.msra.mxu0 0.0
  %v2834 = vand.u32 %v2760, 4294901760
  %v2835 = vsub.f32 %v2760, %v2834
  %2836 = vmatpush.msra.mxu0 %v2835
  %v2837 = vand.u32 %v2757, 4294901760
  %v2838 = vsub.f32 %v2757, %v2837
  %2839 = vmatpush.msra.mxu0 %v2838
  %v2840 = vand.u32 %v2552, 4294901760
  %v2841 = vsub.f32 %v2552, %v2840
  %2842 = vmatmul.f32.gmra.mxu0 %v2841
  %v2843 = vpop.f32.mrf.mxu0
  %v2844 = vadd.f32 %v2818, %v2843
  %2845 = vdwg.mxu0
  %2846 = vmatpush.msra.mxu0 0.0
  %2847 = vmatpush.msra.mxu0 0.0
  %2848 = vmatpush.msra.mxu0 0.0
  %2849 = vmatpush.msra.mxu0 0.0
  %2850 = vmatpush.msra.mxu0 0.0
  %2851 = vmatpush.msra.mxu0 0.0
  %2852 = vmatpush.msra.mxu0 0.0
  %2853 = vmatpush.msra.mxu0 0.0
  %2854 = vmatpush.msra.mxu0 0.0
  %2855 = vmatpush.msra.mxu0 0.0
  %2856 = vmatpush.msra.mxu0 0.0
  %2857 = vmatpush.msra.mxu0 0.0
  %2858 = vmatpush.msra.mxu0 0.0
  %2859 = vmatpush.msra.mxu0 0.0
  %v2860 = vand.u32 %v2760, 4294901760
  %2861 = vmatpush.msra.mxu0 %v2860
  %v2862 = vand.u32 %v2757, 4294901760
  %2863 = vmatpush.msra.mxu0 %v2862
  %v2864 = vand.u32 %v2552, 4294901760
  %v2865 = vsub.f32 %v2552, %v2864
  %v2866 = vand.u32 %v2865, 4294901760
  %2867 = vmatmul.f32.gmra.mxu0 %v2866
  %v2868 = vpop.f32.mrf.mxu0
  %v2869 = vadd.f32 %v2844, %v2868
  %2870 = vdwg.mxu0
  %2871 = vmatpush.msra.mxu0 0.0
  %2872 = vmatpush.msra.mxu0 0.0
  %2873 = vmatpush.msra.mxu0 0.0
  %2874 = vmatpush.msra.mxu0 0.0
  %2875 = vmatpush.msra.mxu0 0.0
  %2876 = vmatpush.msra.mxu0 0.0
  %2877 = vmatpush.msra.mxu0 0.0
  %2878 = vmatpush.msra.mxu0 0.0
  %2879 = vmatpush.msra.mxu0 0.0
  %2880 = vmatpush.msra.mxu0 0.0
  %2881 = vmatpush.msra.mxu0 0.0
  %2882 = vmatpush.msra.mxu0 0.0
  %2883 = vmatpush.msra.mxu0 0.0
  %2884 = vmatpush.msra.mxu0 0.0
  %v2885 = vand.u32 %v2760, 4294901760
  %v2886 = vsub.f32 %v2760, %v2885
  %v2887 = vand.u32 %v2886, 4294901760
  %2888 = vmatpush.msra.mxu0 %v2887
  %v2889 = vand.u32 %v2757, 4294901760
  %v2890 = vsub.f32 %v2757, %v2889
  %v2891 = vand.u32 %v2890, 4294901760
  %2892 = vmatpush.msra.mxu0 %v2891
  %v2893 = vand.u32 %v2552, 4294901760
  %2894 = vmatmul.f32.gmra.mxu0 %v2893
  %v2895 = vpop.f32.mrf.mxu0
  %v2896 = vadd.f32 %v2869, %v2895
  %2897 = vdwg.mxu0
  %2898 = vmatpush.msra.mxu0 0.0
  %2899 = vmatpush.msra.mxu0 0.0
  %2900 = vmatpush.msra.mxu0 0.0
  %2901 = vmatpush.msra.mxu0 0.0
  %2902 = vmatpush.msra.mxu0 0.0
  %2903 = vmatpush.msra.mxu0 0.0
  %2904 = vmatpush.msra.mxu0 0.0
  %2905 = vmatpush.msra.mxu0 0.0
  %2906 = vmatpush.msra.mxu0 0.0
  %2907 = vmatpush.msra.mxu0 0.0
  %2908 = vmatpush.msra.mxu0 0.0
  %2909 = vmatpush.msra.mxu0 0.0
  %2910 = vmatpush.msra.mxu0 0.0
  %2911 = vmatpush.msra.mxu0 0.0
  %v2912 = vand.u32 %v2760, 4294901760
  %2913 = vmatpush.msra.mxu0 %v2912
  %v2914 = vand.u32 %v2757, 4294901760
  %2915 = vmatpush.msra.mxu0 %v2914
  %v2916 = vand.u32 %v2552, 4294901760
  %2917 = vmatmul.f32.gmra.mxu0 %v2916
  %v2918 = vpop.f32.mrf.mxu0
  %v2919 = vadd.f32 %v2896, %v2918
  %2920 = vdwg.mxu0
  %2922 = vrot.lane.b32.xlu0 %v2754, 98
  %v2923 = vpop.permute.xlu0 %2922
  %v2924 = vsel %vm2550, %v2923, 0
  %v2927 = vsel %vm2554, %v2756, 0
  %2929 = vmatpush.msra.mxu0 0.0
  %2930 = vmatpush.msra.mxu0 0.0
  %2931 = vmatpush.msra.mxu0 0.0
  %2932 = vmatpush.msra.mxu0 0.0
  %2933 = vmatpush.msra.mxu0 0.0
  %2934 = vmatpush.msra.mxu0 0.0
  %2935 = vmatpush.msra.mxu0 0.0
  %2936 = vmatpush.msra.mxu0 0.0
  %2937 = vmatpush.msra.mxu0 0.0
  %2938 = vmatpush.msra.mxu0 0.0
  %2939 = vmatpush.msra.mxu0 0.0
  %2940 = vmatpush.msra.mxu0 0.0
  %2941 = vmatpush.msra.mxu0 0.0
  %2942 = vmatpush.msra.mxu0 0.0
  %v2943 = vand.u32 %v2927, 4294901760
  %2944 = vmatpush.msra.mxu0 %v2943
  %v2945 = vand.u32 %v2755, 4294901760
  %2946 = vmatpush.msra.mxu0 %v2945
  %v2947 = vand.u32 %v2924, 4294901760
  %v2948 = vsub.f32 %v2924, %v2947
  %v2949 = vand.u32 %v2948, 4294901760
  %v2950 = vsub.f32 %v2948, %v2949
  %v2951 = vand.u32 %v2950, 4294901760
  %2952 = vmatmul.f32.gmra.mxu0 %v2951
  %v2953 = vpop.f32.mrf.mxu0
  %v2954 = vadd.f32 %v2919, %v2953
  %2955 = vdwg.mxu0
  %2956 = vmatpush.msra.mxu0 0.0
  %2957 = vmatpush.msra.mxu0 0.0
  %2958 = vmatpush.msra.mxu0 0.0
  %2959 = vmatpush.msra.mxu0 0.0
  %2960 = vmatpush.msra.mxu0 0.0
  %2961 = vmatpush.msra.mxu0 0.0
  %2962 = vmatpush.msra.mxu0 0.0
  %2963 = vmatpush.msra.mxu0 0.0
  %2964 = vmatpush.msra.mxu0 0.0
  %2965 = vmatpush.msra.mxu0 0.0
  %2966 = vmatpush.msra.mxu0 0.0
  %2967 = vmatpush.msra.mxu0 0.0
  %2968 = vmatpush.msra.mxu0 0.0
  %2969 = vmatpush.msra.mxu0 0.0
  %v2970 = vand.u32 %v2927, 4294901760
  %v2971 = vsub.f32 %v2927, %v2970
  %v2972 = vand.u32 %v2971, 4294901760
  %v2973 = vsub.f32 %v2971, %v2972
  %v2974 = vand.u32 %v2973, 4294901760
  %2975 = vmatpush.msra.mxu0 %v2974
  %v2976 = vand.u32 %v2755, 4294901760
  %v2977 = vsub.f32 %v2755, %v2976
  %v2978 = vand.u32 %v2977, 4294901760
  %v2979 = vsub.f32 %v2977, %v2978
  %v2980 = vand.u32 %v2979, 4294901760
  %2981 = vmatpush.msra.mxu0 %v2980
  %v2982 = vand.u32 %v2924, 4294901760
  %2983 = vmatmul.f32.gmra.mxu0 %v2982
  %v2984 = vpop.f32.mrf.mxu0
  %v2985 = vadd.f32 %v2954, %v2984
  %2986 = vdwg.mxu0
  %2987 = vmatpush.msra.mxu0 0.0
  %2988 = vmatpush.msra.mxu0 0.0
  %2989 = vmatpush.msra.mxu0 0.0
  %2990 = vmatpush.msra.mxu0 0.0
  %2991 = vmatpush.msra.mxu0 0.0
  %2992 = vmatpush.msra.mxu0 0.0
  %2993 = vmatpush.msra.mxu0 0.0
  %2994 = vmatpush.msra.mxu0 0.0
  %2995 = vmatpush.msra.mxu0 0.0
  %2996 = vmatpush.msra.mxu0 0.0
  %2997 = vmatpush.msra.mxu0 0.0
  %2998 = vmatpush.msra.mxu0 0.0
  %2999 = vmatpush.msra.mxu0 0.0
  %3000 = vmatpush.msra.mxu0 0.0
  %v3001 = vand.u32 %v2927, 4294901760
  %v3002 = vsub.f32 %v2927, %v3001
  %3003 = vmatpush.msra.mxu0 %v3002
  %v3004 = vand.u32 %v2755, 4294901760
  %v3005 = vsub.f32 %v2755, %v3004
  %3006 = vmatpush.msra.mxu0 %v3005
  %v3007 = vand.u32 %v2924, 4294901760
  %v3008 = vsub.f32 %v2924, %v3007
  %3009 = vmatmul.f32.gmra.mxu0 %v3008
  %v3010 = vpop.f32.mrf.mxu0
  %v3011 = vadd.f32 %v2985, %v3010
  %3012 = vdwg.mxu0
  %3013 = vmatpush.msra.mxu0 0.0
  %3014 = vmatpush.msra.mxu0 0.0
  %3015 = vmatpush.msra.mxu0 0.0
  %3016 = vmatpush.msra.mxu0 0.0
  %3017 = vmatpush.msra.mxu0 0.0
  %3018 = vmatpush.msra.mxu0 0.0
  %3019 = vmatpush.msra.mxu0 0.0
  %3020 = vmatpush.msra.mxu0 0.0
  %3021 = vmatpush.msra.mxu0 0.0
  %3022 = vmatpush.msra.mxu0 0.0
  %3023 = vmatpush.msra.mxu0 0.0
  %3024 = vmatpush.msra.mxu0 0.0
  %3025 = vmatpush.msra.mxu0 0.0
  %3026 = vmatpush.msra.mxu0 0.0
  %v3027 = vand.u32 %v2927, 4294901760
  %3028 = vmatpush.msra.mxu0 %v3027
  %v3029 = vand.u32 %v2755, 4294901760
  %3030 = vmatpush.msra.mxu0 %v3029
  %v3031 = vand.u32 %v2924, 4294901760
  %v3032 = vsub.f32 %v2924, %v3031
  %v3033 = vand.u32 %v3032, 4294901760
  %3034 = vmatmul.f32.gmra.mxu0 %v3033
  %v3035 = vpop.f32.mrf.mxu0
  %v3036 = vadd.f32 %v3011, %v3035
  %3037 = vdwg.mxu0
  %3038 = vmatpush.msra.mxu0 0.0
  %3039 = vmatpush.msra.mxu0 0.0
  %3040 = vmatpush.msra.mxu0 0.0
  %3041 = vmatpush.msra.mxu0 0.0
  %3042 = vmatpush.msra.mxu0 0.0
  %3043 = vmatpush.msra.mxu0 0.0
  %3044 = vmatpush.msra.mxu0 0.0
  %3045 = vmatpush.msra.mxu0 0.0
  %3046 = vmatpush.msra.mxu0 0.0
  %3047 = vmatpush.msra.mxu0 0.0
  %3048 = vmatpush.msra.mxu0 0.0
  %3049 = vmatpush.msra.mxu0 0.0
  %3050 = vmatpush.msra.mxu0 0.0
  %3051 = vmatpush.msra.mxu0 0.0
  %v3052 = vand.u32 %v2927, 4294901760
  %v3053 = vsub.f32 %v2927, %v3052
  %v3054 = vand.u32 %v3053, 4294901760
  %3055 = vmatpush.msra.mxu0 %v3054
  %v3056 = vand.u32 %v2755, 4294901760
  %v3057 = vsub.f32 %v2755, %v3056
  %v3058 = vand.u32 %v3057, 4294901760
  %3059 = vmatpush.msra.mxu0 %v3058
  %v3060 = vand.u32 %v2924, 4294901760
  %3061 = vmatmul.f32.gmra.mxu0 %v3060
  %v3062 = vpop.f32.mrf.mxu0
  %v3063 = vadd.f32 %v3036, %v3062
  %3064 = vdwg.mxu0
  %3065 = vmatpush.msra.mxu0 0.0
  %3066 = vmatpush.msra.mxu0 0.0
  %3067 = vmatpush.msra.mxu0 0.0
  %3068 = vmatpush.msra.mxu0 0.0
  %3069 = vmatpush.msra.mxu0 0.0
  %3070 = vmatpush.msra.mxu0 0.0
  %3071 = vmatpush.msra.mxu0 0.0
  %3072 = vmatpush.msra.mxu0 0.0
  %3073 = vmatpush.msra.mxu0 0.0
  %3074 = vmatpush.msra.mxu0 0.0
  %3075 = vmatpush.msra.mxu0 0.0
  %3076 = vmatpush.msra.mxu0 0.0
  %3077 = vmatpush.msra.mxu0 0.0
  %3078 = vmatpush.msra.mxu0 0.0
  %v3079 = vand.u32 %v2927, 4294901760
  %3080 = vmatpush.msra.mxu0 %v3079
  %v3081 = vand.u32 %v2755, 4294901760
  %3082 = vmatpush.msra.mxu0 %v3081
  %v3083 = vand.u32 %v2924, 4294901760
  %3084 = vmatmul.f32.gmra.mxu0 %v3083
  %v3085 = vpop.f32.mrf.mxu0
  %v3086 = vadd.f32 %v3063, %v3085
  %3087 = vdwg.mxu0
  %v3088 = vld [vmem:[%s9] sm:$0x1]
  %v3090 = vperm.slane %v3088, 0
  %v3092 = vadd.f32 %v3086, %v3090
  %v3093 = vxor.u32 %v3092, 2147483648
  %v3094 = vmul.f32 %v3093, 1.442695
  %v3095 = vpow.pop %v3094
  %v3096 = vadd.f32 %v3095, 1.0
  %v3097 = vrcp.pop %v3096
  %v3098 = vmul.f32 %v3096, %v3097
  %v3099 = vsub.f32 1.0, %v3098
  %v3100 = vmul.f32 %v3097, %v3099
  %v3101 = vadd.f32 %v3097, %v3100
  %vm3102 = vweird.f32 %v3096
  %vm3103 = vweird.f32 %v3097
  %vm3104 = vmor %vm3102, %vm3103
  %v3105 = vsel %vm3104, %v3097, %v3101
  %v3106 = vand.u32 2147483647, %v3096
  %vm3107 = vcmp.eq.f32.partialorder %v3106, 8.507059e+37
  %v3108 = vand.u32 %v3096, 2147483648
  %v3109 = vor.u32 1.1754944e-38, %v3108
  %v3110 = vsel %vm3107, %v3109, %v3105
  %v3111 = vmul.f32 1.0, %v3110
  %v3112 = vtanh.pop %v3092
  %v3113 = vmul.f32 %v3111, 0.0
  %3115 = vrot.lane.b32.xlu0 %v3112, 108
  %v3116 = vpop.permute.xlu0 %3115
  %v3118 = vmul.f32 %v3111, %v3116
  %3120 = vrot.lane.b32.xlu0 %v3118, 10
  %v3121 = vpop.permute.xlu0 %3120
  %v3123 = vadd.f32 %v3113, %v3121
  %v3124 = vtanh.pop %v3123
  %3126 = vrot.lane.b32.xlu0 %v3124, 20
  %v3127 = vpop.permute.xlu0 %3126
  %v3129 = vmul.f32 %v3111, %v3127
  %3130 = vmatpush.msra.mxu0 0.0
  %3131 = vmatpush.msra.mxu0 0.0
  %3132 = vmatpush.msra.mxu0 0.0
  %3133 = vmatpush.msra.mxu0 0.0
  %3134 = vmatpush.msra.mxu0 0.0
  %3135 = vmatpush.msra.mxu0 0.0
  %3136 = vmatpush.msra.mxu0 0.0
  %3137 = vmatpush.msra.mxu0 0.0
  %3138 = vmatpush.msra.mxu0 0.0
  %3139 = vmatpush.msra.mxu0 0.0
  %3140 = vmatpush.msra.mxu0 0.0
  %3141 = vmatpush.msra.mxu0 0.0
  %3142 = vmatpush.msra.mxu0 0.0
  %3143 = vmatpush.msra.mxu0 0.0
  %v3144 = vand.u32 %v2556, 4294901760
  %3145 = vmatpush.msra.mxu0 %v3144
  %v3146 = vand.u32 %v2548, 4294901760
  %3147 = vmatpush.msra.mxu0 %v3146
  %v3148 = vand.u32 %v2924, 4294901760
  %v3149 = vsub.f32 %v2924, %v3148
  %v3150 = vand.u32 %v3149, 4294901760
  %v3151 = vsub.f32 %v3149, %v3150
  %v3152 = vand.u32 %v3151, 4294901760
  %3153 = vmatmul.f32.gmra.mxu0 %v3152
  %v3154 = vpop.f32.mrf.mxu0
  %v3155 = vadd.f32 0.0, %v3154
  %3156 = vdwg.mxu0
  %3157 = vmatpush.msra.mxu0 0.0
  %3158 = vmatpush.msra.mxu0 0.0
  %3159 = vmatpush.msra.mxu0 0.0
  %3160 = vmatpush.msra.mxu0 0.0
  %3161 = vmatpush.msra.mxu0 0.0
  %3162 = vmatpush.msra.mxu0 0.0
  %3163 = vmatpush.msra.mxu0 0.0
  %3164 = vmatpush.msra.mxu0 0.0
  %3165 = vmatpush.msra.mxu0 0.0
  %3166 = vmatpush.msra.mxu0 0.0
  %3167 = vmatpush.msra.mxu0 0.0
  %3168 = vmatpush.msra.mxu0 0.0
  %3169 = vmatpush.msra.mxu0 0.0
  %3170 = vmatpush.msra.mxu0 0.0
  %v3171 = vand.u32 %v2556, 4294901760
  %v3172 = vsub.f32 %v2556, %v3171
  %v3173 = vand.u32 %v3172, 4294901760
  %v3174 = vsub.f32 %v3172, %v3173
  %v3175 = vand.u32 %v3174, 4294901760
  %3176 = vmatpush.msra.mxu0 %v3175
  %v3177 = vand.u32 %v2548, 4294901760
  %v3178 = vsub.f32 %v2548, %v3177
  %v3179 = vand.u32 %v3178, 4294901760
  %v3180 = vsub.f32 %v3178, %v3179
  %v3181 = vand.u32 %v3180, 4294901760
  %3182 = vmatpush.msra.mxu0 %v3181
  %v3183 = vand.u32 %v2924, 4294901760
  %3184 = vmatmul.f32.gmra.mxu0 %v3183
  %v3185 = vpop.f32.mrf.mxu0
  %v3186 = vadd.f32 %v3155, %v3185
  %3187 = vdwg.mxu0
  %3188 = vmatpush.msra.mxu0 0.0
  %3189 = vmatpush.msra.mxu0 0.0
  %3190 = vmatpush.msra.mxu0 0.0
  %3191 = vmatpush.msra.mxu0 0.0
  %3192 = vmatpush.msra.mxu0 0.0
  %3193 = vmatpush.msra.mxu0 0.0
  %3194 = vmatpush.msra.mxu0 0.0
  %3195 = vmatpush.msra.mxu0 0.0
  %3196 = vmatpush.msra.mxu0 0.0
  %3197 = vmatpush.msra.mxu0 0.0
  %3198 = vmatpush.msra.mxu0 0.0
  %3199 = vmatpush.msra.mxu0 0.0
  %3200 = vmatpush.msra.mxu0 0.0
  %3201 = vmatpush.msra.mxu0 0.0
  %v3202 = vand.u32 %v2556, 4294901760
  %v3203 = vsub.f32 %v2556, %v3202
  %3204 = vmatpush.msra.mxu0 %v3203
  %v3205 = vand.u32 %v2548, 4294901760
  %v3206 = vsub.f32 %v2548, %v3205
  %3207 = vmatpush.msra.mxu0 %v3206
  %v3208 = vand.u32 %v2924, 4294901760
  %v3209 = vsub.f32 %v2924, %v3208
  %3210 = vmatmul.f32.gmra.mxu0 %v3209
  %v3211 = vpop.f32.mrf.mxu0
  %v3212 = vadd.f32 %v3186, %v3211
  %3213 = vdwg.mxu0
  %3214 = vmatpush.msra.mxu0 0.0
  %3215 = vmatpush.msra.mxu0 0.0
  %3216 = vmatpush.msra.mxu0 0.0
  %3217 = vmatpush.msra.mxu0 0.0
  %3218 = vmatpush.msra.mxu0 0.0
  %3219 = vmatpush.msra.mxu0 0.0
  %3220 = vmatpush.msra.mxu0 0.0
  %3221 = vmatpush.msra.mxu0 0.0
  %3222 = vmatpush.msra.mxu0 0.0
  %3223 = vmatpush.msra.mxu0 0.0
  %3224 = vmatpush.msra.mxu0 0.0
  %3225 = vmatpush.msra.mxu0 0.0
  %3226 = vmatpush.msra.mxu0 0.0
  %3227 = vmatpush.msra.mxu0 0.0
  %v3228 = vand.u32 %v2556, 4294901760
  %3229 = vmatpush.msra.mxu0 %v3228
  %v3230 = vand.u32 %v2548, 4294901760
  %3231 = vmatpush.msra.mxu0 %v3230
  %v3232 = vand.u32 %v2924, 4294901760
  %v3233 = vsub.f32 %v2924, %v3232
  %v3234 = vand.u32 %v3233, 4294901760
  %3235 = vmatmul.f32.gmra.mxu0 %v3234
  %v3236 = vpop.f32.mrf.mxu0
  %v3237 = vadd.f32 %v3212, %v3236
  %3238 = vdwg.mxu0
  %3239 = vmatpush.msra.mxu0 0.0
  %3240 = vmatpush.msra.mxu0 0.0
  %3241 = vmatpush.msra.mxu0 0.0
  %3242 = vmatpush.msra.mxu0 0.0
  %3243 = vmatpush.msra.mxu0 0.0
  %3244 = vmatpush.msra.mxu0 0.0
  %3245 = vmatpush.msra.mxu0 0.0
  %3246 = vmatpush.msra.mxu0 0.0
  %3247 = vmatpush.msra.mxu0 0.0
  %3248 = vmatpush.msra.mxu0 0.0
  %3249 = vmatpush.msra.mxu0 0.0
  %3250 = vmatpush.msra.mxu0 0.0
  %3251 = vmatpush.msra.mxu0 0.0
  %3252 = vmatpush.msra.mxu0 0.0
  %v3253 = vand.u32 %v2556, 4294901760
  %v3254 = vsub.f32 %v2556, %v3253
  %v3255 = vand.u32 %v3254, 4294901760
  %3256 = vmatpush.msra.mxu0 %v3255
  %v3257 = vand.u32 %v2548, 4294901760
  %v3258 = vsub.f32 %v2548, %v3257
  %v3259 = vand.u32 %v3258, 4294901760
  %3260 = vmatpush.msra.mxu0 %v3259
  %v3261 = vand.u32 %v2924, 4294901760
  %3262 = vmatmul.f32.gmra.mxu0 %v3261
  %v3263 = vpop.f32.mrf.mxu0
  %v3264 = vadd.f32 %v3237, %v3263
  %3265 = vdwg.mxu0
  %3266 = vmatpush.msra.mxu0 0.0
  %3267 = vmatpush.msra.mxu0 0.0
  %3268 = vmatpush.msra.mxu0 0.0
  %3269 = vmatpush.msra.mxu0 0.0
  %3270 = vmatpush.msra.mxu0 0.0
  %3271 = vmatpush.msra.mxu0 0.0
  %3272 = vmatpush.msra.mxu0 0.0
  %3273 = vmatpush.msra.mxu0 0.0
  %3274 = vmatpush.msra.mxu0 0.0
  %3275 = vmatpush.msra.mxu0 0.0
  %3276 = vmatpush.msra.mxu0 0.0
  %3277 = vmatpush.msra.mxu0 0.0
  %3278 = vmatpush.msra.mxu0 0.0
  %3279 = vmatpush.msra.mxu0 0.0
  %v3280 = vand.u32 %v2556, 4294901760
  %3281 = vmatpush.msra.mxu0 %v3280
  %v3282 = vand.u32 %v2548, 4294901760
  %3283 = vmatpush.msra.mxu0 %v3282
  %v3284 = vand.u32 %v2924, 4294901760
  %3285 = vmatmul.f32.gmra.mxu0 %v3284
  %v3286 = vpop.f32.mrf.mxu0
  %v3287 = vadd.f32 %v3264, %v3286
  %3288 = vdwg.mxu0
  %v3289 = vadd.f32 %v2522, %v3287
  %v3290 = vxor.u32 %v3289, 2147483648
  %v3291 = vmul.f32 %v3290, 1.442695
  %v3292 = vpow.pop %v3291
  %v3293 = vadd.f32 %v3292, 1.0
  %v3294 = vrcp.pop %v3293
  %v3295 = vmul.f32 %v3293, %v3294
  %v3296 = vsub.f32 1.0, %v3295
  %v3297 = vmul.f32 %v3294, %v3296
  %v3298 = vadd.f32 %v3294, %v3297
  %vm3299 = vweird.f32 %v3293
  %vm3300 = vweird.f32 %v3294
  %vm3301 = vmor %vm3299, %vm3300
  %v3302 = vsel %vm3301, %v3294, %v3298
  %v3303 = vand.u32 2147483647, %v3293
  %vm3304 = vcmp.eq.f32.partialorder %v3303, 8.507059e+37
  %v3305 = vand.u32 %v3293, 2147483648
  %v3306 = vor.u32 1.1754944e-38, %v3305
  %v3307 = vsel %vm3304, %v3306, %v3302
  %v3308 = vmul.f32 1.0, %v3307
  %v3309 = vtanh.pop %v3289
  %v3310 = vmul.f32 %v3308, %v2748
  %3312 = vrot.lane.b32.xlu0 %v3309, 108
  %v3313 = vpop.permute.xlu0 %3312
  %v3315 = vmul.f32 %v3308, %v3313
  %3317 = vrot.lane.b32.xlu0 %v3315, 10
  %v3318 = vpop.permute.xlu0 %3317
  %v3320 = vadd.f32 %v3310, %v3318
  %v3321 = vtanh.pop %v3320
  %3323 = vrot.lane.b32.xlu0 %v3321, 20
  %v3324 = vpop.permute.xlu0 %3323
  %v3326 = vmul.f32 %v3308, %v3324
  %3328 = vrot.lane.b32.xlu0 %v3129, 98
  %v3329 = vpop.permute.xlu0 %3328
  %v3330 = vsel %vm2550, %v3329, 0
  %3332 = vmatpush.msra.mxu0 0.0
  %3333 = vmatpush.msra.mxu0 0.0
  %3334 = vmatpush.msra.mxu0 0.0
  %3335 = vmatpush.msra.mxu0 0.0
  %3336 = vmatpush.msra.mxu0 0.0
  %3337 = vmatpush.msra.mxu0 0.0
  %3338 = vmatpush.msra.mxu0 0.0
  %3339 = vmatpush.msra.mxu0 0.0
  %3340 = vmatpush.msra.mxu0 0.0
  %3341 = vmatpush.msra.mxu0 0.0
  %3342 = vmatpush.msra.mxu0 0.0
  %3343 = vmatpush.msra.mxu0 0.0
  %3344 = vmatpush.msra.mxu0 0.0
  %3345 = vmatpush.msra.mxu0 0.0
  %v3346 = vand.u32 %v2760, 4294901760
  %3347 = vmatpush.msra.mxu0 %v3346
  %v3348 = vand.u32 %v2757, 4294901760
  %3349 = vmatpush.msra.mxu0 %v3348
  %v3350 = vand.u32 %v3330, 4294901760
  %v3351 = vsub.f32 %v3330, %v3350
  %v3352 = vand.u32 %v3351, 4294901760
  %v3353 = vsub.f32 %v3351, %v3352
  %v3354 = vand.u32 %v3353, 4294901760
  %3355 = vmatmul.f32.gmra.mxu0 %v3354
  %v3356 = vpop.f32.mrf.mxu0
  %v3357 = vadd.f32 0.0, %v3356
  %3358 = vdwg.mxu0
  %3359 = vmatpush.msra.mxu0 0.0
  %3360 = vmatpush.msra.mxu0 0.0
  %3361 = vmatpush.msra.mxu0 0.0
  %3362 = vmatpush.msra.mxu0 0.0
  %3363 = vmatpush.msra.mxu0 0.0
  %3364 = vmatpush.msra.mxu0 0.0
  %3365 = vmatpush.msra.mxu0 0.0
  %3366 = vmatpush.msra.mxu0 0.0
  %3367 = vmatpush.msra.mxu0 0.0
  %3368 = vmatpush.msra.mxu0 0.0
  %3369 = vmatpush.msra.mxu0 0.0
  %3370 = vmatpush.msra.mxu0 0.0
  %3371 = vmatpush.msra.mxu0 0.0
  %3372 = vmatpush.msra.mxu0 0.0
  %v3373 = vand.u32 %v2760, 4294901760
  %v3374 = vsub.f32 %v2760, %v3373
  %v3375 = vand.u32 %v3374, 4294901760
  %v3376 = vsub.f32 %v3374, %v3375
  %v3377 = vand.u32 %v3376, 4294901760
  %3378 = vmatpush.msra.mxu0 %v3377
  %v3379 = vand.u32 %v2757, 4294901760
  %v3380 = vsub.f32 %v2757, %v3379
  %v3381 = vand.u32 %v3380, 4294901760
  %v3382 = vsub.f32 %v3380, %v3381
  %v3383 = vand.u32 %v3382, 4294901760
  %3384 = vmatpush.msra.mxu0 %v3383
  %v3385 = vand.u32 %v3330, 4294901760
  %3386 = vmatmul.f32.gmra.mxu0 %v3385
  %v3387 = vpop.f32.mrf.mxu0
  %v3388 = vadd.f32 %v3357, %v3387
  %3389 = vdwg.mxu0
  %3390 = vmatpush.msra.mxu0 0.0
  %3391 = vmatpush.msra.mxu0 0.0
  %3392 = vmatpush.msra.mxu0 0.0
  %3393 = vmatpush.msra.mxu0 0.0
  %3394 = vmatpush.msra.mxu0 0.0
  %3395 = vmatpush.msra.mxu0 0.0
  %3396 = vmatpush.msra.mxu0 0.0
  %3397 = vmatpush.msra.mxu0 0.0
  %3398 = vmatpush.msra.mxu0 0.0
  %3399 = vmatpush.msra.mxu0 0.0
  %3400 = vmatpush.msra.mxu0 0.0
  %3401 = vmatpush.msra.mxu0 0.0
  %3402 = vmatpush.msra.mxu0 0.0
  %3403 = vmatpush.msra.mxu0 0.0
  %v3404 = vand.u32 %v2760, 4294901760
  %v3405 = vsub.f32 %v2760, %v3404
  %3406 = vmatpush.msra.mxu0 %v3405
  %v3407 = vand.u32 %v2757, 4294901760
  %v3408 = vsub.f32 %v2757, %v3407
  %3409 = vmatpush.msra.mxu0 %v3408
  %v3410 = vand.u32 %v3330, 4294901760
  %v3411 = vsub.f32 %v3330, %v3410
  %3412 = vmatmul.f32.gmra.mxu0 %v3411
  %v3413 = vpop.f32.mrf.mxu0
  %v3414 = vadd.f32 %v3388, %v3413
  %3415 = vdwg.mxu0
  %3416 = vmatpush.msra.mxu0 0.0
  %3417 = vmatpush.msra.mxu0 0.0
  %3418 = vmatpush.msra.mxu0 0.0
  %3419 = vmatpush.msra.mxu0 0.0
  %3420 = vmatpush.msra.mxu0 0.0
  %3421 = vmatpush.msra.mxu0 0.0
  %3422 = vmatpush.msra.mxu0 0.0
  %3423 = vmatpush.msra.mxu0 0.0
  %3424 = vmatpush.msra.mxu0 0.0
  %3425 = vmatpush.msra.mxu0 0.0
  %3426 = vmatpush.msra.mxu0 0.0
  %3427 = vmatpush.msra.mxu0 0.0
  %3428 = vmatpush.msra.mxu0 0.0
  %3429 = vmatpush.msra.mxu0 0.0
  %v3430 = vand.u32 %v2760, 4294901760
  %3431 = vmatpush.msra.mxu0 %v3430
  %v3432 = vand.u32 %v2757, 4294901760
  %3433 = vmatpush.msra.mxu0 %v3432
  %v3434 = vand.u32 %v3330, 4294901760
  %v3435 = vsub.f32 %v3330, %v3434
  %v3436 = vand.u32 %v3435, 4294901760
  %3437 = vmatmul.f32.gmra.mxu0 %v3436
  %v3438 = vpop.f32.mrf.mxu0
  %v3439 = vadd.f32 %v3414, %v3438
  %3440 = vdwg.mxu0
  %3441 = vmatpush.msra.mxu0 0.0
  %3442 = vmatpush.msra.mxu0 0.0
  %3443 = vmatpush.msra.mxu0 0.0
  %3444 = vmatpush.msra.mxu0 0.0
  %3445 = vmatpush.msra.mxu0 0.0
  %3446 = vmatpush.msra.mxu0 0.0
  %3447 = vmatpush.msra.mxu0 0.0
  %3448 = vmatpush.msra.mxu0 0.0
  %3449 = vmatpush.msra.mxu0 0.0
  %3450 = vmatpush.msra.mxu0 0.0
  %3451 = vmatpush.msra.mxu0 0.0
  %3452 = vmatpush.msra.mxu0 0.0
  %3453 = vmatpush.msra.mxu0 0.0
  %3454 = vmatpush.msra.mxu0 0.0
  %v3455 = vand.u32 %v2760, 4294901760
  %v3456 = vsub.f32 %v2760, %v3455
  %v3457 = vand.u32 %v3456, 4294901760
  %3458 = vmatpush.msra.mxu0 %v3457
  %v3459 = vand.u32 %v2757, 4294901760
  %v3460 = vsub.f32 %v2757, %v3459
  %v3461 = vand.u32 %v3460, 4294901760
  %3462 = vmatpush.msra.mxu0 %v3461
  %v3463 = vand.u32 %v3330, 4294901760
  %3464 = vmatmul.f32.gmra.mxu0 %v3463
  %v3465 = vpop.f32.mrf.mxu0
  %v3466 = vadd.f32 %v3439, %v3465
  %3467 = vdwg.mxu0
  %3468 = vmatpush.msra.mxu0 0.0
  %3469 = vmatpush.msra.mxu0 0.0
  %3470 = vmatpush.msra.mxu0 0.0
  %3471 = vmatpush.msra.mxu0 0.0
  %3472 = vmatpush.msra.mxu0 0.0
  %3473 = vmatpush.msra.mxu0 0.0
  %3474 = vmatpush.msra.mxu0 0.0
  %3475 = vmatpush.msra.mxu0 0.0
  %3476 = vmatpush.msra.mxu0 0.0
  %3477 = vmatpush.msra.mxu0 0.0
  %3478 = vmatpush.msra.mxu0 0.0
  %3479 = vmatpush.msra.mxu0 0.0
  %3480 = vmatpush.msra.mxu0 0.0
  %3481 = vmatpush.msra.mxu0 0.0
  %v3482 = vand.u32 %v2760, 4294901760
  %3483 = vmatpush.msra.mxu0 %v3482
  %v3484 = vand.u32 %v2757, 4294901760
  %3485 = vmatpush.msra.mxu0 %v3484
  %v3486 = vand.u32 %v3330, 4294901760
  %3487 = vmatmul.f32.gmra.mxu0 %v3486
  %v3488 = vpop.f32.mrf.mxu0
  %v3489 = vadd.f32 %v3466, %v3488
  %3490 = vdwg.mxu0
  %3492 = vrot.lane.b32.xlu0 %v3326, 98
  %v3493 = vpop.permute.xlu0 %3492
  %v3494 = vsel %vm2550, %v3493, 0
  %3496 = vmatpush.msra.mxu0 0.0
  %3497 = vmatpush.msra.mxu0 0.0
  %3498 = vmatpush.msra.mxu0 0.0
  %3499 = vmatpush.msra.mxu0 0.0
  %3500 = vmatpush.msra.mxu0 0.0
  %3501 = vmatpush.msra.mxu0 0.0
  %3502 = vmatpush.msra.mxu0 0.0
  %3503 = vmatpush.msra.mxu0 0.0
  %3504 = vmatpush.msra.mxu0 0.0
  %3505 = vmatpush.msra.mxu0 0.0
  %3506 = vmatpush.msra.mxu0 0.0
  %3507 = vmatpush.msra.mxu0 0.0
  %3508 = vmatpush.msra.mxu0 0.0
  %3509 = vmatpush.msra.mxu0 0.0
  %v3510 = vand.u32 %v2927, 4294901760
  %3511 = vmatpush.msra.mxu0 %v3510
  %v3512 = vand.u32 %v2755, 4294901760
  %3513 = vmatpush.msra.mxu0 %v3512
  %v3514 = vand.u32 %v3494, 4294901760
  %v3515 = vsub.f32 %v3494, %v3514
  %v3516 = vand.u32 %v3515, 4294901760
  %v3517 = vsub.f32 %v3515, %v3516
  %v3518 = vand.u32 %v3517, 4294901760
  %3519 = vmatmul.f32.gmra.mxu0 %v3518
  %v3520 = vpop.f32.mrf.mxu0
  %v3521 = vadd.f32 %v3489, %v3520
  %3522 = vdwg.mxu0
  %3523 = vmatpush.msra.mxu0 0.0
  %3524 = vmatpush.msra.mxu0 0.0
  %3525 = vmatpush.msra.mxu0 0.0
  %3526 = vmatpush.msra.mxu0 0.0
  %3527 = vmatpush.msra.mxu0 0.0
  %3528 = vmatpush.msra.mxu0 0.0
  %3529 = vmatpush.msra.mxu0 0.0
  %3530 = vmatpush.msra.mxu0 0.0
  %3531 = vmatpush.msra.mxu0 0.0
  %3532 = vmatpush.msra.mxu0 0.0
  %3533 = vmatpush.msra.mxu0 0.0
  %3534 = vmatpush.msra.mxu0 0.0
  %3535 = vmatpush.msra.mxu0 0.0
  %3536 = vmatpush.msra.mxu0 0.0
  %v3537 = vand.u32 %v2927, 4294901760
  %v3538 = vsub.f32 %v2927, %v3537
  %v3539 = vand.u32 %v3538, 4294901760
  %v3540 = vsub.f32 %v3538, %v3539
  %v3541 = vand.u32 %v3540, 4294901760
  %3542 = vmatpush.msra.mxu0 %v3541
  %v3543 = vand.u32 %v2755, 4294901760
  %v3544 = vsub.f32 %v2755, %v3543
  %v3545 = vand.u32 %v3544, 4294901760
  %v3546 = vsub.f32 %v3544, %v3545
  %v3547 = vand.u32 %v3546, 4294901760
  %3548 = vmatpush.msra.mxu0 %v3547
  %v3549 = vand.u32 %v3494, 4294901760
  %3550 = vmatmul.f32.gmra.mxu0 %v3549
  %v3551 = vpop.f32.mrf.mxu0
  %v3552 = vadd.f32 %v3521, %v3551
  %3553 = vdwg.mxu0
  %3554 = vmatpush.msra.mxu0 0.0
  %3555 = vmatpush.msra.mxu0 0.0
  %3556 = vmatpush.msra.mxu0 0.0
  %3557 = vmatpush.msra.mxu0 0.0
  %3558 = vmatpush.msra.mxu0 0.0
  %3559 = vmatpush.msra.mxu0 0.0
  %3560 = vmatpush.msra.mxu0 0.0
  %3561 = vmatpush.msra.mxu0 0.0
  %3562 = vmatpush.msra.mxu0 0.0
  %3563 = vmatpush.msra.mxu0 0.0
  %3564 = vmatpush.msra.mxu0 0.0
  %3565 = vmatpush.msra.mxu0 0.0
  %3566 = vmatpush.msra.mxu0 0.0
  %3567 = vmatpush.msra.mxu0 0.0
  %v3568 = vand.u32 %v2927, 4294901760
  %v3569 = vsub.f32 %v2927, %v3568
  %3570 = vmatpush.msra.mxu0 %v3569
  %v3571 = vand.u32 %v2755, 4294901760
  %v3572 = vsub.f32 %v2755, %v3571
  %3573 = vmatpush.msra.mxu0 %v3572
  %v3574 = vand.u32 %v3494, 4294901760
  %v3575 = vsub.f32 %v3494, %v3574
  %3576 = vmatmul.f32.gmra.mxu0 %v3575
  %v3577 = vpop.f32.mrf.mxu0
  %v3578 = vadd.f32 %v3552, %v3577
  %3579 = vdwg.mxu0
  %3580 = vmatpush.msra.mxu0 0.0
  %3581 = vmatpush.msra.mxu0 0.0
  %3582 = vmatpush.msra.mxu0 0.0
  %3583 = vmatpush.msra.mxu0 0.0
  %3584 = vmatpush.msra.mxu0 0.0
  %3585 = vmatpush.msra.mxu0 0.0
  %3586 = vmatpush.msra.mxu0 0.0
  %3587 = vmatpush.msra.mxu0 0.0
  %3588 = vmatpush.msra.mxu0 0.0
  %3589 = vmatpush.msra.mxu0 0.0
  %3590 = vmatpush.msra.mxu0 0.0
  %3591 = vmatpush.msra.mxu0 0.0
  %3592 = vmatpush.msra.mxu0 0.0
  %3593 = vmatpush.msra.mxu0 0.0
  %v3594 = vand.u32 %v2927, 4294901760
  %3595 = vmatpush.msra.mxu0 %v3594
  %v3596 = vand.u32 %v2755, 4294901760
  %3597 = vmatpush.msra.mxu0 %v3596
  %v3598 = vand.u32 %v3494, 4294901760
  %v3599 = vsub.f32 %v3494, %v3598
  %v3600 = vand.u32 %v3599, 4294901760
  %3601 = vmatmul.f32.gmra.mxu0 %v3600
  %v3602 = vpop.f32.mrf.mxu0
  %v3603 = vadd.f32 %v3578, %v3602
  %3604 = vdwg.mxu0
  %3605 = vmatpush.msra.mxu0 0.0
  %3606 = vmatpush.msra.mxu0 0.0
  %3607 = vmatpush.msra.mxu0 0.0
  %3608 = vmatpush.msra.mxu0 0.0
  %3609 = vmatpush.msra.mxu0 0.0
  %3610 = vmatpush.msra.mxu0 0.0
  %3611 = vmatpush.msra.mxu0 0.0
  %3612 = vmatpush.msra.mxu0 0.0
  %3613 = vmatpush.msra.mxu0 0.0
  %3614 = vmatpush.msra.mxu0 0.0
  %3615 = vmatpush.msra.mxu0 0.0
  %3616 = vmatpush.msra.mxu0 0.0
  %3617 = vmatpush.msra.mxu0 0.0
  %3618 = vmatpush.msra.mxu0 0.0
  %v3619 = vand.u32 %v2927, 4294901760
  %v3620 = vsub.f32 %v2927, %v3619
  %v3621 = vand.u32 %v3620, 4294901760
  %3622 = vmatpush.msra.mxu0 %v3621
  %v3623 = vand.u32 %v2755, 4294901760
  %v3624 = vsub.f32 %v2755, %v3623
  %v3625 = vand.u32 %v3624, 4294901760
  %3626 = vmatpush.msra.mxu0 %v3625
  %v3627 = vand.u32 %v3494, 4294901760
  %3628 = vmatmul.f32.gmra.mxu0 %v3627
  %v3629 = vpop.f32.mrf.mxu0
  %v3630 = vadd.f32 %v3603, %v3629
  %3631 = vdwg.mxu0
  %3632 = vmatpush.msra.mxu0 0.0
  %3633 = vmatpush.msra.mxu0 0.0
  %3634 = vmatpush.msra.mxu0 0.0
  %3635 = vmatpush.msra.mxu0 0.0
  %3636 = vmatpush.msra.mxu0 0.0
  %3637 = vmatpush.msra.mxu0 0.0
  %3638 = vmatpush.msra.mxu0 0.0
  %3639 = vmatpush.msra.mxu0 0.0
  %3640 = vmatpush.msra.mxu0 0.0
  %3641 = vmatpush.msra.mxu0 0.0
  %3642 = vmatpush.msra.mxu0 0.0
  %3643 = vmatpush.msra.mxu0 0.0
  %3644 = vmatpush.msra.mxu0 0.0
  %3645 = vmatpush.msra.mxu0 0.0
  %v3646 = vand.u32 %v2927, 4294901760
  %3647 = vmatpush.msra.mxu0 %v3646
  %v3648 = vand.u32 %v2755, 4294901760
  %3649 = vmatpush.msra.mxu0 %v3648
  %v3650 = vand.u32 %v3494, 4294901760
  %3651 = vmatmul.f32.gmra.mxu0 %v3650
  %v3652 = vpop.f32.mrf.mxu0
  %v3653 = vadd.f32 %v3630, %v3652
  %3654 = vdwg.mxu0
  %v3655 = vadd.f32 %v3653, %v3090
  %v3656 = vxor.u32 %v3655, 2147483648
  %v3657 = vmul.f32 %v3656, 1.442695
  %v3658 = vpow.pop %v3657
  %v3659 = vadd.f32 %v3658, 1.0
  %v3660 = vrcp.pop %v3659
  %v3661 = vmul.f32 %v3659, %v3660
  %v3662 = vsub.f32 1.0, %v3661
  %v3663 = vmul.f32 %v3660, %v3662
  %v3664 = vadd.f32 %v3660, %v3663
  %vm3665 = vweird.f32 %v3659
  %vm3666 = vweird.f32 %v3660
  %vm3667 = vmor %vm3665, %vm3666
  %v3668 = vsel %vm3667, %v3660, %v3664
  %v3669 = vand.u32 2147483647, %v3659
  %vm3670 = vcmp.eq.f32.partialorder %v3669, 8.507059e+37
  %v3671 = vand.u32 %v3659, 2147483648
  %v3672 = vor.u32 1.1754944e-38, %v3671
  %v3673 = vsel %vm3670, %v3672, %v3668
  %v3674 = vmul.f32 1.0, %v3673
  %v3675 = vtanh.pop %v3655
  %v3676 = vmul.f32 %v3674, %v3123
  %3678 = vrot.lane.b32.xlu0 %v3675, 108
  %v3679 = vpop.permute.xlu0 %3678
  %v3681 = vmul.f32 %v3674, %v3679
  %3683 = vrot.lane.b32.xlu0 %v3681, 10
  %v3684 = vpop.permute.xlu0 %3683
  %v3686 = vadd.f32 %v3676, %v3684
  %v3687 = vtanh.pop %v3686
  %3689 = vrot.lane.b32.xlu0 %v3687, 20
  %v3690 = vpop.permute.xlu0 %3689
  %v3692 = vmul.f32 %v3674, %v3690
  %3693 = vmatpush.msra.mxu0 0.0
  %3694 = vmatpush.msra.mxu0 0.0
  %3695 = vmatpush.msra.mxu0 0.0
  %3696 = vmatpush.msra.mxu0 0.0
  %3697 = vmatpush.msra.mxu0 0.0
  %3698 = vmatpush.msra.mxu0 0.0
  %3699 = vmatpush.msra.mxu0 0.0
  %3700 = vmatpush.msra.mxu0 0.0
  %3701 = vmatpush.msra.mxu0 0.0
  %3702 = vmatpush.msra.mxu0 0.0
  %3703 = vmatpush.msra.mxu0 0.0
  %3704 = vmatpush.msra.mxu0 0.0
  %3705 = vmatpush.msra.mxu0 0.0
  %3706 = vmatpush.msra.mxu0 0.0
  %v3707 = vand.u32 %v2556, 4294901760
  %3708 = vmatpush.msra.mxu0 %v3707
  %v3709 = vand.u32 %v2548, 4294901760
  %3710 = vmatpush.msra.mxu0 %v3709
  %v3711 = vand.u32 %v3494, 4294901760
  %v3712 = vsub.f32 %v3494, %v3711
  %v3713 = vand.u32 %v3712, 4294901760
  %v3714 = vsub.f32 %v3712, %v3713
  %v3715 = vand.u32 %v3714, 4294901760
  %3716 = vmatmul.f32.gmra.mxu0 %v3715
  %v3717 = vpop.f32.mrf.mxu0
  %v3718 = vadd.f32 0.0, %v3717
  %3719 = vdwg.mxu0
  %3720 = vmatpush.msra.mxu0 0.0
  %3721 = vmatpush.msra.mxu0 0.0
  %3722 = vmatpush.msra.mxu0 0.0
  %3723 = vmatpush.msra.mxu0 0.0
  %3724 = vmatpush.msra.mxu0 0.0
  %3725 = vmatpush.msra.mxu0 0.0
  %3726 = vmatpush.msra.mxu0 0.0
  %3727 = vmatpush.msra.mxu0 0.0
  %3728 = vmatpush.msra.mxu0 0.0
  %3729 = vmatpush.msra.mxu0 0.0
  %3730 = vmatpush.msra.mxu0 0.0
  %3731 = vmatpush.msra.mxu0 0.0
  %3732 = vmatpush.msra.mxu0 0.0
  %3733 = vmatpush.msra.mxu0 0.0
  %v3734 = vand.u32 %v2556, 4294901760
  %v3735 = vsub.f32 %v2556, %v3734
  %v3736 = vand.u32 %v3735, 4294901760
  %v3737 = vsub.f32 %v3735, %v3736
  %v3738 = vand.u32 %v3737, 4294901760
  %3739 = vmatpush.msra.mxu0 %v3738
  %v3740 = vand.u32 %v2548, 4294901760
  %v3741 = vsub.f32 %v2548, %v3740
  %v3742 = vand.u32 %v3741, 4294901760
  %v3743 = vsub.f32 %v3741, %v3742
  %v3744 = vand.u32 %v3743, 4294901760
  %3745 = vmatpush.msra.mxu0 %v3744
  %v3746 = vand.u32 %v3494, 4294901760
  %3747 = vmatmul.f32.gmra.mxu0 %v3746
  %v3748 = vpop.f32.mrf.mxu0
  %v3749 = vadd.f32 %v3718, %v3748
  %3750 = vdwg.mxu0
  %3751 = vmatpush.msra.mxu0 0.0
  %3752 = vmatpush.msra.mxu0 0.0
  %3753 = vmatpush.msra.mxu0 0.0
  %3754 = vmatpush.msra.mxu0 0.0
  %3755 = vmatpush.msra.mxu0 0.0
  %3756 = vmatpush.msra.mxu0 0.0
  %3757 = vmatpush.msra.mxu0 0.0
  %3758 = vmatpush.msra.mxu0 0.0
  %3759 = vmatpush.msra.mxu0 0.0
  %3760 = vmatpush.msra.mxu0 0.0
  %3761 = vmatpush.msra.mxu0 0.0
  %3762 = vmatpush.msra.mxu0 0.0
  %3763 = vmatpush.msra.mxu0 0.0
  %3764 = vmatpush.msra.mxu0 0.0
  %v3765 = vand.u32 %v2556, 4294901760
  %v3766 = vsub.f32 %v2556, %v3765
  %3767 = vmatpush.msra.mxu0 %v3766
  %v3768 = vand.u32 %v2548, 4294901760
  %v3769 = vsub.f32 %v2548, %v3768
  %3770 = vmatpush.msra.mxu0 %v3769
  %v3771 = vand.u32 %v3494, 4294901760
  %v3772 = vsub.f32 %v3494, %v3771
  %3773 = vmatmul.f32.gmra.mxu0 %v3772
  %v3774 = vpop.f32.mrf.mxu0
  %v3775 = vadd.f32 %v3749, %v3774
  %3776 = vdwg.mxu0
  %3777 = vmatpush.msra.mxu0 0.0
  %3778 = vmatpush.msra.mxu0 0.0
  %3779 = vmatpush.msra.mxu0 0.0
  %3780 = vmatpush.msra.mxu0 0.0
  %3781 = vmatpush.msra.mxu0 0.0
  %3782 = vmatpush.msra.mxu0 0.0
  %3783 = vmatpush.msra.mxu0 0.0
  %3784 = vmatpush.msra.mxu0 0.0
  %3785 = vmatpush.msra.mxu0 0.0
  %3786 = vmatpush.msra.mxu0 0.0
  %3787 = vmatpush.msra.mxu0 0.0
  %3788 = vmatpush.msra.mxu0 0.0
  %3789 = vmatpush.msra.mxu0 0.0
  %3790 = vmatpush.msra.mxu0 0.0
  %v3791 = vand.u32 %v2556, 4294901760
  %3792 = vmatpush.msra.mxu0 %v3791
  %v3793 = vand.u32 %v2548, 4294901760
  %3794 = vmatpush.msra.mxu0 %v3793
  %v3795 = vand.u32 %v3494, 4294901760
  %v3796 = vsub.f32 %v3494, %v3795
  %v3797 = vand.u32 %v3796, 4294901760
  %3798 = vmatmul.f32.gmra.mxu0 %v3797
  %v3799 = vpop.f32.mrf.mxu0
  %v3800 = vadd.f32 %v3775, %v3799
  %3801 = vdwg.mxu0
  %3802 = vmatpush.msra.mxu0 0.0
  %3803 = vmatpush.msra.mxu0 0.0
  %3804 = vmatpush.msra.mxu0 0.0
  %3805 = vmatpush.msra.mxu0 0.0
  %3806 = vmatpush.msra.mxu0 0.0
  %3807 = vmatpush.msra.mxu0 0.0
  %3808 = vmatpush.msra.mxu0 0.0
  %3809 = vmatpush.msra.mxu0 0.0
  %3810 = vmatpush.msra.mxu0 0.0
  %3811 = vmatpush.msra.mxu0 0.0
  %3812 = vmatpush.msra.mxu0 0.0
  %3813 = vmatpush.msra.mxu0 0.0
  %3814 = vmatpush.msra.mxu0 0.0
  %3815 = vmatpush.msra.mxu0 0.0
  %v3816 = vand.u32 %v2556, 4294901760
  %v3817 = vsub.f32 %v2556, %v3816
  %v3818 = vand.u32 %v3817, 4294901760
  %3819 = vmatpush.msra.mxu0 %v3818
  %v3820 = vand.u32 %v2548, 4294901760
  %v3821 = vsub.f32 %v2548, %v3820
  %v3822 = vand.u32 %v3821, 4294901760
  %3823 = vmatpush.msra.mxu0 %v3822
  %v3824 = vand.u32 %v3494, 4294901760
  %3825 = vmatmul.f32.gmra.mxu0 %v3824
  %v3826 = vpop.f32.mrf.mxu0
  %v3827 = vadd.f32 %v3800, %v3826
  %3828 = vdwg.mxu0
  %3829 = vmatpush.msra.mxu0 0.0
  %3830 = vmatpush.msra.mxu0 0.0
  %3831 = vmatpush.msra.mxu0 0.0
  %3832 = vmatpush.msra.mxu0 0.0
  %3833 = vmatpush.msra.mxu0 0.0
  %3834 = vmatpush.msra.mxu0 0.0
  %3835 = vmatpush.msra.mxu0 0.0
  %3836 = vmatpush.msra.mxu0 0.0
  %3837 = vmatpush.msra.mxu0 0.0
  %3838 = vmatpush.msra.mxu0 0.0
  %3839 = vmatpush.msra.mxu0 0.0
  %3840 = vmatpush.msra.mxu0 0.0
  %3841 = vmatpush.msra.mxu0 0.0
  %3842 = vmatpush.msra.mxu0 0.0
  %v3843 = vand.u32 %v2556, 4294901760
  %3844 = vmatpush.msra.mxu0 %v3843
  %v3845 = vand.u32 %v2548, 4294901760
  %3846 = vmatpush.msra.mxu0 %v3845
  %v3847 = vand.u32 %v3494, 4294901760
  %3848 = vmatmul.f32.gmra.mxu0 %v3847
  %v3849 = vpop.f32.mrf.mxu0
  %v3850 = vadd.f32 %v3827, %v3849
  %3851 = vdwg.mxu0
  %v3852 = vadd.f32 %v2526, %v3850
  %v3853 = vxor.u32 %v3852, 2147483648
  %v3854 = vmul.f32 %v3853, 1.442695
  %v3855 = vpow.pop %v3854
  %v3856 = vadd.f32 %v3855, 1.0
  %v3857 = vrcp.pop %v3856
  %v3858 = vmul.f32 %v3856, %v3857
  %v3859 = vsub.f32 1.0, %v3858
  %v3860 = vmul.f32 %v3857, %v3859
  %v3861 = vadd.f32 %v3857, %v3860
  %vm3862 = vweird.f32 %v3856
  %vm3863 = vweird.f32 %v3857
  %vm3864 = vmor %vm3862, %vm3863
  %v3865 = vsel %vm3864, %v3857, %v3861
  %v3866 = vand.u32 2147483647, %v3856
  %vm3867 = vcmp.eq.f32.partialorder %v3866, 8.507059e+37
  %v3868 = vand.u32 %v3856, 2147483648
  %v3869 = vor.u32 1.1754944e-38, %v3868
  %v3870 = vsel %vm3867, %v3869, %v3865
  %v3871 = vmul.f32 1.0, %v3870
  %v3872 = vtanh.pop %v3852
  %v3873 = vmul.f32 %v3871, %v3320
  %3875 = vrot.lane.b32.xlu0 %v3872, 108
  %v3876 = vpop.permute.xlu0 %3875
  %v3878 = vmul.f32 %v3871, %v3876
  %3880 = vrot.lane.b32.xlu0 %v3878, 10
  %v3881 = vpop.permute.xlu0 %3880
  %v3883 = vadd.f32 %v3873, %v3881
  %v3884 = vtanh.pop %v3883
  %3886 = vrot.lane.b32.xlu0 %v3884, 20
  %v3887 = vpop.permute.xlu0 %3886
  %v3889 = vmul.f32 %v3871, %v3887
  %3891 = vrot.lane.b32.xlu0 %v3692, 98
  %v3892 = vpop.permute.xlu0 %3891
  %v3893 = vsel %vm2550, %v3892, 0
  %3895 = vmatpush.msra.mxu0 0.0
  %3896 = vmatpush.msra.mxu0 0.0
  %3897 = vmatpush.msra.mxu0 0.0
  %3898 = vmatpush.msra.mxu0 0.0
  %3899 = vmatpush.msra.mxu0 0.0
  %3900 = vmatpush.msra.mxu0 0.0
  %3901 = vmatpush.msra.mxu0 0.0
  %3902 = vmatpush.msra.mxu0 0.0
  %3903 = vmatpush.msra.mxu0 0.0
  %3904 = vmatpush.msra.mxu0 0.0
  %3905 = vmatpush.msra.mxu0 0.0
  %3906 = vmatpush.msra.mxu0 0.0
  %3907 = vmatpush.msra.mxu0 0.0
  %3908 = vmatpush.msra.mxu0 0.0
  %v3909 = vand.u32 %v2760, 4294901760
  %3910 = vmatpush.msra.mxu0 %v3909
  %v3911 = vand.u32 %v2757, 4294901760
  %3912 = vmatpush.msra.mxu0 %v3911
  %v3913 = vand.u32 %v3893, 4294901760
  %v3914 = vsub.f32 %v3893, %v3913
  %v3915 = vand.u32 %v3914, 4294901760
  %v3916 = vsub.f32 %v3914, %v3915
  %v3917 = vand.u32 %v3916, 4294901760
  %3918 = vmatmul.f32.gmra.mxu0 %v3917
  %v3919 = vpop.f32.mrf.mxu0
  %v3920 = vadd.f32 0.0, %v3919
  %3921 = vdwg.mxu0
  %3922 = vmatpush.msra.mxu0 0.0
  %3923 = vmatpush.msra.mxu0 0.0
  %3924 = vmatpush.msra.mxu0 0.0
  %3925 = vmatpush.msra.mxu0 0.0
  %3926 = vmatpush.msra.mxu0 0.0
  %3927 = vmatpush.msra.mxu0 0.0
  %3928 = vmatpush.msra.mxu0 0.0
  %3929 = vmatpush.msra.mxu0 0.0
  %3930 = vmatpush.msra.mxu0 0.0
  %3931 = vmatpush.msra.mxu0 0.0
  %3932 = vmatpush.msra.mxu0 0.0
  %3933 = vmatpush.msra.mxu0 0.0
  %3934 = vmatpush.msra.mxu0 0.0
  %3935 = vmatpush.msra.mxu0 0.0
  %v3936 = vand.u32 %v2760, 4294901760
  %v3937 = vsub.f32 %v2760, %v3936
  %v3938 = vand.u32 %v3937, 4294901760
  %v3939 = vsub.f32 %v3937, %v3938
  %v3940 = vand.u32 %v3939, 4294901760
  %3941 = vmatpush.msra.mxu0 %v3940
  %v3942 = vand.u32 %v2757, 4294901760
  %v3943 = vsub.f32 %v2757, %v3942
  %v3944 = vand.u32 %v3943, 4294901760
  %v3945 = vsub.f32 %v3943, %v3944
  %v3946 = vand.u32 %v3945, 4294901760
  %3947 = vmatpush.msra.mxu0 %v3946
  %v3948 = vand.u32 %v3893, 4294901760
  %3949 = vmatmul.f32.gmra.mxu0 %v3948
  %v3950 = vpop.f32.mrf.mxu0
  %v3951 = vadd.f32 %v3920, %v3950
  %3952 = vdwg.mxu0
  %3953 = vmatpush.msra.mxu0 0.0
  %3954 = vmatpush.msra.mxu0 0.0
  %3955 = vmatpush.msra.mxu0 0.0
  %3956 = vmatpush.msra.mxu0 0.0
  %3957 = vmatpush.msra.mxu0 0.0
  %3958 = vmatpush.msra.mxu0 0.0
  %3959 = vmatpush.msra.mxu0 0.0
  %3960 = vmatpush.msra.mxu0 0.0
  %3961 = vmatpush.msra.mxu0 0.0
  %3962 = vmatpush.msra.mxu0 0.0
  %3963 = vmatpush.msra.mxu0 0.0
  %3964 = vmatpush.msra.mxu0 0.0
  %3965 = vmatpush.msra.mxu0 0.0
  %3966 = vmatpush.msra.mxu0 0.0
  %v3967 = vand.u32 %v2760, 4294901760
  %v3968 = vsub.f32 %v2760, %v3967
  %3969 = vmatpush.msra.mxu0 %v3968
  %v3970 = vand.u32 %v2757, 4294901760
  %v3971 = vsub.f32 %v2757, %v3970
  %3972 = vmatpush.msra.mxu0 %v3971
  %v3973 = vand.u32 %v3893, 4294901760
  %v3974 = vsub.f32 %v3893, %v3973
  %3975 = vmatmul.f32.gmra.mxu0 %v3974
  %v3976 = vpop.f32.mrf.mxu0
  %v3977 = vadd.f32 %v3951, %v3976
  %3978 = vdwg.mxu0
  %3979 = vmatpush.msra.mxu0 0.0
  %3980 = vmatpush.msra.mxu0 0.0
  %3981 = vmatpush.msra.mxu0 0.0
  %3982 = vmatpush.msra.mxu0 0.0
  %3983 = vmatpush.msra.mxu0 0.0
  %3984 = vmatpush.msra.mxu0 0.0
  %3985 = vmatpush.msra.mxu0 0.0
  %3986 = vmatpush.msra.mxu0 0.0
  %3987 = vmatpush.msra.mxu0 0.0
  %3988 = vmatpush.msra.mxu0 0.0
  %3989 = vmatpush.msra.mxu0 0.0
  %3990 = vmatpush.msra.mxu0 0.0
  %3991 = vmatpush.msra.mxu0 0.0
  %3992 = vmatpush.msra.mxu0 0.0
  %v3993 = vand.u32 %v2760, 4294901760
  %3994 = vmatpush.msra.mxu0 %v3993
  %v3995 = vand.u32 %v2757, 4294901760
  %3996 = vmatpush.msra.mxu0 %v3995
  %v3997 = vand.u32 %v3893, 4294901760
  %v3998 = vsub.f32 %v3893, %v3997
  %v3999 = vand.u32 %v3998, 4294901760
  %4000 = vmatmul.f32.gmra.mxu0 %v3999
  %v4001 = vpop.f32.mrf.mxu0
  %v4002 = vadd.f32 %v3977, %v4001
  %4003 = vdwg.mxu0
  %4004 = vmatpush.msra.mxu0 0.0
  %4005 = vmatpush.msra.mxu0 0.0
  %4006 = vmatpush.msra.mxu0 0.0
  %4007 = vmatpush.msra.mxu0 0.0
  %4008 = vmatpush.msra.mxu0 0.0
  %4009 = vmatpush.msra.mxu0 0.0
  %4010 = vmatpush.msra.mxu0 0.0
  %4011 = vmatpush.msra.mxu0 0.0
  %4012 = vmatpush.msra.mxu0 0.0
  %4013 = vmatpush.msra.mxu0 0.0
  %4014 = vmatpush.msra.mxu0 0.0
  %4015 = vmatpush.msra.mxu0 0.0
  %4016 = vmatpush.msra.mxu0 0.0
  %4017 = vmatpush.msra.mxu0 0.0
  %v4018 = vand.u32 %v2760, 4294901760
  %v4019 = vsub.f32 %v2760, %v4018
  %v4020 = vand.u32 %v4019, 4294901760
  %4021 = vmatpush.msra.mxu0 %v4020
  %v4022 = vand.u32 %v2757, 4294901760
  %v4023 = vsub.f32 %v2757, %v4022
  %v4024 = vand.u32 %v4023, 4294901760
  %4025 = vmatpush.msra.mxu0 %v4024
  %v4026 = vand.u32 %v3893, 4294901760
  %4027 = vmatmul.f32.gmra.mxu0 %v4026
  %v4028 = vpop.f32.mrf.mxu0
  %v4029 = vadd.f32 %v4002, %v4028
  %4030 = vdwg.mxu0
  %4031 = vmatpush.msra.mxu0 0.0
  %4032 = vmatpush.msra.mxu0 0.0
  %4033 = vmatpush.msra.mxu0 0.0
  %4034 = vmatpush.msra.mxu0 0.0
  %4035 = vmatpush.msra.mxu0 0.0
  %4036 = vmatpush.msra.mxu0 0.0
  %4037 = vmatpush.msra.mxu0 0.0
  %4038 = vmatpush.msra.mxu0 0.0
  %4039 = vmatpush.msra.mxu0 0.0
  %4040 = vmatpush.msra.mxu0 0.0
  %4041 = vmatpush.msra.mxu0 0.0
  %4042 = vmatpush.msra.mxu0 0.0
  %4043 = vmatpush.msra.mxu0 0.0
  %4044 = vmatpush.msra.mxu0 0.0
  %v4045 = vand.u32 %v2760, 4294901760
  %4046 = vmatpush.msra.mxu0 %v4045
  %v4047 = vand.u32 %v2757, 4294901760
  %4048 = vmatpush.msra.mxu0 %v4047
  %v4049 = vand.u32 %v3893, 4294901760
  %4050 = vmatmul.f32.gmra.mxu0 %v4049
  %v4051 = vpop.f32.mrf.mxu0
  %v4052 = vadd.f32 %v4029, %v4051
  %4053 = vdwg.mxu0
  %4055 = vrot.lane.b32.xlu0 %v3889, 98
  %v4056 = vpop.permute.xlu0 %4055
  %v4057 = vsel %vm2550, %v4056, 0
  %4059 = vmatpush.msra.mxu0 0.0
  %4060 = vmatpush.msra.mxu0 0.0
  %4061 = vmatpush.msra.mxu0 0.0
  %4062 = vmatpush.msra.mxu0 0.0
  %4063 = vmatpush.msra.mxu0 0.0
  %4064 = vmatpush.msra.mxu0 0.0
  %4065 = vmatpush.msra.mxu0 0.0
  %4066 = vmatpush.msra.mxu0 0.0
  %4067 = vmatpush.msra.mxu0 0.0
  %4068 = vmatpush.msra.mxu0 0.0
  %4069 = vmatpush.msra.mxu0 0.0
  %4070 = vmatpush.msra.mxu0 0.0
  %4071 = vmatpush.msra.mxu0 0.0
  %4072 = vmatpush.msra.mxu0 0.0
  %v4073 = vand.u32 %v2927, 4294901760
  %4074 = vmatpush.msra.mxu0 %v4073
  %v4075 = vand.u32 %v2755, 4294901760
  %4076 = vmatpush.msra.mxu0 %v4075
  %v4077 = vand.u32 %v4057, 4294901760
  %v4078 = vsub.f32 %v4057, %v4077
  %v4079 = vand.u32 %v4078, 4294901760
  %v4080 = vsub.f32 %v4078, %v4079
  %v4081 = vand.u32 %v4080, 4294901760
  %4082 = vmatmul.f32.gmra.mxu0 %v4081
  %v4083 = vpop.f32.mrf.mxu0
  %v4084 = vadd.f32 %v4052, %v4083
  %4085 = vdwg.mxu0
  %4086 = vmatpush.msra.mxu0 0.0
  %4087 = vmatpush.msra.mxu0 0.0
  %4088 = vmatpush.msra.mxu0 0.0
  %4089 = vmatpush.msra.mxu0 0.0
  %4090 = vmatpush.msra.mxu0 0.0
  %4091 = vmatpush.msra.mxu0 0.0
  %4092 = vmatpush.msra.mxu0 0.0
  %4093 = vmatpush.msra.mxu0 0.0
  %4094 = vmatpush.msra.mxu0 0.0
  %4095 = vmatpush.msra.mxu0 0.0
  %4096 = vmatpush.msra.mxu0 0.0
  %4097 = vmatpush.msra.mxu0 0.0
  %4098 = vmatpush.msra.mxu0 0.0
  %4099 = vmatpush.msra.mxu0 0.0
  %v4100 = vand.u32 %v2927, 4294901760
  %v4101 = vsub.f32 %v2927, %v4100
  %v4102 = vand.u32 %v4101, 4294901760
  %v4103 = vsub.f32 %v4101, %v4102
  %v4104 = vand.u32 %v4103, 4294901760
  %4105 = vmatpush.msra.mxu0 %v4104
  %v4106 = vand.u32 %v2755, 4294901760
  %v4107 = vsub.f32 %v2755, %v4106
  %v4108 = vand.u32 %v4107, 4294901760
  %v4109 = vsub.f32 %v4107, %v4108
  %v4110 = vand.u32 %v4109, 4294901760
  %4111 = vmatpush.msra.mxu0 %v4110
  %v4112 = vand.u32 %v4057, 4294901760
  %4113 = vmatmul.f32.gmra.mxu0 %v4112
  %v4114 = vpop.f32.mrf.mxu0
  %v4115 = vadd.f32 %v4084, %v4114
  %4116 = vdwg.mxu0
  %4117 = vmatpush.msra.mxu0 0.0
  %4118 = vmatpush.msra.mxu0 0.0
  %4119 = vmatpush.msra.mxu0 0.0
  %4120 = vmatpush.msra.mxu0 0.0
  %4121 = vmatpush.msra.mxu0 0.0
  %4122 = vmatpush.msra.mxu0 0.0
  %4123 = vmatpush.msra.mxu0 0.0
  %4124 = vmatpush.msra.mxu0 0.0
  %4125 = vmatpush.msra.mxu0 0.0
  %4126 = vmatpush.msra.mxu0 0.0
  %4127 = vmatpush.msra.mxu0 0.0
  %4128 = vmatpush.msra.mxu0 0.0
  %4129 = vmatpush.msra.mxu0 0.0
  %4130 = vmatpush.msra.mxu0 0.0
  %v4131 = vand.u32 %v2927, 4294901760
  %v4132 = vsub.f32 %v2927, %v4131
  %4133 = vmatpush.msra.mxu0 %v4132
  %v4134 = vand.u32 %v2755, 4294901760
  %v4135 = vsub.f32 %v2755, %v4134
  %4136 = vmatpush.msra.mxu0 %v4135
  %v4137 = vand.u32 %v4057, 4294901760
  %v4138 = vsub.f32 %v4057, %v4137
  %4139 = vmatmul.f32.gmra.mxu0 %v4138
  %v4140 = vpop.f32.mrf.mxu0
  %v4141 = vadd.f32 %v4115, %v4140
  %4142 = vdwg.mxu0
  %4143 = vmatpush.msra.mxu0 0.0
  %4144 = vmatpush.msra.mxu0 0.0
  %4145 = vmatpush.msra.mxu0 0.0
  %4146 = vmatpush.msra.mxu0 0.0
  %4147 = vmatpush.msra.mxu0 0.0
  %4148 = vmatpush.msra.mxu0 0.0
  %4149 = vmatpush.msra.mxu0 0.0
  %4150 = vmatpush.msra.mxu0 0.0
  %4151 = vmatpush.msra.mxu0 0.0
  %4152 = vmatpush.msra.mxu0 0.0
  %4153 = vmatpush.msra.mxu0 0.0
  %4154 = vmatpush.msra.mxu0 0.0
  %4155 = vmatpush.msra.mxu0 0.0
  %4156 = vmatpush.msra.mxu0 0.0
  %v4157 = vand.u32 %v2927, 4294901760
  %4158 = vmatpush.msra.mxu0 %v4157
  %v4159 = vand.u32 %v2755, 4294901760
  %4160 = vmatpush.msra.mxu0 %v4159
  %v4161 = vand.u32 %v4057, 4294901760
  %v4162 = vsub.f32 %v4057, %v4161
  %v4163 = vand.u32 %v4162, 4294901760
  %4164 = vmatmul.f32.gmra.mxu0 %v4163
  %v4165 = vpop.f32.mrf.mxu0
  %v4166 = vadd.f32 %v4141, %v4165
  %4167 = vdwg.mxu0
  %4168 = vmatpush.msra.mxu0 0.0
  %4169 = vmatpush.msra.mxu0 0.0
  %4170 = vmatpush.msra.mxu0 0.0
  %4171 = vmatpush.msra.mxu0 0.0
  %4172 = vmatpush.msra.mxu0 0.0
  %4173 = vmatpush.msra.mxu0 0.0
  %4174 = vmatpush.msra.mxu0 0.0
  %4175 = vmatpush.msra.mxu0 0.0
  %4176 = vmatpush.msra.mxu0 0.0
  %4177 = vmatpush.msra.mxu0 0.0
  %4178 = vmatpush.msra.mxu0 0.0
  %4179 = vmatpush.msra.mxu0 0.0
  %4180 = vmatpush.msra.mxu0 0.0
  %4181 = vmatpush.msra.mxu0 0.0
  %v4182 = vand.u32 %v2927, 4294901760
  %v4183 = vsub.f32 %v2927, %v4182
  %v4184 = vand.u32 %v4183, 4294901760
  %4185 = vmatpush.msra.mxu0 %v4184
  %v4186 = vand.u32 %v2755, 4294901760
  %v4187 = vsub.f32 %v2755, %v4186
  %v4188 = vand.u32 %v4187, 4294901760
  %4189 = vmatpush.msra.mxu0 %v4188
  %v4190 = vand.u32 %v4057, 4294901760
  %4191 = vmatmul.f32.gmra.mxu0 %v4190
  %v4192 = vpop.f32.mrf.mxu0
  %v4193 = vadd.f32 %v4166, %v4192
  %4194 = vdwg.mxu0
  %4195 = vmatpush.msra.mxu0 0.0
  %4196 = vmatpush.msra.mxu0 0.0
  %4197 = vmatpush.msra.mxu0 0.0
  %4198 = vmatpush.msra.mxu0 0.0
  %4199 = vmatpush.msra.mxu0 0.0
  %4200 = vmatpush.msra.mxu0 0.0
  %4201 = vmatpush.msra.mxu0 0.0
  %4202 = vmatpush.msra.mxu0 0.0
  %4203 = vmatpush.msra.mxu0 0.0
  %4204 = vmatpush.msra.mxu0 0.0
  %4205 = vmatpush.msra.mxu0 0.0
  %4206 = vmatpush.msra.mxu0 0.0
  %4207 = vmatpush.msra.mxu0 0.0
  %4208 = vmatpush.msra.mxu0 0.0
  %v4209 = vand.u32 %v2927, 4294901760
  %4210 = vmatpush.msra.mxu0 %v4209
  %v4211 = vand.u32 %v2755, 4294901760
  %4212 = vmatpush.msra.mxu0 %v4211
  %v4213 = vand.u32 %v4057, 4294901760
  %4214 = vmatmul.f32.gmra.mxu0 %v4213
  %v4215 = vpop.f32.mrf.mxu0
  %v4216 = vadd.f32 %v4193, %v4215
  %4217 = vdwg.mxu0
  %v4218 = vadd.f32 %v4216, %v3090
  %v4219 = vxor.u32 %v4218, 2147483648
  %v4220 = vmul.f32 %v4219, 1.442695
  %v4221 = vpow.pop %v4220
  %v4222 = vadd.f32 %v4221, 1.0
  %v4223 = vrcp.pop %v4222
  %v4224 = vmul.f32 %v4222, %v4223
  %v4225 = vsub.f32 1.0, %v4224
  %v4226 = vmul.f32 %v4223, %v4225
  %v4227 = vadd.f32 %v4223, %v4226
  %vm4228 = vweird.f32 %v4222
  %vm4229 = vweird.f32 %v4223
  %vm4230 = vmor %vm4228, %vm4229
  %v4231 = vsel %vm4230, %v4223, %v4227
  %v4232 = vand.u32 2147483647, %v4222
  %vm4233 = vcmp.eq.f32.partialorder %v4232, 8.507059e+37
  %v4234 = vand.u32 %v4222, 2147483648
  %v4235 = vor.u32 1.1754944e-38, %v4234
  %v4236 = vsel %vm4233, %v4235, %v4231
  %v4237 = vmul.f32 1.0, %v4236
  %v4238 = vtanh.pop %v4218
  %v4239 = vmul.f32 %v4237, %v3686
  %4241 = vrot.lane.b32.xlu0 %v4238, 108
  %v4242 = vpop.permute.xlu0 %4241
  %v4244 = vmul.f32 %v4237, %v4242
  %4246 = vrot.lane.b32.xlu0 %v4244, 10
  %v4247 = vpop.permute.xlu0 %4246
  %v4249 = vadd.f32 %v4239, %v4247
  %v4250 = vtanh.pop %v4249
  %4252 = vrot.lane.b32.xlu0 %v4250, 20
  %v4253 = vpop.permute.xlu0 %4252
  %v4255 = vmul.f32 %v4237, %v4253
  %4256 = vmatpush.msra.mxu0 0.0
  %4257 = vmatpush.msra.mxu0 0.0
  %4258 = vmatpush.msra.mxu0 0.0
  %4259 = vmatpush.msra.mxu0 0.0
  %4260 = vmatpush.msra.mxu0 0.0
  %4261 = vmatpush.msra.mxu0 0.0
  %4262 = vmatpush.msra.mxu0 0.0
  %4263 = vmatpush.msra.mxu0 0.0
  %4264 = vmatpush.msra.mxu0 0.0
  %4265 = vmatpush.msra.mxu0 0.0
  %4266 = vmatpush.msra.mxu0 0.0
  %4267 = vmatpush.msra.mxu0 0.0
  %4268 = vmatpush.msra.mxu0 0.0
  %4269 = vmatpush.msra.mxu0 0.0
  %v4270 = vand.u32 %v2556, 4294901760
  %4271 = vmatpush.msra.mxu0 %v4270
  %v4272 = vand.u32 %v2548, 4294901760
  %4273 = vmatpush.msra.mxu0 %v4272
  %v4274 = vand.u32 %v4057, 4294901760
  %v4275 = vsub.f32 %v4057, %v4274
  %v4276 = vand.u32 %v4275, 4294901760
  %v4277 = vsub.f32 %v4275, %v4276
  %v4278 = vand.u32 %v4277, 4294901760
  %4279 = vmatmul.f32.gmra.mxu0 %v4278
  %v4280 = vpop.f32.mrf.mxu0
  %v4281 = vadd.f32 0.0, %v4280
  %4282 = vdwg.mxu0
  %4283 = vmatpush.msra.mxu0 0.0
  %4284 = vmatpush.msra.mxu0 0.0
  %4285 = vmatpush.msra.mxu0 0.0
  %4286 = vmatpush.msra.mxu0 0.0
  %4287 = vmatpush.msra.mxu0 0.0
  %4288 = vmatpush.msra.mxu0 0.0
  %4289 = vmatpush.msra.mxu0 0.0
  %4290 = vmatpush.msra.mxu0 0.0
  %4291 = vmatpush.msra.mxu0 0.0
  %4292 = vmatpush.msra.mxu0 0.0
  %4293 = vmatpush.msra.mxu0 0.0
  %4294 = vmatpush.msra.mxu0 0.0
  %4295 = vmatpush.msra.mxu0 0.0
  %4296 = vmatpush.msra.mxu0 0.0
  %v4297 = vand.u32 %v2556, 4294901760
  %v4298 = vsub.f32 %v2556, %v4297
  %v4299 = vand.u32 %v4298, 4294901760
  %v4300 = vsub.f32 %v4298, %v4299
  %v4301 = vand.u32 %v4300, 4294901760
  %4302 = vmatpush.msra.mxu0 %v4301
  %v4303 = vand.u32 %v2548, 4294901760
  %v4304 = vsub.f32 %v2548, %v4303
  %v4305 = vand.u32 %v4304, 4294901760
  %v4306 = vsub.f32 %v4304, %v4305
  %v4307 = vand.u32 %v4306, 4294901760
  %4308 = vmatpush.msra.mxu0 %v4307
  %v4309 = vand.u32 %v4057, 4294901760
  %4310 = vmatmul.f32.gmra.mxu0 %v4309
  %v4311 = vpop.f32.mrf.mxu0
  %v4312 = vadd.f32 %v4281, %v4311
  %4313 = vdwg.mxu0
  %4314 = vmatpush.msra.mxu0 0.0
  %4315 = vmatpush.msra.mxu0 0.0
  %4316 = vmatpush.msra.mxu0 0.0
  %4317 = vmatpush.msra.mxu0 0.0
  %4318 = vmatpush.msra.mxu0 0.0
  %4319 = vmatpush.msra.mxu0 0.0
  %4320 = vmatpush.msra.mxu0 0.0
  %4321 = vmatpush.msra.mxu0 0.0
  %4322 = vmatpush.msra.mxu0 0.0
  %4323 = vmatpush.msra.mxu0 0.0
  %4324 = vmatpush.msra.mxu0 0.0
  %4325 = vmatpush.msra.mxu0 0.0
  %4326 = vmatpush.msra.mxu0 0.0
  %4327 = vmatpush.msra.mxu0 0.0
  %v4328 = vand.u32 %v2556, 4294901760
  %v4329 = vsub.f32 %v2556, %v4328
  %4330 = vmatpush.msra.mxu0 %v4329
  %v4331 = vand.u32 %v2548, 4294901760
  %v4332 = vsub.f32 %v2548, %v4331
  %4333 = vmatpush.msra.mxu0 %v4332
  %v4334 = vand.u32 %v4057, 4294901760
  %v4335 = vsub.f32 %v4057, %v4334
  %4336 = vmatmul.f32.gmra.mxu0 %v4335
  %v4337 = vpop.f32.mrf.mxu0
  %v4338 = vadd.f32 %v4312, %v4337
  %4339 = vdwg.mxu0
  %4340 = vmatpush.msra.mxu0 0.0
  %4341 = vmatpush.msra.mxu0 0.0
  %4342 = vmatpush.msra.mxu0 0.0
  %4343 = vmatpush.msra.mxu0 0.0
  %4344 = vmatpush.msra.mxu0 0.0
  %4345 = vmatpush.msra.mxu0 0.0
  %4346 = vmatpush.msra.mxu0 0.0
  %4347 = vmatpush.msra.mxu0 0.0
  %4348 = vmatpush.msra.mxu0 0.0
  %4349 = vmatpush.msra.mxu0 0.0
  %4350 = vmatpush.msra.mxu0 0.0
  %4351 = vmatpush.msra.mxu0 0.0
  %4352 = vmatpush.msra.mxu0 0.0
  %4353 = vmatpush.msra.mxu0 0.0
  %v4354 = vand.u32 %v2556, 4294901760
  %4355 = vmatpush.msra.mxu0 %v4354
  %v4356 = vand.u32 %v2548, 4294901760
  %4357 = vmatpush.msra.mxu0 %v4356
  %v4358 = vand.u32 %v4057, 4294901760
  %v4359 = vsub.f32 %v4057, %v4358
  %v4360 = vand.u32 %v4359, 4294901760
  %4361 = vmatmul.f32.gmra.mxu0 %v4360
  %v4362 = vpop.f32.mrf.mxu0
  %v4363 = vadd.f32 %v4338, %v4362
  %4364 = vdwg.mxu0
  %4365 = vmatpush.msra.mxu0 0.0
  %4366 = vmatpush.msra.mxu0 0.0
  %4367 = vmatpush.msra.mxu0 0.0
  %4368 = vmatpush.msra.mxu0 0.0
  %4369 = vmatpush.msra.mxu0 0.0
  %4370 = vmatpush.msra.mxu0 0.0
  %4371 = vmatpush.msra.mxu0 0.0
  %4372 = vmatpush.msra.mxu0 0.0
  %4373 = vmatpush.msra.mxu0 0.0
  %4374 = vmatpush.msra.mxu0 0.0
  %4375 = vmatpush.msra.mxu0 0.0
  %4376 = vmatpush.msra.mxu0 0.0
  %4377 = vmatpush.msra.mxu0 0.0
  %4378 = vmatpush.msra.mxu0 0.0
  %v4379 = vand.u32 %v2556, 4294901760
  %v4380 = vsub.f32 %v2556, %v4379
  %v4381 = vand.u32 %v4380, 4294901760
  %4382 = vmatpush.msra.mxu0 %v4381
  %v4383 = vand.u32 %v2548, 4294901760
  %v4384 = vsub.f32 %v2548, %v4383
  %v4385 = vand.u32 %v4384, 4294901760
  %4386 = vmatpush.msra.mxu0 %v4385
  %v4387 = vand.u32 %v4057, 4294901760
  %4388 = vmatmul.f32.gmra.mxu0 %v4387
  %v4389 = vpop.f32.mrf.mxu0
  %v4390 = vadd.f32 %v4363, %v4389
  %4391 = vdwg.mxu0
  %4392 = vmatpush.msra.mxu0 0.0
  %4393 = vmatpush.msra.mxu0 0.0
  %4394 = vmatpush.msra.mxu0 0.0
  %4395 = vmatpush.msra.mxu0 0.0
  %4396 = vmatpush.msra.mxu0 0.0
  %4397 = vmatpush.msra.mxu0 0.0
  %4398 = vmatpush.msra.mxu0 0.0
  %4399 = vmatpush.msra.mxu0 0.0
  %4400 = vmatpush.msra.mxu0 0.0
  %4401 = vmatpush.msra.mxu0 0.0
  %4402 = vmatpush.msra.mxu0 0.0
  %4403 = vmatpush.msra.mxu0 0.0
  %4404 = vmatpush.msra.mxu0 0.0
  %4405 = vmatpush.msra.mxu0 0.0
  %v4406 = vand.u32 %v2556, 4294901760
  %4407 = vmatpush.msra.mxu0 %v4406
  %v4408 = vand.u32 %v2548, 4294901760
  %4409 = vmatpush.msra.mxu0 %v4408
  %v4410 = vand.u32 %v4057, 4294901760
  %4411 = vmatmul.f32.gmra.mxu0 %v4410
  %v4412 = vpop.f32.mrf.mxu0
  %v4413 = vadd.f32 %v4390, %v4412
  %4414 = vdwg.mxu0
  %v4415 = vadd.f32 %v2530, %v4413
  %v4416 = vxor.u32 %v4415, 2147483648
  %v4417 = vmul.f32 %v4416, 1.442695
  %v4418 = vpow.pop %v4417
  %v4419 = vadd.f32 %v4418, 1.0
  %v4420 = vrcp.pop %v4419
  %v4421 = vmul.f32 %v4419, %v4420
  %v4422 = vsub.f32 1.0, %v4421
  %v4423 = vmul.f32 %v4420, %v4422
  %v4424 = vadd.f32 %v4420, %v4423
  %vm4425 = vweird.f32 %v4419
  %vm4426 = vweird.f32 %v4420
  %vm4427 = vmor %vm4425, %vm4426
  %v4428 = vsel %vm4427, %v4420, %v4424
  %v4429 = vand.u32 2147483647, %v4419
  %vm4430 = vcmp.eq.f32.partialorder %v4429, 8.507059e+37
  %v4431 = vand.u32 %v4419, 2147483648
  %v4432 = vor.u32 1.1754944e-38, %v4431
  %v4433 = vsel %vm4430, %v4432, %v4428
  %v4434 = vmul.f32 1.0, %v4433
  %v4435 = vtanh.pop %v4415
  %v4436 = vmul.f32 %v4434, %v3883
  %4438 = vrot.lane.b32.xlu0 %v4435, 108
  %v4439 = vpop.permute.xlu0 %4438
  %v4441 = vmul.f32 %v4434, %v4439
  %4443 = vrot.lane.b32.xlu0 %v4441, 10
  %v4444 = vpop.permute.xlu0 %4443
  %v4446 = vadd.f32 %v4436, %v4444
  %v4447 = vtanh.pop %v4446
  %4449 = vrot.lane.b32.xlu0 %v4447, 20
  %v4450 = vpop.permute.xlu0 %4449
  %v4452 = vmul.f32 %v4434, %v4450
  %4454 = vrot.lane.b32.xlu0 %v4255, 98
  %v4455 = vpop.permute.xlu0 %4454
  %v4456 = vsel %vm2550, %v4455, 0
  %4458 = vmatpush.msra.mxu0 0.0
  %4459 = vmatpush.msra.mxu0 0.0
  %4460 = vmatpush.msra.mxu0 0.0
  %4461 = vmatpush.msra.mxu0 0.0
  %4462 = vmatpush.msra.mxu0 0.0
  %4463 = vmatpush.msra.mxu0 0.0
  %4464 = vmatpush.msra.mxu0 0.0
  %4465 = vmatpush.msra.mxu0 0.0
  %4466 = vmatpush.msra.mxu0 0.0
  %4467 = vmatpush.msra.mxu0 0.0
  %4468 = vmatpush.msra.mxu0 0.0
  %4469 = vmatpush.msra.mxu0 0.0
  %4470 = vmatpush.msra.mxu0 0.0
  %4471 = vmatpush.msra.mxu0 0.0
  %v4472 = vand.u32 %v2760, 4294901760
  %4473 = vmatpush.msra.mxu0 %v4472
  %v4474 = vand.u32 %v2757, 4294901760
  %4475 = vmatpush.msra.mxu0 %v4474
  %v4476 = vand.u32 %v4456, 4294901760
  %v4477 = vsub.f32 %v4456, %v4476
  %v4478 = vand.u32 %v4477, 4294901760
  %v4479 = vsub.f32 %v4477, %v4478
  %v4480 = vand.u32 %v4479, 4294901760
  %4481 = vmatmul.f32.gmra.mxu0 %v4480
  %v4482 = vpop.f32.mrf.mxu0
  %v4483 = vadd.f32 0.0, %v4482
  %4484 = vdwg.mxu0
  %4485 = vmatpush.msra.mxu0 0.0
  %4486 = vmatpush.msra.mxu0 0.0
  %4487 = vmatpush.msra.mxu0 0.0
  %4488 = vmatpush.msra.mxu0 0.0
  %4489 = vmatpush.msra.mxu0 0.0
  %4490 = vmatpush.msra.mxu0 0.0
  %4491 = vmatpush.msra.mxu0 0.0
  %4492 = vmatpush.msra.mxu0 0.0
  %4493 = vmatpush.msra.mxu0 0.0
  %4494 = vmatpush.msra.mxu0 0.0
  %4495 = vmatpush.msra.mxu0 0.0
  %4496 = vmatpush.msra.mxu0 0.0
  %4497 = vmatpush.msra.mxu0 0.0
  %4498 = vmatpush.msra.mxu0 0.0
  %v4499 = vand.u32 %v2760, 4294901760
  %v4500 = vsub.f32 %v2760, %v4499
  %v4501 = vand.u32 %v4500, 4294901760
  %v4502 = vsub.f32 %v4500, %v4501
  %v4503 = vand.u32 %v4502, 4294901760
  %4504 = vmatpush.msra.mxu0 %v4503
  %v4505 = vand.u32 %v2757, 4294901760
  %v4506 = vsub.f32 %v2757, %v4505
  %v4507 = vand.u32 %v4506, 4294901760
  %v4508 = vsub.f32 %v4506, %v4507
  %v4509 = vand.u32 %v4508, 4294901760
  %4510 = vmatpush.msra.mxu0 %v4509
  %v4511 = vand.u32 %v4456, 4294901760
  %4512 = vmatmul.f32.gmra.mxu0 %v4511
  %v4513 = vpop.f32.mrf.mxu0
  %v4514 = vadd.f32 %v4483, %v4513
  %4515 = vdwg.mxu0
  %4516 = vmatpush.msra.mxu0 0.0
  %4517 = vmatpush.msra.mxu0 0.0
  %4518 = vmatpush.msra.mxu0 0.0
  %4519 = vmatpush.msra.mxu0 0.0
  %4520 = vmatpush.msra.mxu0 0.0
  %4521 = vmatpush.msra.mxu0 0.0
  %4522 = vmatpush.msra.mxu0 0.0
  %4523 = vmatpush.msra.mxu0 0.0
  %4524 = vmatpush.msra.mxu0 0.0
  %4525 = vmatpush.msra.mxu0 0.0
  %4526 = vmatpush.msra.mxu0 0.0
  %4527 = vmatpush.msra.mxu0 0.0
  %4528 = vmatpush.msra.mxu0 0.0
  %4529 = vmatpush.msra.mxu0 0.0
  %v4530 = vand.u32 %v2760, 4294901760
  %v4531 = vsub.f32 %v2760, %v4530
  %4532 = vmatpush.msra.mxu0 %v4531
  %v4533 = vand.u32 %v2757, 4294901760
  %v4534 = vsub.f32 %v2757, %v4533
  %4535 = vmatpush.msra.mxu0 %v4534
  %v4536 = vand.u32 %v4456, 4294901760
  %v4537 = vsub.f32 %v4456, %v4536
  %4538 = vmatmul.f32.gmra.mxu0 %v4537
  %v4539 = vpop.f32.mrf.mxu0
  %v4540 = vadd.f32 %v4514, %v4539
  %4541 = vdwg.mxu0
  %4542 = vmatpush.msra.mxu0 0.0
  %4543 = vmatpush.msra.mxu0 0.0
  %4544 = vmatpush.msra.mxu0 0.0
  %4545 = vmatpush.msra.mxu0 0.0
  %4546 = vmatpush.msra.mxu0 0.0
  %4547 = vmatpush.msra.mxu0 0.0
  %4548 = vmatpush.msra.mxu0 0.0
  %4549 = vmatpush.msra.mxu0 0.0
  %4550 = vmatpush.msra.mxu0 0.0
  %4551 = vmatpush.msra.mxu0 0.0
  %4552 = vmatpush.msra.mxu0 0.0
  %4553 = vmatpush.msra.mxu0 0.0
  %4554 = vmatpush.msra.mxu0 0.0
  %4555 = vmatpush.msra.mxu0 0.0
  %v4556 = vand.u32 %v2760, 4294901760
  %4557 = vmatpush.msra.mxu0 %v4556
  %v4558 = vand.u32 %v2757, 4294901760
  %4559 = vmatpush.msra.mxu0 %v4558
  %v4560 = vand.u32 %v4456, 4294901760
  %v4561 = vsub.f32 %v4456, %v4560
  %v4562 = vand.u32 %v4561, 4294901760
  %4563 = vmatmul.f32.gmra.mxu0 %v4562
  %v4564 = vpop.f32.mrf.mxu0
  %v4565 = vadd.f32 %v4540, %v4564
  %4566 = vdwg.mxu0
  %4567 = vmatpush.msra.mxu0 0.0
  %4568 = vmatpush.msra.mxu0 0.0
  %4569 = vmatpush.msra.mxu0 0.0
  %4570 = vmatpush.msra.mxu0 0.0
  %4571 = vmatpush.msra.mxu0 0.0
  %4572 = vmatpush.msra.mxu0 0.0
  %4573 = vmatpush.msra.mxu0 0.0
  %4574 = vmatpush.msra.mxu0 0.0
  %4575 = vmatpush.msra.mxu0 0.0
  %4576 = vmatpush.msra.mxu0 0.0
  %4577 = vmatpush.msra.mxu0 0.0
  %4578 = vmatpush.msra.mxu0 0.0
  %4579 = vmatpush.msra.mxu0 0.0
  %4580 = vmatpush.msra.mxu0 0.0
  %v4581 = vand.u32 %v2760, 4294901760
  %v4582 = vsub.f32 %v2760, %v4581
  %v4583 = vand.u32 %v4582, 4294901760
  %4584 = vmatpush.msra.mxu0 %v4583
  %v4585 = vand.u32 %v2757, 4294901760
  %v4586 = vsub.f32 %v2757, %v4585
  %v4587 = vand.u32 %v4586, 4294901760
  %4588 = vmatpush.msra.mxu0 %v4587
  %v4589 = vand.u32 %v4456, 4294901760
  %4590 = vmatmul.f32.gmra.mxu0 %v4589
  %v4591 = vpop.f32.mrf.mxu0
  %v4592 = vadd.f32 %v4565, %v4591
  %4593 = vdwg.mxu0
  %4594 = vmatpush.msra.mxu0 0.0
  %4595 = vmatpush.msra.mxu0 0.0
  %4596 = vmatpush.msra.mxu0 0.0
  %4597 = vmatpush.msra.mxu0 0.0
  %4598 = vmatpush.msra.mxu0 0.0
  %4599 = vmatpush.msra.mxu0 0.0
  %4600 = vmatpush.msra.mxu0 0.0
  %4601 = vmatpush.msra.mxu0 0.0
  %4602 = vmatpush.msra.mxu0 0.0
  %4603 = vmatpush.msra.mxu0 0.0
  %4604 = vmatpush.msra.mxu0 0.0
  %4605 = vmatpush.msra.mxu0 0.0
  %4606 = vmatpush.msra.mxu0 0.0
  %4607 = vmatpush.msra.mxu0 0.0
  %v4608 = vand.u32 %v2760, 4294901760
  %4609 = vmatpush.msra.mxu0 %v4608
  %v4610 = vand.u32 %v2757, 4294901760
  %4611 = vmatpush.msra.mxu0 %v4610
  %v4612 = vand.u32 %v4456, 4294901760
  %4613 = vmatmul.f32.gmra.mxu0 %v4612
  %v4614 = vpop.f32.mrf.mxu0
  %v4615 = vadd.f32 %v4592, %v4614
  %4616 = vdwg.mxu0
  %4618 = vrot.lane.b32.xlu0 %v4452, 98
  %v4619 = vpop.permute.xlu0 %4618
  %v4620 = vsel %vm2550, %v4619, 0
  %4622 = vmatpush.msra.mxu0 0.0
  %4623 = vmatpush.msra.mxu0 0.0
  %4624 = vmatpush.msra.mxu0 0.0
  %4625 = vmatpush.msra.mxu0 0.0
  %4626 = vmatpush.msra.mxu0 0.0
  %4627 = vmatpush.msra.mxu0 0.0
  %4628 = vmatpush.msra.mxu0 0.0
  %4629 = vmatpush.msra.mxu0 0.0
  %4630 = vmatpush.msra.mxu0 0.0
  %4631 = vmatpush.msra.mxu0 0.0
  %4632 = vmatpush.msra.mxu0 0.0
  %4633 = vmatpush.msra.mxu0 0.0
  %4634 = vmatpush.msra.mxu0 0.0
  %4635 = vmatpush.msra.mxu0 0.0
  %v4636 = vand.u32 %v2927, 4294901760
  %4637 = vmatpush.msra.mxu0 %v4636
  %v4638 = vand.u32 %v2755, 4294901760
  %4639 = vmatpush.msra.mxu0 %v4638
  %v4640 = vand.u32 %v4620, 4294901760
  %v4641 = vsub.f32 %v4620, %v4640
  %v4642 = vand.u32 %v4641, 4294901760
  %v4643 = vsub.f32 %v4641, %v4642
  %v4644 = vand.u32 %v4643, 4294901760
  %4645 = vmatmul.f32.gmra.mxu0 %v4644
  %v4646 = vpop.f32.mrf.mxu0
  %v4647 = vadd.f32 %v4615, %v4646
  %4648 = vdwg.mxu0
  %4649 = vmatpush.msra.mxu0 0.0
  %4650 = vmatpush.msra.mxu0 0.0
  %4651 = vmatpush.msra.mxu0 0.0
  %4652 = vmatpush.msra.mxu0 0.0
  %4653 = vmatpush.msra.mxu0 0.0
  %4654 = vmatpush.msra.mxu0 0.0
  %4655 = vmatpush.msra.mxu0 0.0
  %4656 = vmatpush.msra.mxu0 0.0
  %4657 = vmatpush.msra.mxu0 0.0
  %4658 = vmatpush.msra.mxu0 0.0
  %4659 = vmatpush.msra.mxu0 0.0
  %4660 = vmatpush.msra.mxu0 0.0
  %4661 = vmatpush.msra.mxu0 0.0
  %4662 = vmatpush.msra.mxu0 0.0
  %v4663 = vand.u32 %v2927, 4294901760
  %v4664 = vsub.f32 %v2927, %v4663
  %v4665 = vand.u32 %v4664, 4294901760
  %v4666 = vsub.f32 %v4664, %v4665
  %v4667 = vand.u32 %v4666, 4294901760
  %4668 = vmatpush.msra.mxu0 %v4667
  %v4669 = vand.u32 %v2755, 4294901760
  %v4670 = vsub.f32 %v2755, %v4669
  %v4671 = vand.u32 %v4670, 4294901760
  %v4672 = vsub.f32 %v4670, %v4671
  %v4673 = vand.u32 %v4672, 4294901760
  %4674 = vmatpush.msra.mxu0 %v4673
  %v4675 = vand.u32 %v4620, 4294901760
  %4676 = vmatmul.f32.gmra.mxu0 %v4675
  %v4677 = vpop.f32.mrf.mxu0
  %v4678 = vadd.f32 %v4647, %v4677
  %4679 = vdwg.mxu0
  %4680 = vmatpush.msra.mxu0 0.0
  %4681 = vmatpush.msra.mxu0 0.0
  %4682 = vmatpush.msra.mxu0 0.0
  %4683 = vmatpush.msra.mxu0 0.0
  %4684 = vmatpush.msra.mxu0 0.0
  %4685 = vmatpush.msra.mxu0 0.0
  %4686 = vmatpush.msra.mxu0 0.0
  %4687 = vmatpush.msra.mxu0 0.0
  %4688 = vmatpush.msra.mxu0 0.0
  %4689 = vmatpush.msra.mxu0 0.0
  %4690 = vmatpush.msra.mxu0 0.0
  %4691 = vmatpush.msra.mxu0 0.0
  %4692 = vmatpush.msra.mxu0 0.0
  %4693 = vmatpush.msra.mxu0 0.0
  %v4694 = vand.u32 %v2927, 4294901760
  %v4695 = vsub.f32 %v2927, %v4694
  %4696 = vmatpush.msra.mxu0 %v4695
  %v4697 = vand.u32 %v2755, 4294901760
  %v4698 = vsub.f32 %v2755, %v4697
  %4699 = vmatpush.msra.mxu0 %v4698
  %v4700 = vand.u32 %v4620, 4294901760
  %v4701 = vsub.f32 %v4620, %v4700
  %4702 = vmatmul.f32.gmra.mxu0 %v4701
  %v4703 = vpop.f32.mrf.mxu0
  %v4704 = vadd.f32 %v4678, %v4703
  %4705 = vdwg.mxu0
  %4706 = vmatpush.msra.mxu0 0.0
  %4707 = vmatpush.msra.mxu0 0.0
  %4708 = vmatpush.msra.mxu0 0.0
  %4709 = vmatpush.msra.mxu0 0.0
  %4710 = vmatpush.msra.mxu0 0.0
  %4711 = vmatpush.msra.mxu0 0.0
  %4712 = vmatpush.msra.mxu0 0.0
  %4713 = vmatpush.msra.mxu0 0.0
  %4714 = vmatpush.msra.mxu0 0.0
  %4715 = vmatpush.msra.mxu0 0.0
  %4716 = vmatpush.msra.mxu0 0.0
  %4717 = vmatpush.msra.mxu0 0.0
  %4718 = vmatpush.msra.mxu0 0.0
  %4719 = vmatpush.msra.mxu0 0.0
  %v4720 = vand.u32 %v2927, 4294901760
  %4721 = vmatpush.msra.mxu0 %v4720
  %v4722 = vand.u32 %v2755, 4294901760
  %4723 = vmatpush.msra.mxu0 %v4722
  %v4724 = vand.u32 %v4620, 4294901760
  %v4725 = vsub.f32 %v4620, %v4724
  %v4726 = vand.u32 %v4725, 4294901760
  %4727 = vmatmul.f32.gmra.mxu0 %v4726
  %v4728 = vpop.f32.mrf.mxu0
  %v4729 = vadd.f32 %v4704, %v4728
  %4730 = vdwg.mxu0
  %4731 = vmatpush.msra.mxu0 0.0
  %4732 = vmatpush.msra.mxu0 0.0
  %4733 = vmatpush.msra.mxu0 0.0
  %4734 = vmatpush.msra.mxu0 0.0
  %4735 = vmatpush.msra.mxu0 0.0
  %4736 = vmatpush.msra.mxu0 0.0
  %4737 = vmatpush.msra.mxu0 0.0
  %4738 = vmatpush.msra.mxu0 0.0
  %4739 = vmatpush.msra.mxu0 0.0
  %4740 = vmatpush.msra.mxu0 0.0
  %4741 = vmatpush.msra.mxu0 0.0
  %4742 = vmatpush.msra.mxu0 0.0
  %4743 = vmatpush.msra.mxu0 0.0
  %4744 = vmatpush.msra.mxu0 0.0
  %v4745 = vand.u32 %v2927, 4294901760
  %v4746 = vsub.f32 %v2927, %v4745
  %v4747 = vand.u32 %v4746, 4294901760
  %4748 = vmatpush.msra.mxu0 %v4747
  %v4749 = vand.u32 %v2755, 4294901760
  %v4750 = vsub.f32 %v2755, %v4749
  %v4751 = vand.u32 %v4750, 4294901760
  %4752 = vmatpush.msra.mxu0 %v4751
  %v4753 = vand.u32 %v4620, 4294901760
  %4754 = vmatmul.f32.gmra.mxu0 %v4753
  %v4755 = vpop.f32.mrf.mxu0
  %v4756 = vadd.f32 %v4729, %v4755
  %4757 = vdwg.mxu0
  %4758 = vmatpush.msra.mxu0 0.0
  %4759 = vmatpush.msra.mxu0 0.0
  %4760 = vmatpush.msra.mxu0 0.0
  %4761 = vmatpush.msra.mxu0 0.0
  %4762 = vmatpush.msra.mxu0 0.0
  %4763 = vmatpush.msra.mxu0 0.0
  %4764 = vmatpush.msra.mxu0 0.0
  %4765 = vmatpush.msra.mxu0 0.0
  %4766 = vmatpush.msra.mxu0 0.0
  %4767 = vmatpush.msra.mxu0 0.0
  %4768 = vmatpush.msra.mxu0 0.0
  %4769 = vmatpush.msra.mxu0 0.0
  %4770 = vmatpush.msra.mxu0 0.0
  %4771 = vmatpush.msra.mxu0 0.0
  %v4772 = vand.u32 %v2927, 4294901760
  %4773 = vmatpush.msra.mxu0 %v4772
  %v4774 = vand.u32 %v2755, 4294901760
  %4775 = vmatpush.msra.mxu0 %v4774
  %v4776 = vand.u32 %v4620, 4294901760
  %4777 = vmatmul.f32.gmra.mxu0 %v4776
  %v4778 = vpop.f32.mrf.mxu0
  %v4779 = vadd.f32 %v4756, %v4778
  %4780 = vdwg.mxu0
  %v4781 = vadd.f32 %v4779, %v3090
  %v4782 = vxor.u32 %v4781, 2147483648
  %v4783 = vmul.f32 %v4782, 1.442695
  %v4784 = vpow.pop %v4783
  %v4785 = vadd.f32 %v4784, 1.0
  %v4786 = vrcp.pop %v4785
  %v4787 = vmul.f32 %v4785, %v4786
  %v4788 = vsub.f32 1.0, %v4787
  %v4789 = vmul.f32 %v4786, %v4788
  %v4790 = vadd.f32 %v4786, %v4789
  %vm4791 = vweird.f32 %v4785
  %vm4792 = vweird.f32 %v4786
  %vm4793 = vmor %vm4791, %vm4792
  %v4794 = vsel %vm4793, %v4786, %v4790
  %v4795 = vand.u32 2147483647, %v4785
  %vm4796 = vcmp.eq.f32.partialorder %v4795, 8.507059e+37
  %v4797 = vand.u32 %v4785, 2147483648
  %v4798 = vor.u32 1.1754944e-38, %v4797
  %v4799 = vsel %vm4796, %v4798, %v4794
  %v4800 = vmul.f32 1.0, %v4799
  %v4801 = vtanh.pop %v4781
  %v4802 = vmul.f32 %v4800, %v4249
  %4804 = vrot.lane.b32.xlu0 %v4801, 108
  %v4805 = vpop.permute.xlu0 %4804
  %v4807 = vmul.f32 %v4800, %v4805
  %4809 = vrot.lane.b32.xlu0 %v4807, 10
  %v4810 = vpop.permute.xlu0 %4809
  %v4812 = vadd.f32 %v4802, %v4810
  %v4813 = vtanh.pop %v4812
  %4815 = vrot.lane.b32.xlu0 %v4813, 20
  %v4816 = vpop.permute.xlu0 %4815
  %v4818 = vmul.f32 %v4800, %v4816
  %4819 = vmatpush.msra.mxu0 0.0
  %4820 = vmatpush.msra.mxu0 0.0
  %4821 = vmatpush.msra.mxu0 0.0
  %4822 = vmatpush.msra.mxu0 0.0
  %4823 = vmatpush.msra.mxu0 0.0
  %4824 = vmatpush.msra.mxu0 0.0
  %4825 = vmatpush.msra.mxu0 0.0
  %4826 = vmatpush.msra.mxu0 0.0
  %4827 = vmatpush.msra.mxu0 0.0
  %4828 = vmatpush.msra.mxu0 0.0
  %4829 = vmatpush.msra.mxu0 0.0
  %4830 = vmatpush.msra.mxu0 0.0
  %4831 = vmatpush.msra.mxu0 0.0
  %4832 = vmatpush.msra.mxu0 0.0
  %v4833 = vand.u32 %v2556, 4294901760
  %4834 = vmatpush.msra.mxu0 %v4833
  %v4835 = vand.u32 %v2548, 4294901760
  %4836 = vmatpush.msra.mxu0 %v4835
  %v4837 = vand.u32 %v4620, 4294901760
  %v4838 = vsub.f32 %v4620, %v4837
  %v4839 = vand.u32 %v4838, 4294901760
  %v4840 = vsub.f32 %v4838, %v4839
  %v4841 = vand.u32 %v4840, 4294901760
  %4842 = vmatmul.f32.gmra.mxu0 %v4841
  %v4843 = vpop.f32.mrf.mxu0
  %v4844 = vadd.f32 0.0, %v4843
  %4845 = vdwg.mxu0
  %4846 = vmatpush.msra.mxu0 0.0
  %4847 = vmatpush.msra.mxu0 0.0
  %4848 = vmatpush.msra.mxu0 0.0
  %4849 = vmatpush.msra.mxu0 0.0
  %4850 = vmatpush.msra.mxu0 0.0
  %4851 = vmatpush.msra.mxu0 0.0
  %4852 = vmatpush.msra.mxu0 0.0
  %4853 = vmatpush.msra.mxu0 0.0
  %4854 = vmatpush.msra.mxu0 0.0
  %4855 = vmatpush.msra.mxu0 0.0
  %4856 = vmatpush.msra.mxu0 0.0
  %4857 = vmatpush.msra.mxu0 0.0
  %4858 = vmatpush.msra.mxu0 0.0
  %4859 = vmatpush.msra.mxu0 0.0
  %v4860 = vand.u32 %v2556, 4294901760
  %v4861 = vsub.f32 %v2556, %v4860
  %v4862 = vand.u32 %v4861, 4294901760
  %v4863 = vsub.f32 %v4861, %v4862
  %v4864 = vand.u32 %v4863, 4294901760
  %4865 = vmatpush.msra.mxu0 %v4864
  %v4866 = vand.u32 %v2548, 4294901760
  %v4867 = vsub.f32 %v2548, %v4866
  %v4868 = vand.u32 %v4867, 4294901760
  %v4869 = vsub.f32 %v4867, %v4868
  %v4870 = vand.u32 %v4869, 4294901760
  %4871 = vmatpush.msra.mxu0 %v4870
  %v4872 = vand.u32 %v4620, 4294901760
  %4873 = vmatmul.f32.gmra.mxu0 %v4872
  %v4874 = vpop.f32.mrf.mxu0
  %v4875 = vadd.f32 %v4844, %v4874
  %4876 = vdwg.mxu0
  %4877 = vmatpush.msra.mxu0 0.0
  %4878 = vmatpush.msra.mxu0 0.0
  %4879 = vmatpush.msra.mxu0 0.0
  %4880 = vmatpush.msra.mxu0 0.0
  %4881 = vmatpush.msra.mxu0 0.0
  %4882 = vmatpush.msra.mxu0 0.0
  %4883 = vmatpush.msra.mxu0 0.0
  %4884 = vmatpush.msra.mxu0 0.0
  %4885 = vmatpush.msra.mxu0 0.0
  %4886 = vmatpush.msra.mxu0 0.0
  %4887 = vmatpush.msra.mxu0 0.0
  %4888 = vmatpush.msra.mxu0 0.0
  %4889 = vmatpush.msra.mxu0 0.0
  %4890 = vmatpush.msra.mxu0 0.0
  %v4891 = vand.u32 %v2556, 4294901760
  %v4892 = vsub.f32 %v2556, %v4891
  %4893 = vmatpush.msra.mxu0 %v4892
  %v4894 = vand.u32 %v2548, 4294901760
  %v4895 = vsub.f32 %v2548, %v4894
  %4896 = vmatpush.msra.mxu0 %v4895
  %v4897 = vand.u32 %v4620, 4294901760
  %v4898 = vsub.f32 %v4620, %v4897
  %4899 = vmatmul.f32.gmra.mxu0 %v4898
  %v4900 = vpop.f32.mrf.mxu0
  %v4901 = vadd.f32 %v4875, %v4900
  %4902 = vdwg.mxu0
  %4903 = vmatpush.msra.mxu0 0.0
  %4904 = vmatpush.msra.mxu0 0.0
  %4905 = vmatpush.msra.mxu0 0.0
  %4906 = vmatpush.msra.mxu0 0.0
  %4907 = vmatpush.msra.mxu0 0.0
  %4908 = vmatpush.msra.mxu0 0.0
  %4909 = vmatpush.msra.mxu0 0.0
  %4910 = vmatpush.msra.mxu0 0.0
  %4911 = vmatpush.msra.mxu0 0.0
  %4912 = vmatpush.msra.mxu0 0.0
  %4913 = vmatpush.msra.mxu0 0.0
  %4914 = vmatpush.msra.mxu0 0.0
  %4915 = vmatpush.msra.mxu0 0.0
  %4916 = vmatpush.msra.mxu0 0.0
  %v4917 = vand.u32 %v2556, 4294901760
  %4918 = vmatpush.msra.mxu0 %v4917
  %v4919 = vand.u32 %v2548, 4294901760
  %4920 = vmatpush.msra.mxu0 %v4919
  %v4921 = vand.u32 %v4620, 4294901760
  %v4922 = vsub.f32 %v4620, %v4921
  %v4923 = vand.u32 %v4922, 4294901760
  %4924 = vmatmul.f32.gmra.mxu0 %v4923
  %v4925 = vpop.f32.mrf.mxu0
  %v4926 = vadd.f32 %v4901, %v4925
  %4927 = vdwg.mxu0
  %4928 = vmatpush.msra.mxu0 0.0
  %4929 = vmatpush.msra.mxu0 0.0
  %4930 = vmatpush.msra.mxu0 0.0
  %4931 = vmatpush.msra.mxu0 0.0
  %4932 = vmatpush.msra.mxu0 0.0
  %4933 = vmatpush.msra.mxu0 0.0
  %4934 = vmatpush.msra.mxu0 0.0
  %4935 = vmatpush.msra.mxu0 0.0
  %4936 = vmatpush.msra.mxu0 0.0
  %4937 = vmatpush.msra.mxu0 0.0
  %4938 = vmatpush.msra.mxu0 0.0
  %4939 = vmatpush.msra.mxu0 0.0
  %4940 = vmatpush.msra.mxu0 0.0
  %4941 = vmatpush.msra.mxu0 0.0
  %v4942 = vand.u32 %v2556, 4294901760
  %v4943 = vsub.f32 %v2556, %v4942
  %v4944 = vand.u32 %v4943, 4294901760
  %4945 = vmatpush.msra.mxu0 %v4944
  %v4946 = vand.u32 %v2548, 4294901760
  %v4947 = vsub.f32 %v2548, %v4946
  %v4948 = vand.u32 %v4947, 4294901760
  %4949 = vmatpush.msra.mxu0 %v4948
  %v4950 = vand.u32 %v4620, 4294901760
  %4951 = vmatmul.f32.gmra.mxu0 %v4950
  %v4952 = vpop.f32.mrf.mxu0
  %v4953 = vadd.f32 %v4926, %v4952
  %4954 = vdwg.mxu0
  %4955 = vmatpush.msra.mxu0 0.0
  %4956 = vmatpush.msra.mxu0 0.0
  %4957 = vmatpush.msra.mxu0 0.0
  %4958 = vmatpush.msra.mxu0 0.0
  %4959 = vmatpush.msra.mxu0 0.0
  %4960 = vmatpush.msra.mxu0 0.0
  %4961 = vmatpush.msra.mxu0 0.0
  %4962 = vmatpush.msra.mxu0 0.0
  %4963 = vmatpush.msra.mxu0 0.0
  %4964 = vmatpush.msra.mxu0 0.0
  %4965 = vmatpush.msra.mxu0 0.0
  %4966 = vmatpush.msra.mxu0 0.0
  %4967 = vmatpush.msra.mxu0 0.0
  %4968 = vmatpush.msra.mxu0 0.0
  %v4969 = vand.u32 %v2556, 4294901760
  %4970 = vmatpush.msra.mxu0 %v4969
  %v4971 = vand.u32 %v2548, 4294901760
  %4972 = vmatpush.msra.mxu0 %v4971
  %v4973 = vand.u32 %v4620, 4294901760
  %4974 = vmatmul.f32.gmra.mxu0 %v4973
  %v4975 = vpop.f32.mrf.mxu0
  %v4976 = vadd.f32 %v4953, %v4975
  %4977 = vdwg.mxu0
  %v4978 = vadd.f32 %v2534, %v4976
  %v4979 = vxor.u32 %v4978, 2147483648
  %v4980 = vmul.f32 %v4979, 1.442695
  %v4981 = vpow.pop %v4980
  %v4982 = vadd.f32 %v4981, 1.0
  %v4983 = vrcp.pop %v4982
  %v4984 = vmul.f32 %v4982, %v4983
  %v4985 = vsub.f32 1.0, %v4984
  %v4986 = vmul.f32 %v4983, %v4985
  %v4987 = vadd.f32 %v4983, %v4986
  %vm4988 = vweird.f32 %v4982
  %vm4989 = vweird.f32 %v4983
  %vm4990 = vmor %vm4988, %vm4989
  %v4991 = vsel %vm4990, %v4983, %v4987
  %v4992 = vand.u32 2147483647, %v4982
  %vm4993 = vcmp.eq.f32.partialorder %v4992, 8.507059e+37
  %v4994 = vand.u32 %v4982, 2147483648
  %v4995 = vor.u32 1.1754944e-38, %v4994
  %v4996 = vsel %vm4993, %v4995, %v4991
  %v4997 = vmul.f32 1.0, %v4996
  %v4998 = vtanh.pop %v4978
  %v4999 = vmul.f32 %v4997, %v4446
  %5001 = vrot.lane.b32.xlu0 %v4998, 108
  %v5002 = vpop.permute.xlu0 %5001
  %v5004 = vmul.f32 %v4997, %v5002
  %5006 = vrot.lane.b32.xlu0 %v5004, 10
  %v5007 = vpop.permute.xlu0 %5006
  %v5009 = vadd.f32 %v4999, %v5007
  %v5010 = vtanh.pop %v5009
  %5012 = vrot.lane.b32.xlu0 %v5010, 20
  %v5013 = vpop.permute.xlu0 %5012
  %v5015 = vmul.f32 %v4997, %v5013
  %5017 = vrot.lane.b32.xlu0 %v4818, 98
  %v5018 = vpop.permute.xlu0 %5017
  %v5019 = vsel %vm2550, %v5018, 0
  %5021 = vmatpush.msra.mxu0 0.0
  %5022 = vmatpush.msra.mxu0 0.0
  %5023 = vmatpush.msra.mxu0 0.0
  %5024 = vmatpush.msra.mxu0 0.0
  %5025 = vmatpush.msra.mxu0 0.0
  %5026 = vmatpush.msra.mxu0 0.0
  %5027 = vmatpush.msra.mxu0 0.0
  %5028 = vmatpush.msra.mxu0 0.0
  %5029 = vmatpush.msra.mxu0 0.0
  %5030 = vmatpush.msra.mxu0 0.0
  %5031 = vmatpush.msra.mxu0 0.0
  %5032 = vmatpush.msra.mxu0 0.0
  %5033 = vmatpush.msra.mxu0 0.0
  %5034 = vmatpush.msra.mxu0 0.0
  %v5035 = vand.u32 %v2760, 4294901760
  %5036 = vmatpush.msra.mxu0 %v5035
  %v5037 = vand.u32 %v2757, 4294901760
  %5038 = vmatpush.msra.mxu0 %v5037
  %v5039 = vand.u32 %v5019, 4294901760
  %v5040 = vsub.f32 %v5019, %v5039
  %v5041 = vand.u32 %v5040, 4294901760
  %v5042 = vsub.f32 %v5040, %v5041
  %v5043 = vand.u32 %v5042, 4294901760
  %5044 = vmatmul.f32.gmra.mxu0 %v5043
  %v5045 = vpop.f32.mrf.mxu0
  %v5046 = vadd.f32 0.0, %v5045
  %5047 = vdwg.mxu0
  %5048 = vmatpush.msra.mxu0 0.0
  %5049 = vmatpush.msra.mxu0 0.0
  %5050 = vmatpush.msra.mxu0 0.0
  %5051 = vmatpush.msra.mxu0 0.0
  %5052 = vmatpush.msra.mxu0 0.0
  %5053 = vmatpush.msra.mxu0 0.0
  %5054 = vmatpush.msra.mxu0 0.0
  %5055 = vmatpush.msra.mxu0 0.0
  %5056 = vmatpush.msra.mxu0 0.0
  %5057 = vmatpush.msra.mxu0 0.0
  %5058 = vmatpush.msra.mxu0 0.0
  %5059 = vmatpush.msra.mxu0 0.0
  %5060 = vmatpush.msra.mxu0 0.0
  %5061 = vmatpush.msra.mxu0 0.0
  %v5062 = vand.u32 %v2760, 4294901760
  %v5063 = vsub.f32 %v2760, %v5062
  %v5064 = vand.u32 %v5063, 4294901760
  %v5065 = vsub.f32 %v5063, %v5064
  %v5066 = vand.u32 %v5065, 4294901760
  %5067 = vmatpush.msra.mxu0 %v5066
  %v5068 = vand.u32 %v2757, 4294901760
  %v5069 = vsub.f32 %v2757, %v5068
  %v5070 = vand.u32 %v5069, 4294901760
  %v5071 = vsub.f32 %v5069, %v5070
  %v5072 = vand.u32 %v5071, 4294901760
  %5073 = vmatpush.msra.mxu0 %v5072
  %v5074 = vand.u32 %v5019, 4294901760
  %5075 = vmatmul.f32.gmra.mxu0 %v5074
  %v5076 = vpop.f32.mrf.mxu0
  %v5077 = vadd.f32 %v5046, %v5076
  %5078 = vdwg.mxu0
  %5079 = vmatpush.msra.mxu0 0.0
  %5080 = vmatpush.msra.mxu0 0.0
  %5081 = vmatpush.msra.mxu0 0.0
  %5082 = vmatpush.msra.mxu0 0.0
  %5083 = vmatpush.msra.mxu0 0.0
  %5084 = vmatpush.msra.mxu0 0.0
  %5085 = vmatpush.msra.mxu0 0.0
  %5086 = vmatpush.msra.mxu0 0.0
  %5087 = vmatpush.msra.mxu0 0.0
  %5088 = vmatpush.msra.mxu0 0.0
  %5089 = vmatpush.msra.mxu0 0.0
  %5090 = vmatpush.msra.mxu0 0.0
  %5091 = vmatpush.msra.mxu0 0.0
  %5092 = vmatpush.msra.mxu0 0.0
  %v5093 = vand.u32 %v2760, 4294901760
  %v5094 = vsub.f32 %v2760, %v5093
  %5095 = vmatpush.msra.mxu0 %v5094
  %v5096 = vand.u32 %v2757, 4294901760
  %v5097 = vsub.f32 %v2757, %v5096
  %5098 = vmatpush.msra.mxu0 %v5097
  %v5099 = vand.u32 %v5019, 4294901760
  %v5100 = vsub.f32 %v5019, %v5099
  %5101 = vmatmul.f32.gmra.mxu0 %v5100
  %v5102 = vpop.f32.mrf.mxu0
  %v5103 = vadd.f32 %v5077, %v5102
  %5104 = vdwg.mxu0
  %5105 = vmatpush.msra.mxu0 0.0
  %5106 = vmatpush.msra.mxu0 0.0
  %5107 = vmatpush.msra.mxu0 0.0
  %5108 = vmatpush.msra.mxu0 0.0
  %5109 = vmatpush.msra.mxu0 0.0
  %5110 = vmatpush.msra.mxu0 0.0
  %5111 = vmatpush.msra.mxu0 0.0
  %5112 = vmatpush.msra.mxu0 0.0
  %5113 = vmatpush.msra.mxu0 0.0
  %5114 = vmatpush.msra.mxu0 0.0
  %5115 = vmatpush.msra.mxu0 0.0
  %5116 = vmatpush.msra.mxu0 0.0
  %5117 = vmatpush.msra.mxu0 0.0
  %5118 = vmatpush.msra.mxu0 0.0
  %v5119 = vand.u32 %v2760, 4294901760
  %5120 = vmatpush.msra.mxu0 %v5119
  %v5121 = vand.u32 %v2757, 4294901760
  %5122 = vmatpush.msra.mxu0 %v5121
  %v5123 = vand.u32 %v5019, 4294901760
  %v5124 = vsub.f32 %v5019, %v5123
  %v5125 = vand.u32 %v5124, 4294901760
  %5126 = vmatmul.f32.gmra.mxu0 %v5125
  %v5127 = vpop.f32.mrf.mxu0
  %v5128 = vadd.f32 %v5103, %v5127
  %5129 = vdwg.mxu0
  %5130 = vmatpush.msra.mxu0 0.0
  %5131 = vmatpush.msra.mxu0 0.0
  %5132 = vmatpush.msra.mxu0 0.0
  %5133 = vmatpush.msra.mxu0 0.0
  %5134 = vmatpush.msra.mxu0 0.0
  %5135 = vmatpush.msra.mxu0 0.0
  %5136 = vmatpush.msra.mxu0 0.0
  %5137 = vmatpush.msra.mxu0 0.0
  %5138 = vmatpush.msra.mxu0 0.0
  %5139 = vmatpush.msra.mxu0 0.0
  %5140 = vmatpush.msra.mxu0 0.0
  %5141 = vmatpush.msra.mxu0 0.0
  %5142 = vmatpush.msra.mxu0 0.0
  %5143 = vmatpush.msra.mxu0 0.0
  %v5144 = vand.u32 %v2760, 4294901760
  %v5145 = vsub.f32 %v2760, %v5144
  %v5146 = vand.u32 %v5145, 4294901760
  %5147 = vmatpush.msra.mxu0 %v5146
  %v5148 = vand.u32 %v2757, 4294901760
  %v5149 = vsub.f32 %v2757, %v5148
  %v5150 = vand.u32 %v5149, 4294901760
  %5151 = vmatpush.msra.mxu0 %v5150
  %v5152 = vand.u32 %v5019, 4294901760
  %5153 = vmatmul.f32.gmra.mxu0 %v5152
  %v5154 = vpop.f32.mrf.mxu0
  %v5155 = vadd.f32 %v5128, %v5154
  %5156 = vdwg.mxu0
  %5157 = vmatpush.msra.mxu0 0.0
  %5158 = vmatpush.msra.mxu0 0.0
  %5159 = vmatpush.msra.mxu0 0.0
  %5160 = vmatpush.msra.mxu0 0.0
  %5161 = vmatpush.msra.mxu0 0.0
  %5162 = vmatpush.msra.mxu0 0.0
  %5163 = vmatpush.msra.mxu0 0.0
  %5164 = vmatpush.msra.mxu0 0.0
  %5165 = vmatpush.msra.mxu0 0.0
  %5166 = vmatpush.msra.mxu0 0.0
  %5167 = vmatpush.msra.mxu0 0.0
  %5168 = vmatpush.msra.mxu0 0.0
  %5169 = vmatpush.msra.mxu0 0.0
  %5170 = vmatpush.msra.mxu0 0.0
  %v5171 = vand.u32 %v2760, 4294901760
  %5172 = vmatpush.msra.mxu0 %v5171
  %v5173 = vand.u32 %v2757, 4294901760
  %5174 = vmatpush.msra.mxu0 %v5173
  %v5175 = vand.u32 %v5019, 4294901760
  %5176 = vmatmul.f32.gmra.mxu0 %v5175
  %v5177 = vpop.f32.mrf.mxu0
  %v5178 = vadd.f32 %v5155, %v5177
  %5179 = vdwg.mxu0
  %5181 = vrot.lane.b32.xlu0 %v5015, 98
  %v5182 = vpop.permute.xlu0 %5181
  %v5183 = vsel %vm2550, %v5182, 0
  %5185 = vmatpush.msra.mxu0 0.0
  %5186 = vmatpush.msra.mxu0 0.0
  %5187 = vmatpush.msra.mxu0 0.0
  %5188 = vmatpush.msra.mxu0 0.0
  %5189 = vmatpush.msra.mxu0 0.0
  %5190 = vmatpush.msra.mxu0 0.0
  %5191 = vmatpush.msra.mxu0 0.0
  %5192 = vmatpush.msra.mxu0 0.0
  %5193 = vmatpush.msra.mxu0 0.0
  %5194 = vmatpush.msra.mxu0 0.0
  %5195 = vmatpush.msra.mxu0 0.0
  %5196 = vmatpush.msra.mxu0 0.0
  %5197 = vmatpush.msra.mxu0 0.0
  %5198 = vmatpush.msra.mxu0 0.0
  %v5199 = vand.u32 %v2927, 4294901760
  %5200 = vmatpush.msra.mxu0 %v5199
  %v5201 = vand.u32 %v2755, 4294901760
  %5202 = vmatpush.msra.mxu0 %v5201
  %v5203 = vand.u32 %v5183, 4294901760
  %v5204 = vsub.f32 %v5183, %v5203
  %v5205 = vand.u32 %v5204, 4294901760
  %v5206 = vsub.f32 %v5204, %v5205
  %v5207 = vand.u32 %v5206, 4294901760
  %5208 = vmatmul.f32.gmra.mxu0 %v5207
  %v5209 = vpop.f32.mrf.mxu0
  %v5210 = vadd.f32 %v5178, %v5209
  %5211 = vdwg.mxu0
  %5212 = vmatpush.msra.mxu0 0.0
  %5213 = vmatpush.msra.mxu0 0.0
  %5214 = vmatpush.msra.mxu0 0.0
  %5215 = vmatpush.msra.mxu0 0.0
  %5216 = vmatpush.msra.mxu0 0.0
  %5217 = vmatpush.msra.mxu0 0.0
  %5218 = vmatpush.msra.mxu0 0.0
  %5219 = vmatpush.msra.mxu0 0.0
  %5220 = vmatpush.msra.mxu0 0.0
  %5221 = vmatpush.msra.mxu0 0.0
  %5222 = vmatpush.msra.mxu0 0.0
  %5223 = vmatpush.msra.mxu0 0.0
  %5224 = vmatpush.msra.mxu0 0.0
  %5225 = vmatpush.msra.mxu0 0.0
  %v5226 = vand.u32 %v2927, 4294901760
  %v5227 = vsub.f32 %v2927, %v5226
  %v5228 = vand.u32 %v5227, 4294901760
  %v5229 = vsub.f32 %v5227, %v5228
  %v5230 = vand.u32 %v5229, 4294901760
  %5231 = vmatpush.msra.mxu0 %v5230
  %v5232 = vand.u32 %v2755, 4294901760
  %v5233 = vsub.f32 %v2755, %v5232
  %v5234 = vand.u32 %v5233, 4294901760
  %v5235 = vsub.f32 %v5233, %v5234
  %v5236 = vand.u32 %v5235, 4294901760
  %5237 = vmatpush.msra.mxu0 %v5236
  %v5238 = vand.u32 %v5183, 4294901760
  %5239 = vmatmul.f32.gmra.mxu0 %v5238
  %v5240 = vpop.f32.mrf.mxu0
  %v5241 = vadd.f32 %v5210, %v5240
  %5242 = vdwg.mxu0
  %5243 = vmatpush.msra.mxu0 0.0
  %5244 = vmatpush.msra.mxu0 0.0
  %5245 = vmatpush.msra.mxu0 0.0
  %5246 = vmatpush.msra.mxu0 0.0
  %5247 = vmatpush.msra.mxu0 0.0
  %5248 = vmatpush.msra.mxu0 0.0
  %5249 = vmatpush.msra.mxu0 0.0
  %5250 = vmatpush.msra.mxu0 0.0
  %5251 = vmatpush.msra.mxu0 0.0
  %5252 = vmatpush.msra.mxu0 0.0
  %5253 = vmatpush.msra.mxu0 0.0
  %5254 = vmatpush.msra.mxu0 0.0
  %5255 = vmatpush.msra.mxu0 0.0
  %5256 = vmatpush.msra.mxu0 0.0
  %v5257 = vand.u32 %v2927, 4294901760
  %v5258 = vsub.f32 %v2927, %v5257
  %5259 = vmatpush.msra.mxu0 %v5258
  %v5260 = vand.u32 %v2755, 4294901760
  %v5261 = vsub.f32 %v2755, %v5260
  %5262 = vmatpush.msra.mxu0 %v5261
  %v5263 = vand.u32 %v5183, 4294901760
  %v5264 = vsub.f32 %v5183, %v5263
  %5265 = vmatmul.f32.gmra.mxu0 %v5264
  %v5266 = vpop.f32.mrf.mxu0
  %v5267 = vadd.f32 %v5241, %v5266
  %5268 = vdwg.mxu0
  %5269 = vmatpush.msra.mxu0 0.0
  %5270 = vmatpush.msra.mxu0 0.0
  %5271 = vmatpush.msra.mxu0 0.0
  %5272 = vmatpush.msra.mxu0 0.0
  %5273 = vmatpush.msra.mxu0 0.0
  %5274 = vmatpush.msra.mxu0 0.0
  %5275 = vmatpush.msra.mxu0 0.0
  %5276 = vmatpush.msra.mxu0 0.0
  %5277 = vmatpush.msra.mxu0 0.0
  %5278 = vmatpush.msra.mxu0 0.0
  %5279 = vmatpush.msra.mxu0 0.0
  %5280 = vmatpush.msra.mxu0 0.0
  %5281 = vmatpush.msra.mxu0 0.0
  %5282 = vmatpush.msra.mxu0 0.0
  %v5283 = vand.u32 %v2927, 4294901760
  %5284 = vmatpush.msra.mxu0 %v5283
  %v5285 = vand.u32 %v2755, 4294901760
  %5286 = vmatpush.msra.mxu0 %v5285
  %v5287 = vand.u32 %v5183, 4294901760
  %v5288 = vsub.f32 %v5183, %v5287
  %v5289 = vand.u32 %v5288, 4294901760
  %5290 = vmatmul.f32.gmra.mxu0 %v5289
  %v5291 = vpop.f32.mrf.mxu0
  %v5292 = vadd.f32 %v5267, %v5291
  %5293 = vdwg.mxu0
  %5294 = vmatpush.msra.mxu0 0.0
  %5295 = vmatpush.msra.mxu0 0.0
  %5296 = vmatpush.msra.mxu0 0.0
  %5297 = vmatpush.msra.mxu0 0.0
  %5298 = vmatpush.msra.mxu0 0.0
  %5299 = vmatpush.msra.mxu0 0.0
  %5300 = vmatpush.msra.mxu0 0.0
  %5301 = vmatpush.msra.mxu0 0.0
  %5302 = vmatpush.msra.mxu0 0.0
  %5303 = vmatpush.msra.mxu0 0.0
  %5304 = vmatpush.msra.mxu0 0.0
  %5305 = vmatpush.msra.mxu0 0.0
  %5306 = vmatpush.msra.mxu0 0.0
  %5307 = vmatpush.msra.mxu0 0.0
  %v5308 = vand.u32 %v2927, 4294901760
  %v5309 = vsub.f32 %v2927, %v5308
  %v5310 = vand.u32 %v5309, 4294901760
  %5311 = vmatpush.msra.mxu0 %v5310
  %v5312 = vand.u32 %v2755, 4294901760
  %v5313 = vsub.f32 %v2755, %v5312
  %v5314 = vand.u32 %v5313, 4294901760
  %5315 = vmatpush.msra.mxu0 %v5314
  %v5316 = vand.u32 %v5183, 4294901760
  %5317 = vmatmul.f32.gmra.mxu0 %v5316
  %v5318 = vpop.f32.mrf.mxu0
  %v5319 = vadd.f32 %v5292, %v5318
  %5320 = vdwg.mxu0
  %5321 = vmatpush.msra.mxu0 0.0
  %5322 = vmatpush.msra.mxu0 0.0
  %5323 = vmatpush.msra.mxu0 0.0
  %5324 = vmatpush.msra.mxu0 0.0
  %5325 = vmatpush.msra.mxu0 0.0
  %5326 = vmatpush.msra.mxu0 0.0
  %5327 = vmatpush.msra.mxu0 0.0
  %5328 = vmatpush.msra.mxu0 0.0
  %5329 = vmatpush.msra.mxu0 0.0
  %5330 = vmatpush.msra.mxu0 0.0
  %5331 = vmatpush.msra.mxu0 0.0
  %5332 = vmatpush.msra.mxu0 0.0
  %5333 = vmatpush.msra.mxu0 0.0
  %5334 = vmatpush.msra.mxu0 0.0
  %v5335 = vand.u32 %v2927, 4294901760
  %5336 = vmatpush.msra.mxu0 %v5335
  %v5337 = vand.u32 %v2755, 4294901760
  %5338 = vmatpush.msra.mxu0 %v5337
  %v5339 = vand.u32 %v5183, 4294901760
  %5340 = vmatmul.f32.gmra.mxu0 %v5339
  %v5341 = vpop.f32.mrf.mxu0
  %v5342 = vadd.f32 %v5319, %v5341
  %5343 = vdwg.mxu0
  %v5344 = vadd.f32 %v5342, %v3090
  %v5345 = vxor.u32 %v5344, 2147483648
  %v5346 = vmul.f32 %v5345, 1.442695
  %v5347 = vpow.pop %v5346
  %v5348 = vadd.f32 %v5347, 1.0
  %v5349 = vrcp.pop %v5348
  %v5350 = vmul.f32 %v5348, %v5349
  %v5351 = vsub.f32 1.0, %v5350
  %v5352 = vmul.f32 %v5349, %v5351
  %v5353 = vadd.f32 %v5349, %v5352
  %vm5354 = vweird.f32 %v5348
  %vm5355 = vweird.f32 %v5349
  %vm5356 = vmor %vm5354, %vm5355
  %v5357 = vsel %vm5356, %v5349, %v5353
  %v5358 = vand.u32 2147483647, %v5348
  %vm5359 = vcmp.eq.f32.partialorder %v5358, 8.507059e+37
  %v5360 = vand.u32 %v5348, 2147483648
  %v5361 = vor.u32 1.1754944e-38, %v5360
  %v5362 = vsel %vm5359, %v5361, %v5357
  %v5363 = vmul.f32 1.0, %v5362
  %v5364 = vtanh.pop %v5344
  %v5365 = vmul.f32 %v5363, %v4812
  %5367 = vrot.lane.b32.xlu0 %v5364, 108
  %v5368 = vpop.permute.xlu0 %5367
  %v5370 = vmul.f32 %v5363, %v5368
  %5372 = vrot.lane.b32.xlu0 %v5370, 10
  %v5373 = vpop.permute.xlu0 %5372
  %v5375 = vadd.f32 %v5365, %v5373
  %v5376 = vtanh.pop %v5375
  %5378 = vrot.lane.b32.xlu0 %v5376, 20
  %v5379 = vpop.permute.xlu0 %5378
  %v5381 = vmul.f32 %v5363, %v5379
  %5382 = vmatpush.msra.mxu0 0.0
  %5383 = vmatpush.msra.mxu0 0.0
  %5384 = vmatpush.msra.mxu0 0.0
  %5385 = vmatpush.msra.mxu0 0.0
  %5386 = vmatpush.msra.mxu0 0.0
  %5387 = vmatpush.msra.mxu0 0.0
  %5388 = vmatpush.msra.mxu0 0.0
  %5389 = vmatpush.msra.mxu0 0.0
  %5390 = vmatpush.msra.mxu0 0.0
  %5391 = vmatpush.msra.mxu0 0.0
  %5392 = vmatpush.msra.mxu0 0.0
  %5393 = vmatpush.msra.mxu0 0.0
  %5394 = vmatpush.msra.mxu0 0.0
  %5395 = vmatpush.msra.mxu0 0.0
  %v5396 = vand.u32 %v2556, 4294901760
  %5397 = vmatpush.msra.mxu0 %v5396
  %v5398 = vand.u32 %v2548, 4294901760
  %5399 = vmatpush.msra.mxu0 %v5398
  %v5400 = vand.u32 %v5183, 4294901760
  %v5401 = vsub.f32 %v5183, %v5400
  %v5402 = vand.u32 %v5401, 4294901760
  %v5403 = vsub.f32 %v5401, %v5402
  %v5404 = vand.u32 %v5403, 4294901760
  %5405 = vmatmul.f32.gmra.mxu0 %v5404
  %v5406 = vpop.f32.mrf.mxu0
  %v5407 = vadd.f32 0.0, %v5406
  %5408 = vdwg.mxu0
  %5409 = vmatpush.msra.mxu0 0.0
  %5410 = vmatpush.msra.mxu0 0.0
  %5411 = vmatpush.msra.mxu0 0.0
  %5412 = vmatpush.msra.mxu0 0.0
  %5413 = vmatpush.msra.mxu0 0.0
  %5414 = vmatpush.msra.mxu0 0.0
  %5415 = vmatpush.msra.mxu0 0.0
  %5416 = vmatpush.msra.mxu0 0.0
  %5417 = vmatpush.msra.mxu0 0.0
  %5418 = vmatpush.msra.mxu0 0.0
  %5419 = vmatpush.msra.mxu0 0.0
  %5420 = vmatpush.msra.mxu0 0.0
  %5421 = vmatpush.msra.mxu0 0.0
  %5422 = vmatpush.msra.mxu0 0.0
  %v5423 = vand.u32 %v2556, 4294901760
  %v5424 = vsub.f32 %v2556, %v5423
  %v5425 = vand.u32 %v5424, 4294901760
  %v5426 = vsub.f32 %v5424, %v5425
  %v5427 = vand.u32 %v5426, 4294901760
  %5428 = vmatpush.msra.mxu0 %v5427
  %v5429 = vand.u32 %v2548, 4294901760
  %v5430 = vsub.f32 %v2548, %v5429
  %v5431 = vand.u32 %v5430, 4294901760
  %v5432 = vsub.f32 %v5430, %v5431
  %v5433 = vand.u32 %v5432, 4294901760
  %5434 = vmatpush.msra.mxu0 %v5433
  %v5435 = vand.u32 %v5183, 4294901760
  %5436 = vmatmul.f32.gmra.mxu0 %v5435
  %v5437 = vpop.f32.mrf.mxu0
  %v5438 = vadd.f32 %v5407, %v5437
  %5439 = vdwg.mxu0
  %5440 = vmatpush.msra.mxu0 0.0
  %5441 = vmatpush.msra.mxu0 0.0
  %5442 = vmatpush.msra.mxu0 0.0
  %5443 = vmatpush.msra.mxu0 0.0
  %5444 = vmatpush.msra.mxu0 0.0
  %5445 = vmatpush.msra.mxu0 0.0
  %5446 = vmatpush.msra.mxu0 0.0
  %5447 = vmatpush.msra.mxu0 0.0
  %5448 = vmatpush.msra.mxu0 0.0
  %5449 = vmatpush.msra.mxu0 0.0
  %5450 = vmatpush.msra.mxu0 0.0
  %5451 = vmatpush.msra.mxu0 0.0
  %5452 = vmatpush.msra.mxu0 0.0
  %5453 = vmatpush.msra.mxu0 0.0
  %v5454 = vand.u32 %v2556, 4294901760
  %v5455 = vsub.f32 %v2556, %v5454
  %5456 = vmatpush.msra.mxu0 %v5455
  %v5457 = vand.u32 %v2548, 4294901760
  %v5458 = vsub.f32 %v2548, %v5457
  %5459 = vmatpush.msra.mxu0 %v5458
  %v5460 = vand.u32 %v5183, 4294901760
  %v5461 = vsub.f32 %v5183, %v5460
  %5462 = vmatmul.f32.gmra.mxu0 %v5461
  %v5463 = vpop.f32.mrf.mxu0
  %v5464 = vadd.f32 %v5438, %v5463
  %5465 = vdwg.mxu0
  %5466 = vmatpush.msra.mxu0 0.0
  %5467 = vmatpush.msra.mxu0 0.0
  %5468 = vmatpush.msra.mxu0 0.0
  %5469 = vmatpush.msra.mxu0 0.0
  %5470 = vmatpush.msra.mxu0 0.0
  %5471 = vmatpush.msra.mxu0 0.0
  %5472 = vmatpush.msra.mxu0 0.0
  %5473 = vmatpush.msra.mxu0 0.0
  %5474 = vmatpush.msra.mxu0 0.0
  %5475 = vmatpush.msra.mxu0 0.0
  %5476 = vmatpush.msra.mxu0 0.0
  %5477 = vmatpush.msra.mxu0 0.0
  %5478 = vmatpush.msra.mxu0 0.0
  %5479 = vmatpush.msra.mxu0 0.0
  %v5480 = vand.u32 %v2556, 4294901760
  %5481 = vmatpush.msra.mxu0 %v5480
  %v5482 = vand.u32 %v2548, 4294901760
  %5483 = vmatpush.msra.mxu0 %v5482
  %v5484 = vand.u32 %v5183, 4294901760
  %v5485 = vsub.f32 %v5183, %v5484
  %v5486 = vand.u32 %v5485, 4294901760
  %5487 = vmatmul.f32.gmra.mxu0 %v5486
  %v5488 = vpop.f32.mrf.mxu0
  %v5489 = vadd.f32 %v5464, %v5488
  %5490 = vdwg.mxu0
  %5491 = vmatpush.msra.mxu0 0.0
  %5492 = vmatpush.msra.mxu0 0.0
  %5493 = vmatpush.msra.mxu0 0.0
  %5494 = vmatpush.msra.mxu0 0.0
  %5495 = vmatpush.msra.mxu0 0.0
  %5496 = vmatpush.msra.mxu0 0.0
  %5497 = vmatpush.msra.mxu0 0.0
  %5498 = vmatpush.msra.mxu0 0.0
  %5499 = vmatpush.msra.mxu0 0.0
  %5500 = vmatpush.msra.mxu0 0.0
  %5501 = vmatpush.msra.mxu0 0.0
  %5502 = vmatpush.msra.mxu0 0.0
  %5503 = vmatpush.msra.mxu0 0.0
  %5504 = vmatpush.msra.mxu0 0.0
  %v5505 = vand.u32 %v2556, 4294901760
  %v5506 = vsub.f32 %v2556, %v5505
  %v5507 = vand.u32 %v5506, 4294901760
  %5508 = vmatpush.msra.mxu0 %v5507
  %v5509 = vand.u32 %v2548, 4294901760
  %v5510 = vsub.f32 %v2548, %v5509
  %v5511 = vand.u32 %v5510, 4294901760
  %5512 = vmatpush.msra.mxu0 %v5511
  %v5513 = vand.u32 %v5183, 4294901760
  %5514 = vmatmul.f32.gmra.mxu0 %v5513
  %v5515 = vpop.f32.mrf.mxu0
  %v5516 = vadd.f32 %v5489, %v5515
  %5517 = vdwg.mxu0
  %5518 = vmatpush.msra.mxu0 0.0
  %5519 = vmatpush.msra.mxu0 0.0
  %5520 = vmatpush.msra.mxu0 0.0
  %5521 = vmatpush.msra.mxu0 0.0
  %5522 = vmatpush.msra.mxu0 0.0
  %5523 = vmatpush.msra.mxu0 0.0
  %5524 = vmatpush.msra.mxu0 0.0
  %5525 = vmatpush.msra.mxu0 0.0
  %5526 = vmatpush.msra.mxu0 0.0
  %5527 = vmatpush.msra.mxu0 0.0
  %5528 = vmatpush.msra.mxu0 0.0
  %5529 = vmatpush.msra.mxu0 0.0
  %5530 = vmatpush.msra.mxu0 0.0
  %5531 = vmatpush.msra.mxu0 0.0
  %v5532 = vand.u32 %v2556, 4294901760
  %5533 = vmatpush.msra.mxu0 %v5532
  %v5534 = vand.u32 %v2548, 4294901760
  %5535 = vmatpush.msra.mxu0 %v5534
  %v5536 = vand.u32 %v5183, 4294901760
  %5537 = vmatmul.f32.gmra.mxu0 %v5536
  %v5538 = vpop.f32.mrf.mxu0
  %v5539 = vadd.f32 %v5516, %v5538
  %5540 = vdwg.mxu0
  %v5541 = vadd.f32 %v2538, %v5539
  %v5542 = vxor.u32 %v5541, 2147483648
  %v5543 = vmul.f32 %v5542, 1.442695
  %v5544 = vpow.pop %v5543
  %v5545 = vadd.f32 %v5544, 1.0
  %v5546 = vrcp.pop %v5545
  %v5547 = vmul.f32 %v5545, %v5546
  %v5548 = vsub.f32 1.0, %v5547
  %v5549 = vmul.f32 %v5546, %v5548
  %v5550 = vadd.f32 %v5546, %v5549
  %vm5551 = vweird.f32 %v5545
  %vm5552 = vweird.f32 %v5546
  %vm5553 = vmor %vm5551, %vm5552
  %v5554 = vsel %vm5553, %v5546, %v5550
  %v5555 = vand.u32 2147483647, %v5545
  %vm5556 = vcmp.eq.f32.partialorder %v5555, 8.507059e+37
  %v5557 = vand.u32 %v5545, 2147483648
  %v5558 = vor.u32 1.1754944e-38, %v5557
  %v5559 = vsel %vm5556, %v5558, %v5554
  %v5560 = vmul.f32 1.0, %v5559
  %v5561 = vtanh.pop %v5541
  %v5562 = vmul.f32 %v5560, %v5009
  %5564 = vrot.lane.b32.xlu0 %v5561, 108
  %v5565 = vpop.permute.xlu0 %5564
  %v5567 = vmul.f32 %v5560, %v5565
  %5569 = vrot.lane.b32.xlu0 %v5567, 10
  %v5570 = vpop.permute.xlu0 %5569
  %v5572 = vadd.f32 %v5562, %v5570
  %v5573 = vtanh.pop %v5572
  %5575 = vrot.lane.b32.xlu0 %v5573, 20
  %v5576 = vpop.permute.xlu0 %5575
  %v5578 = vmul.f32 %v5560, %v5576
  %5580 = vrot.lane.b32.xlu0 %v5381, 98
  %v5581 = vpop.permute.xlu0 %5580
  %v5582 = vsel %vm2550, %v5581, 0
  %5584 = vmatpush.msra.mxu0 0.0
  %5585 = vmatpush.msra.mxu0 0.0
  %5586 = vmatpush.msra.mxu0 0.0
  %5587 = vmatpush.msra.mxu0 0.0
  %5588 = vmatpush.msra.mxu0 0.0
  %5589 = vmatpush.msra.mxu0 0.0
  %5590 = vmatpush.msra.mxu0 0.0
  %5591 = vmatpush.msra.mxu0 0.0
  %5592 = vmatpush.msra.mxu0 0.0
  %5593 = vmatpush.msra.mxu0 0.0
  %5594 = vmatpush.msra.mxu0 0.0
  %5595 = vmatpush.msra.mxu0 0.0
  %5596 = vmatpush.msra.mxu0 0.0
  %5597 = vmatpush.msra.mxu0 0.0
  %v5598 = vand.u32 %v2760, 4294901760
  %5599 = vmatpush.msra.mxu0 %v5598
  %v5600 = vand.u32 %v2757, 4294901760
  %5601 = vmatpush.msra.mxu0 %v5600
  %v5602 = vand.u32 %v5582, 4294901760
  %v5603 = vsub.f32 %v5582, %v5602
  %v5604 = vand.u32 %v5603, 4294901760
  %v5605 = vsub.f32 %v5603, %v5604
  %v5606 = vand.u32 %v5605, 4294901760
  %5607 = vmatmul.f32.gmra.mxu0 %v5606
  %v5608 = vpop.f32.mrf.mxu0
  %v5609 = vadd.f32 0.0, %v5608
  %5610 = vdwg.mxu0
  %5611 = vmatpush.msra.mxu0 0.0
  %5612 = vmatpush.msra.mxu0 0.0
  %5613 = vmatpush.msra.mxu0 0.0
  %5614 = vmatpush.msra.mxu0 0.0
  %5615 = vmatpush.msra.mxu0 0.0
  %5616 = vmatpush.msra.mxu0 0.0
  %5617 = vmatpush.msra.mxu0 0.0
  %5618 = vmatpush.msra.mxu0 0.0
  %5619 = vmatpush.msra.mxu0 0.0
  %5620 = vmatpush.msra.mxu0 0.0
  %5621 = vmatpush.msra.mxu0 0.0
  %5622 = vmatpush.msra.mxu0 0.0
  %5623 = vmatpush.msra.mxu0 0.0
  %5624 = vmatpush.msra.mxu0 0.0
  %v5625 = vand.u32 %v2760, 4294901760
  %v5626 = vsub.f32 %v2760, %v5625
  %v5627 = vand.u32 %v5626, 4294901760
  %v5628 = vsub.f32 %v5626, %v5627
  %v5629 = vand.u32 %v5628, 4294901760
  %5630 = vmatpush.msra.mxu0 %v5629
  %v5631 = vand.u32 %v2757, 4294901760
  %v5632 = vsub.f32 %v2757, %v5631
  %v5633 = vand.u32 %v5632, 4294901760
  %v5634 = vsub.f32 %v5632, %v5633
  %v5635 = vand.u32 %v5634, 4294901760
  %5636 = vmatpush.msra.mxu0 %v5635
  %v5637 = vand.u32 %v5582, 4294901760
  %5638 = vmatmul.f32.gmra.mxu0 %v5637
  %v5639 = vpop.f32.mrf.mxu0
  %v5640 = vadd.f32 %v5609, %v5639
  %5641 = vdwg.mxu0
  %5642 = vmatpush.msra.mxu0 0.0
  %5643 = vmatpush.msra.mxu0 0.0
  %5644 = vmatpush.msra.mxu0 0.0
  %5645 = vmatpush.msra.mxu0 0.0
  %5646 = vmatpush.msra.mxu0 0.0
  %5647 = vmatpush.msra.mxu0 0.0
  %5648 = vmatpush.msra.mxu0 0.0
  %5649 = vmatpush.msra.mxu0 0.0
  %5650 = vmatpush.msra.mxu0 0.0
  %5651 = vmatpush.msra.mxu0 0.0
  %5652 = vmatpush.msra.mxu0 0.0
  %5653 = vmatpush.msra.mxu0 0.0
  %5654 = vmatpush.msra.mxu0 0.0
  %5655 = vmatpush.msra.mxu0 0.0
  %v5656 = vand.u32 %v2760, 4294901760
  %v5657 = vsub.f32 %v2760, %v5656
  %5658 = vmatpush.msra.mxu0 %v5657
  %v5659 = vand.u32 %v2757, 4294901760
  %v5660 = vsub.f32 %v2757, %v5659
  %5661 = vmatpush.msra.mxu0 %v5660
  %v5662 = vand.u32 %v5582, 4294901760
  %v5663 = vsub.f32 %v5582, %v5662
  %5664 = vmatmul.f32.gmra.mxu0 %v5663
  %v5665 = vpop.f32.mrf.mxu0
  %v5666 = vadd.f32 %v5640, %v5665
  %5667 = vdwg.mxu0
  %5668 = vmatpush.msra.mxu0 0.0
  %5669 = vmatpush.msra.mxu0 0.0
  %5670 = vmatpush.msra.mxu0 0.0
  %5671 = vmatpush.msra.mxu0 0.0
  %5672 = vmatpush.msra.mxu0 0.0
  %5673 = vmatpush.msra.mxu0 0.0
  %5674 = vmatpush.msra.mxu0 0.0
  %5675 = vmatpush.msra.mxu0 0.0
  %5676 = vmatpush.msra.mxu0 0.0
  %5677 = vmatpush.msra.mxu0 0.0
  %5678 = vmatpush.msra.mxu0 0.0
  %5679 = vmatpush.msra.mxu0 0.0
  %5680 = vmatpush.msra.mxu0 0.0
  %5681 = vmatpush.msra.mxu0 0.0
  %v5682 = vand.u32 %v2760, 4294901760
  %5683 = vmatpush.msra.mxu0 %v5682
  %v5684 = vand.u32 %v2757, 4294901760
  %5685 = vmatpush.msra.mxu0 %v5684
  %v5686 = vand.u32 %v5582, 4294901760
  %v5687 = vsub.f32 %v5582, %v5686
  %v5688 = vand.u32 %v5687, 4294901760
  %5689 = vmatmul.f32.gmra.mxu0 %v5688
  %v5690 = vpop.f32.mrf.mxu0
  %v5691 = vadd.f32 %v5666, %v5690
  %5692 = vdwg.mxu0
  %5693 = vmatpush.msra.mxu0 0.0
  %5694 = vmatpush.msra.mxu0 0.0
  %5695 = vmatpush.msra.mxu0 0.0
  %5696 = vmatpush.msra.mxu0 0.0
  %5697 = vmatpush.msra.mxu0 0.0
  %5698 = vmatpush.msra.mxu0 0.0
  %5699 = vmatpush.msra.mxu0 0.0
  %5700 = vmatpush.msra.mxu0 0.0
  %5701 = vmatpush.msra.mxu0 0.0
  %5702 = vmatpush.msra.mxu0 0.0
  %5703 = vmatpush.msra.mxu0 0.0
  %5704 = vmatpush.msra.mxu0 0.0
  %5705 = vmatpush.msra.mxu0 0.0
  %5706 = vmatpush.msra.mxu0 0.0
  %v5707 = vand.u32 %v2760, 4294901760
  %v5708 = vsub.f32 %v2760, %v5707
  %v5709 = vand.u32 %v5708, 4294901760
  %5710 = vmatpush.msra.mxu0 %v5709
  %v5711 = vand.u32 %v2757, 4294901760
  %v5712 = vsub.f32 %v2757, %v5711
  %v5713 = vand.u32 %v5712, 4294901760
  %5714 = vmatpush.msra.mxu0 %v5713
  %v5715 = vand.u32 %v5582, 4294901760
  %5716 = vmatmul.f32.gmra.mxu0 %v5715
  %v5717 = vpop.f32.mrf.mxu0
  %v5718 = vadd.f32 %v5691, %v5717
  %5719 = vdwg.mxu0
  %5720 = vmatpush.msra.mxu0 0.0
  %5721 = vmatpush.msra.mxu0 0.0
  %5722 = vmatpush.msra.mxu0 0.0
  %5723 = vmatpush.msra.mxu0 0.0
  %5724 = vmatpush.msra.mxu0 0.0
  %5725 = vmatpush.msra.mxu0 0.0
  %5726 = vmatpush.msra.mxu0 0.0
  %5727 = vmatpush.msra.mxu0 0.0
  %5728 = vmatpush.msra.mxu0 0.0
  %5729 = vmatpush.msra.mxu0 0.0
  %5730 = vmatpush.msra.mxu0 0.0
  %5731 = vmatpush.msra.mxu0 0.0
  %5732 = vmatpush.msra.mxu0 0.0
  %5733 = vmatpush.msra.mxu0 0.0
  %v5734 = vand.u32 %v2760, 4294901760
  %5735 = vmatpush.msra.mxu0 %v5734
  %v5736 = vand.u32 %v2757, 4294901760
  %5737 = vmatpush.msra.mxu0 %v5736
  %v5738 = vand.u32 %v5582, 4294901760
  %5739 = vmatmul.f32.gmra.mxu0 %v5738
  %v5740 = vpop.f32.mrf.mxu0
  %v5741 = vadd.f32 %v5718, %v5740
  %5742 = vdwg.mxu0
  %5744 = vrot.lane.b32.xlu0 %v5578, 98
  %v5745 = vpop.permute.xlu0 %5744
  %v5746 = vsel %vm2550, %v5745, 0
  %5748 = vmatpush.msra.mxu0 0.0
  %5749 = vmatpush.msra.mxu0 0.0
  %5750 = vmatpush.msra.mxu0 0.0
  %5751 = vmatpush.msra.mxu0 0.0
  %5752 = vmatpush.msra.mxu0 0.0
  %5753 = vmatpush.msra.mxu0 0.0
  %5754 = vmatpush.msra.mxu0 0.0
  %5755 = vmatpush.msra.mxu0 0.0
  %5756 = vmatpush.msra.mxu0 0.0
  %5757 = vmatpush.msra.mxu0 0.0
  %5758 = vmatpush.msra.mxu0 0.0
  %5759 = vmatpush.msra.mxu0 0.0
  %5760 = vmatpush.msra.mxu0 0.0
  %5761 = vmatpush.msra.mxu0 0.0
  %v5762 = vand.u32 %v2927, 4294901760
  %5763 = vmatpush.msra.mxu0 %v5762
  %v5764 = vand.u32 %v2755, 4294901760
  %5765 = vmatpush.msra.mxu0 %v5764
  %v5766 = vand.u32 %v5746, 4294901760
  %v5767 = vsub.f32 %v5746, %v5766
  %v5768 = vand.u32 %v5767, 4294901760
  %v5769 = vsub.f32 %v5767, %v5768
  %v5770 = vand.u32 %v5769, 4294901760
  %5771 = vmatmul.f32.gmra.mxu0 %v5770
  %v5772 = vpop.f32.mrf.mxu0
  %v5773 = vadd.f32 %v5741, %v5772
  %5774 = vdwg.mxu0
  %5775 = vmatpush.msra.mxu0 0.0
  %5776 = vmatpush.msra.mxu0 0.0
  %5777 = vmatpush.msra.mxu0 0.0
  %5778 = vmatpush.msra.mxu0 0.0
  %5779 = vmatpush.msra.mxu0 0.0
  %5780 = vmatpush.msra.mxu0 0.0
  %5781 = vmatpush.msra.mxu0 0.0
  %5782 = vmatpush.msra.mxu0 0.0
  %5783 = vmatpush.msra.mxu0 0.0
  %5784 = vmatpush.msra.mxu0 0.0
  %5785 = vmatpush.msra.mxu0 0.0
  %5786 = vmatpush.msra.mxu0 0.0
  %5787 = vmatpush.msra.mxu0 0.0
  %5788 = vmatpush.msra.mxu0 0.0
  %v5789 = vand.u32 %v2927, 4294901760
  %v5790 = vsub.f32 %v2927, %v5789
  %v5791 = vand.u32 %v5790, 4294901760
  %v5792 = vsub.f32 %v5790, %v5791
  %v5793 = vand.u32 %v5792, 4294901760
  %5794 = vmatpush.msra.mxu0 %v5793
  %v5795 = vand.u32 %v2755, 4294901760
  %v5796 = vsub.f32 %v2755, %v5795
  %v5797 = vand.u32 %v5796, 4294901760
  %v5798 = vsub.f32 %v5796, %v5797
  %v5799 = vand.u32 %v5798, 4294901760
  %5800 = vmatpush.msra.mxu0 %v5799
  %v5801 = vand.u32 %v5746, 4294901760
  %5802 = vmatmul.f32.gmra.mxu0 %v5801
  %v5803 = vpop.f32.mrf.mxu0
  %v5804 = vadd.f32 %v5773, %v5803
  %5805 = vdwg.mxu0
  %5806 = vmatpush.msra.mxu0 0.0
  %5807 = vmatpush.msra.mxu0 0.0
  %5808 = vmatpush.msra.mxu0 0.0
  %5809 = vmatpush.msra.mxu0 0.0
  %5810 = vmatpush.msra.mxu0 0.0
  %5811 = vmatpush.msra.mxu0 0.0
  %5812 = vmatpush.msra.mxu0 0.0
  %5813 = vmatpush.msra.mxu0 0.0
  %5814 = vmatpush.msra.mxu0 0.0
  %5815 = vmatpush.msra.mxu0 0.0
  %5816 = vmatpush.msra.mxu0 0.0
  %5817 = vmatpush.msra.mxu0 0.0
  %5818 = vmatpush.msra.mxu0 0.0
  %5819 = vmatpush.msra.mxu0 0.0
  %v5820 = vand.u32 %v2927, 4294901760
  %v5821 = vsub.f32 %v2927, %v5820
  %5822 = vmatpush.msra.mxu0 %v5821
  %v5823 = vand.u32 %v2755, 4294901760
  %v5824 = vsub.f32 %v2755, %v5823
  %5825 = vmatpush.msra.mxu0 %v5824
  %v5826 = vand.u32 %v5746, 4294901760
  %v5827 = vsub.f32 %v5746, %v5826
  %5828 = vmatmul.f32.gmra.mxu0 %v5827
  %v5829 = vpop.f32.mrf.mxu0
  %v5830 = vadd.f32 %v5804, %v5829
  %5831 = vdwg.mxu0
  %5832 = vmatpush.msra.mxu0 0.0
  %5833 = vmatpush.msra.mxu0 0.0
  %5834 = vmatpush.msra.mxu0 0.0
  %5835 = vmatpush.msra.mxu0 0.0
  %5836 = vmatpush.msra.mxu0 0.0
  %5837 = vmatpush.msra.mxu0 0.0
  %5838 = vmatpush.msra.mxu0 0.0
  %5839 = vmatpush.msra.mxu0 0.0
  %5840 = vmatpush.msra.mxu0 0.0
  %5841 = vmatpush.msra.mxu0 0.0
  %5842 = vmatpush.msra.mxu0 0.0
  %5843 = vmatpush.msra.mxu0 0.0
  %5844 = vmatpush.msra.mxu0 0.0
  %5845 = vmatpush.msra.mxu0 0.0
  %v5846 = vand.u32 %v2927, 4294901760
  %5847 = vmatpush.msra.mxu0 %v5846
  %v5848 = vand.u32 %v2755, 4294901760
  %5849 = vmatpush.msra.mxu0 %v5848
  %v5850 = vand.u32 %v5746, 4294901760
  %v5851 = vsub.f32 %v5746, %v5850
  %v5852 = vand.u32 %v5851, 4294901760
  %5853 = vmatmul.f32.gmra.mxu0 %v5852
  %v5854 = vpop.f32.mrf.mxu0
  %v5855 = vadd.f32 %v5830, %v5854
  %5856 = vdwg.mxu0
  %5857 = vmatpush.msra.mxu0 0.0
  %5858 = vmatpush.msra.mxu0 0.0
  %5859 = vmatpush.msra.mxu0 0.0
  %5860 = vmatpush.msra.mxu0 0.0
  %5861 = vmatpush.msra.mxu0 0.0
  %5862 = vmatpush.msra.mxu0 0.0
  %5863 = vmatpush.msra.mxu0 0.0
  %5864 = vmatpush.msra.mxu0 0.0
  %5865 = vmatpush.msra.mxu0 0.0
  %5866 = vmatpush.msra.mxu0 0.0
  %5867 = vmatpush.msra.mxu0 0.0
  %5868 = vmatpush.msra.mxu0 0.0
  %5869 = vmatpush.msra.mxu0 0.0
  %5870 = vmatpush.msra.mxu0 0.0
  %v5871 = vand.u32 %v2927, 4294901760
  %v5872 = vsub.f32 %v2927, %v5871
  %v5873 = vand.u32 %v5872, 4294901760
  %5874 = vmatpush.msra.mxu0 %v5873
  %v5875 = vand.u32 %v2755, 4294901760
  %v5876 = vsub.f32 %v2755, %v5875
  %v5877 = vand.u32 %v5876, 4294901760
  %5878 = vmatpush.msra.mxu0 %v5877
  %v5879 = vand.u32 %v5746, 4294901760
  %5880 = vmatmul.f32.gmra.mxu0 %v5879
  %v5881 = vpop.f32.mrf.mxu0
  %v5882 = vadd.f32 %v5855, %v5881
  %5883 = vdwg.mxu0
  %5884 = vmatpush.msra.mxu0 0.0
  %5885 = vmatpush.msra.mxu0 0.0
  %5886 = vmatpush.msra.mxu0 0.0
  %5887 = vmatpush.msra.mxu0 0.0
  %5888 = vmatpush.msra.mxu0 0.0
  %5889 = vmatpush.msra.mxu0 0.0
  %5890 = vmatpush.msra.mxu0 0.0
  %5891 = vmatpush.msra.mxu0 0.0
  %5892 = vmatpush.msra.mxu0 0.0
  %5893 = vmatpush.msra.mxu0 0.0
  %5894 = vmatpush.msra.mxu0 0.0
  %5895 = vmatpush.msra.mxu0 0.0
  %5896 = vmatpush.msra.mxu0 0.0
  %5897 = vmatpush.msra.mxu0 0.0
  %v5898 = vand.u32 %v2927, 4294901760
  %5899 = vmatpush.msra.mxu0 %v5898
  %v5900 = vand.u32 %v2755, 4294901760
  %5901 = vmatpush.msra.mxu0 %v5900
  %v5902 = vand.u32 %v5746, 4294901760
  %5903 = vmatmul.f32.gmra.mxu0 %v5902
  %v5904 = vpop.f32.mrf.mxu0
  %v5905 = vadd.f32 %v5882, %v5904
  %5906 = vdwg.mxu0
  %v5907 = vadd.f32 %v5905, %v3090
  %v5908 = vxor.u32 %v5907, 2147483648
  %v5909 = vmul.f32 %v5908, 1.442695
  %v5910 = vpow.pop %v5909
  %v5911 = vadd.f32 %v5910, 1.0
  %v5912 = vrcp.pop %v5911
  %v5913 = vmul.f32 %v5911, %v5912
  %v5914 = vsub.f32 1.0, %v5913
  %v5915 = vmul.f32 %v5912, %v5914
  %v5916 = vadd.f32 %v5912, %v5915
  %vm5917 = vweird.f32 %v5911
  %vm5918 = vweird.f32 %v5912
  %vm5919 = vmor %vm5917, %vm5918
  %v5920 = vsel %vm5919, %v5912, %v5916
  %v5921 = vand.u32 2147483647, %v5911
  %vm5922 = vcmp.eq.f32.partialorder %v5921, 8.507059e+37
  %v5923 = vand.u32 %v5911, 2147483648
  %v5924 = vor.u32 1.1754944e-38, %v5923
  %v5925 = vsel %vm5922, %v5924, %v5920
  %v5926 = vmul.f32 1.0, %v5925
  %v5927 = vtanh.pop %v5907
  %v5928 = vmul.f32 %v5926, %v5375
  %5930 = vrot.lane.b32.xlu0 %v5927, 108
  %v5931 = vpop.permute.xlu0 %5930
  %v5933 = vmul.f32 %v5926, %v5931
  %5935 = vrot.lane.b32.xlu0 %v5933, 10
  %v5936 = vpop.permute.xlu0 %5935
  %v5938 = vadd.f32 %v5928, %v5936
  %v5939 = vtanh.pop %v5938
  %5941 = vrot.lane.b32.xlu0 %v5939, 20
  %v5942 = vpop.permute.xlu0 %5941
  %v5944 = vmul.f32 %v5926, %v5942
  %5945 = vmatpush.msra.mxu0 0.0
  %5946 = vmatpush.msra.mxu0 0.0
  %5947 = vmatpush.msra.mxu0 0.0
  %5948 = vmatpush.msra.mxu0 0.0
  %5949 = vmatpush.msra.mxu0 0.0
  %5950 = vmatpush.msra.mxu0 0.0
  %5951 = vmatpush.msra.mxu0 0.0
  %5952 = vmatpush.msra.mxu0 0.0
  %5953 = vmatpush.msra.mxu0 0.0
  %5954 = vmatpush.msra.mxu0 0.0
  %5955 = vmatpush.msra.mxu0 0.0
  %5956 = vmatpush.msra.mxu0 0.0
  %5957 = vmatpush.msra.mxu0 0.0
  %5958 = vmatpush.msra.mxu0 0.0
  %v5959 = vand.u32 %v2556, 4294901760
  %5960 = vmatpush.msra.mxu0 %v5959
  %v5961 = vand.u32 %v2548, 4294901760
  %5962 = vmatpush.msra.mxu0 %v5961
  %v5963 = vand.u32 %v5746, 4294901760
  %v5964 = vsub.f32 %v5746, %v5963
  %v5965 = vand.u32 %v5964, 4294901760
  %v5966 = vsub.f32 %v5964, %v5965
  %v5967 = vand.u32 %v5966, 4294901760
  %5968 = vmatmul.f32.gmra.mxu0 %v5967
  %v5969 = vpop.f32.mrf.mxu0
  %v5970 = vadd.f32 0.0, %v5969
  %5971 = vdwg.mxu0
  %5972 = vmatpush.msra.mxu0 0.0
  %5973 = vmatpush.msra.mxu0 0.0
  %5974 = vmatpush.msra.mxu0 0.0
  %5975 = vmatpush.msra.mxu0 0.0
  %5976 = vmatpush.msra.mxu0 0.0
  %5977 = vmatpush.msra.mxu0 0.0
  %5978 = vmatpush.msra.mxu0 0.0
  %5979 = vmatpush.msra.mxu0 0.0
  %5980 = vmatpush.msra.mxu0 0.0
  %5981 = vmatpush.msra.mxu0 0.0
  %5982 = vmatpush.msra.mxu0 0.0
  %5983 = vmatpush.msra.mxu0 0.0
  %5984 = vmatpush.msra.mxu0 0.0
  %5985 = vmatpush.msra.mxu0 0.0
  %v5986 = vand.u32 %v2556, 4294901760
  %v5987 = vsub.f32 %v2556, %v5986
  %v5988 = vand.u32 %v5987, 4294901760
  %v5989 = vsub.f32 %v5987, %v5988
  %v5990 = vand.u32 %v5989, 4294901760
  %5991 = vmatpush.msra.mxu0 %v5990
  %v5992 = vand.u32 %v2548, 4294901760
  %v5993 = vsub.f32 %v2548, %v5992
  %v5994 = vand.u32 %v5993, 4294901760
  %v5995 = vsub.f32 %v5993, %v5994
  %v5996 = vand.u32 %v5995, 4294901760
  %5997 = vmatpush.msra.mxu0 %v5996
  %v5998 = vand.u32 %v5746, 4294901760
  %5999 = vmatmul.f32.gmra.mxu0 %v5998
  %v6000 = vpop.f32.mrf.mxu0
  %v6001 = vadd.f32 %v5970, %v6000
  %6002 = vdwg.mxu0
  %6003 = vmatpush.msra.mxu0 0.0
  %6004 = vmatpush.msra.mxu0 0.0
  %6005 = vmatpush.msra.mxu0 0.0
  %6006 = vmatpush.msra.mxu0 0.0
  %6007 = vmatpush.msra.mxu0 0.0
  %6008 = vmatpush.msra.mxu0 0.0
  %6009 = vmatpush.msra.mxu0 0.0
  %6010 = vmatpush.msra.mxu0 0.0
  %6011 = vmatpush.msra.mxu0 0.0
  %6012 = vmatpush.msra.mxu0 0.0
  %6013 = vmatpush.msra.mxu0 0.0
  %6014 = vmatpush.msra.mxu0 0.0
  %6015 = vmatpush.msra.mxu0 0.0
  %6016 = vmatpush.msra.mxu0 0.0
  %v6017 = vand.u32 %v2556, 4294901760
  %v6018 = vsub.f32 %v2556, %v6017
  %6019 = vmatpush.msra.mxu0 %v6018
  %v6020 = vand.u32 %v2548, 4294901760
  %v6021 = vsub.f32 %v2548, %v6020
  %6022 = vmatpush.msra.mxu0 %v6021
  %v6023 = vand.u32 %v5746, 4294901760
  %v6024 = vsub.f32 %v5746, %v6023
  %6025 = vmatmul.f32.gmra.mxu0 %v6024
  %v6026 = vpop.f32.mrf.mxu0
  %v6027 = vadd.f32 %v6001, %v6026
  %6028 = vdwg.mxu0
  %6029 = vmatpush.msra.mxu0 0.0
  %6030 = vmatpush.msra.mxu0 0.0
  %6031 = vmatpush.msra.mxu0 0.0
  %6032 = vmatpush.msra.mxu0 0.0
  %6033 = vmatpush.msra.mxu0 0.0
  %6034 = vmatpush.msra.mxu0 0.0
  %6035 = vmatpush.msra.mxu0 0.0
  %6036 = vmatpush.msra.mxu0 0.0
  %6037 = vmatpush.msra.mxu0 0.0
  %6038 = vmatpush.msra.mxu0 0.0
  %6039 = vmatpush.msra.mxu0 0.0
  %6040 = vmatpush.msra.mxu0 0.0
  %6041 = vmatpush.msra.mxu0 0.0
  %6042 = vmatpush.msra.mxu0 0.0
  %v6043 = vand.u32 %v2556, 4294901760
  %6044 = vmatpush.msra.mxu0 %v6043
  %v6045 = vand.u32 %v2548, 4294901760
  %6046 = vmatpush.msra.mxu0 %v6045
  %v6047 = vand.u32 %v5746, 4294901760
  %v6048 = vsub.f32 %v5746, %v6047
  %v6049 = vand.u32 %v6048, 4294901760
  %6050 = vmatmul.f32.gmra.mxu0 %v6049
  %v6051 = vpop.f32.mrf.mxu0
  %v6052 = vadd.f32 %v6027, %v6051
  %6053 = vdwg.mxu0
  %6054 = vmatpush.msra.mxu0 0.0
  %6055 = vmatpush.msra.mxu0 0.0
  %6056 = vmatpush.msra.mxu0 0.0
  %6057 = vmatpush.msra.mxu0 0.0
  %6058 = vmatpush.msra.mxu0 0.0
  %6059 = vmatpush.msra.mxu0 0.0
  %6060 = vmatpush.msra.mxu0 0.0
  %6061 = vmatpush.msra.mxu0 0.0
  %6062 = vmatpush.msra.mxu0 0.0
  %6063 = vmatpush.msra.mxu0 0.0
  %6064 = vmatpush.msra.mxu0 0.0
  %6065 = vmatpush.msra.mxu0 0.0
  %6066 = vmatpush.msra.mxu0 0.0
  %6067 = vmatpush.msra.mxu0 0.0
  %v6068 = vand.u32 %v2556, 4294901760
  %v6069 = vsub.f32 %v2556, %v6068
  %v6070 = vand.u32 %v6069, 4294901760
  %6071 = vmatpush.msra.mxu0 %v6070
  %v6072 = vand.u32 %v2548, 4294901760
  %v6073 = vsub.f32 %v2548, %v6072
  %v6074 = vand.u32 %v6073, 4294901760
  %6075 = vmatpush.msra.mxu0 %v6074
  %v6076 = vand.u32 %v5746, 4294901760
  %6077 = vmatmul.f32.gmra.mxu0 %v6076
  %v6078 = vpop.f32.mrf.mxu0
  %v6079 = vadd.f32 %v6052, %v6078
  %6080 = vdwg.mxu0
  %6081 = vmatpush.msra.mxu0 0.0
  %6082 = vmatpush.msra.mxu0 0.0
  %6083 = vmatpush.msra.mxu0 0.0
  %6084 = vmatpush.msra.mxu0 0.0
  %6085 = vmatpush.msra.mxu0 0.0
  %6086 = vmatpush.msra.mxu0 0.0
  %6087 = vmatpush.msra.mxu0 0.0
  %6088 = vmatpush.msra.mxu0 0.0
  %6089 = vmatpush.msra.mxu0 0.0
  %6090 = vmatpush.msra.mxu0 0.0
  %6091 = vmatpush.msra.mxu0 0.0
  %6092 = vmatpush.msra.mxu0 0.0
  %6093 = vmatpush.msra.mxu0 0.0
  %6094 = vmatpush.msra.mxu0 0.0
  %v6095 = vand.u32 %v2556, 4294901760
  %6096 = vmatpush.msra.mxu0 %v6095
  %v6097 = vand.u32 %v2548, 4294901760
  %6098 = vmatpush.msra.mxu0 %v6097
  %v6099 = vand.u32 %v5746, 4294901760
  %6100 = vmatmul.f32.gmra.mxu0 %v6099
  %v6101 = vpop.f32.mrf.mxu0
  %v6102 = vadd.f32 %v6079, %v6101
  %6103 = vdwg.mxu0
  %v6104 = vadd.f32 %v2542, %v6102
  %v6105 = vxor.u32 %v6104, 2147483648
  %v6106 = vmul.f32 %v6105, 1.442695
  %v6107 = vpow.pop %v6106
  %v6108 = vadd.f32 %v6107, 1.0
  %v6109 = vrcp.pop %v6108
  %v6110 = vmul.f32 %v6108, %v6109
  %v6111 = vsub.f32 1.0, %v6110
  %v6112 = vmul.f32 %v6109, %v6111
  %v6113 = vadd.f32 %v6109, %v6112
  %vm6114 = vweird.f32 %v6108
  %vm6115 = vweird.f32 %v6109
  %vm6116 = vmor %vm6114, %vm6115
  %v6117 = vsel %vm6116, %v6109, %v6113
  %v6118 = vand.u32 2147483647, %v6108
  %vm6119 = vcmp.eq.f32.partialorder %v6118, 8.507059e+37
  %v6120 = vand.u32 %v6108, 2147483648
  %v6121 = vor.u32 1.1754944e-38, %v6120
  %v6122 = vsel %vm6119, %v6121, %v6117
  %v6123 = vmul.f32 1.0, %v6122
  %v6124 = vtanh.pop %v6104
  %v6125 = vmul.f32 %v6123, %v5572
  %6127 = vrot.lane.b32.xlu0 %v6124, 108
  %v6128 = vpop.permute.xlu0 %6127
  %v6130 = vmul.f32 %v6123, %v6128
  %6132 = vrot.lane.b32.xlu0 %v6130, 10
  %v6133 = vpop.permute.xlu0 %6132
  %v6135 = vadd.f32 %v6125, %v6133
  %v6136 = vtanh.pop %v6135
  %6138 = vrot.lane.b32.xlu0 %v6136, 20
  %v6139 = vpop.permute.xlu0 %6138
  %v6141 = vmul.f32 %v6123, %v6139
  %6143 = vrot.lane.b32.xlu0 %v5944, 98
  %v6144 = vpop.permute.xlu0 %6143
  %v6145 = vsel %vm2550, %v6144, 0
  %6147 = vmatpush.msra.mxu0 0.0
  %6148 = vmatpush.msra.mxu0 0.0
  %6149 = vmatpush.msra.mxu0 0.0
  %6150 = vmatpush.msra.mxu0 0.0
  %6151 = vmatpush.msra.mxu0 0.0
  %6152 = vmatpush.msra.mxu0 0.0
  %6153 = vmatpush.msra.mxu0 0.0
  %6154 = vmatpush.msra.mxu0 0.0
  %6155 = vmatpush.msra.mxu0 0.0
  %6156 = vmatpush.msra.mxu0 0.0
  %6157 = vmatpush.msra.mxu0 0.0
  %6158 = vmatpush.msra.mxu0 0.0
  %6159 = vmatpush.msra.mxu0 0.0
  %6160 = vmatpush.msra.mxu0 0.0
  %v6161 = vand.u32 %v2760, 4294901760
  %6162 = vmatpush.msra.mxu0 %v6161
  %v6163 = vand.u32 %v2757, 4294901760
  %6164 = vmatpush.msra.mxu0 %v6163
  %v6165 = vand.u32 %v6145, 4294901760
  %v6166 = vsub.f32 %v6145, %v6165
  %v6167 = vand.u32 %v6166, 4294901760
  %v6168 = vsub.f32 %v6166, %v6167
  %v6169 = vand.u32 %v6168, 4294901760
  %6170 = vmatmul.f32.gmra.mxu0 %v6169
  %v6171 = vpop.f32.mrf.mxu0
  %v6172 = vadd.f32 0.0, %v6171
  %6173 = vdwg.mxu0
  %6174 = vmatpush.msra.mxu0 0.0
  %6175 = vmatpush.msra.mxu0 0.0
  %6176 = vmatpush.msra.mxu0 0.0
  %6177 = vmatpush.msra.mxu0 0.0
  %6178 = vmatpush.msra.mxu0 0.0
  %6179 = vmatpush.msra.mxu0 0.0
  %6180 = vmatpush.msra.mxu0 0.0
  %6181 = vmatpush.msra.mxu0 0.0
  %6182 = vmatpush.msra.mxu0 0.0
  %6183 = vmatpush.msra.mxu0 0.0
  %6184 = vmatpush.msra.mxu0 0.0
  %6185 = vmatpush.msra.mxu0 0.0
  %6186 = vmatpush.msra.mxu0 0.0
  %6187 = vmatpush.msra.mxu0 0.0
  %v6188 = vand.u32 %v2760, 4294901760
  %v6189 = vsub.f32 %v2760, %v6188
  %v6190 = vand.u32 %v6189, 4294901760
  %v6191 = vsub.f32 %v6189, %v6190
  %v6192 = vand.u32 %v6191, 4294901760
  %6193 = vmatpush.msra.mxu0 %v6192
  %v6194 = vand.u32 %v2757, 4294901760
  %v6195 = vsub.f32 %v2757, %v6194
  %v6196 = vand.u32 %v6195, 4294901760
  %v6197 = vsub.f32 %v6195, %v6196
  %v6198 = vand.u32 %v6197, 4294901760
  %6199 = vmatpush.msra.mxu0 %v6198
  %v6200 = vand.u32 %v6145, 4294901760
  %6201 = vmatmul.f32.gmra.mxu0 %v6200
  %v6202 = vpop.f32.mrf.mxu0
  %v6203 = vadd.f32 %v6172, %v6202
  %6204 = vdwg.mxu0
  %6205 = vmatpush.msra.mxu0 0.0
  %6206 = vmatpush.msra.mxu0 0.0
  %6207 = vmatpush.msra.mxu0 0.0
  %6208 = vmatpush.msra.mxu0 0.0
  %6209 = vmatpush.msra.mxu0 0.0
  %6210 = vmatpush.msra.mxu0 0.0
  %6211 = vmatpush.msra.mxu0 0.0
  %6212 = vmatpush.msra.mxu0 0.0
  %6213 = vmatpush.msra.mxu0 0.0
  %6214 = vmatpush.msra.mxu0 0.0
  %6215 = vmatpush.msra.mxu0 0.0
  %6216 = vmatpush.msra.mxu0 0.0
  %6217 = vmatpush.msra.mxu0 0.0
  %6218 = vmatpush.msra.mxu0 0.0
  %v6219 = vand.u32 %v2760, 4294901760
  %v6220 = vsub.f32 %v2760, %v6219
  %6221 = vmatpush.msra.mxu0 %v6220
  %v6222 = vand.u32 %v2757, 4294901760
  %v6223 = vsub.f32 %v2757, %v6222
  %6224 = vmatpush.msra.mxu0 %v6223
  %v6225 = vand.u32 %v6145, 4294901760
  %v6226 = vsub.f32 %v6145, %v6225
  %6227 = vmatmul.f32.gmra.mxu0 %v6226
  %v6228 = vpop.f32.mrf.mxu0
  %v6229 = vadd.f32 %v6203, %v6228
  %6230 = vdwg.mxu0
  %6231 = vmatpush.msra.mxu0 0.0
  %6232 = vmatpush.msra.mxu0 0.0
  %6233 = vmatpush.msra.mxu0 0.0
  %6234 = vmatpush.msra.mxu0 0.0
  %6235 = vmatpush.msra.mxu0 0.0
  %6236 = vmatpush.msra.mxu0 0.0
  %6237 = vmatpush.msra.mxu0 0.0
  %6238 = vmatpush.msra.mxu0 0.0
  %6239 = vmatpush.msra.mxu0 0.0
  %6240 = vmatpush.msra.mxu0 0.0
  %6241 = vmatpush.msra.mxu0 0.0
  %6242 = vmatpush.msra.mxu0 0.0
  %6243 = vmatpush.msra.mxu0 0.0
  %6244 = vmatpush.msra.mxu0 0.0
  %v6245 = vand.u32 %v2760, 4294901760
  %6246 = vmatpush.msra.mxu0 %v6245
  %v6247 = vand.u32 %v2757, 4294901760
  %6248 = vmatpush.msra.mxu0 %v6247
  %v6249 = vand.u32 %v6145, 4294901760
  %v6250 = vsub.f32 %v6145, %v6249
  %v6251 = vand.u32 %v6250, 4294901760
  %6252 = vmatmul.f32.gmra.mxu0 %v6251
  %v6253 = vpop.f32.mrf.mxu0
  %v6254 = vadd.f32 %v6229, %v6253
  %6255 = vdwg.mxu0
  %6256 = vmatpush.msra.mxu0 0.0
  %6257 = vmatpush.msra.mxu0 0.0
  %6258 = vmatpush.msra.mxu0 0.0
  %6259 = vmatpush.msra.mxu0 0.0
  %6260 = vmatpush.msra.mxu0 0.0
  %6261 = vmatpush.msra.mxu0 0.0
  %6262 = vmatpush.msra.mxu0 0.0
  %6263 = vmatpush.msra.mxu0 0.0
  %6264 = vmatpush.msra.mxu0 0.0
  %6265 = vmatpush.msra.mxu0 0.0
  %6266 = vmatpush.msra.mxu0 0.0
  %6267 = vmatpush.msra.mxu0 0.0
  %6268 = vmatpush.msra.mxu0 0.0
  %6269 = vmatpush.msra.mxu0 0.0
  %v6270 = vand.u32 %v2760, 4294901760
  %v6271 = vsub.f32 %v2760, %v6270
  %v6272 = vand.u32 %v6271, 4294901760
  %6273 = vmatpush.msra.mxu0 %v6272
  %v6274 = vand.u32 %v2757, 4294901760
  %v6275 = vsub.f32 %v2757, %v6274
  %v6276 = vand.u32 %v6275, 4294901760
  %6277 = vmatpush.msra.mxu0 %v6276
  %v6278 = vand.u32 %v6145, 4294901760
  %6279 = vmatmul.f32.gmra.mxu0 %v6278
  %v6280 = vpop.f32.mrf.mxu0
  %v6281 = vadd.f32 %v6254, %v6280
  %6282 = vdwg.mxu0
  %6283 = vmatpush.msra.mxu0 0.0
  %6284 = vmatpush.msra.mxu0 0.0
  %6285 = vmatpush.msra.mxu0 0.0
  %6286 = vmatpush.msra.mxu0 0.0
  %6287 = vmatpush.msra.mxu0 0.0
  %6288 = vmatpush.msra.mxu0 0.0
  %6289 = vmatpush.msra.mxu0 0.0
  %6290 = vmatpush.msra.mxu0 0.0
  %6291 = vmatpush.msra.mxu0 0.0
  %6292 = vmatpush.msra.mxu0 0.0
  %6293 = vmatpush.msra.mxu0 0.0
  %6294 = vmatpush.msra.mxu0 0.0
  %6295 = vmatpush.msra.mxu0 0.0
  %6296 = vmatpush.msra.mxu0 0.0
  %v6297 = vand.u32 %v2760, 4294901760
  %6298 = vmatpush.msra.mxu0 %v6297
  %v6299 = vand.u32 %v2757, 4294901760
  %6300 = vmatpush.msra.mxu0 %v6299
  %v6301 = vand.u32 %v6145, 4294901760
  %6302 = vmatmul.f32.gmra.mxu0 %v6301
  %v6303 = vpop.f32.mrf.mxu0
  %v6304 = vadd.f32 %v6281, %v6303
  %6305 = vdwg.mxu0
  %6307 = vrot.lane.b32.xlu0 %v6141, 98
  %v6308 = vpop.permute.xlu0 %6307
  %v6309 = vsel %vm2550, %v6308, 0
  %6311 = vmatpush.msra.mxu0 0.0
  %6312 = vmatpush.msra.mxu0 0.0
  %6313 = vmatpush.msra.mxu0 0.0
  %6314 = vmatpush.msra.mxu0 0.0
  %6315 = vmatpush.msra.mxu0 0.0
  %6316 = vmatpush.msra.mxu0 0.0
  %6317 = vmatpush.msra.mxu0 0.0
  %6318 = vmatpush.msra.mxu0 0.0
  %6319 = vmatpush.msra.mxu0 0.0
  %6320 = vmatpush.msra.mxu0 0.0
  %6321 = vmatpush.msra.mxu0 0.0
  %6322 = vmatpush.msra.mxu0 0.0
  %6323 = vmatpush.msra.mxu0 0.0
  %6324 = vmatpush.msra.mxu0 0.0
  %v6325 = vand.u32 %v2927, 4294901760
  %6326 = vmatpush.msra.mxu0 %v6325
  %v6327 = vand.u32 %v2755, 4294901760
  %6328 = vmatpush.msra.mxu0 %v6327
  %v6329 = vand.u32 %v6309, 4294901760
  %v6330 = vsub.f32 %v6309, %v6329
  %v6331 = vand.u32 %v6330, 4294901760
  %v6332 = vsub.f32 %v6330, %v6331
  %v6333 = vand.u32 %v6332, 4294901760
  %6334 = vmatmul.f32.gmra.mxu0 %v6333
  %v6335 = vpop.f32.mrf.mxu0
  %v6336 = vadd.f32 %v6304, %v6335
  %6337 = vdwg.mxu0
  %6338 = vmatpush.msra.mxu0 0.0
  %6339 = vmatpush.msra.mxu0 0.0
  %6340 = vmatpush.msra.mxu0 0.0
  %6341 = vmatpush.msra.mxu0 0.0
  %6342 = vmatpush.msra.mxu0 0.0
  %6343 = vmatpush.msra.mxu0 0.0
  %6344 = vmatpush.msra.mxu0 0.0
  %6345 = vmatpush.msra.mxu0 0.0
  %6346 = vmatpush.msra.mxu0 0.0
  %6347 = vmatpush.msra.mxu0 0.0
  %6348 = vmatpush.msra.mxu0 0.0
  %6349 = vmatpush.msra.mxu0 0.0
  %6350 = vmatpush.msra.mxu0 0.0
  %6351 = vmatpush.msra.mxu0 0.0
  %v6352 = vand.u32 %v2927, 4294901760
  %v6353 = vsub.f32 %v2927, %v6352
  %v6354 = vand.u32 %v6353, 4294901760
  %v6355 = vsub.f32 %v6353, %v6354
  %v6356 = vand.u32 %v6355, 4294901760
  %6357 = vmatpush.msra.mxu0 %v6356
  %v6358 = vand.u32 %v2755, 4294901760
  %v6359 = vsub.f32 %v2755, %v6358
  %v6360 = vand.u32 %v6359, 4294901760
  %v6361 = vsub.f32 %v6359, %v6360
  %v6362 = vand.u32 %v6361, 4294901760
  %6363 = vmatpush.msra.mxu0 %v6362
  %v6364 = vand.u32 %v6309, 4294901760
  %6365 = vmatmul.f32.gmra.mxu0 %v6364
  %v6366 = vpop.f32.mrf.mxu0
  %v6367 = vadd.f32 %v6336, %v6366
  %6368 = vdwg.mxu0
  %6369 = vmatpush.msra.mxu0 0.0
  %6370 = vmatpush.msra.mxu0 0.0
  %6371 = vmatpush.msra.mxu0 0.0
  %6372 = vmatpush.msra.mxu0 0.0
  %6373 = vmatpush.msra.mxu0 0.0
  %6374 = vmatpush.msra.mxu0 0.0
  %6375 = vmatpush.msra.mxu0 0.0
  %6376 = vmatpush.msra.mxu0 0.0
  %6377 = vmatpush.msra.mxu0 0.0
  %6378 = vmatpush.msra.mxu0 0.0
  %6379 = vmatpush.msra.mxu0 0.0
  %6380 = vmatpush.msra.mxu0 0.0
  %6381 = vmatpush.msra.mxu0 0.0
  %6382 = vmatpush.msra.mxu0 0.0
  %v6383 = vand.u32 %v2927, 4294901760
  %v6384 = vsub.f32 %v2927, %v6383
  %6385 = vmatpush.msra.mxu0 %v6384
  %v6386 = vand.u32 %v2755, 4294901760
  %v6387 = vsub.f32 %v2755, %v6386
  %6388 = vmatpush.msra.mxu0 %v6387
  %v6389 = vand.u32 %v6309, 4294901760
  %v6390 = vsub.f32 %v6309, %v6389
  %6391 = vmatmul.f32.gmra.mxu0 %v6390
  %v6392 = vpop.f32.mrf.mxu0
  %v6393 = vadd.f32 %v6367, %v6392
  %6394 = vdwg.mxu0
  %6395 = vmatpush.msra.mxu0 0.0
  %6396 = vmatpush.msra.mxu0 0.0
  %6397 = vmatpush.msra.mxu0 0.0
  %6398 = vmatpush.msra.mxu0 0.0
  %6399 = vmatpush.msra.mxu0 0.0
  %6400 = vmatpush.msra.mxu0 0.0
  %6401 = vmatpush.msra.mxu0 0.0
  %6402 = vmatpush.msra.mxu0 0.0
  %6403 = vmatpush.msra.mxu0 0.0
  %6404 = vmatpush.msra.mxu0 0.0
  %6405 = vmatpush.msra.mxu0 0.0
  %6406 = vmatpush.msra.mxu0 0.0
  %6407 = vmatpush.msra.mxu0 0.0
  %6408 = vmatpush.msra.mxu0 0.0
  %v6409 = vand.u32 %v2927, 4294901760
  %6410 = vmatpush.msra.mxu0 %v6409
  %v6411 = vand.u32 %v2755, 4294901760
  %6412 = vmatpush.msra.mxu0 %v6411
  %v6413 = vand.u32 %v6309, 4294901760
  %v6414 = vsub.f32 %v6309, %v6413
  %v6415 = vand.u32 %v6414, 4294901760
  %6416 = vmatmul.f32.gmra.mxu0 %v6415
  %v6417 = vpop.f32.mrf.mxu0
  %v6418 = vadd.f32 %v6393, %v6417
  %6419 = vdwg.mxu0
  %6420 = vmatpush.msra.mxu0 0.0
  %6421 = vmatpush.msra.mxu0 0.0
  %6422 = vmatpush.msra.mxu0 0.0
  %6423 = vmatpush.msra.mxu0 0.0
  %6424 = vmatpush.msra.mxu0 0.0
  %6425 = vmatpush.msra.mxu0 0.0
  %6426 = vmatpush.msra.mxu0 0.0
  %6427 = vmatpush.msra.mxu0 0.0
  %6428 = vmatpush.msra.mxu0 0.0
  %6429 = vmatpush.msra.mxu0 0.0
  %6430 = vmatpush.msra.mxu0 0.0
  %6431 = vmatpush.msra.mxu0 0.0
  %6432 = vmatpush.msra.mxu0 0.0
  %6433 = vmatpush.msra.mxu0 0.0
  %v6434 = vand.u32 %v2927, 4294901760
  %v6435 = vsub.f32 %v2927, %v6434
  %v6436 = vand.u32 %v6435, 4294901760
  %6437 = vmatpush.msra.mxu0 %v6436
  %v6438 = vand.u32 %v2755, 4294901760
  %v6439 = vsub.f32 %v2755, %v6438
  %v6440 = vand.u32 %v6439, 4294901760
  %6441 = vmatpush.msra.mxu0 %v6440
  %v6442 = vand.u32 %v6309, 4294901760
  %6443 = vmatmul.f32.gmra.mxu0 %v6442
  %v6444 = vpop.f32.mrf.mxu0
  %v6445 = vadd.f32 %v6418, %v6444
  %6446 = vdwg.mxu0
  %6447 = vmatpush.msra.mxu0 0.0
  %6448 = vmatpush.msra.mxu0 0.0
  %6449 = vmatpush.msra.mxu0 0.0
  %6450 = vmatpush.msra.mxu0 0.0
  %6451 = vmatpush.msra.mxu0 0.0
  %6452 = vmatpush.msra.mxu0 0.0
  %6453 = vmatpush.msra.mxu0 0.0
  %6454 = vmatpush.msra.mxu0 0.0
  %6455 = vmatpush.msra.mxu0 0.0
  %6456 = vmatpush.msra.mxu0 0.0
  %6457 = vmatpush.msra.mxu0 0.0
  %6458 = vmatpush.msra.mxu0 0.0
  %6459 = vmatpush.msra.mxu0 0.0
  %6460 = vmatpush.msra.mxu0 0.0
  %v6461 = vand.u32 %v2927, 4294901760
  %6462 = vmatpush.msra.mxu0 %v6461
  %v6463 = vand.u32 %v2755, 4294901760
  %6464 = vmatpush.msra.mxu0 %v6463
  %v6465 = vand.u32 %v6309, 4294901760
  %6466 = vmatmul.f32.gmra.mxu0 %v6465
  %v6467 = vpop.f32.mrf.mxu0
  %v6468 = vadd.f32 %v6445, %v6467
  %6469 = vdwg.mxu0
  %v6470 = vadd.f32 %v6468, %v3090
  %v6471 = vxor.u32 %v6470, 2147483648
  %v6472 = vmul.f32 %v6471, 1.442695
  %v6473 = vpow.pop %v6472
  %v6474 = vadd.f32 %v6473, 1.0
  %v6475 = vrcp.pop %v6474
  %v6476 = vmul.f32 %v6474, %v6475
  %v6477 = vsub.f32 1.0, %v6476
  %v6478 = vmul.f32 %v6475, %v6477
  %v6479 = vadd.f32 %v6475, %v6478
  %vm6480 = vweird.f32 %v6474
  %vm6481 = vweird.f32 %v6475
  %vm6482 = vmor %vm6480, %vm6481
  %v6483 = vsel %vm6482, %v6475, %v6479
  %v6484 = vand.u32 2147483647, %v6474
  %vm6485 = vcmp.eq.f32.partialorder %v6484, 8.507059e+37
  %v6486 = vand.u32 %v6474, 2147483648
  %v6487 = vor.u32 1.1754944e-38, %v6486
  %v6488 = vsel %vm6485, %v6487, %v6483
  %v6489 = vmul.f32 1.0, %v6488
  %v6490 = vtanh.pop %v6470
  %v6491 = vmul.f32 %v6489, %v5938
  %6493 = vrot.lane.b32.xlu0 %v6490, 108
  %v6494 = vpop.permute.xlu0 %6493
  %v6496 = vmul.f32 %v6489, %v6494
  %6498 = vrot.lane.b32.xlu0 %v6496, 10
  %v6499 = vpop.permute.xlu0 %6498
  %v6501 = vadd.f32 %v6491, %v6499
  %v6502 = vtanh.pop %v6501
  %6504 = vrot.lane.b32.xlu0 %v6502, 20
  %v6505 = vpop.permute.xlu0 %6504
  %v6507 = vmul.f32 %v6489, %v6505
  %6508 = vmatpush.msra.mxu0 0.0
  %6509 = vmatpush.msra.mxu0 0.0
  %6510 = vmatpush.msra.mxu0 0.0
  %6511 = vmatpush.msra.mxu0 0.0
  %6512 = vmatpush.msra.mxu0 0.0
  %6513 = vmatpush.msra.mxu0 0.0
  %6514 = vmatpush.msra.mxu0 0.0
  %6515 = vmatpush.msra.mxu0 0.0
  %6516 = vmatpush.msra.mxu0 0.0
  %6517 = vmatpush.msra.mxu0 0.0
  %6518 = vmatpush.msra.mxu0 0.0
  %6519 = vmatpush.msra.mxu0 0.0
  %6520 = vmatpush.msra.mxu0 0.0
  %6521 = vmatpush.msra.mxu0 0.0
  %v6522 = vand.u32 %v2556, 4294901760
  %6523 = vmatpush.msra.mxu0 %v6522
  %v6524 = vand.u32 %v2548, 4294901760
  %6525 = vmatpush.msra.mxu0 %v6524
  %v6526 = vand.u32 %v6309, 4294901760
  %v6527 = vsub.f32 %v6309, %v6526
  %v6528 = vand.u32 %v6527, 4294901760
  %v6529 = vsub.f32 %v6527, %v6528
  %v6530 = vand.u32 %v6529, 4294901760
  %6531 = vmatmul.f32.gmra.mxu0 %v6530
  %v6532 = vpop.f32.mrf.mxu0
  %v6533 = vadd.f32 0.0, %v6532
  %6534 = vdwg.mxu0
  %6535 = vmatpush.msra.mxu0 0.0
  %6536 = vmatpush.msra.mxu0 0.0
  %6537 = vmatpush.msra.mxu0 0.0
  %6538 = vmatpush.msra.mxu0 0.0
  %6539 = vmatpush.msra.mxu0 0.0
  %6540 = vmatpush.msra.mxu0 0.0
  %6541 = vmatpush.msra.mxu0 0.0
  %6542 = vmatpush.msra.mxu0 0.0
  %6543 = vmatpush.msra.mxu0 0.0
  %6544 = vmatpush.msra.mxu0 0.0
  %6545 = vmatpush.msra.mxu0 0.0
  %6546 = vmatpush.msra.mxu0 0.0
  %6547 = vmatpush.msra.mxu0 0.0
  %6548 = vmatpush.msra.mxu0 0.0
  %v6549 = vand.u32 %v2556, 4294901760
  %v6550 = vsub.f32 %v2556, %v6549
  %v6551 = vand.u32 %v6550, 4294901760
  %v6552 = vsub.f32 %v6550, %v6551
  %v6553 = vand.u32 %v6552, 4294901760
  %6554 = vmatpush.msra.mxu0 %v6553
  %v6555 = vand.u32 %v2548, 4294901760
  %v6556 = vsub.f32 %v2548, %v6555
  %v6557 = vand.u32 %v6556, 4294901760
  %v6558 = vsub.f32 %v6556, %v6557
  %v6559 = vand.u32 %v6558, 4294901760
  %6560 = vmatpush.msra.mxu0 %v6559
  %v6561 = vand.u32 %v6309, 4294901760
  %6562 = vmatmul.f32.gmra.mxu0 %v6561
  %v6563 = vpop.f32.mrf.mxu0
  %v6564 = vadd.f32 %v6533, %v6563
  %6565 = vdwg.mxu0
  %6566 = vmatpush.msra.mxu0 0.0
  %6567 = vmatpush.msra.mxu0 0.0
  %6568 = vmatpush.msra.mxu0 0.0
  %6569 = vmatpush.msra.mxu0 0.0
  %6570 = vmatpush.msra.mxu0 0.0
  %6571 = vmatpush.msra.mxu0 0.0
  %6572 = vmatpush.msra.mxu0 0.0
  %6573 = vmatpush.msra.mxu0 0.0
  %6574 = vmatpush.msra.mxu0 0.0
  %6575 = vmatpush.msra.mxu0 0.0
  %6576 = vmatpush.msra.mxu0 0.0
  %6577 = vmatpush.msra.mxu0 0.0
  %6578 = vmatpush.msra.mxu0 0.0
  %6579 = vmatpush.msra.mxu0 0.0
  %v6580 = vand.u32 %v2556, 4294901760
  %v6581 = vsub.f32 %v2556, %v6580
  %6582 = vmatpush.msra.mxu0 %v6581
  %v6583 = vand.u32 %v2548, 4294901760
  %v6584 = vsub.f32 %v2548, %v6583
  %6585 = vmatpush.msra.mxu0 %v6584
  %v6586 = vand.u32 %v6309, 4294901760
  %v6587 = vsub.f32 %v6309, %v6586
  %6588 = vmatmul.f32.gmra.mxu0 %v6587
  %v6589 = vpop.f32.mrf.mxu0
  %v6590 = vadd.f32 %v6564, %v6589
  %6591 = vdwg.mxu0
  %6592 = vmatpush.msra.mxu0 0.0
  %6593 = vmatpush.msra.mxu0 0.0
  %6594 = vmatpush.msra.mxu0 0.0
  %6595 = vmatpush.msra.mxu0 0.0
  %6596 = vmatpush.msra.mxu0 0.0
  %6597 = vmatpush.msra.mxu0 0.0
  %6598 = vmatpush.msra.mxu0 0.0
  %6599 = vmatpush.msra.mxu0 0.0
  %6600 = vmatpush.msra.mxu0 0.0
  %6601 = vmatpush.msra.mxu0 0.0
  %6602 = vmatpush.msra.mxu0 0.0
  %6603 = vmatpush.msra.mxu0 0.0
  %6604 = vmatpush.msra.mxu0 0.0
  %6605 = vmatpush.msra.mxu0 0.0
  %v6606 = vand.u32 %v2556, 4294901760
  %6607 = vmatpush.msra.mxu0 %v6606
  %v6608 = vand.u32 %v2548, 4294901760
  %6609 = vmatpush.msra.mxu0 %v6608
  %v6610 = vand.u32 %v6309, 4294901760
  %v6611 = vsub.f32 %v6309, %v6610
  %v6612 = vand.u32 %v6611, 4294901760
  %6613 = vmatmul.f32.gmra.mxu0 %v6612
  %v6614 = vpop.f32.mrf.mxu0
  %v6615 = vadd.f32 %v6590, %v6614
  %6616 = vdwg.mxu0
  %6617 = vmatpush.msra.mxu0 0.0
  %6618 = vmatpush.msra.mxu0 0.0
  %6619 = vmatpush.msra.mxu0 0.0
  %6620 = vmatpush.msra.mxu0 0.0
  %6621 = vmatpush.msra.mxu0 0.0
  %6622 = vmatpush.msra.mxu0 0.0
  %6623 = vmatpush.msra.mxu0 0.0
  %6624 = vmatpush.msra.mxu0 0.0
  %6625 = vmatpush.msra.mxu0 0.0
  %6626 = vmatpush.msra.mxu0 0.0
  %6627 = vmatpush.msra.mxu0 0.0
  %6628 = vmatpush.msra.mxu0 0.0
  %6629 = vmatpush.msra.mxu0 0.0
  %6630 = vmatpush.msra.mxu0 0.0
  %v6631 = vand.u32 %v2556, 4294901760
  %v6632 = vsub.f32 %v2556, %v6631
  %v6633 = vand.u32 %v6632, 4294901760
  %6634 = vmatpush.msra.mxu0 %v6633
  %v6635 = vand.u32 %v2548, 4294901760
  %v6636 = vsub.f32 %v2548, %v6635
  %v6637 = vand.u32 %v6636, 4294901760
  %6638 = vmatpush.msra.mxu0 %v6637
  %v6639 = vand.u32 %v6309, 4294901760
  %6640 = vmatmul.f32.gmra.mxu0 %v6639
  %v6641 = vpop.f32.mrf.mxu0
  %v6642 = vadd.f32 %v6615, %v6641
  %6643 = vdwg.mxu0
  %6644 = vmatpush.msra.mxu0 0.0
  %6645 = vmatpush.msra.mxu0 0.0
  %6646 = vmatpush.msra.mxu0 0.0
  %6647 = vmatpush.msra.mxu0 0.0
  %6648 = vmatpush.msra.mxu0 0.0
  %6649 = vmatpush.msra.mxu0 0.0
  %6650 = vmatpush.msra.mxu0 0.0
  %6651 = vmatpush.msra.mxu0 0.0
  %6652 = vmatpush.msra.mxu0 0.0
  %6653 = vmatpush.msra.mxu0 0.0
  %6654 = vmatpush.msra.mxu0 0.0
  %6655 = vmatpush.msra.mxu0 0.0
  %6656 = vmatpush.msra.mxu0 0.0
  %6657 = vmatpush.msra.mxu0 0.0
  %v6658 = vand.u32 %v2556, 4294901760
  %6659 = vmatpush.msra.mxu0 %v6658
  %v6660 = vand.u32 %v2548, 4294901760
  %6661 = vmatpush.msra.mxu0 %v6660
  %v6662 = vand.u32 %v6309, 4294901760
  %6663 = vmatmul.f32.gmra.mxu0 %v6662
  %v6664 = vpop.f32.mrf.mxu0
  %v6665 = vadd.f32 %v6642, %v6664
  %6666 = vdwg.mxu0
  %v6667 = vadd.f32 %v2546, %v6665
  %v6668 = vxor.u32 %v6667, 2147483648
  %v6669 = vmul.f32 %v6668, 1.442695
  %v6670 = vpow.pop %v6669
  %v6671 = vadd.f32 %v6670, 1.0
  %v6672 = vrcp.pop %v6671
  %v6673 = vmul.f32 %v6671, %v6672
  %v6674 = vsub.f32 1.0, %v6673
  %v6675 = vmul.f32 %v6672, %v6674
  %v6676 = vadd.f32 %v6672, %v6675
  %vm6677 = vweird.f32 %v6671
  %vm6678 = vweird.f32 %v6672
  %vm6679 = vmor %vm6677, %vm6678
  %v6680 = vsel %vm6679, %v6672, %v6676
  %v6681 = vand.u32 2147483647, %v6671
  %vm6682 = vcmp.eq.f32.partialorder %v6681, 8.507059e+37
  %v6683 = vand.u32 %v6671, 2147483648
  %v6684 = vor.u32 1.1754944e-38, %v6683
  %v6685 = vsel %vm6682, %v6684, %v6680
  %v6686 = vmul.f32 1.0, %v6685
  %v6687 = vtanh.pop %v6667
  %v6688 = vmul.f32 %v6686, %v6135
  %6690 = vrot.lane.b32.xlu0 %v6687, 108
  %v6691 = vpop.permute.xlu0 %6690
  %v6693 = vmul.f32 %v6686, %v6691
  %6695 = vrot.lane.b32.xlu0 %v6693, 10
  %v6696 = vpop.permute.xlu0 %6695
  %v6698 = vadd.f32 %v6688, %v6696
  %v6699 = vtanh.pop %v6698
  %6701 = vrot.lane.b32.xlu0 %v6699, 20
  %v6702 = vpop.permute.xlu0 %6701
  %v6704 = vmul.f32 %v6686, %v6702
  %6706 = vrot.lane.b32.xlu0 %v6507, 98
  %v6707 = vpop.permute.xlu0 %6706
  %v6708 = vsel %vm2550, %v6707, 0
  %6710 = vmatpush.msra.mxu0 0.0
  %6711 = vmatpush.msra.mxu0 0.0
  %6712 = vmatpush.msra.mxu0 0.0
  %6713 = vmatpush.msra.mxu0 0.0
  %6714 = vmatpush.msra.mxu0 0.0
  %6715 = vmatpush.msra.mxu0 0.0
  %6716 = vmatpush.msra.mxu0 0.0
  %6717 = vmatpush.msra.mxu0 0.0
  %6718 = vmatpush.msra.mxu0 0.0
  %6719 = vmatpush.msra.mxu0 0.0
  %6720 = vmatpush.msra.mxu0 0.0
  %6721 = vmatpush.msra.mxu0 0.0
  %6722 = vmatpush.msra.mxu0 0.0
  %6723 = vmatpush.msra.mxu0 0.0
  %v6724 = vand.u32 %v2760, 4294901760
  %6725 = vmatpush.msra.mxu0 %v6724
  %v6726 = vand.u32 %v2757, 4294901760
  %6727 = vmatpush.msra.mxu0 %v6726
  %v6728 = vand.u32 %v6708, 4294901760
  %v6729 = vsub.f32 %v6708, %v6728
  %v6730 = vand.u32 %v6729, 4294901760
  %v6731 = vsub.f32 %v6729, %v6730
  %v6732 = vand.u32 %v6731, 4294901760
  %6733 = vmatmul.f32.gmra.mxu0 %v6732
  %v6734 = vpop.f32.mrf.mxu0
  %v6735 = vadd.f32 0.0, %v6734
  %6736 = vdwg.mxu0
  %6737 = vmatpush.msra.mxu0 0.0
  %6738 = vmatpush.msra.mxu0 0.0
  %6739 = vmatpush.msra.mxu0 0.0
  %6740 = vmatpush.msra.mxu0 0.0
  %6741 = vmatpush.msra.mxu0 0.0
  %6742 = vmatpush.msra.mxu0 0.0
  %6743 = vmatpush.msra.mxu0 0.0
  %6744 = vmatpush.msra.mxu0 0.0
  %6745 = vmatpush.msra.mxu0 0.0
  %6746 = vmatpush.msra.mxu0 0.0
  %6747 = vmatpush.msra.mxu0 0.0
  %6748 = vmatpush.msra.mxu0 0.0
  %6749 = vmatpush.msra.mxu0 0.0
  %6750 = vmatpush.msra.mxu0 0.0
  %v6751 = vand.u32 %v2760, 4294901760
  %v6752 = vsub.f32 %v2760, %v6751
  %v6753 = vand.u32 %v6752, 4294901760
  %v6754 = vsub.f32 %v6752, %v6753
  %v6755 = vand.u32 %v6754, 4294901760
  %6756 = vmatpush.msra.mxu0 %v6755
  %v6757 = vand.u32 %v2757, 4294901760
  %v6758 = vsub.f32 %v2757, %v6757
  %v6759 = vand.u32 %v6758, 4294901760
  %v6760 = vsub.f32 %v6758, %v6759
  %v6761 = vand.u32 %v6760, 4294901760
  %6762 = vmatpush.msra.mxu0 %v6761
  %v6763 = vand.u32 %v6708, 4294901760
  %6764 = vmatmul.f32.gmra.mxu0 %v6763
  %v6765 = vpop.f32.mrf.mxu0
  %v6766 = vadd.f32 %v6735, %v6765
  %6767 = vdwg.mxu0
  %6768 = vmatpush.msra.mxu0 0.0
  %6769 = vmatpush.msra.mxu0 0.0
  %6770 = vmatpush.msra.mxu0 0.0
  %6771 = vmatpush.msra.mxu0 0.0
  %6772 = vmatpush.msra.mxu0 0.0
  %6773 = vmatpush.msra.mxu0 0.0
  %6774 = vmatpush.msra.mxu0 0.0
  %6775 = vmatpush.msra.mxu0 0.0
  %6776 = vmatpush.msra.mxu0 0.0
  %6777 = vmatpush.msra.mxu0 0.0
  %6778 = vmatpush.msra.mxu0 0.0
  %6779 = vmatpush.msra.mxu0 0.0
  %6780 = vmatpush.msra.mxu0 0.0
  %6781 = vmatpush.msra.mxu0 0.0
  %v6782 = vand.u32 %v2760, 4294901760
  %v6783 = vsub.f32 %v2760, %v6782
  %6784 = vmatpush.msra.mxu0 %v6783
  %v6785 = vand.u32 %v2757, 4294901760
  %v6786 = vsub.f32 %v2757, %v6785
  %6787 = vmatpush.msra.mxu0 %v6786
  %v6788 = vand.u32 %v6708, 4294901760
  %v6789 = vsub.f32 %v6708, %v6788
  %6790 = vmatmul.f32.gmra.mxu0 %v6789
  %v6791 = vpop.f32.mrf.mxu0
  %v6792 = vadd.f32 %v6766, %v6791
  %6793 = vdwg.mxu0
  %6794 = vmatpush.msra.mxu0 0.0
  %6795 = vmatpush.msra.mxu0 0.0
  %6796 = vmatpush.msra.mxu0 0.0
  %6797 = vmatpush.msra.mxu0 0.0
  %6798 = vmatpush.msra.mxu0 0.0
  %6799 = vmatpush.msra.mxu0 0.0
  %6800 = vmatpush.msra.mxu0 0.0
  %6801 = vmatpush.msra.mxu0 0.0
  %6802 = vmatpush.msra.mxu0 0.0
  %6803 = vmatpush.msra.mxu0 0.0
  %6804 = vmatpush.msra.mxu0 0.0
  %6805 = vmatpush.msra.mxu0 0.0
  %6806 = vmatpush.msra.mxu0 0.0
  %6807 = vmatpush.msra.mxu0 0.0
  %v6808 = vand.u32 %v2760, 4294901760
  %6809 = vmatpush.msra.mxu0 %v6808
  %v6810 = vand.u32 %v2757, 4294901760
  %6811 = vmatpush.msra.mxu0 %v6810
  %v6812 = vand.u32 %v6708, 4294901760
  %v6813 = vsub.f32 %v6708, %v6812
  %v6814 = vand.u32 %v6813, 4294901760
  %6815 = vmatmul.f32.gmra.mxu0 %v6814
  %v6816 = vpop.f32.mrf.mxu0
  %v6817 = vadd.f32 %v6792, %v6816
  %6818 = vdwg.mxu0
  %6819 = vmatpush.msra.mxu0 0.0
  %6820 = vmatpush.msra.mxu0 0.0
  %6821 = vmatpush.msra.mxu0 0.0
  %6822 = vmatpush.msra.mxu0 0.0
  %6823 = vmatpush.msra.mxu0 0.0
  %6824 = vmatpush.msra.mxu0 0.0
  %6825 = vmatpush.msra.mxu0 0.0
  %6826 = vmatpush.msra.mxu0 0.0
  %6827 = vmatpush.msra.mxu0 0.0
  %6828 = vmatpush.msra.mxu0 0.0
  %6829 = vmatpush.msra.mxu0 0.0
  %6830 = vmatpush.msra.mxu0 0.0
  %6831 = vmatpush.msra.mxu0 0.0
  %6832 = vmatpush.msra.mxu0 0.0
  %v6833 = vand.u32 %v2760, 4294901760
  %v6834 = vsub.f32 %v2760, %v6833
  %v6835 = vand.u32 %v6834, 4294901760
  %6836 = vmatpush.msra.mxu0 %v6835
  %v6837 = vand.u32 %v2757, 4294901760
  %v6838 = vsub.f32 %v2757, %v6837
  %v6839 = vand.u32 %v6838, 4294901760
  %6840 = vmatpush.msra.mxu0 %v6839
  %v6841 = vand.u32 %v6708, 4294901760
  %6842 = vmatmul.f32.gmra.mxu0 %v6841
  %v6843 = vpop.f32.mrf.mxu0
  %v6844 = vadd.f32 %v6817, %v6843
  %6845 = vdwg.mxu0
  %6846 = vmatpush.msra.mxu0 0.0
  %6847 = vmatpush.msra.mxu0 0.0
  %6848 = vmatpush.msra.mxu0 0.0
  %6849 = vmatpush.msra.mxu0 0.0
  %6850 = vmatpush.msra.mxu0 0.0
  %6851 = vmatpush.msra.mxu0 0.0
  %6852 = vmatpush.msra.mxu0 0.0
  %6853 = vmatpush.msra.mxu0 0.0
  %6854 = vmatpush.msra.mxu0 0.0
  %6855 = vmatpush.msra.mxu0 0.0
  %6856 = vmatpush.msra.mxu0 0.0
  %6857 = vmatpush.msra.mxu0 0.0
  %6858 = vmatpush.msra.mxu0 0.0
  %6859 = vmatpush.msra.mxu0 0.0
  %v6860 = vand.u32 %v2760, 4294901760
  %6861 = vmatpush.msra.mxu0 %v6860
  %v6862 = vand.u32 %v2757, 4294901760
  %6863 = vmatpush.msra.mxu0 %v6862
  %v6864 = vand.u32 %v6708, 4294901760
  %6865 = vmatmul.f32.gmra.mxu0 %v6864
  %v6866 = vpop.f32.mrf.mxu0
  %v6867 = vadd.f32 %v6844, %v6866
  %6868 = vdwg.mxu0
  %6870 = vrot.lane.b32.xlu0 %v6704, 98
  %v6871 = vpop.permute.xlu0 %6870
  %v6872 = vsel %vm2550, %v6871, 0
  %6874 = vmatpush.msra.mxu0 0.0
  %6875 = vmatpush.msra.mxu0 0.0
  %6876 = vmatpush.msra.mxu0 0.0
  %6877 = vmatpush.msra.mxu0 0.0
  %6878 = vmatpush.msra.mxu0 0.0
  %6879 = vmatpush.msra.mxu0 0.0
  %6880 = vmatpush.msra.mxu0 0.0
  %6881 = vmatpush.msra.mxu0 0.0
  %6882 = vmatpush.msra.mxu0 0.0
  %6883 = vmatpush.msra.mxu0 0.0
  %6884 = vmatpush.msra.mxu0 0.0
  %6885 = vmatpush.msra.mxu0 0.0
  %6886 = vmatpush.msra.mxu0 0.0
  %6887 = vmatpush.msra.mxu0 0.0
  %v6888 = vand.u32 %v2927, 4294901760
  %6889 = vmatpush.msra.mxu0 %v6888
  %v6890 = vand.u32 %v2755, 4294901760
  %6891 = vmatpush.msra.mxu0 %v6890
  %v6892 = vand.u32 %v6872, 4294901760
  %v6893 = vsub.f32 %v6872, %v6892
  %v6894 = vand.u32 %v6893, 4294901760
  %v6895 = vsub.f32 %v6893, %v6894
  %v6896 = vand.u32 %v6895, 4294901760
  %6897 = vmatmul.f32.gmra.mxu0 %v6896
  %v6898 = vpop.f32.mrf.mxu0
  %v6899 = vadd.f32 %v6867, %v6898
  %6900 = vdwg.mxu0
  %6901 = vmatpush.msra.mxu0 0.0
  %6902 = vmatpush.msra.mxu0 0.0
  %6903 = vmatpush.msra.mxu0 0.0
  %6904 = vmatpush.msra.mxu0 0.0
  %6905 = vmatpush.msra.mxu0 0.0
  %6906 = vmatpush.msra.mxu0 0.0
  %6907 = vmatpush.msra.mxu0 0.0
  %6908 = vmatpush.msra.mxu0 0.0
  %6909 = vmatpush.msra.mxu0 0.0
  %6910 = vmatpush.msra.mxu0 0.0
  %6911 = vmatpush.msra.mxu0 0.0
  %6912 = vmatpush.msra.mxu0 0.0
  %6913 = vmatpush.msra.mxu0 0.0
  %6914 = vmatpush.msra.mxu0 0.0
  %v6915 = vand.u32 %v2927, 4294901760
  %v6916 = vsub.f32 %v2927, %v6915
  %v6917 = vand.u32 %v6916, 4294901760
  %v6918 = vsub.f32 %v6916, %v6917
  %v6919 = vand.u32 %v6918, 4294901760
  %6920 = vmatpush.msra.mxu0 %v6919
  %v6921 = vand.u32 %v2755, 4294901760
  %v6922 = vsub.f32 %v2755, %v6921
  %v6923 = vand.u32 %v6922, 4294901760
  %v6924 = vsub.f32 %v6922, %v6923
  %v6925 = vand.u32 %v6924, 4294901760
  %6926 = vmatpush.msra.mxu0 %v6925
  %v6927 = vand.u32 %v6872, 4294901760
  %6928 = vmatmul.f32.gmra.mxu0 %v6927
  %v6929 = vpop.f32.mrf.mxu0
  %v6930 = vadd.f32 %v6899, %v6929
  %6931 = vdwg.mxu0
  %6932 = vmatpush.msra.mxu0 0.0
  %6933 = vmatpush.msra.mxu0 0.0
  %6934 = vmatpush.msra.mxu0 0.0
  %6935 = vmatpush.msra.mxu0 0.0
  %6936 = vmatpush.msra.mxu0 0.0
  %6937 = vmatpush.msra.mxu0 0.0
  %6938 = vmatpush.msra.mxu0 0.0
  %6939 = vmatpush.msra.mxu0 0.0
  %6940 = vmatpush.msra.mxu0 0.0
  %6941 = vmatpush.msra.mxu0 0.0
  %6942 = vmatpush.msra.mxu0 0.0
  %6943 = vmatpush.msra.mxu0 0.0
  %6944 = vmatpush.msra.mxu0 0.0
  %6945 = vmatpush.msra.mxu0 0.0
  %v6946 = vand.u32 %v2927, 4294901760
  %v6947 = vsub.f32 %v2927, %v6946
  %6948 = vmatpush.msra.mxu0 %v6947
  %v6949 = vand.u32 %v2755, 4294901760
  %v6950 = vsub.f32 %v2755, %v6949
  %6951 = vmatpush.msra.mxu0 %v6950
  %v6952 = vand.u32 %v6872, 4294901760
  %v6953 = vsub.f32 %v6872, %v6952
  %6954 = vmatmul.f32.gmra.mxu0 %v6953
  %v6955 = vpop.f32.mrf.mxu0
  %v6956 = vadd.f32 %v6930, %v6955
  %6957 = vdwg.mxu0
  %6958 = vmatpush.msra.mxu0 0.0
  %6959 = vmatpush.msra.mxu0 0.0
  %6960 = vmatpush.msra.mxu0 0.0
  %6961 = vmatpush.msra.mxu0 0.0
  %6962 = vmatpush.msra.mxu0 0.0
  %6963 = vmatpush.msra.mxu0 0.0
  %6964 = vmatpush.msra.mxu0 0.0
  %6965 = vmatpush.msra.mxu0 0.0
  %6966 = vmatpush.msra.mxu0 0.0
  %6967 = vmatpush.msra.mxu0 0.0
  %6968 = vmatpush.msra.mxu0 0.0
  %6969 = vmatpush.msra.mxu0 0.0
  %6970 = vmatpush.msra.mxu0 0.0
  %6971 = vmatpush.msra.mxu0 0.0
  %v6972 = vand.u32 %v2927, 4294901760
  %6973 = vmatpush.msra.mxu0 %v6972
  %v6974 = vand.u32 %v2755, 4294901760
  %6975 = vmatpush.msra.mxu0 %v6974
  %v6976 = vand.u32 %v6872, 4294901760
  %v6977 = vsub.f32 %v6872, %v6976
  %v6978 = vand.u32 %v6977, 4294901760
  %6979 = vmatmul.f32.gmra.mxu0 %v6978
  %v6980 = vpop.f32.mrf.mxu0
  %v6981 = vadd.f32 %v6956, %v6980
  %6982 = vdwg.mxu0
  %6983 = vmatpush.msra.mxu0 0.0
  %6984 = vmatpush.msra.mxu0 0.0
  %6985 = vmatpush.msra.mxu0 0.0
  %6986 = vmatpush.msra.mxu0 0.0
  %6987 = vmatpush.msra.mxu0 0.0
  %6988 = vmatpush.msra.mxu0 0.0
  %6989 = vmatpush.msra.mxu0 0.0
  %6990 = vmatpush.msra.mxu0 0.0
  %6991 = vmatpush.msra.mxu0 0.0
  %6992 = vmatpush.msra.mxu0 0.0
  %6993 = vmatpush.msra.mxu0 0.0
  %6994 = vmatpush.msra.mxu0 0.0
  %6995 = vmatpush.msra.mxu0 0.0
  %6996 = vmatpush.msra.mxu0 0.0
  %v6997 = vand.u32 %v2927, 4294901760
  %v6998 = vsub.f32 %v2927, %v6997
  %v6999 = vand.u32 %v6998, 4294901760
  %7000 = vmatpush.msra.mxu0 %v6999
  %v7001 = vand.u32 %v2755, 4294901760
  %v7002 = vsub.f32 %v2755, %v7001
  %v7003 = vand.u32 %v7002, 4294901760
  %7004 = vmatpush.msra.mxu0 %v7003
  %v7005 = vand.u32 %v6872, 4294901760
  %7006 = vmatmul.f32.gmra.mxu0 %v7005
  %v7007 = vpop.f32.mrf.mxu0
  %v7008 = vadd.f32 %v6981, %v7007
  %7009 = vdwg.mxu0
  %7010 = vmatpush.msra.mxu0 0.0
  %7011 = vmatpush.msra.mxu0 0.0
  %7012 = vmatpush.msra.mxu0 0.0
  %7013 = vmatpush.msra.mxu0 0.0
  %7014 = vmatpush.msra.mxu0 0.0
  %7015 = vmatpush.msra.mxu0 0.0
  %7016 = vmatpush.msra.mxu0 0.0
  %7017 = vmatpush.msra.mxu0 0.0
  %7018 = vmatpush.msra.mxu0 0.0
  %7019 = vmatpush.msra.mxu0 0.0
  %7020 = vmatpush.msra.mxu0 0.0
  %7021 = vmatpush.msra.mxu0 0.0
  %7022 = vmatpush.msra.mxu0 0.0
  %7023 = vmatpush.msra.mxu0 0.0
  %v7024 = vand.u32 %v2927, 4294901760
  %7025 = vmatpush.msra.mxu0 %v7024
  %v7026 = vand.u32 %v2755, 4294901760
  %7027 = vmatpush.msra.mxu0 %v7026
  %v7028 = vand.u32 %v6872, 4294901760
  %7029 = vmatmul.f32.gmra.mxu0 %v7028
  %v7030 = vpop.f32.mrf.mxu0
  %v7031 = vadd.f32 %v7008, %v7030
  %7032 = vdwg.mxu0
  %v7033 = vadd.f32 %v7031, %v3090
  %v7034 = vxor.u32 %v7033, 2147483648
  %v7035 = vmul.f32 %v7034, 1.442695
  %v7036 = vpow.pop %v7035
  %v7037 = vadd.f32 %v7036, 1.0
  %v7038 = vrcp.pop %v7037
  %v7039 = vmul.f32 %v7037, %v7038
  %v7040 = vsub.f32 1.0, %v7039
  %v7041 = vmul.f32 %v7038, %v7040
  %v7042 = vadd.f32 %v7038, %v7041
  %vm7043 = vweird.f32 %v7037
  %vm7044 = vweird.f32 %v7038
  %vm7045 = vmor %vm7043, %vm7044
  %v7046 = vsel %vm7045, %v7038, %v7042
  %v7047 = vand.u32 2147483647, %v7037
  %vm7048 = vcmp.eq.f32.partialorder %v7047, 8.507059e+37
  %v7049 = vand.u32 %v7037, 2147483648
  %v7050 = vor.u32 1.1754944e-38, %v7049
  %v7051 = vsel %vm7048, %v7050, %v7046
  %v7052 = vmul.f32 1.0, %v7051
  %v7053 = vtanh.pop %v7033
  %v7054 = vmul.f32 %v7052, %v6501
  %7056 = vrot.lane.b32.xlu0 %v7053, 108
  %v7057 = vpop.permute.xlu0 %7056
  %v7059 = vmul.f32 %v7052, %v7057
  %7061 = vrot.lane.b32.xlu0 %v7059, 10
  %v7062 = vpop.permute.xlu0 %7061
  %v7064 = vadd.f32 %v7054, %v7062
  %v7065 = vtanh.pop %v7064
  %7067 = vrot.lane.b32.xlu0 %v7065, 20
  %v7068 = vpop.permute.xlu0 %7067
  %v7070 = vmul.f32 %v7052, %v7068
  %v7071 = vld [vmem:[%s10] sm:$0xff]
  %v7072 = vld [vmem:[%s10 + $0x8] sm:$0x3]
  %v7073 = vld [vmem:[%s11] sm:$0x1]
  %v7075 = vperm.slane %v7073, 0
  %7078 = vrot.lane.b32.xlu0 %v7070, 98
  %v7079 = vpop.permute.xlu0 %7078
  %v7080 = vsel %vm2550, %v7079, 0
  %v7083 = vsel %vm2554, %v7072, 0
  %7085 = vmatpush.msra.mxu0 0.0
  %7086 = vmatpush.msra.mxu0 0.0
  %7087 = vmatpush.msra.mxu0 0.0
  %7088 = vmatpush.msra.mxu0 0.0
  %7089 = vmatpush.msra.mxu0 0.0
  %7090 = vmatpush.msra.mxu0 0.0
  %7091 = vmatpush.msra.mxu0 0.0
  %7092 = vmatpush.msra.mxu0 0.0
  %7093 = vmatpush.msra.mxu0 0.0
  %7094 = vmatpush.msra.mxu0 0.0
  %7095 = vmatpush.msra.mxu0 0.0
  %7096 = vmatpush.msra.mxu0 0.0
  %7097 = vmatpush.msra.mxu0 0.0
  %7098 = vmatpush.msra.mxu0 0.0
  %v7099 = vand.u32 %v7083, 4294901760
  %7100 = vmatpush.msra.mxu0 %v7099
  %v7101 = vand.u32 %v7071, 4294901760
  %7102 = vmatpush.msra.mxu0 %v7101
  %v7103 = vand.u32 %v7080, 4294901760
  %v7104 = vsub.f32 %v7080, %v7103
  %v7105 = vand.u32 %v7104, 4294901760
  %v7106 = vsub.f32 %v7104, %v7105
  %v7107 = vand.u32 %v7106, 4294901760
  %7108 = vmatmul.f32.gmra.mxu0 %v7107
  %v7109 = vpop.f32.mrf.mxu0
  %v7110 = vadd.f32 %v7075, %v7109
  %7111 = vdwg.mxu0
  %7112 = vmatpush.msra.mxu0 0.0
  %7113 = vmatpush.msra.mxu0 0.0
  %7114 = vmatpush.msra.mxu0 0.0
  %7115 = vmatpush.msra.mxu0 0.0
  %7116 = vmatpush.msra.mxu0 0.0
  %7117 = vmatpush.msra.mxu0 0.0
  %7118 = vmatpush.msra.mxu0 0.0
  %7119 = vmatpush.msra.mxu0 0.0
  %7120 = vmatpush.msra.mxu0 0.0
  %7121 = vmatpush.msra.mxu0 0.0
  %7122 = vmatpush.msra.mxu0 0.0
  %7123 = vmatpush.msra.mxu0 0.0
  %7124 = vmatpush.msra.mxu0 0.0
  %7125 = vmatpush.msra.mxu0 0.0
  %v7126 = vand.u32 %v7083, 4294901760
  %v7127 = vsub.f32 %v7083, %v7126
  %v7128 = vand.u32 %v7127, 4294901760
  %v7129 = vsub.f32 %v7127, %v7128
  %v7130 = vand.u32 %v7129, 4294901760
  %7131 = vmatpush.msra.mxu0 %v7130
  %v7132 = vand.u32 %v7071, 4294901760
  %v7133 = vsub.f32 %v7071, %v7132
  %v7134 = vand.u32 %v7133, 4294901760
  %v7135 = vsub.f32 %v7133, %v7134
  %v7136 = vand.u32 %v7135, 4294901760
  %7137 = vmatpush.msra.mxu0 %v7136
  %v7138 = vand.u32 %v7080, 4294901760
  %7139 = vmatmul.f32.gmra.mxu0 %v7138
  %v7140 = vpop.f32.mrf.mxu0
  %v7141 = vadd.f32 %v7110, %v7140
  %7142 = vdwg.mxu0
  %7143 = vmatpush.msra.mxu0 0.0
  %7144 = vmatpush.msra.mxu0 0.0
  %7145 = vmatpush.msra.mxu0 0.0
  %7146 = vmatpush.msra.mxu0 0.0
  %7147 = vmatpush.msra.mxu0 0.0
  %7148 = vmatpush.msra.mxu0 0.0
  %7149 = vmatpush.msra.mxu0 0.0
  %7150 = vmatpush.msra.mxu0 0.0
  %7151 = vmatpush.msra.mxu0 0.0
  %7152 = vmatpush.msra.mxu0 0.0
  %7153 = vmatpush.msra.mxu0 0.0
  %7154 = vmatpush.msra.mxu0 0.0
  %7155 = vmatpush.msra.mxu0 0.0
  %7156 = vmatpush.msra.mxu0 0.0
  %v7157 = vand.u32 %v7083, 4294901760
  %v7158 = vsub.f32 %v7083, %v7157
  %7159 = vmatpush.msra.mxu0 %v7158
  %v7160 = vand.u32 %v7071, 4294901760
  %v7161 = vsub.f32 %v7071, %v7160
  %7162 = vmatpush.msra.mxu0 %v7161
  %v7163 = vand.u32 %v7080, 4294901760
  %v7164 = vsub.f32 %v7080, %v7163
  %7165 = vmatmul.f32.gmra.mxu0 %v7164
  %v7166 = vpop.f32.mrf.mxu0
  %v7167 = vadd.f32 %v7141, %v7166
  %7168 = vdwg.mxu0
  %7169 = vmatpush.msra.mxu0 0.0
  %7170 = vmatpush.msra.mxu0 0.0
  %7171 = vmatpush.msra.mxu0 0.0
  %7172 = vmatpush.msra.mxu0 0.0
  %7173 = vmatpush.msra.mxu0 0.0
  %7174 = vmatpush.msra.mxu0 0.0
  %7175 = vmatpush.msra.mxu0 0.0
  %7176 = vmatpush.msra.mxu0 0.0
  %7177 = vmatpush.msra.mxu0 0.0
  %7178 = vmatpush.msra.mxu0 0.0
  %7179 = vmatpush.msra.mxu0 0.0
  %7180 = vmatpush.msra.mxu0 0.0
  %7181 = vmatpush.msra.mxu0 0.0
  %7182 = vmatpush.msra.mxu0 0.0
  %v7183 = vand.u32 %v7083, 4294901760
  %7184 = vmatpush.msra.mxu0 %v7183
  %v7185 = vand.u32 %v7071, 4294901760
  %7186 = vmatpush.msra.mxu0 %v7185
  %v7187 = vand.u32 %v7080, 4294901760
  %v7188 = vsub.f32 %v7080, %v7187
  %v7189 = vand.u32 %v7188, 4294901760
  %7190 = vmatmul.f32.gmra.mxu0 %v7189
  %v7191 = vpop.f32.mrf.mxu0
  %v7192 = vadd.f32 %v7167, %v7191
  %7193 = vdwg.mxu0
  %7194 = vmatpush.msra.mxu0 0.0
  %7195 = vmatpush.msra.mxu0 0.0
  %7196 = vmatpush.msra.mxu0 0.0
  %7197 = vmatpush.msra.mxu0 0.0
  %7198 = vmatpush.msra.mxu0 0.0
  %7199 = vmatpush.msra.mxu0 0.0
  %7200 = vmatpush.msra.mxu0 0.0
  %7201 = vmatpush.msra.mxu0 0.0
  %7202 = vmatpush.msra.mxu0 0.0
  %7203 = vmatpush.msra.mxu0 0.0
  %7204 = vmatpush.msra.mxu0 0.0
  %7205 = vmatpush.msra.mxu0 0.0
  %7206 = vmatpush.msra.mxu0 0.0
  %7207 = vmatpush.msra.mxu0 0.0
  %v7208 = vand.u32 %v7083, 4294901760
  %v7209 = vsub.f32 %v7083, %v7208
  %v7210 = vand.u32 %v7209, 4294901760
  %7211 = vmatpush.msra.mxu0 %v7210
  %v7212 = vand.u32 %v7071, 4294901760
  %v7213 = vsub.f32 %v7071, %v7212
  %v7214 = vand.u32 %v7213, 4294901760
  %7215 = vmatpush.msra.mxu0 %v7214
  %v7216 = vand.u32 %v7080, 4294901760
  %7217 = vmatmul.f32.gmra.mxu0 %v7216
  %v7218 = vpop.f32.mrf.mxu0
  %v7219 = vadd.f32 %v7192, %v7218
  %7220 = vdwg.mxu0
  %7221 = vmatpush.msra.mxu0 0.0
  %7222 = vmatpush.msra.mxu0 0.0
  %7223 = vmatpush.msra.mxu0 0.0
  %7224 = vmatpush.msra.mxu0 0.0
  %7225 = vmatpush.msra.mxu0 0.0
  %7226 = vmatpush.msra.mxu0 0.0
  %7227 = vmatpush.msra.mxu0 0.0
  %7228 = vmatpush.msra.mxu0 0.0
  %7229 = vmatpush.msra.mxu0 0.0
  %7230 = vmatpush.msra.mxu0 0.0
  %7231 = vmatpush.msra.mxu0 0.0
  %7232 = vmatpush.msra.mxu0 0.0
  %7233 = vmatpush.msra.mxu0 0.0
  %7234 = vmatpush.msra.mxu0 0.0
  %v7235 = vand.u32 %v7083, 4294901760
  %7236 = vmatpush.msra.mxu0 %v7235
  %v7237 = vand.u32 %v7071, 4294901760
  %7238 = vmatpush.msra.mxu0 %v7237
  %v7239 = vand.u32 %v7080, 4294901760
  %7240 = vmatmul.f32.gmra.mxu0 %v7239
  %v7241 = vpop.f32.mrf.mxu0
  %v7242 = vadd.f32 %v7219, %v7241
  %7243 = vdwg.mxu0
  %vm7244 = vcmask 15360
  %7245 = vst.msk [vmem:[%s12] sm:$0xff] %vm7244, %v7242
  // Predicated region
  $region50: #{conv_lstm_forward.1} parent=0 // pred_check
    _
  $region51: #{conv_lstm_forward.1} parent=0 // pred_check_branch
    %7247 = sbr.rel (0) target = $region53
  $region52: #{conv_lstm_forward.1} parent=0 // pred_region
    _
  $region53: #{conv_lstm_forward.1} parent=0 // pred_fallthru
    _
  // Predicated region
  $region54: #{conv_lstm_forward.1} parent=0 // pred_check
    _
  $region55: #{conv_lstm_forward.1} parent=0 // pred_check_branch
    %7249 = sbr.rel (0) target = $region57
  $region56: #{conv_lstm_forward.1} parent=0 // pred_region
    _
  $region57: #{conv_lstm_forward.1} parent=0 // pred_fallthru
    _

</llo_original>
